<compile_context>
chip_gen: v7x
topology: tpu7x:2x2x1
jax: 0.10.0
libtpu: 0.0.40
codegen_flags: <defaults>
</compile_context>

<pallas_src>
import functools

import jax
import jax.numpy as jnp
from jax import lax
from jax.experimental import pallas as pl
from jax.experimental.pallas import tpu as pltpu


# ----------------------------------------------------------------------------
# Kernel 1: fused encoder (patch linear + ReLU + mean pool, geo MLP, mem proj)
# ----------------------------------------------------------------------------
def _encoder_kernel(patches_ref, geo_ref,
                    w_img_ref, b_img_ref,
                    gw1_ref, gb1_ref, gw2_ref, gb2_ref,
                    wm_img_ref, wm_geo_ref, bm_ref,
                    mem_ref):
    inv_p = 1.0 / patches_ref.shape[1]

    # Patch encoder: (P, K) @ (K, D_img) -> ReLU -> mean over patches.
    pb = patches_ref[0].astype(jnp.bfloat16)                       # (P, K)
    hb = jnp.dot(pb, w_img_ref[...],
                 preferred_element_type=jnp.float32) + b_img_ref[...]
    hb = jnp.maximum(hb, 0.0)
    img = jnp.sum(hb, axis=0, keepdims=True) * inv_p               # (1, D_img)

    # Geo-temporal encoder: 2-layer MLP.
    g = geo_ref[0].astype(jnp.bfloat16)                            # (1, G)
    g1 = jnp.maximum(
        jnp.dot(g, gw1_ref[...], preferred_element_type=jnp.float32)
        + gb1_ref[...], 0.0)
    g2 = jnp.maximum(
        jnp.dot(g1.astype(jnp.bfloat16), gw2_ref[...],
                preferred_element_type=jnp.float32) + gb2_ref[...], 0.0)

    # Memory projection of concat([img, geo]) done as a split matmul.
    mem = (jnp.dot(img.astype(jnp.bfloat16), wm_img_ref[...],
                   preferred_element_type=jnp.float32)
           + jnp.dot(g2.astype(jnp.bfloat16), wm_geo_ref[...],
                     preferred_element_type=jnp.float32)
           + bm_ref[...])
    mem_ref[0] = mem                                               # (1, H)


# ----------------------------------------------------------------------------
# Kernel 2: fused transformer-decoder depth-marker predictor
# ----------------------------------------------------------------------------
def _predictor_kernel(mem_ref, qe_ref,
                      wq_ref, bq_ref, wk_ref, bk_ref, wv_ref, bv_ref,
                      wo_ref, bo_ref,
                      w1_ref, b1_ref, w2_ref, b2_ref,
                      lng_ref, lnb_ref,
                      wout_ref, bout_ref,
                      out_ref,
                      *, num_layers, num_heads, eps):
    S, H = qe_ref.shape
    Dh = wq_ref.shape[-1]
    scale = 1.0 / float(Dh) ** 0.5
    L, nh = num_layers, num_heads

    def mm(a, w):
        # bf16 MXU matmul with f32 accumulation.
        return jnp.dot(a.astype(jnp.bfloat16), w.astype(jnp.bfloat16),
                       preferred_element_type=jnp.float32)

    def layer_norm(y, idx):
        mu = jnp.mean(y, axis=-1, keepdims=True)
        var = jnp.mean((y - mu) ** 2, axis=-1, keepdims=True)
        return (y - mu) * lax.rsqrt(var + eps) * lng_ref[idx] + lnb_ref[idx]

    def softmax_rows(s):
        m = jnp.max(s, axis=-1, keepdims=True)
        p = jnp.exp(s - m)
        return p * pl.reciprocal(jnp.sum(p, axis=-1, keepdims=True), approx=True)

    def mha(x_q, x_kv, kind, l):
        # kind: 0 = self-attention, 1 = cross-attention.
        sq, skv = x_q.shape[0], x_kv.shape[0]
        acc = jnp.zeros((sq, H), jnp.float32)
        for h in range(nh):               # static loop: all heads in one kernel
            a = (kind * L + l) * nh + h
            v = mm(x_kv, wv_ref[a]) + bv_ref[a]                     # (Skv, Dh)
            if skv == 1:
                # Single memory token: softmax over one key is exactly 1,
                # so the attention output equals v for every query.
                o = jnp.broadcast_to(v, (sq, Dh))
            else:
                q = mm(x_q, wq_ref[a]) + bq_ref[a]                  # (Sq, Dh)
                k = mm(x_kv, wk_ref[a]) + bk_ref[a]                 # (Skv, Dh)
                s = lax.dot_general(
                    q.astype(jnp.bfloat16), k.astype(jnp.bfloat16),
                    dimension_numbers=(((1,), (1,)), ((), ())),
                    preferred_element_type=jnp.float32) * scale     # (Sq, Skv)
                p = softmax_rows(s)
                o = mm(p, v)                                        # (Sq, Dh)
            acc = acc + mm(o, wo_ref[a])                            # (Sq, H)
        return acc + bo_ref[kind * L + l]

    x = qe_ref[...]                        # (S, H) learned query embeddings
    mem = mem_ref[0]                       # (1, H) fused image/geo vector
    for l in range(L):                     # static loop over decoder layers
        x = layer_norm(x + mha(x, x, 0, l), l * 3 + 0)      # self-attn + LN
        x = layer_norm(x + mha(x, mem, 1, l), l * 3 + 1)    # cross-attn + LN
        hdd = jnp.maximum(mm(x, w1_ref[l]) + b1_ref[l], 0.0)
        x = layer_norm(x + mm(hdd, w2_ref[l]) + b2_ref[l], l * 3 + 2)

    out = jnp.dot(x, wout_ref[...],
                  preferred_element_type=jnp.float32) + bout_ref[...]
    out_ref[0] = out                       # (S, 1)


# ----------------------------------------------------------------------------
# Wrappers
# ----------------------------------------------------------------------------
def _full_spec(arr):
    rank = arr.ndim
    return pl.BlockSpec(arr.shape, lambda b, rank=rank: (0,) * rank)


def encode(patches, geo3, p):
    B, P, K = patches.shape
    H = p["bm"].shape[-1]
    G = geo3.shape[-1]
    weights = (p["w_img"], p["b_img"], p["gw1"], p["gb1"], p["gw2"], p["gb2"],
               p["wm_img"], p["wm_geo"], p["bm"])
    in_specs = [pl.BlockSpec((1, P, K), lambda b: (b, 0, 0)),
                pl.BlockSpec((1, 1, G), lambda b: (b, 0, 0))]
    in_specs += [_full_spec(w) for w in weights]
    return pl.pallas_call(
        _encoder_kernel,
        out_shape=jax.ShapeDtypeStruct((B, 1, H), jnp.float32),
        grid=(B,),
        in_specs=in_specs,
        out_specs=pl.BlockSpec((1, 1, H), lambda b: (b, 0, 0)),
        compiler_params=pltpu.CompilerParams(
            dimension_semantics=("parallel",)),
    )(patches, geo3, *weights)


def predict_depth_markers(mem, p):
    B = mem.shape[0]
    S, H = p["query_embed"].shape
    weights = (p["query_embed"],
               p["wq"], p["bq"], p["wk"], p["bk"], p["wv"], p["bv"],
               p["wo"], p["bo"],
               p["w1"], p["b1"], p["w2"], p["b2"],
               p["ln_g"], p["ln_b"],
               p["w_out"], p["b_out"])
    in_specs = [pl.BlockSpec((1, 1, H), lambda b: (b, 0, 0))]
    in_specs += [_full_spec(w) for w in weights]
    kernel = functools.partial(_predictor_kernel,
                               num_layers=p["num_layers"],
                               num_heads=p["num_heads"],
                               eps=1e-5)
    out = pl.pallas_call(
        kernel,
        out_shape=jax.ShapeDtypeStruct((B, S, 1), jnp.float32),
        grid=(B,),
        in_specs=in_specs,
        out_specs=pl.BlockSpec((1, S, 1), lambda b: (b, 0, 0)),
        compiler_params=pltpu.CompilerParams(
            dimension_semantics=("parallel",)),
    )(mem, *weights)
    return out.reshape(B, S)


def simple_depth_model_cross_attention(images, geo_temp, params):
    # Plain-JAX layout plumbing only; all compute happens in the two kernels.
    B, C, Hi, Wi = images.shape
    ps = params["patch_size"]
    nph, npw = Hi // ps, Wi // ps
    patches = (images.reshape(B, C, nph, ps, npw, ps)
                     .transpose(0, 2, 4, 1, 3, 5)
                     .reshape(B, nph * npw, C * ps * ps))
    geo3 = geo_temp.reshape(B, 1, geo_temp.shape[-1])
    mem = encode(patches, geo3, params)                     # (B, 1, hidden)
    return predict_depth_markers(mem, params)               # (B, max_seq_len)


# ----------------------------------------------------------------------------
# Deterministic parameter init (weights already in kernel-friendly packed
# layout: per-head/per-layer stacks with a leading index axis, bf16 matmul
# weights, (1, N)-shaped biases — no per-forward reshapes/casts).
# ----------------------------------------------------------------------------
def init_params(key, *, in_channels, patch_size, image_dim, geo_in, geo_dim,
                hidden, num_heads, num_layers, max_seq_len, ff_dim):
    L, nh = num_layers, num_heads
    dh = hidden // nh
    ks = jax.random.split(key, 32)

    def w(k, shape, fan_in, dtype=jnp.bfloat16):
        return (jax.random.normal(k, shape, jnp.float32)
                / jnp.sqrt(jnp.float32(fan_in))).astype(dtype)

    def bias(k, shape):
        return jax.random.normal(k, shape, jnp.float32) * 0.01

    patch_k = in_channels * patch_size * patch_size
    return dict(
        patch_size=patch_size, num_heads=nh, num_layers=L,
        max_seq_len=max_seq_len,
        # image encoder
        w_img=w(ks[0], (patch_k, image_dim), patch_k),
        b_img=bias(ks[1], (1, image_dim)),
        # geo-temporal encoder
        gw1=w(ks[2], (geo_in, 2 * geo_dim), geo_in),
        gb1=bias(ks[3], (1, 2 * geo_dim)),
        gw2=w(ks[4], (2 * geo_dim, geo_dim), 2 * geo_dim),
        gb2=bias(ks[5], (1, geo_dim)),
        # memory projection (split = concat([img, geo]) @ w_mem)
        wm_img=w(ks[6], (image_dim, hidden), image_dim + geo_dim),
        wm_geo=w(ks[7], (geo_dim, hidden), image_dim + geo_dim),
        bm=bias(ks[8], (1, hidden)),
        # decoder: attention weights stacked as [self layers..., cross layers...]
        # with per-head leading index a = (kind*L + l)*nh + h
        query_embed=jax.random.normal(ks[9], (max_seq_len, hidden),
                                      jnp.float32) * 0.02,
        wq=w(ks[10], (2 * L * nh, hidden, dh), hidden),
        bq=bias(ks[11], (2 * L * nh, 1, dh)),
        wk=w(ks[12], (2 * L * nh, hidden, dh), hidden),
        bk=bias(ks[13], (2 * L * nh, 1, dh)),
        wv=w(ks[14], (2 * L * nh, hidden, dh), hidden),
        bv=bias(ks[15], (2 * L * nh, 1, dh)),
        wo=w(ks[16], (2 * L * nh, dh, hidden), hidden),
        bo=bias(ks[17], (2 * L, 1, hidden)),
        # FFN (leading layer index)
        w1=w(ks[18], (L, hidden, ff_dim), hidden),
        b1=bias(ks[19], (L, 1, ff_dim)),
        w2=w(ks[20], (L, ff_dim, hidden), ff_dim),
        b2=bias(ks[21], (L, 1, hidden)),
        # LayerNorms (index = l*3 + {0:post-self, 1:post-cross, 2:post-ffn})
        ln_g=jnp.ones((3 * L, 1, hidden), jnp.float32),
        ln_b=jnp.zeros((3 * L, 1, hidden), jnp.float32),
        # output head
        w_out=w(ks[22], (hidden, 1), hidden, dtype=jnp.float32),
        b_out=bias(ks[23], (1, 1)),
    )


# ----------------------------------------------------------------------------
if __name__ == "__main__":
    B, C, H, W = 2, 3, 16, 16
    GEO_IN, GEO_DIM = 8, 16
    IMG_DIM = 64
    HIDDEN, HEADS, LAYERS = 32, 4, 2
    MAX_SEQ = 8
    PATCH = 8
    FF_DIM = 4 * HIDDEN

    key = jax.random.PRNGKey(0)
    k_img, k_geo = jax.random.split(key)
    images = jax.random.normal(k_img, (B, C, H, W), jnp.float32)
    geo_temp = jax.random.normal(k_geo, (B, GEO_IN), jnp.float32)

    params = init_params(
        jax.random.PRNGKey(42),
        in_channels=C, patch_size=PATCH, image_dim=IMG_DIM,
        geo_in=GEO_IN, geo_dim=GEO_DIM, hidden=HIDDEN,
        num_heads=HEADS, num_layers=LAYERS, max_seq_len=MAX_SEQ,
        ff_dim=FF_DIM)

    fwd = jax.jit(lambda im, gt: simple_depth_model_cross_attention(im, gt, params))
    depth_markers = jax.block_until_ready(fwd(images, geo_temp))

    assert depth_markers.shape == (B, MAX_SEQ)
    assert bool(jnp.all(jnp.isfinite(depth_markers)))
    # TODO(synk): exact submodule internals (PatchCNNEncoder / GeoTemporalEncoder /
    # CrossAttentionTransformerDepthMarkerPredictor) were not given in the source;
    # canonical architectures were reconstructed from constructor signatures
    # (dropout omitted = eval mode).
    print("KERNEL_OK")
</pallas_src>

<mosaic_0001>
module attributes {stable_mosaic.version = 11 : i64} {
  func.func @_encoder_kernel(%arg0: i32, %arg1: memref<1x4x192xf32, #tpu.memory_space<vmem>>, %arg2: memref<1x1x8xf32, #tpu.memory_space<vmem>>, %arg3: memref<192x64xbf16, #tpu.memory_space<vmem>>, %arg4: memref<1x64xf32, #tpu.memory_space<vmem>>, %arg5: memref<8x32xbf16, #tpu.memory_space<vmem>>, %arg6: memref<1x32xf32, #tpu.memory_space<vmem>>, %arg7: memref<32x16xbf16, #tpu.memory_space<vmem>>, %arg8: memref<1x16xf32, #tpu.memory_space<vmem>>, %arg9: memref<64x32xbf16, #tpu.memory_space<vmem>>, %arg10: memref<16x32xbf16, #tpu.memory_space<vmem>>, %arg11: memref<1x32xf32, #tpu.memory_space<vmem>>, %arg12: memref<1x1x32xf32, #tpu.memory_space<vmem>>) attributes {dimension_semantics = [#tpu.dimension_semantics<parallel>], iteration_bounds = array<i64: 2>, scalar_prefetch = 0 : i64, scratch_operands = 0 : i64, tpu.core_type = #tpu.core_type<tc>, window_params = [{transform_indices = @transform_0, window_bounds = array<i64: 1, 4, 192>}, {transform_indices = @transform_1, window_bounds = array<i64: 1, 1, 8>}, {pipeline_mode = #tpu.pipeline_mode<synchronous>, transform_indices = @transform_2, window_bounds = array<i64: 192, 64>}, {pipeline_mode = #tpu.pipeline_mode<synchronous>, transform_indices = @transform_3, window_bounds = array<i64: 1, 64>}, {pipeline_mode = #tpu.pipeline_mode<synchronous>, transform_indices = @transform_4, window_bounds = array<i64: 8, 32>}, {pipeline_mode = #tpu.pipeline_mode<synchronous>, transform_indices = @transform_5, window_bounds = array<i64: 1, 32>}, {pipeline_mode = #tpu.pipeline_mode<synchronous>, transform_indices = @transform_6, window_bounds = array<i64: 32, 16>}, {pipeline_mode = #tpu.pipeline_mode<synchronous>, transform_indices = @transform_7, window_bounds = array<i64: 1, 16>}, {pipeline_mode = #tpu.pipeline_mode<synchronous>, transform_indices = @transform_8, window_bounds = array<i64: 64, 32>}, {pipeline_mode = #tpu.pipeline_mode<synchronous>, transform_indices = @transform_9, window_bounds = array<i64: 16, 32>}, {pipeline_mode = #tpu.pipeline_mode<synchronous>, transform_indices = @transform_10, window_bounds = array<i64: 1, 32>}, {transform_indices = @transform_11, window_bounds = array<i64: 1, 1, 32>}]} {
    %c0 = arith.constant 0 : index
    %c0_0 = arith.constant 0 : index
    %c0_1 = arith.constant 0 : index
    %0 = vector.load %arg1[%c0, %c0_0, %c0_1] : memref<1x4x192xf32, #tpu.memory_space<vmem>>, vector<1x4x192xf32>
    %1 = vector.shape_cast %0 : vector<1x4x192xf32> to vector<4x192xf32>
    %2 = arith.truncf %1 : vector<4x192xf32> to vector<4x192xbf16>
    %c0_2 = arith.constant 0 : index
    %c0_3 = arith.constant 0 : index
    %3 = vector.load %arg3[%c0_2, %c0_3] : memref<192x64xbf16, #tpu.memory_space<vmem>>, vector<192x64xbf16>
    %cst = arith.constant dense<0.000000e+00> : vector<4x64xf32>
    %4 = tpu.matmul %2, %3, %cst {dimension_numbers = #tpu.dot_dimension_numbers<[1], [0], [0], [1], [0, 0, 1, 1], [], []>} : vector<4x192xbf16>, vector<192x64xbf16>, vector<4x64xf32> -> vector<4x64xf32>
    %c0_4 = arith.constant 0 : index
    %c0_5 = arith.constant 0 : index
    %5 = vector.load %arg4[%c0_4, %c0_5] : memref<1x64xf32, #tpu.memory_space<vmem>>, vector<1x64xf32>
    %6 = vector.broadcast %5 : vector<1x64xf32> to vector<4x64xf32>
    %7 = arith.addf %4, %6 : vector<4x64xf32>
    %cst_6 = arith.constant 0.000000e+00 : f32
    %8 = vector.broadcast %cst_6 : f32 to vector<4x64xf32>
    %9 = arith.maximumf %7, %8 : vector<4x64xf32>
    %cst_7 = arith.constant dense<0.000000e+00> : vector<64xf32>
    %10 = vector.multi_reduction <add>, %9, %cst_7 [0] : vector<4x64xf32> to vector<64xf32>
    %11 = vector.shape_cast %10 : vector<64xf32> to vector<1x64xf32>
    %cst_8 = arith.constant 2.500000e-01 : f32
    %12 = vector.broadcast %cst_8 : f32 to vector<1x64xf32>
    %13 = arith.mulf %11, %12 : vector<1x64xf32>
    %c0_9 = arith.constant 0 : index
    %c0_10 = arith.constant 0 : index
    %c0_11 = arith.constant 0 : index
    %14 = vector.load %arg2[%c0_9, %c0_10, %c0_11] : memref<1x1x8xf32, #tpu.memory_space<vmem>>, vector<1x1x8xf32>
    %15 = vector.shape_cast %14 : vector<1x1x8xf32> to vector<1x8xf32>
    %16 = arith.truncf %15 : vector<1x8xf32> to vector<1x8xbf16>
    %c0_12 = arith.constant 0 : index
    %c0_13 = arith.constant 0 : index
    %17 = vector.load %arg5[%c0_12, %c0_13] : memref<8x32xbf16, #tpu.memory_space<vmem>>, vector<8x32xbf16>
    %cst_14 = arith.constant dense<0.000000e+00> : vector<1x32xf32>
    %18 = tpu.matmul %16, %17, %cst_14 {dimension_numbers = #tpu.dot_dimension_numbers<[1], [0], [0], [1], [0, 0, 1, 1], [], []>} : vector<1x8xbf16>, vector<8x32xbf16>, vector<1x32xf32> -> vector<1x32xf32>
    %c0_15 = arith.constant 0 : index
    %c0_16 = arith.constant 0 : index
    %19 = vector.load %arg6[%c0_15, %c0_16] : memref<1x32xf32, #tpu.memory_space<vmem>>, vector<1x32xf32>
    %20 = arith.addf %18, %19 : vector<1x32xf32>
    %cst_17 = arith.constant 0.000000e+00 : f32
    %21 = vector.broadcast %cst_17 : f32 to vector<1x32xf32>
    %22 = arith.maximumf %20, %21 : vector<1x32xf32>
    %23 = arith.truncf %22 : vector<1x32xf32> to vector<1x32xbf16>
    %c0_18 = arith.constant 0 : index
    %c0_19 = arith.constant 0 : index
    %24 = vector.load %arg7[%c0_18, %c0_19] : memref<32x16xbf16, #tpu.memory_space<vmem>>, vector<32x16xbf16>
    %cst_20 = arith.constant dense<0.000000e+00> : vector<1x16xf32>
    %25 = tpu.matmul %23, %24, %cst_20 {dimension_numbers = #tpu.dot_dimension_numbers<[1], [0], [0], [1], [0, 0, 1, 1], [], []>} : vector<1x32xbf16>, vector<32x16xbf16>, vector<1x16xf32> -> vector<1x16xf32>
    %c0_21 = arith.constant 0 : index
    %c0_22 = arith.constant 0 : index
    %26 = vector.load %arg8[%c0_21, %c0_22] : memref<1x16xf32, #tpu.memory_space<vmem>>, vector<1x16xf32>
    %27 = arith.addf %25, %26 : vector<1x16xf32>
    %cst_23 = arith.constant 0.000000e+00 : f32
    %28 = vector.broadcast %cst_23 : f32 to vector<1x16xf32>
    %29 = arith.maximumf %27, %28 : vector<1x16xf32>
    %30 = arith.truncf %13 : vector<1x64xf32> to vector<1x64xbf16>
    %c0_24 = arith.constant 0 : index
    %c0_25 = arith.constant 0 : index
    %31 = vector.load %arg9[%c0_24, %c0_25] : memref<64x32xbf16, #tpu.memory_space<vmem>>, vector<64x32xbf16>
    %cst_26 = arith.constant dense<0.000000e+00> : vector<1x32xf32>
    %32 = tpu.matmul %30, %31, %cst_26 {dimension_numbers = #tpu.dot_dimension_numbers<[1], [0], [0], [1], [0, 0, 1, 1], [], []>} : vector<1x64xbf16>, vector<64x32xbf16>, vector<1x32xf32> -> vector<1x32xf32>
    %33 = arith.truncf %29 : vector<1x16xf32> to vector<1x16xbf16>
    %c0_27 = arith.constant 0 : index
    %c0_28 = arith.constant 0 : index
    %34 = vector.load %arg10[%c0_27, %c0_28] : memref<16x32xbf16, #tpu.memory_space<vmem>>, vector<16x32xbf16>
    %cst_29 = arith.constant dense<0.000000e+00> : vector<1x32xf32>
    %35 = tpu.matmul %33, %34, %cst_29 {dimension_numbers = #tpu.dot_dimension_numbers<[1], [0], [0], [1], [0, 0, 1, 1], [], []>} : vector<1x16xbf16>, vector<16x32xbf16>, vector<1x32xf32> -> vector<1x32xf32>
    %36 = arith.addf %32, %35 : vector<1x32xf32>
    %c0_30 = arith.constant 0 : index
    %c0_31 = arith.constant 0 : index
    %37 = vector.load %arg11[%c0_30, %c0_31] : memref<1x32xf32, #tpu.memory_space<vmem>>, vector<1x32xf32>
    %38 = arith.addf %36, %37 : vector<1x32xf32>
    %c0_32 = arith.constant 0 : index
    %c0_33 = arith.constant 0 : index
    %c0_34 = arith.constant 0 : index
    %39 = vector.load %arg12[%c0_32, %c0_33, %c0_34] : memref<1x1x32xf32, #tpu.memory_space<vmem>>, vector<1x1x32xf32>
    %40 = vector.shape_cast %39 : vector<1x1x32xf32> to vector<1x32xf32>
    %41 = vector.shape_cast %38 : vector<1x32xf32> to vector<1x1x32xf32>
    tpu.vector_store %arg12[%c0_32, %c0_33, %c0_34], %41 {strides = array<i32>} : memref<1x1x32xf32, #tpu.memory_space<vmem>>, vector<1x1x32xf32>,
    return
  }
  func.func @transform_0(%arg0: i32) -> (i32, i32, i32) {
    %c0_i32 = arith.constant 0 : i32
    %c0_i32_0 = arith.constant 0 : i32
    %c0_i32_1 = arith.constant 0 : i32
    return %arg0, %c0_i32, %c0_i32_0 : i32, i32, i32
  }
  func.func @transform_1(%arg0: i32) -> (i32, i32, i32) {
    %c0_i32 = arith.constant 0 : i32
    %c0_i32_0 = arith.constant 0 : i32
    %c0_i32_1 = arith.constant 0 : i32
    return %arg0, %c0_i32, %c0_i32_0 : i32, i32, i32
  }
  func.func @transform_2(%arg0: i32) -> (i32, i32) {
    %c0_i32 = arith.constant 0 : i32
    %c0_i32_0 = arith.constant 0 : i32
    %c0_i32_1 = arith.constant 0 : i32
    return %c0_i32, %c0_i32_0 : i32, i32
  }
  func.func @transform_3(%arg0: i32) -> (i32, i32) {
    %c0_i32 = arith.constant 0 : i32
    %c0_i32_0 = arith.constant 0 : i32
    %c0_i32_1 = arith.constant 0 : i32
    return %c0_i32, %c0_i32_0 : i32, i32
  }
  func.func @transform_4(%arg0: i32) -> (i32, i32) {
    %c0_i32 = arith.constant 0 : i32
    %c0_i32_0 = arith.constant 0 : i32
    %c0_i32_1 = arith.constant 0 : i32
    return %c0_i32, %c0_i32_0 : i32, i32
  }
  func.func @transform_5(%arg0: i32) -> (i32, i32) {
    %c0_i32 = arith.constant 0 : i32
    %c0_i32_0 = arith.constant 0 : i32
    %c0_i32_1 = arith.constant 0 : i32
    return %c0_i32, %c0_i32_0 : i32, i32
  }
  func.func @transform_6(%arg0: i32) -> (i32, i32) {
    %c0_i32 = arith.constant 0 : i32
    %c0_i32_0 = arith.constant 0 : i32
    %c0_i32_1 = arith.constant 0 : i32
    return %c0_i32, %c0_i32_0 : i32, i32
  }
  func.func @transform_7(%arg0: i32) -> (i32, i32) {
    %c0_i32 = arith.constant 0 : i32
    %c0_i32_0 = arith.constant 0 : i32
    %c0_i32_1 = arith.constant 0 : i32
    return %c0_i32, %c0_i32_0 : i32, i32
  }
  func.func @transform_8(%arg0: i32) -> (i32, i32) {
    %c0_i32 = arith.constant 0 : i32
    %c0_i32_0 = arith.constant 0 : i32
    %c0_i32_1 = arith.constant 0 : i32
    return %c0_i32, %c0_i32_0 : i32, i32
  }
  func.func @transform_9(%arg0: i32) -> (i32, i32) {
    %c0_i32 = arith.constant 0 : i32
    %c0_i32_0 = arith.constant 0 : i32
    %c0_i32_1 = arith.constant 0 : i32
    return %c0_i32, %c0_i32_0 : i32, i32
  }
  func.func @transform_10(%arg0: i32) -> (i32, i32) {
    %c0_i32 = arith.constant 0 : i32
    %c0_i32_0 = arith.constant 0 : i32
    %c0_i32_1 = arith.constant 0 : i32
    return %c0_i32, %c0_i32_0 : i32, i32
  }
  func.func @transform_11(%arg0: i32) -> (i32, i32, i32) {
    %c0_i32 = arith.constant 0 : i32
    %c0_i32_0 = arith.constant 0 : i32
    %c0_i32_1 = arith.constant 0 : i32
    return %arg0, %c0_i32, %c0_i32_0 : i32, i32, i32
  }
}

module attributes {stable_mosaic.version = 11 : i64} {
  func.func @_predictor_kernel(%arg0: i32, %arg1: memref<1x1x32xf32, #tpu.memory_space<vmem>>, %arg2: memref<8x32xf32, #tpu.memory_space<vmem>>, %arg3: memref<16x32x8xbf16, #tpu.memory_space<vmem>>, %arg4: memref<16x1x8xf32, #tpu.memory_space<vmem>>, %arg5: memref<16x32x8xbf16, #tpu.memory_space<vmem>>, %arg6: memref<16x1x8xf32, #tpu.memory_space<vmem>>, %arg7: memref<16x32x8xbf16, #tpu.memory_space<vmem>>, %arg8: memref<16x1x8xf32, #tpu.memory_space<vmem>>, %arg9: memref<16x8x32xbf16, #tpu.memory_space<vmem>>, %arg10: memref<4x1x32xf32, #tpu.memory_space<vmem>>, %arg11: memref<2x32x128xbf16, #tpu.memory_space<vmem>>, %arg12: memref<2x1x128xf32, #tpu.memory_space<vmem>>, %arg13: memref<2x128x32xbf16, #tpu.memory_space<vmem>>, %arg14: memref<2x1x32xf32, #tpu.memory_space<vmem>>, %arg15: memref<6x1x32xf32, #tpu.memory_space<vmem>>, %arg16: memref<6x1x32xf32, #tpu.memory_space<vmem>>, %arg17: memref<32x1xf32, #tpu.memory_space<vmem>>, %arg18: memref<1x1xf32, #tpu.memory_space<vmem>>, %arg19: memref<1x8x1xf32, #tpu.memory_space<vmem>>) attributes {dimension_semantics = [#tpu.dimension_semantics<parallel>], iteration_bounds = array<i64: 2>, scalar_prefetch = 0 : i64, scratch_operands = 0 : i64, tpu.core_type = #tpu.core_type<tc>, window_params = [{transform_indices = @transform_0, window_bounds = array<i64: 1, 1, 32>}, {pipeline_mode = #tpu.pipeline_mode<synchronous>, transform_indices = @transform_1, window_bounds = array<i64: 8, 32>}, {pipeline_mode = #tpu.pipeline_mode<synchronous>, transform_indices = @transform_2, window_bounds = array<i64: 16, 32, 8>}, {pipeline_mode = #tpu.pipeline_mode<synchronous>, transform_indices = @transform_3, window_bounds = array<i64: 16, 1, 8>}, {pipeline_mode = #tpu.pipeline_mode<synchronous>, transform_indices = @transform_4, window_bounds = array<i64: 16, 32, 8>}, {pipeline_mode = #tpu.pipeline_mode<synchronous>, transform_indices = @transform_5, window_bounds = array<i64: 16, 1, 8>}, {pipeline_mode = #tpu.pipeline_mode<synchronous>, transform_indices = @transform_6, window_bounds = array<i64: 16, 32, 8>}, {pipeline_mode = #tpu.pipeline_mode<synchronous>, transform_indices = @transform_7, window_bounds = array<i64: 16, 1, 8>}, {pipeline_mode = #tpu.pipeline_mode<synchronous>, transform_indices = @transform_8, window_bounds = array<i64: 16, 8, 32>}, {pipeline_mode = #tpu.pipeline_mode<synchronous>, transform_indices = @transform_9, window_bounds = array<i64: 4, 1, 32>}, {pipeline_mode = #tpu.pipeline_mode<synchronous>, transform_indices = @transform_10, window_bounds = array<i64: 2, 32, 128>}, {pipeline_mode = #tpu.pipeline_mode<synchronous>, transform_indices = @transform_11, window_bounds = array<i64: 2, 1, 128>}, {pipeline_mode = #tpu.pipeline_mode<synchronous>, transform_indices = @transform_12, window_bounds = array<i64: 2, 128, 32>}, {pipeline_mode = #tpu.pipeline_mode<synchronous>, transform_indices = @transform_13, window_bounds = array<i64: 2, 1, 32>}, {pipeline_mode = #tpu.pipeline_mode<synchronous>, transform_indices = @transform_14, window_bounds = array<i64: 6, 1, 32>}, {pipeline_mode = #tpu.pipeline_mode<synchronous>, transform_indices = @transform_15, window_bounds = array<i64: 6, 1, 32>}, {pipeline_mode = #tpu.pipeline_mode<synchronous>, transform_indices = @transform_16, window_bounds = array<i64: 32, 1>}, {pipeline_mode = #tpu.pipeline_mode<synchronous>, transform_indices = @transform_17, window_bounds = array<i64: 1, 1>}, {transform_indices = @transform_18, window_bounds = array<i64: 1, 8, 1>}]} {
    %c0 = arith.constant 0 : index
    %c0_0 = arith.constant 0 : index
    %0 = vector.load %arg2[%c0, %c0_0] : memref<8x32xf32, #tpu.memory_space<vmem>>, vector<8x32xf32>
    %c0_1 = arith.constant 0 : index
    %c0_2 = arith.constant 0 : index
    %c0_3 = arith.constant 0 : index
    %1 = vector.load %arg1[%c0_1, %c0_2, %c0_3] : memref<1x1x32xf32, #tpu.memory_space<vmem>>, vector<1x1x32xf32>
    %2 = vector.shape_cast %1 : vector<1x1x32xf32> to vector<1x32xf32>
    %cst = arith.constant 0.000000e+00 : f32
    %3 = vector.broadcast %cst : f32 to vector<8x32xf32>
    %c0_4 = arith.constant 0 : index
    %c0_5 = arith.constant 0 : index
    %c0_6 = arith.constant 0 : index
    %4 = vector.load %arg7[%c0_4, %c0_5, %c0_6] : memref<16x32x8xbf16, #tpu.memory_space<vmem>>, vector<1x32x8xbf16>
    %5 = vector.shape_cast %4 : vector<1x32x8xbf16> to vector<32x8xbf16>
    %6 = arith.truncf %0 : vector<8x32xf32> to vector<8x32xbf16>
    %cst_7 = arith.constant dense<0.000000e+00> : vector<8x8xf32>
    %7 = tpu.matmul %6, %5, %cst_7 {dimension_numbers = #tpu.dot_dimension_numbers<[1], [0], [0], [1], [0, 0, 1, 1], [], []>} : vector<8x32xbf16>, vector<32x8xbf16>, vector<8x8xf32> -> vector<8x8xf32>
    %c0_8 = arith.constant 0 : index
    %c0_9 = arith.constant 0 : index
    %c0_10 = arith.constant 0 : index
    %8 = vector.load %arg8[%c0_8, %c0_9, %c0_10] : memref<16x1x8xf32, #tpu.memory_space<vmem>>, vector<1x1x8xf32>
    %9 = vector.shape_cast %8 : vector<1x1x8xf32> to vector<1x8xf32>
    %10 = vector.broadcast %9 : vector<1x8xf32> to vector<8x8xf32>
    %11 = arith.addf %7, %10 : vector<8x8xf32>
    %c0_11 = arith.constant 0 : index
    %c0_12 = arith.constant 0 : index
    %c0_13 = arith.constant 0 : index
    %12 = vector.load %arg3[%c0_11, %c0_12, %c0_13] : memref<16x32x8xbf16, #tpu.memory_space<vmem>>, vector<1x32x8xbf16>
    %13 = vector.shape_cast %12 : vector<1x32x8xbf16> to vector<32x8xbf16>
    %14 = arith.truncf %0 : vector<8x32xf32> to vector<8x32xbf16>
    %cst_14 = arith.constant dense<0.000000e+00> : vector<8x8xf32>
    %15 = tpu.matmul %14, %13, %cst_14 {dimension_numbers = #tpu.dot_dimension_numbers<[1], [0], [0], [1], [0, 0, 1, 1], [], []>} : vector<8x32xbf16>, vector<32x8xbf16>, vector<8x8xf32> -> vector<8x8xf32>
    %c0_15 = arith.constant 0 : index
    %c0_16 = arith.constant 0 : index
    %c0_17 = arith.constant 0 : index
    %16 = vector.load %arg4[%c0_15, %c0_16, %c0_17] : memref<16x1x8xf32, #tpu.memory_space<vmem>>, vector<1x1x8xf32>
    %17 = vector.shape_cast %16 : vector<1x1x8xf32> to vector<1x8xf32>
    %18 = vector.broadcast %17 : vector<1x8xf32> to vector<8x8xf32>
    %19 = arith.addf %15, %18 : vector<8x8xf32>
    %c0_18 = arith.constant 0 : index
    %c0_19 = arith.constant 0 : index
    %c0_20 = arith.constant 0 : index
    %20 = vector.load %arg5[%c0_18, %c0_19, %c0_20] : memref<16x32x8xbf16, #tpu.memory_space<vmem>>, vector<1x32x8xbf16>
    %21 = vector.shape_cast %20 : vector<1x32x8xbf16> to vector<32x8xbf16>
    %22 = arith.truncf %0 : vector<8x32xf32> to vector<8x32xbf16>
    %cst_21 = arith.constant dense<0.000000e+00> : vector<8x8xf32>
    %23 = tpu.matmul %22, %21, %cst_21 {dimension_numbers = #tpu.dot_dimension_numbers<[1], [0], [0], [1], [0, 0, 1, 1], [], []>} : vector<8x32xbf16>, vector<32x8xbf16>, vector<8x8xf32> -> vector<8x8xf32>
    %c0_22 = arith.constant 0 : index
    %c0_23 = arith.constant 0 : index
    %c0_24 = arith.constant 0 : index
    %24 = vector.load %arg6[%c0_22, %c0_23, %c0_24] : memref<16x1x8xf32, #tpu.memory_space<vmem>>, vector<1x1x8xf32>
    %25 = vector.shape_cast %24 : vector<1x1x8xf32> to vector<1x8xf32>
    %26 = vector.broadcast %25 : vector<1x8xf32> to vector<8x8xf32>
    %27 = arith.addf %23, %26 : vector<8x8xf32>
    %28 = arith.truncf %19 : vector<8x8xf32> to vector<8x8xbf16>
    %29 = arith.truncf %27 : vector<8x8xf32> to vector<8x8xbf16>
    %cst_25 = arith.constant dense<0.000000e+00> : vector<8x8xf32>
    %30 = tpu.matmul %28, %29, %cst_25 {dimension_numbers = #tpu.dot_dimension_numbers<[1], [1], [0], [0], [0, 0, 1, 0], [], []>} : vector<8x8xbf16>, vector<8x8xbf16>, vector<8x8xf32> -> vector<8x8xf32>
    %cst_26 = arith.constant 0.353553385 : f32
    %31 = vector.broadcast %cst_26 : f32 to vector<8x8xf32>
    %32 = arith.mulf %30, %31 : vector<8x8xf32>
    %cst_27 = arith.constant dense<0xFF800000> : vector<8xf32>
    %33 = vector.multi_reduction <maximumf>, %32, %cst_27 [1] : vector<8x8xf32> to vector<8xf32>
    %34 = vector.shape_cast %33 : vector<8xf32> to vector<8x1xf32>
    %35 = vector.broadcast %34 : vector<8x1xf32> to vector<8x8xf32>
    %36 = arith.subf %32, %35 : vector<8x8xf32>
    %37 = math.exp %36 : vector<8x8xf32>
    %cst_28 = arith.constant dense<0.000000e+00> : vector<8xf32>
    %38 = vector.multi_reduction <add>, %37, %cst_28 [1] : vector<8x8xf32> to vector<8xf32>
    %39 = vector.shape_cast %38 : vector<8xf32> to vector<8x1xf32>
    %40 = tpu.reciprocal %39 {approx = true} : vector<8x1xf32> -> vector<8x1xf32>
    %41 = vector.broadcast %40 : vector<8x1xf32> to vector<8x8xf32>
    %42 = arith.mulf %37, %41 : vector<8x8xf32>
    %43 = arith.truncf %42 : vector<8x8xf32> to vector<8x8xbf16>
    %44 = arith.truncf %11 : vector<8x8xf32> to vector<8x8xbf16>
    %cst_29 = arith.constant dense<0.000000e+00> : vector<8x8xf32>
    %45 = tpu.matmul %43, %44, %cst_29 {dimension_numbers = #tpu.dot_dimension_numbers<[1], [0], [0], [1], [0, 0, 1, 1], [], []>} : vector<8x8xbf16>, vector<8x8xbf16>, vector<8x8xf32> -> vector<8x8xf32>
    %c0_30 = arith.constant 0 : index
    %c0_31 = arith.constant 0 : index
    %c0_32 = arith.constant 0 : index
    %46 = vector.load %arg9[%c0_30, %c0_31, %c0_32] : memref<16x8x32xbf16, #tpu.memory_space<vmem>>, vector<1x8x32xbf16>
    %47 = vector.shape_cast %46 : vector<1x8x32xbf16> to vector<8x32xbf16>
    %48 = arith.truncf %45 : vector<8x8xf32> to vector<8x8xbf16>
    %cst_33 = arith.constant dense<0.000000e+00> : vector<8x32xf32>
    %49 = tpu.matmul %48, %47, %cst_33 {dimension_numbers = #tpu.dot_dimension_numbers<[1], [0], [0], [1], [0, 0, 1, 1], [], []>} : vector<8x8xbf16>, vector<8x32xbf16>, vector<8x32xf32> -> vector<8x32xf32>
    %50 = arith.addf %3, %49 : vector<8x32xf32>
    %c1 = arith.constant 1 : index
    %c0_34 = arith.constant 0 : index
    %c0_35 = arith.constant 0 : index
    %51 = vector.load %arg7[%c1, %c0_34, %c0_35] : memref<16x32x8xbf16, #tpu.memory_space<vmem>>, vector<1x32x8xbf16>
    %52 = vector.shape_cast %51 : vector<1x32x8xbf16> to vector<32x8xbf16>
    %53 = arith.truncf %0 : vector<8x32xf32> to vector<8x32xbf16>
    %cst_36 = arith.constant dense<0.000000e+00> : vector<8x8xf32>
    %54 = tpu.matmul %53, %52, %cst_36 {dimension_numbers = #tpu.dot_dimension_numbers<[1], [0], [0], [1], [0, 0, 1, 1], [], []>} : vector<8x32xbf16>, vector<32x8xbf16>, vector<8x8xf32> -> vector<8x8xf32>
    %c1_37 = arith.constant 1 : index
    %c0_38 = arith.constant 0 : index
    %c0_39 = arith.constant 0 : index
    %55 = vector.load %arg8[%c1_37, %c0_38, %c0_39] : memref<16x1x8xf32, #tpu.memory_space<vmem>>, vector<1x1x8xf32>
    %56 = vector.shape_cast %55 : vector<1x1x8xf32> to vector<1x8xf32>
    %57 = vector.broadcast %56 : vector<1x8xf32> to vector<8x8xf32>
    %58 = arith.addf %54, %57 : vector<8x8xf32>
    %c1_40 = arith.constant 1 : index
    %c0_41 = arith.constant 0 : index
    %c0_42 = arith.constant 0 : index
    %59 = vector.load %arg3[%c1_40, %c0_41, %c0_42] : memref<16x32x8xbf16, #tpu.memory_space<vmem>>, vector<1x32x8xbf16>
    %60 = vector.shape_cast %59 : vector<1x32x8xbf16> to vector<32x8xbf16>
    %61 = arith.truncf %0 : vector<8x32xf32> to vector<8x32xbf16>
    %cst_43 = arith.constant dense<0.000000e+00> : vector<8x8xf32>
    %62 = tpu.matmul %61, %60, %cst_43 {dimension_numbers = #tpu.dot_dimension_numbers<[1], [0], [0], [1], [0, 0, 1, 1], [], []>} : vector<8x32xbf16>, vector<32x8xbf16>, vector<8x8xf32> -> vector<8x8xf32>
    %c1_44 = arith.constant 1 : index
    %c0_45 = arith.constant 0 : index
    %c0_46 = arith.constant 0 : index
    %63 = vector.load %arg4[%c1_44, %c0_45, %c0_46] : memref<16x1x8xf32, #tpu.memory_space<vmem>>, vector<1x1x8xf32>
    %64 = vector.shape_cast %63 : vector<1x1x8xf32> to vector<1x8xf32>
    %65 = vector.broadcast %64 : vector<1x8xf32> to vector<8x8xf32>
    %66 = arith.addf %62, %65 : vector<8x8xf32>
    %c1_47 = arith.constant 1 : index
    %c0_48 = arith.constant 0 : index
    %c0_49 = arith.constant 0 : index
    %67 = vector.load %arg5[%c1_47, %c0_48, %c0_49] : memref<16x32x8xbf16, #tpu.memory_space<vmem>>, vector<1x32x8xbf16>
    %68 = vector.shape_cast %67 : vector<1x32x8xbf16> to vector<32x8xbf16>
    %69 = arith.truncf %0 : vector<8x32xf32> to vector<8x32xbf16>
    %cst_50 = arith.constant dense<0.000000e+00> : vector<8x8xf32>
    %70 = tpu.matmul %69, %68, %cst_50 {dimension_numbers = #tpu.dot_dimension_numbers<[1], [0], [0], [1], [0, 0, 1, 1], [], []>} : vector<8x32xbf16>, vector<32x8xbf16>, vector<8x8xf32> -> vector<8x8xf32>
    %c1_51 = arith.constant 1 : index
    %c0_52 = arith.constant 0 : index
    %c0_53 = arith.constant 0 : index
    %71 = vector.load %arg6[%c1_51, %c0_52, %c0_53] : memref<16x1x8xf32, #tpu.memory_space<vmem>>, vector<1x1x8xf32>
    %72 = vector.shape_cast %71 : vector<1x1x8xf32> to vector<1x8xf32>
    %73 = vector.broadcast %72 : vector<1x8xf32> to vector<8x8xf32>
    %74 = arith.addf %70, %73 : vector<8x8xf32>
    %75 = arith.truncf %66 : vector<8x8xf32> to vector<8x8xbf16>
    %76 = arith.truncf %74 : vector<8x8xf32> to vector<8x8xbf16>
    %cst_54 = arith.constant dense<0.000000e+00> : vector<8x8xf32>
    %77 = tpu.matmul %75, %76, %cst_54 {dimension_numbers = #tpu.dot_dimension_numbers<[1], [1], [0], [0], [0, 0, 1, 0], [], []>} : vector<8x8xbf16>, vector<8x8xbf16>, vector<8x8xf32> -> vector<8x8xf32>
    %cst_55 = arith.constant 0.353553385 : f32
    %78 = vector.broadcast %cst_55 : f32 to vector<8x8xf32>
    %79 = arith.mulf %77, %78 : vector<8x8xf32>
    %cst_56 = arith.constant dense<0xFF800000> : vector<8xf32>
    %80 = vector.multi_reduction <maximumf>, %79, %cst_56 [1] : vector<8x8xf32> to vector<8xf32>
    %81 = vector.shape_cast %80 : vector<8xf32> to vector<8x1xf32>
    %82 = vector.broadcast %81 : vector<8x1xf32> to vector<8x8xf32>
    %83 = arith.subf %79, %82 : vector<8x8xf32>
    %84 = math.exp %83 : vector<8x8xf32>
    %cst_57 = arith.constant dense<0.000000e+00> : vector<8xf32>
    %85 = vector.multi_reduction <add>, %84, %cst_57 [1] : vector<8x8xf32> to vector<8xf32>
    %86 = vector.shape_cast %85 : vector<8xf32> to vector<8x1xf32>
    %87 = tpu.reciprocal %86 {approx = true} : vector<8x1xf32> -> vector<8x1xf32>
    %88 = vector.broadcast %87 : vector<8x1xf32> to vector<8x8xf32>
    %89 = arith.mulf %84, %88 : vector<8x8xf32>
    %90 = arith.truncf %89 : vector<8x8xf32> to vector<8x8xbf16>
    %91 = arith.truncf %58 : vector<8x8xf32> to vector<8x8xbf16>
    %cst_58 = arith.constant dense<0.000000e+00> : vector<8x8xf32>
    %92 = tpu.matmul %90, %91, %cst_58 {dimension_numbers = #tpu.dot_dimension_numbers<[1], [0], [0], [1], [0, 0, 1, 1], [], []>} : vector<8x8xbf16>, vector<8x8xbf16>, vector<8x8xf32> -> vector<8x8xf32>
    %c1_59 = arith.constant 1 : index
    %c0_60 = arith.constant 0 : index
    %c0_61 = arith.constant 0 : index
    %93 = vector.load %arg9[%c1_59, %c0_60, %c0_61] : memref<16x8x32xbf16, #tpu.memory_space<vmem>>, vector<1x8x32xbf16>
    %94 = vector.shape_cast %93 : vector<1x8x32xbf16> to vector<8x32xbf16>
    %95 = arith.truncf %92 : vector<8x8xf32> to vector<8x8xbf16>
    %cst_62 = arith.constant dense<0.000000e+00> : vector<8x32xf32>
    %96 = tpu.matmul %95, %94, %cst_62 {dimension_numbers = #tpu.dot_dimension_numbers<[1], [0], [0], [1], [0, 0, 1, 1], [], []>} : vector<8x8xbf16>, vector<8x32xbf16>, vector<8x32xf32> -> vector<8x32xf32>
    %97 = arith.addf %50, %96 : vector<8x32xf32>
    %c2 = arith.constant 2 : index
    %c0_63 = arith.constant 0 : index
    %c0_64 = arith.constant 0 : index
    %98 = vector.load %arg7[%c2, %c0_63, %c0_64] : memref<16x32x8xbf16, #tpu.memory_space<vmem>>, vector<1x32x8xbf16>
    %99 = vector.shape_cast %98 : vector<1x32x8xbf16> to vector<32x8xbf16>
    %100 = arith.truncf %0 : vector<8x32xf32> to vector<8x32xbf16>
    %cst_65 = arith.constant dense<0.000000e+00> : vector<8x8xf32>
    %101 = tpu.matmul %100, %99, %cst_65 {dimension_numbers = #tpu.dot_dimension_numbers<[1], [0], [0], [1], [0, 0, 1, 1], [], []>} : vector<8x32xbf16>, vector<32x8xbf16>, vector<8x8xf32> -> vector<8x8xf32>
    %c2_66 = arith.constant 2 : index
    %c0_67 = arith.constant 0 : index
    %c0_68 = arith.constant 0 : index
    %102 = vector.load %arg8[%c2_66, %c0_67, %c0_68] : memref<16x1x8xf32, #tpu.memory_space<vmem>>, vector<1x1x8xf32>
    %103 = vector.shape_cast %102 : vector<1x1x8xf32> to vector<1x8xf32>
    %104 = vector.broadcast %103 : vector<1x8xf32> to vector<8x8xf32>
    %105 = arith.addf %101, %104 : vector<8x8xf32>
    %c2_69 = arith.constant 2 : index
    %c0_70 = arith.constant 0 : index
    %c0_71 = arith.constant 0 : index
    %106 = vector.load %arg3[%c2_69, %c0_70, %c0_71] : memref<16x32x8xbf16, #tpu.memory_space<vmem>>, vector<1x32x8xbf16>
    %107 = vector.shape_cast %106 : vector<1x32x8xbf16> to vector<32x8xbf16>
    %108 = arith.truncf %0 : vector<8x32xf32> to vector<8x32xbf16>
    %cst_72 = arith.constant dense<0.000000e+00> : vector<8x8xf32>
    %109 = tpu.matmul %108, %107, %cst_72 {dimension_numbers = #tpu.dot_dimension_numbers<[1], [0], [0], [1], [0, 0, 1, 1], [], []>} : vector<8x32xbf16>, vector<32x8xbf16>, vector<8x8xf32> -> vector<8x8xf32>
    %c2_73 = arith.constant 2 : index
    %c0_74 = arith.constant 0 : index
    %c0_75 = arith.constant 0 : index
    %110 = vector.load %arg4[%c2_73, %c0_74, %c0_75] : memref<16x1x8xf32, #tpu.memory_space<vmem>>, vector<1x1x8xf32>
    %111 = vector.shape_cast %110 : vector<1x1x8xf32> to vector<1x8xf32>
    %112 = vector.broadcast %111 : vector<1x8xf32> to vector<8x8xf32>
    %113 = arith.addf %109, %112 : vector<8x8xf32>
    %c2_76 = arith.constant 2 : index
    %c0_77 = arith.constant 0 : index
    %c0_78 = arith.constant 0 : index
    %114 = vector.load %arg5[%c2_76, %c0_77, %c0_78] : memref<16x32x8xbf16, #tpu.memory_space<vmem>>, vector<1x32x8xbf16>
    %115 = vector.shape_cast %114 : vector<1x32x8xbf16> to vector<32x8xbf16>
    %116 = arith.truncf %0 : vector<8x32xf32> to vector<8x32xbf16>
    %cst_79 = arith.constant dense<0.000000e+00> : vector<8x8xf32>
    %117 = tpu.matmul %116, %115, %cst_79 {dimension_numbers = #tpu.dot_dimension_numbers<[1], [0], [0], [1], [0, 0, 1, 1], [], []>} : vector<8x32xbf16>, vector<32x8xbf16>, vector<8x8xf32> -> vector<8x8xf32>
    %c2_80 = arith.constant 2 : index
    %c0_81 = arith.constant 0 : index
    %c0_82 = arith.constant 0 : index
    %118 = vector.load %arg6[%c2_80, %c0_81, %c0_82] : memref<16x1x8xf32, #tpu.memory_space<vmem>>, vector<1x1x8xf32>
    %119 = vector.shape_cast %118 : vector<1x1x8xf32> to vector<1x8xf32>
    %120 = vector.broadcast %119 : vector<1x8xf32> to vector<8x8xf32>
    %121 = arith.addf %117, %120 : vector<8x8xf32>
    %122 = arith.truncf %113 : vector<8x8xf32> to vector<8x8xbf16>
    %123 = arith.truncf %121 : vector<8x8xf32> to vector<8x8xbf16>
    %cst_83 = arith.constant dense<0.000000e+00> : vector<8x8xf32>
    %124 = tpu.matmul %122, %123, %cst_83 {dimension_numbers = #tpu.dot_dimension_numbers<[1], [1], [0], [0], [0, 0, 1, 0], [], []>} : vector<8x8xbf16>, vector<8x8xbf16>, vector<8x8xf32> -> vector<8x8xf32>
    %cst_84 = arith.constant 0.353553385 : f32
    %125 = vector.broadcast %cst_84 : f32 to vector<8x8xf32>
    %126 = arith.mulf %124, %125 : vector<8x8xf32>
    %cst_85 = arith.constant dense<0xFF800000> : vector<8xf32>
    %127 = vector.multi_reduction <maximumf>, %126, %cst_85 [1] : vector<8x8xf32> to vector<8xf32>
    %128 = vector.shape_cast %127 : vector<8xf32> to vector<8x1xf32>
    %129 = vector.broadcast %128 : vector<8x1xf32> to vector<8x8xf32>
    %130 = arith.subf %126, %129 : vector<8x8xf32>
    %131 = math.exp %130 : vector<8x8xf32>
    %cst_86 = arith.constant dense<0.000000e+00> : vector<8xf32>
    %132 = vector.multi_reduction <add>, %131, %cst_86 [1] : vector<8x8xf32> to vector<8xf32>
    %133 = vector.shape_cast %132 : vector<8xf32> to vector<8x1xf32>
    %134 = tpu.reciprocal %133 {approx = true} : vector<8x1xf32> -> vector<8x1xf32>
    %135 = vector.broadcast %134 : vector<8x1xf32> to vector<8x8xf32>
    %136 = arith.mulf %131, %135 : vector<8x8xf32>
    %137 = arith.truncf %136 : vector<8x8xf32> to vector<8x8xbf16>
    %138 = arith.truncf %105 : vector<8x8xf32> to vector<8x8xbf16>
    %cst_87 = arith.constant dense<0.000000e+00> : vector<8x8xf32>
    %139 = tpu.matmul %137, %138, %cst_87 {dimension_numbers = #tpu.dot_dimension_numbers<[1], [0], [0], [1], [0, 0, 1, 1], [], []>} : vector<8x8xbf16>, vector<8x8xbf16>, vector<8x8xf32> -> vector<8x8xf32>
    %c2_88 = arith.constant 2 : index
    %c0_89 = arith.constant 0 : index
    %c0_90 = arith.constant 0 : index
    %140 = vector.load %arg9[%c2_88, %c0_89, %c0_90] : memref<16x8x32xbf16, #tpu.memory_space<vmem>>, vector<1x8x32xbf16>
    %141 = vector.shape_cast %140 : vector<1x8x32xbf16> to vector<8x32xbf16>
    %142 = arith.truncf %139 : vector<8x8xf32> to vector<8x8xbf16>
    %cst_91 = arith.constant dense<0.000000e+00> : vector<8x32xf32>
    %143 = tpu.matmul %142, %141, %cst_91 {dimension_numbers = #tpu.dot_dimension_numbers<[1], [0], [0], [1], [0, 0, 1, 1], [], []>} : vector<8x8xbf16>, vector<8x32xbf16>, vector<8x32xf32> -> vector<8x32xf32>
    %144 = arith.addf %97, %143 : vector<8x32xf32>
    %c3 = arith.constant 3 : index
    %c0_92 = arith.constant 0 : index
    %c0_93 = arith.constant 0 : index
    %145 = vector.load %arg7[%c3, %c0_92, %c0_93] : memref<16x32x8xbf16, #tpu.memory_space<vmem>>, vector<1x32x8xbf16>
    %146 = vector.shape_cast %145 : vector<1x32x8xbf16> to vector<32x8xbf16>
    %147 = arith.truncf %0 : vector<8x32xf32> to vector<8x32xbf16>
    %cst_94 = arith.constant dense<0.000000e+00> : vector<8x8xf32>
    %148 = tpu.matmul %147, %146, %cst_94 {dimension_numbers = #tpu.dot_dimension_numbers<[1], [0], [0], [1], [0, 0, 1, 1], [], []>} : vector<8x32xbf16>, vector<32x8xbf16>, vector<8x8xf32> -> vector<8x8xf32>
    %c3_95 = arith.constant 3 : index
    %c0_96 = arith.constant 0 : index
    %c0_97 = arith.constant 0 : index
    %149 = vector.load %arg8[%c3_95, %c0_96, %c0_97] : memref<16x1x8xf32, #tpu.memory_space<vmem>>, vector<1x1x8xf32>
    %150 = vector.shape_cast %149 : vector<1x1x8xf32> to vector<1x8xf32>
    %151 = vector.broadcast %150 : vector<1x8xf32> to vector<8x8xf32>
    %152 = arith.addf %148, %151 : vector<8x8xf32>
    %c3_98 = arith.constant 3 : index
    %c0_99 = arith.constant 0 : index
    %c0_100 = arith.constant 0 : index
    %153 = vector.load %arg3[%c3_98, %c0_99, %c0_100] : memref<16x32x8xbf16, #tpu.memory_space<vmem>>, vector<1x32x8xbf16>
    %154 = vector.shape_cast %153 : vector<1x32x8xbf16> to vector<32x8xbf16>
    %155 = arith.truncf %0 : vector<8x32xf32> to vector<8x32xbf16>
    %cst_101 = arith.constant dense<0.000000e+00> : vector<8x8xf32>
    %156 = tpu.matmul %155, %154, %cst_101 {dimension_numbers = #tpu.dot_dimension_numbers<[1], [0], [0], [1], [0, 0, 1, 1], [], []>} : vector<8x32xbf16>, vector<32x8xbf16>, vector<8x8xf32> -> vector<8x8xf32>
    %c3_102 = arith.constant 3 : index
    %c0_103 = arith.constant 0 : index
    %c0_104 = arith.constant 0 : index
    %157 = vector.load %arg4[%c3_102, %c0_103, %c0_104] : memref<16x1x8xf32, #tpu.memory_space<vmem>>, vector<1x1x8xf32>
    %158 = vector.shape_cast %157 : vector<1x1x8xf32> to vector<1x8xf32>
    %159 = vector.broadcast %158 : vector<1x8xf32> to vector<8x8xf32>
    %160 = arith.addf %156, %159 : vector<8x8xf32>
    %c3_105 = arith.constant 3 : index
    %c0_106 = arith.constant 0 : index
    %c0_107 = arith.constant 0 : index
    %161 = vector.load %arg5[%c3_105, %c0_106, %c0_107] : memref<16x32x8xbf16, #tpu.memory_space<vmem>>, vector<1x32x8xbf16>
    %162 = vector.shape_cast %161 : vector<1x32x8xbf16> to vector<32x8xbf16>
    %163 = arith.truncf %0 : vector<8x32xf32> to vector<8x32xbf16>
    %cst_108 = arith.constant dense<0.000000e+00> : vector<8x8xf32>
    %164 = tpu.matmul %163, %162, %cst_108 {dimension_numbers = #tpu.dot_dimension_numbers<[1], [0], [0], [1], [0, 0, 1, 1], [], []>} : vector<8x32xbf16>, vector<32x8xbf16>, vector<8x8xf32> -> vector<8x8xf32>
    %c3_109 = arith.constant 3 : index
    %c0_110 = arith.constant 0 : index
    %c0_111 = arith.constant 0 : index
    %165 = vector.load %arg6[%c3_109, %c0_110, %c0_111] : memref<16x1x8xf32, #tpu.memory_space<vmem>>, vector<1x1x8xf32>
    %166 = vector.shape_cast %165 : vector<1x1x8xf32> to vector<1x8xf32>
    %167 = vector.broadcast %166 : vector<1x8xf32> to vector<8x8xf32>
    %168 = arith.addf %164, %167 : vector<8x8xf32>
    %169 = arith.truncf %160 : vector<8x8xf32> to vector<8x8xbf16>
    %170 = arith.truncf %168 : vector<8x8xf32> to vector<8x8xbf16>
    %cst_112 = arith.constant dense<0.000000e+00> : vector<8x8xf32>
    %171 = tpu.matmul %169, %170, %cst_112 {dimension_numbers = #tpu.dot_dimension_numbers<[1], [1], [0], [0], [0, 0, 1, 0], [], []>} : vector<8x8xbf16>, vector<8x8xbf16>, vector<8x8xf32> -> vector<8x8xf32>
    %cst_113 = arith.constant 0.353553385 : f32
    %172 = vector.broadcast %cst_113 : f32 to vector<8x8xf32>
    %173 = arith.mulf %171, %172 : vector<8x8xf32>
    %cst_114 = arith.constant dense<0xFF800000> : vector<8xf32>
    %174 = vector.multi_reduction <maximumf>, %173, %cst_114 [1] : vector<8x8xf32> to vector<8xf32>
    %175 = vector.shape_cast %174 : vector<8xf32> to vector<8x1xf32>
    %176 = vector.broadcast %175 : vector<8x1xf32> to vector<8x8xf32>
    %177 = arith.subf %173, %176 : vector<8x8xf32>
    %178 = math.exp %177 : vector<8x8xf32>
    %cst_115 = arith.constant dense<0.000000e+00> : vector<8xf32>
    %179 = vector.multi_reduction <add>, %178, %cst_115 [1] : vector<8x8xf32> to vector<8xf32>
    %180 = vector.shape_cast %179 : vector<8xf32> to vector<8x1xf32>
    %181 = tpu.reciprocal %180 {approx = true} : vector<8x1xf32> -> vector<8x1xf32>
    %182 = vector.broadcast %181 : vector<8x1xf32> to vector<8x8xf32>
    %183 = arith.mulf %178, %182 : vector<8x8xf32>
    %184 = arith.truncf %183 : vector<8x8xf32> to vector<8x8xbf16>
    %185 = arith.truncf %152 : vector<8x8xf32> to vector<8x8xbf16>
    %cst_116 = arith.constant dense<0.000000e+00> : vector<8x8xf32>
    %186 = tpu.matmul %184, %185, %cst_116 {dimension_numbers = #tpu.dot_dimension_numbers<[1], [0], [0], [1], [0, 0, 1, 1], [], []>} : vector<8x8xbf16>, vector<8x8xbf16>, vector<8x8xf32> -> vector<8x8xf32>
    %c3_117 = arith.constant 3 : index
    %c0_118 = arith.constant 0 : index
    %c0_119 = arith.constant 0 : index
    %187 = vector.load %arg9[%c3_117, %c0_118, %c0_119] : memref<16x8x32xbf16, #tpu.memory_space<vmem>>, vector<1x8x32xbf16>
    %188 = vector.shape_cast %187 : vector<1x8x32xbf16> to vector<8x32xbf16>
    %189 = arith.truncf %186 : vector<8x8xf32> to vector<8x8xbf16>
    %cst_120 = arith.constant dense<0.000000e+00> : vector<8x32xf32>
    %190 = tpu.matmul %189, %188, %cst_120 {dimension_numbers = #tpu.dot_dimension_numbers<[1], [0], [0], [1], [0, 0, 1, 1], [], []>} : vector<8x8xbf16>, vector<8x32xbf16>, vector<8x32xf32> -> vector<8x32xf32>
    %191 = arith.addf %144, %190 : vector<8x32xf32>
    %c0_121 = arith.constant 0 : index
    %c0_122 = arith.constant 0 : index
    %c0_123 = arith.constant 0 : index
    %192 = vector.load %arg10[%c0_121, %c0_122, %c0_123] : memref<4x1x32xf32, #tpu.memory_space<vmem>>, vector<1x1x32xf32>
    %193 = vector.shape_cast %192 : vector<1x1x32xf32> to vector<1x32xf32>
    %194 = vector.broadcast %193 : vector<1x32xf32> to vector<8x32xf32>
    %195 = arith.addf %191, %194 : vector<8x32xf32>
    %196 = arith.addf %0, %195 : vector<8x32xf32>
    %cst_124 = arith.constant dense<0.000000e+00> : vector<8xf32>
    %197 = vector.multi_reduction <add>, %196, %cst_124 [1] : vector<8x32xf32> to vector<8xf32>
    %198 = vector.shape_cast %197 : vector<8xf32> to vector<8x1xf32>
    %cst_125 = arith.constant 3.200000e+01 : f32
    %199 = vector.broadcast %cst_125 : f32 to vector<8x1xf32>
    %200 = arith.divf %198, %199 : vector<8x1xf32>
    %201 = vector.broadcast %200 : vector<8x1xf32> to vector<8x32xf32>
    %202 = arith.subf %196, %201 : vector<8x32xf32>
    %203 = arith.mulf %202, %202 : vector<8x32xf32>
    %cst_126 = arith.constant dense<0.000000e+00> : vector<8xf32>
    %204 = vector.multi_reduction <add>, %203, %cst_126 [1] : vector<8x32xf32> to vector<8xf32>
    %205 = vector.shape_cast %204 : vector<8xf32> to vector<8x1xf32>
    %cst_127 = arith.constant 3.200000e+01 : f32
    %206 = vector.broadcast %cst_127 : f32 to vector<8x1xf32>
    %207 = arith.divf %205, %206 : vector<8x1xf32>
    %208 = vector.broadcast %200 : vector<8x1xf32> to vector<8x32xf32>
    %209 = arith.subf %196, %208 : vector<8x32xf32>
    %cst_128 = arith.constant 9.99999974E-6 : f32
    %210 = vector.broadcast %cst_128 : f32 to vector<8x1xf32>
    %211 = arith.addf %207, %210 : vector<8x1xf32>
    %212 = math.rsqrt %211 : vector<8x1xf32>
    %213 = vector.broadcast %212 : vector<8x1xf32> to vector<8x32xf32>
    %214 = arith.mulf %209, %213 : vector<8x32xf32>
    %c0_129 = arith.constant 0 : index
    %c0_130 = arith.constant 0 : index
    %c0_131 = arith.constant 0 : index
    %215 = vector.load %arg15[%c0_129, %c0_130, %c0_131] : memref<6x1x32xf32, #tpu.memory_space<vmem>>, vector<1x1x32xf32>
    %216 = vector.shape_cast %215 : vector<1x1x32xf32> to vector<1x32xf32>
    %217 = vector.broadcast %216 : vector<1x32xf32> to vector<8x32xf32>
    %218 = arith.mulf %214, %217 : vector<8x32xf32>
    %c0_132 = arith.constant 0 : index
    %c0_133 = arith.constant 0 : index
    %c0_134 = arith.constant 0 : index
    %219 = vector.load %arg16[%c0_132, %c0_133, %c0_134] : memref<6x1x32xf32, #tpu.memory_space<vmem>>, vector<1x1x32xf32>
    %220 = vector.shape_cast %219 : vector<1x1x32xf32> to vector<1x32xf32>
    %221 = vector.broadcast %220 : vector<1x32xf32> to vector<8x32xf32>
    %222 = arith.addf %218, %221 : vector<8x32xf32>
    %cst_135 = arith.constant 0.000000e+00 : f32
    %223 = vector.broadcast %cst_135 : f32 to vector<8x32xf32>
    %c8 = arith.constant 8 : index
    %c0_136 = arith.constant 0 : index
    %c0_137 = arith.constant 0 : index
    %224 = vector.load %arg7[%c8, %c0_136, %c0_137] : memref<16x32x8xbf16, #tpu.memory_space<vmem>>, vector<1x32x8xbf16>
    %225 = vector.shape_cast %224 : vector<1x32x8xbf16> to vector<32x8xbf16>
    %226 = arith.truncf %2 : vector<1x32xf32> to vector<1x32xbf16>
    %cst_138 = arith.constant dense<0.000000e+00> : vector<1x8xf32>
    %227 = tpu.matmul %226, %225, %cst_138 {dimension_numbers = #tpu.dot_dimension_numbers<[1], [0], [0], [1], [0, 0, 1, 1], [], []>} : vector<1x32xbf16>, vector<32x8xbf16>, vector<1x8xf32> -> vector<1x8xf32>
    %c8_139 = arith.constant 8 : index
    %c0_140 = arith.constant 0 : index
    %c0_141 = arith.constant 0 : index
    %228 = vector.load %arg8[%c8_139, %c0_140, %c0_141] : memref<16x1x8xf32, #tpu.memory_space<vmem>>, vector<1x1x8xf32>
    %229 = vector.shape_cast %228 : vector<1x1x8xf32> to vector<1x8xf32>
    %230 = arith.addf %227, %229 : vector<1x8xf32>
    %231 = vector.shape_cast %230 : vector<1x8xf32> to vector<1x8xf32>
    %232 = vector.broadcast %231 : vector<1x8xf32> to vector<8x8xf32>
    %c8_142 = arith.constant 8 : index
    %c0_143 = arith.constant 0 : index
    %c0_144 = arith.constant 0 : index
    %233 = vector.load %arg9[%c8_142, %c0_143, %c0_144] : memref<16x8x32xbf16, #tpu.memory_space<vmem>>, vector<1x8x32xbf16>
    %234 = vector.shape_cast %233 : vector<1x8x32xbf16> to vector<8x32xbf16>
    %235 = arith.truncf %232 : vector<8x8xf32> to vector<8x8xbf16>
    %cst_145 = arith.constant dense<0.000000e+00> : vector<8x32xf32>
    %236 = tpu.matmul %235, %234, %cst_145 {dimension_numbers = #tpu.dot_dimension_numbers<[1], [0], [0], [1], [0, 0, 1, 1], [], []>} : vector<8x8xbf16>, vector<8x32xbf16>, vector<8x32xf32> -> vector<8x32xf32>
    %237 = arith.addf %223, %236 : vector<8x32xf32>
    %c9 = arith.constant 9 : index
    %c0_146 = arith.constant 0 : index
    %c0_147 = arith.constant 0 : index
    %238 = vector.load %arg7[%c9, %c0_146, %c0_147] : memref<16x32x8xbf16, #tpu.memory_space<vmem>>, vector<1x32x8xbf16>
    %239 = vector.shape_cast %238 : vector<1x32x8xbf16> to vector<32x8xbf16>
    %240 = arith.truncf %2 : vector<1x32xf32> to vector<1x32xbf16>
    %cst_148 = arith.constant dense<0.000000e+00> : vector<1x8xf32>
    %241 = tpu.matmul %240, %239, %cst_148 {dimension_numbers = #tpu.dot_dimension_numbers<[1], [0], [0], [1], [0, 0, 1, 1], [], []>} : vector<1x32xbf16>, vector<32x8xbf16>, vector<1x8xf32> -> vector<1x8xf32>
    %c9_149 = arith.constant 9 : index
    %c0_150 = arith.constant 0 : index
    %c0_151 = arith.constant 0 : index
    %242 = vector.load %arg8[%c9_149, %c0_150, %c0_151] : memref<16x1x8xf32, #tpu.memory_space<vmem>>, vector<1x1x8xf32>
    %243 = vector.shape_cast %242 : vector<1x1x8xf32> to vector<1x8xf32>
    %244 = arith.addf %241, %243 : vector<1x8xf32>
    %245 = vector.shape_cast %244 : vector<1x8xf32> to vector<1x8xf32>
    %246 = vector.broadcast %245 : vector<1x8xf32> to vector<8x8xf32>
    %c9_152 = arith.constant 9 : index
    %c0_153 = arith.constant 0 : index
    %c0_154 = arith.constant 0 : index
    %247 = vector.load %arg9[%c9_152, %c0_153, %c0_154] : memref<16x8x32xbf16, #tpu.memory_space<vmem>>, vector<1x8x32xbf16>
    %248 = vector.shape_cast %247 : vector<1x8x32xbf16> to vector<8x32xbf16>
    %249 = arith.truncf %246 : vector<8x8xf32> to vector<8x8xbf16>
    %cst_155 = arith.constant dense<0.000000e+00> : vector<8x32xf32>
    %250 = tpu.matmul %249, %248, %cst_155 {dimension_numbers = #tpu.dot_dimension_numbers<[1], [0], [0], [1], [0, 0, 1, 1], [], []>} : vector<8x8xbf16>, vector<8x32xbf16>, vector<8x32xf32> -> vector<8x32xf32>
    %251 = arith.addf %237, %250 : vector<8x32xf32>
    %c10 = arith.constant 10 : index
    %c0_156 = arith.constant 0 : index
    %c0_157 = arith.constant 0 : index
    %252 = vector.load %arg7[%c10, %c0_156, %c0_157] : memref<16x32x8xbf16, #tpu.memory_space<vmem>>, vector<1x32x8xbf16>
    %253 = vector.shape_cast %252 : vector<1x32x8xbf16> to vector<32x8xbf16>
    %254 = arith.truncf %2 : vector<1x32xf32> to vector<1x32xbf16>
    %cst_158 = arith.constant dense<0.000000e+00> : vector<1x8xf32>
    %255 = tpu.matmul %254, %253, %cst_158 {dimension_numbers = #tpu.dot_dimension_numbers<[1], [0], [0], [1], [0, 0, 1, 1], [], []>} : vector<1x32xbf16>, vector<32x8xbf16>, vector<1x8xf32> -> vector<1x8xf32>
    %c10_159 = arith.constant 10 : index
    %c0_160 = arith.constant 0 : index
    %c0_161 = arith.constant 0 : index
    %256 = vector.load %arg8[%c10_159, %c0_160, %c0_161] : memref<16x1x8xf32, #tpu.memory_space<vmem>>, vector<1x1x8xf32>
    %257 = vector.shape_cast %256 : vector<1x1x8xf32> to vector<1x8xf32>
    %258 = arith.addf %255, %257 : vector<1x8xf32>
    %259 = vector.shape_cast %258 : vector<1x8xf32> to vector<1x8xf32>
    %260 = vector.broadcast %259 : vector<1x8xf32> to vector<8x8xf32>
    %c10_162 = arith.constant 10 : index
    %c0_163 = arith.constant 0 : index
    %c0_164 = arith.constant 0 : index
    %261 = vector.load %arg9[%c10_162, %c0_163, %c0_164] : memref<16x8x32xbf16, #tpu.memory_space<vmem>>, vector<1x8x32xbf16>
    %262 = vector.shape_cast %261 : vector<1x8x32xbf16> to vector<8x32xbf16>
    %263 = arith.truncf %260 : vector<8x8xf32> to vector<8x8xbf16>
    %cst_165 = arith.constant dense<0.000000e+00> : vector<8x32xf32>
    %264 = tpu.matmul %263, %262, %cst_165 {dimension_numbers = #tpu.dot_dimension_numbers<[1], [0], [0], [1], [0, 0, 1, 1], [], []>} : vector<8x8xbf16>, vector<8x32xbf16>, vector<8x32xf32> -> vector<8x32xf32>
    %265 = arith.addf %251, %264 : vector<8x32xf32>
    %c11 = arith.constant 11 : index
    %c0_166 = arith.constant 0 : index
    %c0_167 = arith.constant 0 : index
    %266 = vector.load %arg7[%c11, %c0_166, %c0_167] : memref<16x32x8xbf16, #tpu.memory_space<vmem>>, vector<1x32x8xbf16>
    %267 = vector.shape_cast %266 : vector<1x32x8xbf16> to vector<32x8xbf16>
    %268 = arith.truncf %2 : vector<1x32xf32> to vector<1x32xbf16>
    %cst_168 = arith.constant dense<0.000000e+00> : vector<1x8xf32>
    %269 = tpu.matmul %268, %267, %cst_168 {dimension_numbers = #tpu.dot_dimension_numbers<[1], [0], [0], [1], [0, 0, 1, 1], [], []>} : vector<1x32xbf16>, vector<32x8xbf16>, vector<1x8xf32> -> vector<1x8xf32>
    %c11_169 = arith.constant 11 : index
    %c0_170 = arith.constant 0 : index
    %c0_171 = arith.constant 0 : index
    %270 = vector.load %arg8[%c11_169, %c0_170, %c0_171] : memref<16x1x8xf32, #tpu.memory_space<vmem>>, vector<1x1x8xf32>
    %271 = vector.shape_cast %270 : vector<1x1x8xf32> to vector<1x8xf32>
    %272 = arith.addf %269, %271 : vector<1x8xf32>
    %273 = vector.shape_cast %272 : vector<1x8xf32> to vector<1x8xf32>
    %274 = vector.broadcast %273 : vector<1x8xf32> to vector<8x8xf32>
    %c11_172 = arith.constant 11 : index
    %c0_173 = arith.constant 0 : index
    %c0_174 = arith.constant 0 : index
    %275 = vector.load %arg9[%c11_172, %c0_173, %c0_174] : memref<16x8x32xbf16, #tpu.memory_space<vmem>>, vector<1x8x32xbf16>
    %276 = vector.shape_cast %275 : vector<1x8x32xbf16> to vector<8x32xbf16>
    %277 = arith.truncf %274 : vector<8x8xf32> to vector<8x8xbf16>
    %cst_175 = arith.constant dense<0.000000e+00> : vector<8x32xf32>
    %278 = tpu.matmul %277, %276, %cst_175 {dimension_numbers = #tpu.dot_dimension_numbers<[1], [0], [0], [1], [0, 0, 1, 1], [], []>} : vector<8x8xbf16>, vector<8x32xbf16>, vector<8x32xf32> -> vector<8x32xf32>
    %279 = arith.addf %265, %278 : vector<8x32xf32>
    %c2_176 = arith.constant 2 : index
    %c0_177 = arith.constant 0 : index
    %c0_178 = arith.constant 0 : index
    %280 = vector.load %arg10[%c2_176, %c0_177, %c0_178] : memref<4x1x32xf32, #tpu.memory_space<vmem>>, vector<1x1x32xf32>
    %281 = vector.shape_cast %280 : vector<1x1x32xf32> to vector<1x32xf32>
    %282 = vector.broadcast %281 : vector<1x32xf32> to vector<8x32xf32>
    %283 = arith.addf %279, %282 : vector<8x32xf32>
    %284 = arith.addf %222, %283 : vector<8x32xf32>
    %cst_179 = arith.constant dense<0.000000e+00> : vector<8xf32>
    %285 = vector.multi_reduction <add>, %284, %cst_179 [1] : vector<8x32xf32> to vector<8xf32>
    %286 = vector.shape_cast %285 : vector<8xf32> to vector<8x1xf32>
    %cst_180 = arith.constant 3.200000e+01 : f32
    %287 = vector.broadcast %cst_180 : f32 to vector<8x1xf32>
    %288 = arith.divf %286, %287 : vector<8x1xf32>
    %289 = vector.broadcast %288 : vector<8x1xf32> to vector<8x32xf32>
    %290 = arith.subf %284, %289 : vector<8x32xf32>
    %291 = arith.mulf %290, %290 : vector<8x32xf32>
    %cst_181 = arith.constant dense<0.000000e+00> : vector<8xf32>
    %292 = vector.multi_reduction <add>, %291, %cst_181 [1] : vector<8x32xf32> to vector<8xf32>
    %293 = vector.shape_cast %292 : vector<8xf32> to vector<8x1xf32>
    %cst_182 = arith.constant 3.200000e+01 : f32
    %294 = vector.broadcast %cst_182 : f32 to vector<8x1xf32>
    %295 = arith.divf %293, %294 : vector<8x1xf32>
    %296 = vector.broadcast %288 : vector<8x1xf32> to vector<8x32xf32>
    %297 = arith.subf %284, %296 : vector<8x32xf32>
    %cst_183 = arith.constant 9.99999974E-6 : f32
    %298 = vector.broadcast %cst_183 : f32 to vector<8x1xf32>
    %299 = arith.addf %295, %298 : vector<8x1xf32>
    %300 = math.rsqrt %299 : vector<8x1xf32>
    %301 = vector.broadcast %300 : vector<8x1xf32> to vector<8x32xf32>
    %302 = arith.mulf %297, %301 : vector<8x32xf32>
    %c1_184 = arith.constant 1 : index
    %c0_185 = arith.constant 0 : index
    %c0_186 = arith.constant 0 : index
    %303 = vector.load %arg15[%c1_184, %c0_185, %c0_186] : memref<6x1x32xf32, #tpu.memory_space<vmem>>, vector<1x1x32xf32>
    %304 = vector.shape_cast %303 : vector<1x1x32xf32> to vector<1x32xf32>
    %305 = vector.broadcast %304 : vector<1x32xf32> to vector<8x32xf32>
    %306 = arith.mulf %302, %305 : vector<8x32xf32>
    %c1_187 = arith.constant 1 : index
    %c0_188 = arith.constant 0 : index
    %c0_189 = arith.constant 0 : index
    %307 = vector.load %arg16[%c1_187, %c0_188, %c0_189] : memref<6x1x32xf32, #tpu.memory_space<vmem>>, vector<1x1x32xf32>
    %308 = vector.shape_cast %307 : vector<1x1x32xf32> to vector<1x32xf32>
    %309 = vector.broadcast %308 : vector<1x32xf32> to vector<8x32xf32>
    %310 = arith.addf %306, %309 : vector<8x32xf32>
    %c0_190 = arith.constant 0 : index
    %c0_191 = arith.constant 0 : index
    %c0_192 = arith.constant 0 : index
    %311 = vector.load %arg11[%c0_190, %c0_191, %c0_192] : memref<2x32x128xbf16, #tpu.memory_space<vmem>>, vector<1x32x128xbf16>
    %312 = vector.shape_cast %311 : vector<1x32x128xbf16> to vector<32x128xbf16>
    %313 = arith.truncf %310 : vector<8x32xf32> to vector<8x32xbf16>
    %cst_193 = arith.constant dense<0.000000e+00> : vector<8x128xf32>
    %314 = tpu.matmul %313, %312, %cst_193 {dimension_numbers = #tpu.dot_dimension_numbers<[1], [0], [0], [1], [0, 0, 1, 1], [], []>} : vector<8x32xbf16>, vector<32x128xbf16>, vector<8x128xf32> -> vector<8x128xf32>
    %c0_194 = arith.constant 0 : index
    %c0_195 = arith.constant 0 : index
    %c0_196 = arith.constant 0 : index
    %315 = vector.load %arg12[%c0_194, %c0_195, %c0_196] : memref<2x1x128xf32, #tpu.memory_space<vmem>>, vector<1x1x128xf32>
    %316 = vector.shape_cast %315 : vector<1x1x128xf32> to vector<1x128xf32>
    %317 = vector.broadcast %316 : vector<1x128xf32> to vector<8x128xf32>
    %318 = arith.addf %314, %317 : vector<8x128xf32>
    %cst_197 = arith.constant 0.000000e+00 : f32
    %319 = vector.broadcast %cst_197 : f32 to vector<8x128xf32>
    %320 = arith.maximumf %318, %319 : vector<8x128xf32>
    %c0_198 = arith.constant 0 : index
    %c0_199 = arith.constant 0 : index
    %c0_200 = arith.constant 0 : index
    %321 = vector.load %arg13[%c0_198, %c0_199, %c0_200] : memref<2x128x32xbf16, #tpu.memory_space<vmem>>, vector<1x128x32xbf16>
    %322 = vector.shape_cast %321 : vector<1x128x32xbf16> to vector<128x32xbf16>
    %323 = arith.truncf %320 : vector<8x128xf32> to vector<8x128xbf16>
    %cst_201 = arith.constant dense<0.000000e+00> : vector<8x32xf32>
    %324 = tpu.matmul %323, %322, %cst_201 {dimension_numbers = #tpu.dot_dimension_numbers<[1], [0], [0], [1], [0, 0, 1, 1], [], []>} : vector<8x128xbf16>, vector<128x32xbf16>, vector<8x32xf32> -> vector<8x32xf32>
    %325 = arith.addf %310, %324 : vector<8x32xf32>
    %c0_202 = arith.constant 0 : index
    %c0_203 = arith.constant 0 : index
    %c0_204 = arith.constant 0 : index
    %326 = vector.load %arg14[%c0_202, %c0_203, %c0_204] : memref<2x1x32xf32, #tpu.memory_space<vmem>>, vector<1x1x32xf32>
    %327 = vector.shape_cast %326 : vector<1x1x32xf32> to vector<1x32xf32>
    %328 = vector.broadcast %327 : vector<1x32xf32> to vector<8x32xf32>
    %329 = arith.addf %325, %328 : vector<8x32xf32>
    %cst_205 = arith.constant dense<0.000000e+00> : vector<8xf32>
    %330 = vector.multi_reduction <add>, %329, %cst_205 [1] : vector<8x32xf32> to vector<8xf32>
    %331 = vector.shape_cast %330 : vector<8xf32> to vector<8x1xf32>
    %cst_206 = arith.constant 3.200000e+01 : f32
    %332 = vector.broadcast %cst_206 : f32 to vector<8x1xf32>
    %333 = arith.divf %331, %332 : vector<8x1xf32>
    %334 = vector.broadcast %333 : vector<8x1xf32> to vector<8x32xf32>
    %335 = arith.subf %329, %334 : vector<8x32xf32>
    %336 = arith.mulf %335, %335 : vector<8x32xf32>
    %cst_207 = arith.constant dense<0.000000e+00> : vector<8xf32>
    %337 = vector.multi_reduction <add>, %336, %cst_207 [1] : vector<8x32xf32> to vector<8xf32>
    %338 = vector.shape_cast %337 : vector<8xf32> to vector<8x1xf32>
    %cst_208 = arith.constant 3.200000e+01 : f32
    %339 = vector.broadcast %cst_208 : f32 to vector<8x1xf32>
    %340 = arith.divf %338, %339 : vector<8x1xf32>
    %341 = vector.broadcast %333 : vector<8x1xf32> to vector<8x32xf32>
    %342 = arith.subf %329, %341 : vector<8x32xf32>
    %cst_209 = arith.constant 9.99999974E-6 : f32
    %343 = vector.broadcast %cst_209 : f32 to vector<8x1xf32>
    %344 = arith.addf %340, %343 : vector<8x1xf32>
    %345 = math.rsqrt %344 : vector<8x1xf32>
    %346 = vector.broadcast %345 : vector<8x1xf32> to vector<8x32xf32>
    %347 = arith.mulf %342, %346 : vector<8x32xf32>
    %c2_210 = arith.constant 2 : index
    %c0_211 = arith.constant 0 : index
    %c0_212 = arith.constant 0 : index
    %348 = vector.load %arg15[%c2_210, %c0_211, %c0_212] : memref<6x1x32xf32, #tpu.memory_space<vmem>>, vector<1x1x32xf32>
    %349 = vector.shape_cast %348 : vector<1x1x32xf32> to vector<1x32xf32>
    %350 = vector.broadcast %349 : vector<1x32xf32> to vector<8x32xf32>
    %351 = arith.mulf %347, %350 : vector<8x32xf32>
    %c2_213 = arith.constant 2 : index
    %c0_214 = arith.constant 0 : index
    %c0_215 = arith.constant 0 : index
    %352 = vector.load %arg16[%c2_213, %c0_214, %c0_215] : memref<6x1x32xf32, #tpu.memory_space<vmem>>, vector<1x1x32xf32>
    %353 = vector.shape_cast %352 : vector<1x1x32xf32> to vector<1x32xf32>
    %354 = vector.broadcast %353 : vector<1x32xf32> to vector<8x32xf32>
    %355 = arith.addf %351, %354 : vector<8x32xf32>
    %cst_216 = arith.constant 0.000000e+00 : f32
    %356 = vector.broadcast %cst_216 : f32 to vector<8x32xf32>
    %c4 = arith.constant 4 : index
    %c0_217 = arith.constant 0 : index
    %c0_218 = arith.constant 0 : index
    %357 = vector.load %arg7[%c4, %c0_217, %c0_218] : memref<16x32x8xbf16, #tpu.memory_space<vmem>>, vector<1x32x8xbf16>
    %358 = vector.shape_cast %357 : vector<1x32x8xbf16> to vector<32x8xbf16>
    %359 = arith.truncf %355 : vector<8x32xf32> to vector<8x32xbf16>
    %cst_219 = arith.constant dense<0.000000e+00> : vector<8x8xf32>
    %360 = tpu.matmul %359, %358, %cst_219 {dimension_numbers = #tpu.dot_dimension_numbers<[1], [0], [0], [1], [0, 0, 1, 1], [], []>} : vector<8x32xbf16>, vector<32x8xbf16>, vector<8x8xf32> -> vector<8x8xf32>
    %c4_220 = arith.constant 4 : index
    %c0_221 = arith.constant 0 : index
    %c0_222 = arith.constant 0 : index
    %361 = vector.load %arg8[%c4_220, %c0_221, %c0_222] : memref<16x1x8xf32, #tpu.memory_space<vmem>>, vector<1x1x8xf32>
    %362 = vector.shape_cast %361 : vector<1x1x8xf32> to vector<1x8xf32>
    %363 = vector.broadcast %362 : vector<1x8xf32> to vector<8x8xf32>
    %364 = arith.addf %360, %363 : vector<8x8xf32>
    %c4_223 = arith.constant 4 : index
    %c0_224 = arith.constant 0 : index
    %c0_225 = arith.constant 0 : index
    %365 = vector.load %arg3[%c4_223, %c0_224, %c0_225] : memref<16x32x8xbf16, #tpu.memory_space<vmem>>, vector<1x32x8xbf16>
    %366 = vector.shape_cast %365 : vector<1x32x8xbf16> to vector<32x8xbf16>
    %367 = arith.truncf %355 : vector<8x32xf32> to vector<8x32xbf16>
    %cst_226 = arith.constant dense<0.000000e+00> : vector<8x8xf32>
    %368 = tpu.matmul %367, %366, %cst_226 {dimension_numbers = #tpu.dot_dimension_numbers<[1], [0], [0], [1], [0, 0, 1, 1], [], []>} : vector<8x32xbf16>, vector<32x8xbf16>, vector<8x8xf32> -> vector<8x8xf32>
    %c4_227 = arith.constant 4 : index
    %c0_228 = arith.constant 0 : index
    %c0_229 = arith.constant 0 : index
    %369 = vector.load %arg4[%c4_227, %c0_228, %c0_229] : memref<16x1x8xf32, #tpu.memory_space<vmem>>, vector<1x1x8xf32>
    %370 = vector.shape_cast %369 : vector<1x1x8xf32> to vector<1x8xf32>
    %371 = vector.broadcast %370 : vector<1x8xf32> to vector<8x8xf32>
    %372 = arith.addf %368, %371 : vector<8x8xf32>
    %c4_230 = arith.constant 4 : index
    %c0_231 = arith.constant 0 : index
    %c0_232 = arith.constant 0 : index
    %373 = vector.load %arg5[%c4_230, %c0_231, %c0_232] : memref<16x32x8xbf16, #tpu.memory_space<vmem>>, vector<1x32x8xbf16>
    %374 = vector.shape_cast %373 : vector<1x32x8xbf16> to vector<32x8xbf16>
    %375 = arith.truncf %355 : vector<8x32xf32> to vector<8x32xbf16>
    %cst_233 = arith.constant dense<0.000000e+00> : vector<8x8xf32>
    %376 = tpu.matmul %375, %374, %cst_233 {dimension_numbers = #tpu.dot_dimension_numbers<[1], [0], [0], [1], [0, 0, 1, 1], [], []>} : vector<8x32xbf16>, vector<32x8xbf16>, vector<8x8xf32> -> vector<8x8xf32>
    %c4_234 = arith.constant 4 : index
    %c0_235 = arith.constant 0 : index
    %c0_236 = arith.constant 0 : index
    %377 = vector.load %arg6[%c4_234, %c0_235, %c0_236] : memref<16x1x8xf32, #tpu.memory_space<vmem>>, vector<1x1x8xf32>
    %378 = vector.shape_cast %377 : vector<1x1x8xf32> to vector<1x8xf32>
    %379 = vector.broadcast %378 : vector<1x8xf32> to vector<8x8xf32>
    %380 = arith.addf %376, %379 : vector<8x8xf32>
    %381 = arith.truncf %372 : vector<8x8xf32> to vector<8x8xbf16>
    %382 = arith.truncf %380 : vector<8x8xf32> to vector<8x8xbf16>
    %cst_237 = arith.constant dense<0.000000e+00> : vector<8x8xf32>
    %383 = tpu.matmul %381, %382, %cst_237 {dimension_numbers = #tpu.dot_dimension_numbers<[1], [1], [0], [0], [0, 0, 1, 0], [], []>} : vector<8x8xbf16>, vector<8x8xbf16>, vector<8x8xf32> -> vector<8x8xf32>
    %cst_238 = arith.constant 0.353553385 : f32
    %384 = vector.broadcast %cst_238 : f32 to vector<8x8xf32>
    %385 = arith.mulf %383, %384 : vector<8x8xf32>
    %cst_239 = arith.constant dense<0xFF800000> : vector<8xf32>
    %386 = vector.multi_reduction <maximumf>, %385, %cst_239 [1] : vector<8x8xf32> to vector<8xf32>
    %387 = vector.shape_cast %386 : vector<8xf32> to vector<8x1xf32>
    %388 = vector.broadcast %387 : vector<8x1xf32> to vector<8x8xf32>
    %389 = arith.subf %385, %388 : vector<8x8xf32>
    %390 = math.exp %389 : vector<8x8xf32>
    %cst_240 = arith.constant dense<0.000000e+00> : vector<8xf32>
    %391 = vector.multi_reduction <add>, %390, %cst_240 [1] : vector<8x8xf32> to vector<8xf32>
    %392 = vector.shape_cast %391 : vector<8xf32> to vector<8x1xf32>
    %393 = tpu.reciprocal %392 {approx = true} : vector<8x1xf32> -> vector<8x1xf32>
    %394 = vector.broadcast %393 : vector<8x1xf32> to vector<8x8xf32>
    %395 = arith.mulf %390, %394 : vector<8x8xf32>
    %396 = arith.truncf %395 : vector<8x8xf32> to vector<8x8xbf16>
    %397 = arith.truncf %364 : vector<8x8xf32> to vector<8x8xbf16>
    %cst_241 = arith.constant dense<0.000000e+00> : vector<8x8xf32>
    %398 = tpu.matmul %396, %397, %cst_241 {dimension_numbers = #tpu.dot_dimension_numbers<[1], [0], [0], [1], [0, 0, 1, 1], [], []>} : vector<8x8xbf16>, vector<8x8xbf16>, vector<8x8xf32> -> vector<8x8xf32>
    %c4_242 = arith.constant 4 : index
    %c0_243 = arith.constant 0 : index
    %c0_244 = arith.constant 0 : index
    %399 = vector.load %arg9[%c4_242, %c0_243, %c0_244] : memref<16x8x32xbf16, #tpu.memory_space<vmem>>, vector<1x8x32xbf16>
    %400 = vector.shape_cast %399 : vector<1x8x32xbf16> to vector<8x32xbf16>
    %401 = arith.truncf %398 : vector<8x8xf32> to vector<8x8xbf16>
    %cst_245 = arith.constant dense<0.000000e+00> : vector<8x32xf32>
    %402 = tpu.matmul %401, %400, %cst_245 {dimension_numbers = #tpu.dot_dimension_numbers<[1], [0], [0], [1], [0, 0, 1, 1], [], []>} : vector<8x8xbf16>, vector<8x32xbf16>, vector<8x32xf32> -> vector<8x32xf32>
    %403 = arith.addf %356, %402 : vector<8x32xf32>
    %c5 = arith.constant 5 : index
    %c0_246 = arith.constant 0 : index
    %c0_247 = arith.constant 0 : index
    %404 = vector.load %arg7[%c5, %c0_246, %c0_247] : memref<16x32x8xbf16, #tpu.memory_space<vmem>>, vector<1x32x8xbf16>
    %405 = vector.shape_cast %404 : vector<1x32x8xbf16> to vector<32x8xbf16>
    %406 = arith.truncf %355 : vector<8x32xf32> to vector<8x32xbf16>
    %cst_248 = arith.constant dense<0.000000e+00> : vector<8x8xf32>
    %407 = tpu.matmul %406, %405, %cst_248 {dimension_numbers = #tpu.dot_dimension_numbers<[1], [0], [0], [1], [0, 0, 1, 1], [], []>} : vector<8x32xbf16>, vector<32x8xbf16>, vector<8x8xf32> -> vector<8x8xf32>
    %c5_249 = arith.constant 5 : index
    %c0_250 = arith.constant 0 : index
    %c0_251 = arith.constant 0 : index
    %408 = vector.load %arg8[%c5_249, %c0_250, %c0_251] : memref<16x1x8xf32, #tpu.memory_space<vmem>>, vector<1x1x8xf32>
    %409 = vector.shape_cast %408 : vector<1x1x8xf32> to vector<1x8xf32>
    %410 = vector.broadcast %409 : vector<1x8xf32> to vector<8x8xf32>
    %411 = arith.addf %407, %410 : vector<8x8xf32>
    %c5_252 = arith.constant 5 : index
    %c0_253 = arith.constant 0 : index
    %c0_254 = arith.constant 0 : index
    %412 = vector.load %arg3[%c5_252, %c0_253, %c0_254] : memref<16x32x8xbf16, #tpu.memory_space<vmem>>, vector<1x32x8xbf16>
    %413 = vector.shape_cast %412 : vector<1x32x8xbf16> to vector<32x8xbf16>
    %414 = arith.truncf %355 : vector<8x32xf32> to vector<8x32xbf16>
    %cst_255 = arith.constant dense<0.000000e+00> : vector<8x8xf32>
    %415 = tpu.matmul %414, %413, %cst_255 {dimension_numbers = #tpu.dot_dimension_numbers<[1], [0], [0], [1], [0, 0, 1, 1], [], []>} : vector<8x32xbf16>, vector<32x8xbf16>, vector<8x8xf32> -> vector<8x8xf32>
    %c5_256 = arith.constant 5 : index
    %c0_257 = arith.constant 0 : index
    %c0_258 = arith.constant 0 : index
    %416 = vector.load %arg4[%c5_256, %c0_257, %c0_258] : memref<16x1x8xf32, #tpu.memory_space<vmem>>, vector<1x1x8xf32>
    %417 = vector.shape_cast %416 : vector<1x1x8xf32> to vector<1x8xf32>
    %418 = vector.broadcast %417 : vector<1x8xf32> to vector<8x8xf32>
    %419 = arith.addf %415, %418 : vector<8x8xf32>
    %c5_259 = arith.constant 5 : index
    %c0_260 = arith.constant 0 : index
    %c0_261 = arith.constant 0 : index
    %420 = vector.load %arg5[%c5_259, %c0_260, %c0_261] : memref<16x32x8xbf16, #tpu.memory_space<vmem>>, vector<1x32x8xbf16>
    %421 = vector.shape_cast %420 : vector<1x32x8xbf16> to vector<32x8xbf16>
    %422 = arith.truncf %355 : vector<8x32xf32> to vector<8x32xbf16>
    %cst_262 = arith.constant dense<0.000000e+00> : vector<8x8xf32>
    %423 = tpu.matmul %422, %421, %cst_262 {dimension_numbers = #tpu.dot_dimension_numbers<[1], [0], [0], [1], [0, 0, 1, 1], [], []>} : vector<8x32xbf16>, vector<32x8xbf16>, vector<8x8xf32> -> vector<8x8xf32>
    %c5_263 = arith.constant 5 : index
    %c0_264 = arith.constant 0 : index
    %c0_265 = arith.constant 0 : index
    %424 = vector.load %arg6[%c5_263, %c0_264, %c0_265] : memref<16x1x8xf32, #tpu.memory_space<vmem>>, vector<1x1x8xf32>
    %425 = vector.shape_cast %424 : vector<1x1x8xf32> to vector<1x8xf32>
    %426 = vector.broadcast %425 : vector<1x8xf32> to vector<8x8xf32>
    %427 = arith.addf %423, %426 : vector<8x8xf32>
    %428 = arith.truncf %419 : vector<8x8xf32> to vector<8x8xbf16>
    %429 = arith.truncf %427 : vector<8x8xf32> to vector<8x8xbf16>
    %cst_266 = arith.constant dense<0.000000e+00> : vector<8x8xf32>
    %430 = tpu.matmul %428, %429, %cst_266 {dimension_numbers = #tpu.dot_dimension_numbers<[1], [1], [0], [0], [0, 0, 1, 0], [], []>} : vector<8x8xbf16>, vector<8x8xbf16>, vector<8x8xf32> -> vector<8x8xf32>
    %cst_267 = arith.constant 0.353553385 : f32
    %431 = vector.broadcast %cst_267 : f32 to vector<8x8xf32>
    %432 = arith.mulf %430, %431 : vector<8x8xf32>
    %cst_268 = arith.constant dense<0xFF800000> : vector<8xf32>
    %433 = vector.multi_reduction <maximumf>, %432, %cst_268 [1] : vector<8x8xf32> to vector<8xf32>
    %434 = vector.shape_cast %433 : vector<8xf32> to vector<8x1xf32>
    %435 = vector.broadcast %434 : vector<8x1xf32> to vector<8x8xf32>
    %436 = arith.subf %432, %435 : vector<8x8xf32>
    %437 = math.exp %436 : vector<8x8xf32>
    %cst_269 = arith.constant dense<0.000000e+00> : vector<8xf32>
    %438 = vector.multi_reduction <add>, %437, %cst_269 [1] : vector<8x8xf32> to vector<8xf32>
    %439 = vector.shape_cast %438 : vector<8xf32> to vector<8x1xf32>
    %440 = tpu.reciprocal %439 {approx = true} : vector<8x1xf32> -> vector<8x1xf32>
    %441 = vector.broadcast %440 : vector<8x1xf32> to vector<8x8xf32>
    %442 = arith.mulf %437, %441 : vector<8x8xf32>
    %443 = arith.truncf %442 : vector<8x8xf32> to vector<8x8xbf16>
    %444 = arith.truncf %411 : vector<8x8xf32> to vector<8x8xbf16>
    %cst_270 = arith.constant dense<0.000000e+00> : vector<8x8xf32>
    %445 = tpu.matmul %443, %444, %cst_270 {dimension_numbers = #tpu.dot_dimension_numbers<[1], [0], [0], [1], [0, 0, 1, 1], [], []>} : vector<8x8xbf16>, vector<8x8xbf16>, vector<8x8xf32> -> vector<8x8xf32>
    %c5_271 = arith.constant 5 : index
    %c0_272 = arith.constant 0 : index
    %c0_273 = arith.constant 0 : index
    %446 = vector.load %arg9[%c5_271, %c0_272, %c0_273] : memref<16x8x32xbf16, #tpu.memory_space<vmem>>, vector<1x8x32xbf16>
    %447 = vector.shape_cast %446 : vector<1x8x32xbf16> to vector<8x32xbf16>
    %448 = arith.truncf %445 : vector<8x8xf32> to vector<8x8xbf16>
    %cst_274 = arith.constant dense<0.000000e+00> : vector<8x32xf32>
    %449 = tpu.matmul %448, %447, %cst_274 {dimension_numbers = #tpu.dot_dimension_numbers<[1], [0], [0], [1], [0, 0, 1, 1], [], []>} : vector<8x8xbf16>, vector<8x32xbf16>, vector<8x32xf32> -> vector<8x32xf32>
    %450 = arith.addf %403, %449 : vector<8x32xf32>
    %c6 = arith.constant 6 : index
    %c0_275 = arith.constant 0 : index
    %c0_276 = arith.constant 0 : index
    %451 = vector.load %arg7[%c6, %c0_275, %c0_276] : memref<16x32x8xbf16, #tpu.memory_space<vmem>>, vector<1x32x8xbf16>
    %452 = vector.shape_cast %451 : vector<1x32x8xbf16> to vector<32x8xbf16>
    %453 = arith.truncf %355 : vector<8x32xf32> to vector<8x32xbf16>
    %cst_277 = arith.constant dense<0.000000e+00> : vector<8x8xf32>
    %454 = tpu.matmul %453, %452, %cst_277 {dimension_numbers = #tpu.dot_dimension_numbers<[1], [0], [0], [1], [0, 0, 1, 1], [], []>} : vector<8x32xbf16>, vector<32x8xbf16>, vector<8x8xf32> -> vector<8x8xf32>
    %c6_278 = arith.constant 6 : index
    %c0_279 = arith.constant 0 : index
    %c0_280 = arith.constant 0 : index
    %455 = vector.load %arg8[%c6_278, %c0_279, %c0_280] : memref<16x1x8xf32, #tpu.memory_space<vmem>>, vector<1x1x8xf32>
    %456 = vector.shape_cast %455 : vector<1x1x8xf32> to vector<1x8xf32>
    %457 = vector.broadcast %456 : vector<1x8xf32> to vector<8x8xf32>
    %458 = arith.addf %454, %457 : vector<8x8xf32>
    %c6_281 = arith.constant 6 : index
    %c0_282 = arith.constant 0 : index
    %c0_283 = arith.constant 0 : index
    %459 = vector.load %arg3[%c6_281, %c0_282, %c0_283] : memref<16x32x8xbf16, #tpu.memory_space<vmem>>, vector<1x32x8xbf16>
    %460 = vector.shape_cast %459 : vector<1x32x8xbf16> to vector<32x8xbf16>
    %461 = arith.truncf %355 : vector<8x32xf32> to vector<8x32xbf16>
    %cst_284 = arith.constant dense<0.000000e+00> : vector<8x8xf32>
    %462 = tpu.matmul %461, %460, %cst_284 {dimension_numbers = #tpu.dot_dimension_numbers<[1], [0], [0], [1], [0, 0, 1, 1], [], []>} : vector<8x32xbf16>, vector<32x8xbf16>, vector<8x8xf32> -> vector<8x8xf32>
    %c6_285 = arith.constant 6 : index
    %c0_286 = arith.constant 0 : index
    %c0_287 = arith.constant 0 : index
    %463 = vector.load %arg4[%c6_285, %c0_286, %c0_287] : memref<16x1x8xf32, #tpu.memory_space<vmem>>, vector<1x1x8xf32>
    %464 = vector.shape_cast %463 : vector<1x1x8xf32> to vector<1x8xf32>
    %465 = vector.broadcast %464 : vector<1x8xf32> to vector<8x8xf32>
    %466 = arith.addf %462, %465 : vector<8x8xf32>
    %c6_288 = arith.constant 6 : index
    %c0_289 = arith.constant 0 : index
    %c0_290 = arith.constant 0 : index
    %467 = vector.load %arg5[%c6_288, %c0_289, %c0_290] : memref<16x32x8xbf16, #tpu.memory_space<vmem>>, vector<1x32x8xbf16>
    %468 = vector.shape_cast %467 : vector<1x32x8xbf16> to vector<32x8xbf16>
    %469 = arith.truncf %355 : vector<8x32xf32> to vector<8x32xbf16>
    %cst_291 = arith.constant dense<0.000000e+00> : vector<8x8xf32>
    %470 = tpu.matmul %469, %468, %cst_291 {dimension_numbers = #tpu.dot_dimension_numbers<[1], [0], [0], [1], [0, 0, 1, 1], [], []>} : vector<8x32xbf16>, vector<32x8xbf16>, vector<8x8xf32> -> vector<8x8xf32>
    %c6_292 = arith.constant 6 : index
    %c0_293 = arith.constant 0 : index
    %c0_294 = arith.constant 0 : index
    %471 = vector.load %arg6[%c6_292, %c0_293, %c0_294] : memref<16x1x8xf32, #tpu.memory_space<vmem>>, vector<1x1x8xf32>
    %472 = vector.shape_cast %471 : vector<1x1x8xf32> to vector<1x8xf32>
    %473 = vector.broadcast %472 : vector<1x8xf32> to vector<8x8xf32>
    %474 = arith.addf %470, %473 : vector<8x8xf32>
    %475 = arith.truncf %466 : vector<8x8xf32> to vector<8x8xbf16>
    %476 = arith.truncf %474 : vector<8x8xf32> to vector<8x8xbf16>
    %cst_295 = arith.constant dense<0.000000e+00> : vector<8x8xf32>
    %477 = tpu.matmul %475, %476, %cst_295 {dimension_numbers = #tpu.dot_dimension_numbers<[1], [1], [0], [0], [0, 0, 1, 0], [], []>} : vector<8x8xbf16>, vector<8x8xbf16>, vector<8x8xf32> -> vector<8x8xf32>
    %cst_296 = arith.constant 0.353553385 : f32
    %478 = vector.broadcast %cst_296 : f32 to vector<8x8xf32>
    %479 = arith.mulf %477, %478 : vector<8x8xf32>
    %cst_297 = arith.constant dense<0xFF800000> : vector<8xf32>
    %480 = vector.multi_reduction <maximumf>, %479, %cst_297 [1] : vector<8x8xf32> to vector<8xf32>
    %481 = vector.shape_cast %480 : vector<8xf32> to vector<8x1xf32>
    %482 = vector.broadcast %481 : vector<8x1xf32> to vector<8x8xf32>
    %483 = arith.subf %479, %482 : vector<8x8xf32>
    %484 = math.exp %483 : vector<8x8xf32>
    %cst_298 = arith.constant dense<0.000000e+00> : vector<8xf32>
    %485 = vector.multi_reduction <add>, %484, %cst_298 [1] : vector<8x8xf32> to vector<8xf32>
    %486 = vector.shape_cast %485 : vector<8xf32> to vector<8x1xf32>
    %487 = tpu.reciprocal %486 {approx = true} : vector<8x1xf32> -> vector<8x1xf32>
    %488 = vector.broadcast %487 : vector<8x1xf32> to vector<8x8xf32>
    %489 = arith.mulf %484, %488 : vector<8x8xf32>
    %490 = arith.truncf %489 : vector<8x8xf32> to vector<8x8xbf16>
    %491 = arith.truncf %458 : vector<8x8xf32> to vector<8x8xbf16>
    %cst_299 = arith.constant dense<0.000000e+00> : vector<8x8xf32>
    %492 = tpu.matmul %490, %491, %cst_299 {dimension_numbers = #tpu.dot_dimension_numbers<[1], [0], [0], [1], [0, 0, 1, 1], [], []>} : vector<8x8xbf16>, vector<8x8xbf16>, vector<8x8xf32> -> vector<8x8xf32>
    %c6_300 = arith.constant 6 : index
    %c0_301 = arith.constant 0 : index
    %c0_302 = arith.constant 0 : index
    %493 = vector.load %arg9[%c6_300, %c0_301, %c0_302] : memref<16x8x32xbf16, #tpu.memory_space<vmem>>, vector<1x8x32xbf16>
    %494 = vector.shape_cast %493 : vector<1x8x32xbf16> to vector<8x32xbf16>
    %495 = arith.truncf %492 : vector<8x8xf32> to vector<8x8xbf16>
    %cst_303 = arith.constant dense<0.000000e+00> : vector<8x32xf32>
    %496 = tpu.matmul %495, %494, %cst_303 {dimension_numbers = #tpu.dot_dimension_numbers<[1], [0], [0], [1], [0, 0, 1, 1], [], []>} : vector<8x8xbf16>, vector<8x32xbf16>, vector<8x32xf32> -> vector<8x32xf32>
    %497 = arith.addf %450, %496 : vector<8x32xf32>
    %c7 = arith.constant 7 : index
    %c0_304 = arith.constant 0 : index
    %c0_305 = arith.constant 0 : index
    %498 = vector.load %arg7[%c7, %c0_304, %c0_305] : memref<16x32x8xbf16, #tpu.memory_space<vmem>>, vector<1x32x8xbf16>
    %499 = vector.shape_cast %498 : vector<1x32x8xbf16> to vector<32x8xbf16>
    %500 = arith.truncf %355 : vector<8x32xf32> to vector<8x32xbf16>
    %cst_306 = arith.constant dense<0.000000e+00> : vector<8x8xf32>
    %501 = tpu.matmul %500, %499, %cst_306 {dimension_numbers = #tpu.dot_dimension_numbers<[1], [0], [0], [1], [0, 0, 1, 1], [], []>} : vector<8x32xbf16>, vector<32x8xbf16>, vector<8x8xf32> -> vector<8x8xf32>
    %c7_307 = arith.constant 7 : index
    %c0_308 = arith.constant 0 : index
    %c0_309 = arith.constant 0 : index
    %502 = vector.load %arg8[%c7_307, %c0_308, %c0_309] : memref<16x1x8xf32, #tpu.memory_space<vmem>>, vector<1x1x8xf32>
    %503 = vector.shape_cast %502 : vector<1x1x8xf32> to vector<1x8xf32>
    %504 = vector.broadcast %503 : vector<1x8xf32> to vector<8x8xf32>
    %505 = arith.addf %501, %504 : vector<8x8xf32>
    %c7_310 = arith.constant 7 : index
    %c0_311 = arith.constant 0 : index
    %c0_312 = arith.constant 0 : index
    %506 = vector.load %arg3[%c7_310, %c0_311, %c0_312] : memref<16x32x8xbf16, #tpu.memory_space<vmem>>, vector<1x32x8xbf16>
    %507 = vector.shape_cast %506 : vector<1x32x8xbf16> to vector<32x8xbf16>
    %508 = arith.truncf %355 : vector<8x32xf32> to vector<8x32xbf16>
    %cst_313 = arith.constant dense<0.000000e+00> : vector<8x8xf32>
    %509 = tpu.matmul %508, %507, %cst_313 {dimension_numbers = #tpu.dot_dimension_numbers<[1], [0], [0], [1], [0, 0, 1, 1], [], []>} : vector<8x32xbf16>, vector<32x8xbf16>, vector<8x8xf32> -> vector<8x8xf32>
    %c7_314 = arith.constant 7 : index
    %c0_315 = arith.constant 0 : index
    %c0_316 = arith.constant 0 : index
    %510 = vector.load %arg4[%c7_314, %c0_315, %c0_316] : memref<16x1x8xf32, #tpu.memory_space<vmem>>, vector<1x1x8xf32>
    %511 = vector.shape_cast %510 : vector<1x1x8xf32> to vector<1x8xf32>
    %512 = vector.broadcast %511 : vector<1x8xf32> to vector<8x8xf32>
    %513 = arith.addf %509, %512 : vector<8x8xf32>
    %c7_317 = arith.constant 7 : index
    %c0_318 = arith.constant 0 : index
    %c0_319 = arith.constant 0 : index
    %514 = vector.load %arg5[%c7_317, %c0_318, %c0_319] : memref<16x32x8xbf16, #tpu.memory_space<vmem>>, vector<1x32x8xbf16>
    %515 = vector.shape_cast %514 : vector<1x32x8xbf16> to vector<32x8xbf16>
    %516 = arith.truncf %355 : vector<8x32xf32> to vector<8x32xbf16>
    %cst_320 = arith.constant dense<0.000000e+00> : vector<8x8xf32>
    %517 = tpu.matmul %516, %515, %cst_320 {dimension_numbers = #tpu.dot_dimension_numbers<[1], [0], [0], [1], [0, 0, 1, 1], [], []>} : vector<8x32xbf16>, vector<32x8xbf16>, vector<8x8xf32> -> vector<8x8xf32>
    %c7_321 = arith.constant 7 : index
    %c0_322 = arith.constant 0 : index
    %c0_323 = arith.constant 0 : index
    %518 = vector.load %arg6[%c7_321, %c0_322, %c0_323] : memref<16x1x8xf32, #tpu.memory_space<vmem>>, vector<1x1x8xf32>
    %519 = vector.shape_cast %518 : vector<1x1x8xf32> to vector<1x8xf32>
    %520 = vector.broadcast %519 : vector<1x8xf32> to vector<8x8xf32>
    %521 = arith.addf %517, %520 : vector<8x8xf32>
    %522 = arith.truncf %513 : vector<8x8xf32> to vector<8x8xbf16>
    %523 = arith.truncf %521 : vector<8x8xf32> to vector<8x8xbf16>
    %cst_324 = arith.constant dense<0.000000e+00> : vector<8x8xf32>
    %524 = tpu.matmul %522, %523, %cst_324 {dimension_numbers = #tpu.dot_dimension_numbers<[1], [1], [0], [0], [0, 0, 1, 0], [], []>} : vector<8x8xbf16>, vector<8x8xbf16>, vector<8x8xf32> -> vector<8x8xf32>
    %cst_325 = arith.constant 0.353553385 : f32
    %525 = vector.broadcast %cst_325 : f32 to vector<8x8xf32>
    %526 = arith.mulf %524, %525 : vector<8x8xf32>
    %cst_326 = arith.constant dense<0xFF800000> : vector<8xf32>
    %527 = vector.multi_reduction <maximumf>, %526, %cst_326 [1] : vector<8x8xf32> to vector<8xf32>
    %528 = vector.shape_cast %527 : vector<8xf32> to vector<8x1xf32>
    %529 = vector.broadcast %528 : vector<8x1xf32> to vector<8x8xf32>
    %530 = arith.subf %526, %529 : vector<8x8xf32>
    %531 = math.exp %530 : vector<8x8xf32>
    %cst_327 = arith.constant dense<0.000000e+00> : vector<8xf32>
    %532 = vector.multi_reduction <add>, %531, %cst_327 [1] : vector<8x8xf32> to vector<8xf32>
    %533 = vector.shape_cast %532 : vector<8xf32> to vector<8x1xf32>
    %534 = tpu.reciprocal %533 {approx = true} : vector<8x1xf32> -> vector<8x1xf32>
    %535 = vector.broadcast %534 : vector<8x1xf32> to vector<8x8xf32>
    %536 = arith.mulf %531, %535 : vector<8x8xf32>
    %537 = arith.truncf %536 : vector<8x8xf32> to vector<8x8xbf16>
    %538 = arith.truncf %505 : vector<8x8xf32> to vector<8x8xbf16>
    %cst_328 = arith.constant dense<0.000000e+00> : vector<8x8xf32>
    %539 = tpu.matmul %537, %538, %cst_328 {dimension_numbers = #tpu.dot_dimension_numbers<[1], [0], [0], [1], [0, 0, 1, 1], [], []>} : vector<8x8xbf16>, vector<8x8xbf16>, vector<8x8xf32> -> vector<8x8xf32>
    %c7_329 = arith.constant 7 : index
    %c0_330 = arith.constant 0 : index
    %c0_331 = arith.constant 0 : index
    %540 = vector.load %arg9[%c7_329, %c0_330, %c0_331] : memref<16x8x32xbf16, #tpu.memory_space<vmem>>, vector<1x8x32xbf16>
    %541 = vector.shape_cast %540 : vector<1x8x32xbf16> to vector<8x32xbf16>
    %542 = arith.truncf %539 : vector<8x8xf32> to vector<8x8xbf16>
    %cst_332 = arith.constant dense<0.000000e+00> : vector<8x32xf32>
    %543 = tpu.matmul %542, %541, %cst_332 {dimension_numbers = #tpu.dot_dimension_numbers<[1], [0], [0], [1], [0, 0, 1, 1], [], []>} : vector<8x8xbf16>, vector<8x32xbf16>, vector<8x32xf32> -> vector<8x32xf32>
    %544 = arith.addf %497, %543 : vector<8x32xf32>
    %c1_333 = arith.constant 1 : index
    %c0_334 = arith.constant 0 : index
    %c0_335 = arith.constant 0 : index
    %545 = vector.load %arg10[%c1_333, %c0_334, %c0_335] : memref<4x1x32xf32, #tpu.memory_space<vmem>>, vector<1x1x32xf32>
    %546 = vector.shape_cast %545 : vector<1x1x32xf32> to vector<1x32xf32>
    %547 = vector.broadcast %546 : vector<1x32xf32> to vector<8x32xf32>
    %548 = arith.addf %544, %547 : vector<8x32xf32>
    %549 = arith.addf %355, %548 : vector<8x32xf32>
    %cst_336 = arith.constant dense<0.000000e+00> : vector<8xf32>
    %550 = vector.multi_reduction <add>, %549, %cst_336 [1] : vector<8x32xf32> to vector<8xf32>
    %551 = vector.shape_cast %550 : vector<8xf32> to vector<8x1xf32>
    %cst_337 = arith.constant 3.200000e+01 : f32
    %552 = vector.broadcast %cst_337 : f32 to vector<8x1xf32>
    %553 = arith.divf %551, %552 : vector<8x1xf32>
    %554 = vector.broadcast %553 : vector<8x1xf32> to vector<8x32xf32>
    %555 = arith.subf %549, %554 : vector<8x32xf32>
    %556 = arith.mulf %555, %555 : vector<8x32xf32>
    %cst_338 = arith.constant dense<0.000000e+00> : vector<8xf32>
    %557 = vector.multi_reduction <add>, %556, %cst_338 [1] : vector<8x32xf32> to vector<8xf32>
    %558 = vector.shape_cast %557 : vector<8xf32> to vector<8x1xf32>
    %cst_339 = arith.constant 3.200000e+01 : f32
    %559 = vector.broadcast %cst_339 : f32 to vector<8x1xf32>
    %560 = arith.divf %558, %559 : vector<8x1xf32>
    %561 = vector.broadcast %553 : vector<8x1xf32> to vector<8x32xf32>
    %562 = arith.subf %549, %561 : vector<8x32xf32>
    %cst_340 = arith.constant 9.99999974E-6 : f32
    %563 = vector.broadcast %cst_340 : f32 to vector<8x1xf32>
    %564 = arith.addf %560, %563 : vector<8x1xf32>
    %565 = math.rsqrt %564 : vector<8x1xf32>
    %566 = vector.broadcast %565 : vector<8x1xf32> to vector<8x32xf32>
    %567 = arith.mulf %562, %566 : vector<8x32xf32>
    %c3_341 = arith.constant 3 : index
    %c0_342 = arith.constant 0 : index
    %c0_343 = arith.constant 0 : index
    %568 = vector.load %arg15[%c3_341, %c0_342, %c0_343] : memref<6x1x32xf32, #tpu.memory_space<vmem>>, vector<1x1x32xf32>
    %569 = vector.shape_cast %568 : vector<1x1x32xf32> to vector<1x32xf32>
    %570 = vector.broadcast %569 : vector<1x32xf32> to vector<8x32xf32>
    %571 = arith.mulf %567, %570 : vector<8x32xf32>
    %c3_344 = arith.constant 3 : index
    %c0_345 = arith.constant 0 : index
    %c0_346 = arith.constant 0 : index
    %572 = vector.load %arg16[%c3_344, %c0_345, %c0_346] : memref<6x1x32xf32, #tpu.memory_space<vmem>>, vector<1x1x32xf32>
    %573 = vector.shape_cast %572 : vector<1x1x32xf32> to vector<1x32xf32>
    %574 = vector.broadcast %573 : vector<1x32xf32> to vector<8x32xf32>
    %575 = arith.addf %571, %574 : vector<8x32xf32>
    %cst_347 = arith.constant 0.000000e+00 : f32
    %576 = vector.broadcast %cst_347 : f32 to vector<8x32xf32>
    %c12 = arith.constant 12 : index
    %c0_348 = arith.constant 0 : index
    %c0_349 = arith.constant 0 : index
    %577 = vector.load %arg7[%c12, %c0_348, %c0_349] : memref<16x32x8xbf16, #tpu.memory_space<vmem>>, vector<1x32x8xbf16>
    %578 = vector.shape_cast %577 : vector<1x32x8xbf16> to vector<32x8xbf16>
    %579 = arith.truncf %2 : vector<1x32xf32> to vector<1x32xbf16>
    %cst_350 = arith.constant dense<0.000000e+00> : vector<1x8xf32>
    %580 = tpu.matmul %579, %578, %cst_350 {dimension_numbers = #tpu.dot_dimension_numbers<[1], [0], [0], [1], [0, 0, 1, 1], [], []>} : vector<1x32xbf16>, vector<32x8xbf16>, vector<1x8xf32> -> vector<1x8xf32>
    %c12_351 = arith.constant 12 : index
    %c0_352 = arith.constant 0 : index
    %c0_353 = arith.constant 0 : index
    %581 = vector.load %arg8[%c12_351, %c0_352, %c0_353] : memref<16x1x8xf32, #tpu.memory_space<vmem>>, vector<1x1x8xf32>
    %582 = vector.shape_cast %581 : vector<1x1x8xf32> to vector<1x8xf32>
    %583 = arith.addf %580, %582 : vector<1x8xf32>
    %584 = vector.shape_cast %583 : vector<1x8xf32> to vector<1x8xf32>
    %585 = vector.broadcast %584 : vector<1x8xf32> to vector<8x8xf32>
    %c12_354 = arith.constant 12 : index
    %c0_355 = arith.constant 0 : index
    %c0_356 = arith.constant 0 : index
    %586 = vector.load %arg9[%c12_354, %c0_355, %c0_356] : memref<16x8x32xbf16, #tpu.memory_space<vmem>>, vector<1x8x32xbf16>
    %587 = vector.shape_cast %586 : vector<1x8x32xbf16> to vector<8x32xbf16>
    %588 = arith.truncf %585 : vector<8x8xf32> to vector<8x8xbf16>
    %cst_357 = arith.constant dense<0.000000e+00> : vector<8x32xf32>
    %589 = tpu.matmul %588, %587, %cst_357 {dimension_numbers = #tpu.dot_dimension_numbers<[1], [0], [0], [1], [0, 0, 1, 1], [], []>} : vector<8x8xbf16>, vector<8x32xbf16>, vector<8x32xf32> -> vector<8x32xf32>
    %590 = arith.addf %576, %589 : vector<8x32xf32>
    %c13 = arith.constant 13 : index
    %c0_358 = arith.constant 0 : index
    %c0_359 = arith.constant 0 : index
    %591 = vector.load %arg7[%c13, %c0_358, %c0_359] : memref<16x32x8xbf16, #tpu.memory_space<vmem>>, vector<1x32x8xbf16>
    %592 = vector.shape_cast %591 : vector<1x32x8xbf16> to vector<32x8xbf16>
    %593 = arith.truncf %2 : vector<1x32xf32> to vector<1x32xbf16>
    %cst_360 = arith.constant dense<0.000000e+00> : vector<1x8xf32>
    %594 = tpu.matmul %593, %592, %cst_360 {dimension_numbers = #tpu.dot_dimension_numbers<[1], [0], [0], [1], [0, 0, 1, 1], [], []>} : vector<1x32xbf16>, vector<32x8xbf16>, vector<1x8xf32> -> vector<1x8xf32>
    %c13_361 = arith.constant 13 : index
    %c0_362 = arith.constant 0 : index
    %c0_363 = arith.constant 0 : index
    %595 = vector.load %arg8[%c13_361, %c0_362, %c0_363] : memref<16x1x8xf32, #tpu.memory_space<vmem>>, vector<1x1x8xf32>
    %596 = vector.shape_cast %595 : vector<1x1x8xf32> to vector<1x8xf32>
    %597 = arith.addf %594, %596 : vector<1x8xf32>
    %598 = vector.shape_cast %597 : vector<1x8xf32> to vector<1x8xf32>
    %599 = vector.broadcast %598 : vector<1x8xf32> to vector<8x8xf32>
    %c13_364 = arith.constant 13 : index
    %c0_365 = arith.constant 0 : index
    %c0_366 = arith.constant 0 : index
    %600 = vector.load %arg9[%c13_364, %c0_365, %c0_366] : memref<16x8x32xbf16, #tpu.memory_space<vmem>>, vector<1x8x32xbf16>
    %601 = vector.shape_cast %600 : vector<1x8x32xbf16> to vector<8x32xbf16>
    %602 = arith.truncf %599 : vector<8x8xf32> to vector<8x8xbf16>
    %cst_367 = arith.constant dense<0.000000e+00> : vector<8x32xf32>
    %603 = tpu.matmul %602, %601, %cst_367 {dimension_numbers = #tpu.dot_dimension_numbers<[1], [0], [0], [1], [0, 0, 1, 1], [], []>} : vector<8x8xbf16>, vector<8x32xbf16>, vector<8x32xf32> -> vector<8x32xf32>
    %604 = arith.addf %590, %603 : vector<8x32xf32>
    %c14 = arith.constant 14 : index
    %c0_368 = arith.constant 0 : index
    %c0_369 = arith.constant 0 : index
    %605 = vector.load %arg7[%c14, %c0_368, %c0_369] : memref<16x32x8xbf16, #tpu.memory_space<vmem>>, vector<1x32x8xbf16>
    %606 = vector.shape_cast %605 : vector<1x32x8xbf16> to vector<32x8xbf16>
    %607 = arith.truncf %2 : vector<1x32xf32> to vector<1x32xbf16>
    %cst_370 = arith.constant dense<0.000000e+00> : vector<1x8xf32>
    %608 = tpu.matmul %607, %606, %cst_370 {dimension_numbers = #tpu.dot_dimension_numbers<[1], [0], [0], [1], [0, 0, 1, 1], [], []>} : vector<1x32xbf16>, vector<32x8xbf16>, vector<1x8xf32> -> vector<1x8xf32>
    %c14_371 = arith.constant 14 : index
    %c0_372 = arith.constant 0 : index
    %c0_373 = arith.constant 0 : index
    %609 = vector.load %arg8[%c14_371, %c0_372, %c0_373] : memref<16x1x8xf32, #tpu.memory_space<vmem>>, vector<1x1x8xf32>
    %610 = vector.shape_cast %609 : vector<1x1x8xf32> to vector<1x8xf32>
    %611 = arith.addf %608, %610 : vector<1x8xf32>
    %612 = vector.shape_cast %611 : vector<1x8xf32> to vector<1x8xf32>
    %613 = vector.broadcast %612 : vector<1x8xf32> to vector<8x8xf32>
    %c14_374 = arith.constant 14 : index
    %c0_375 = arith.constant 0 : index
    %c0_376 = arith.constant 0 : index
    %614 = vector.load %arg9[%c14_374, %c0_375, %c0_376] : memref<16x8x32xbf16, #tpu.memory_space<vmem>>, vector<1x8x32xbf16>
    %615 = vector.shape_cast %614 : vector<1x8x32xbf16> to vector<8x32xbf16>
    %616 = arith.truncf %613 : vector<8x8xf32> to vector<8x8xbf16>
    %cst_377 = arith.constant dense<0.000000e+00> : vector<8x32xf32>
    %617 = tpu.matmul %616, %615, %cst_377 {dimension_numbers = #tpu.dot_dimension_numbers<[1], [0], [0], [1], [0, 0, 1, 1], [], []>} : vector<8x8xbf16>, vector<8x32xbf16>, vector<8x32xf32> -> vector<8x32xf32>
    %618 = arith.addf %604, %617 : vector<8x32xf32>
    %c15 = arith.constant 15 : index
    %c0_378 = arith.constant 0 : index
    %c0_379 = arith.constant 0 : index
    %619 = vector.load %arg7[%c15, %c0_378, %c0_379] : memref<16x32x8xbf16, #tpu.memory_space<vmem>>, vector<1x32x8xbf16>
    %620 = vector.shape_cast %619 : vector<1x32x8xbf16> to vector<32x8xbf16>
    %621 = arith.truncf %2 : vector<1x32xf32> to vector<1x32xbf16>
    %cst_380 = arith.constant dense<0.000000e+00> : vector<1x8xf32>
    %622 = tpu.matmul %621, %620, %cst_380 {dimension_numbers = #tpu.dot_dimension_numbers<[1], [0], [0], [1], [0, 0, 1, 1], [], []>} : vector<1x32xbf16>, vector<32x8xbf16>, vector<1x8xf32> -> vector<1x8xf32>
    %c15_381 = arith.constant 15 : index
    %c0_382 = arith.constant 0 : index
    %c0_383 = arith.constant 0 : index
    %623 = vector.load %arg8[%c15_381, %c0_382, %c0_383] : memref<16x1x8xf32, #tpu.memory_space<vmem>>, vector<1x1x8xf32>
    %624 = vector.shape_cast %623 : vector<1x1x8xf32> to vector<1x8xf32>
    %625 = arith.addf %622, %624 : vector<1x8xf32>
    %626 = vector.shape_cast %625 : vector<1x8xf32> to vector<1x8xf32>
    %627 = vector.broadcast %626 : vector<1x8xf32> to vector<8x8xf32>
    %c15_384 = arith.constant 15 : index
    %c0_385 = arith.constant 0 : index
    %c0_386 = arith.constant 0 : index
    %628 = vector.load %arg9[%c15_384, %c0_385, %c0_386] : memref<16x8x32xbf16, #tpu.memory_space<vmem>>, vector<1x8x32xbf16>
    %629 = vector.shape_cast %628 : vector<1x8x32xbf16> to vector<8x32xbf16>
    %630 = arith.truncf %627 : vector<8x8xf32> to vector<8x8xbf16>
    %cst_387 = arith.constant dense<0.000000e+00> : vector<8x32xf32>
    %631 = tpu.matmul %630, %629, %cst_387 {dimension_numbers = #tpu.dot_dimension_numbers<[1], [0], [0], [1], [0, 0, 1, 1], [], []>} : vector<8x8xbf16>, vector<8x32xbf16>, vector<8x32xf32> -> vector<8x32xf32>
    %632 = arith.addf %618, %631 : vector<8x32xf32>
    %c3_388 = arith.constant 3 : index
    %c0_389 = arith.constant 0 : index
    %c0_390 = arith.constant 0 : index
    %633 = vector.load %arg10[%c3_388, %c0_389, %c0_390] : memref<4x1x32xf32, #tpu.memory_space<vmem>>, vector<1x1x32xf32>
    %634 = vector.shape_cast %633 : vector<1x1x32xf32> to vector<1x32xf32>
    %635 = vector.broadcast %634 : vector<1x32xf32> to vector<8x32xf32>
    %636 = arith.addf %632, %635 : vector<8x32xf32>
    %637 = arith.addf %575, %636 : vector<8x32xf32>
    %cst_391 = arith.constant dense<0.000000e+00> : vector<8xf32>
    %638 = vector.multi_reduction <add>, %637, %cst_391 [1] : vector<8x32xf32> to vector<8xf32>
    %639 = vector.shape_cast %638 : vector<8xf32> to vector<8x1xf32>
    %cst_392 = arith.constant 3.200000e+01 : f32
    %640 = vector.broadcast %cst_392 : f32 to vector<8x1xf32>
    %641 = arith.divf %639, %640 : vector<8x1xf32>
    %642 = vector.broadcast %641 : vector<8x1xf32> to vector<8x32xf32>
    %643 = arith.subf %637, %642 : vector<8x32xf32>
    %644 = arith.mulf %643, %643 : vector<8x32xf32>
    %cst_393 = arith.constant dense<0.000000e+00> : vector<8xf32>
    %645 = vector.multi_reduction <add>, %644, %cst_393 [1] : vector<8x32xf32> to vector<8xf32>
    %646 = vector.shape_cast %645 : vector<8xf32> to vector<8x1xf32>
    %cst_394 = arith.constant 3.200000e+01 : f32
    %647 = vector.broadcast %cst_394 : f32 to vector<8x1xf32>
    %648 = arith.divf %646, %647 : vector<8x1xf32>
    %649 = vector.broadcast %641 : vector<8x1xf32> to vector<8x32xf32>
    %650 = arith.subf %637, %649 : vector<8x32xf32>
    %cst_395 = arith.constant 9.99999974E-6 : f32
    %651 = vector.broadcast %cst_395 : f32 to vector<8x1xf32>
    %652 = arith.addf %648, %651 : vector<8x1xf32>
    %653 = math.rsqrt %652 : vector<8x1xf32>
    %654 = vector.broadcast %653 : vector<8x1xf32> to vector<8x32xf32>
    %655 = arith.mulf %650, %654 : vector<8x32xf32>
    %c4_396 = arith.constant 4 : index
    %c0_397 = arith.constant 0 : index
    %c0_398 = arith.constant 0 : index
    %656 = vector.load %arg15[%c4_396, %c0_397, %c0_398] : memref<6x1x32xf32, #tpu.memory_space<vmem>>, vector<1x1x32xf32>
    %657 = vector.shape_cast %656 : vector<1x1x32xf32> to vector<1x32xf32>
    %658 = vector.broadcast %657 : vector<1x32xf32> to vector<8x32xf32>
    %659 = arith.mulf %655, %658 : vector<8x32xf32>
    %c4_399 = arith.constant 4 : index
    %c0_400 = arith.constant 0 : index
    %c0_401 = arith.constant 0 : index
    %660 = vector.load %arg16[%c4_399, %c0_400, %c0_401] : memref<6x1x32xf32, #tpu.memory_space<vmem>>, vector<1x1x32xf32>
    %661 = vector.shape_cast %660 : vector<1x1x32xf32> to vector<1x32xf32>
    %662 = vector.broadcast %661 : vector<1x32xf32> to vector<8x32xf32>
    %663 = arith.addf %659, %662 : vector<8x32xf32>
    %c1_402 = arith.constant 1 : index
    %c0_403 = arith.constant 0 : index
    %c0_404 = arith.constant 0 : index
    %664 = vector.load %arg11[%c1_402, %c0_403, %c0_404] : memref<2x32x128xbf16, #tpu.memory_space<vmem>>, vector<1x32x128xbf16>
    %665 = vector.shape_cast %664 : vector<1x32x128xbf16> to vector<32x128xbf16>
    %666 = arith.truncf %663 : vector<8x32xf32> to vector<8x32xbf16>
    %cst_405 = arith.constant dense<0.000000e+00> : vector<8x128xf32>
    %667 = tpu.matmul %666, %665, %cst_405 {dimension_numbers = #tpu.dot_dimension_numbers<[1], [0], [0], [1], [0, 0, 1, 1], [], []>} : vector<8x32xbf16>, vector<32x128xbf16>, vector<8x128xf32> -> vector<8x128xf32>
    %c1_406 = arith.constant 1 : index
    %c0_407 = arith.constant 0 : index
    %c0_408 = arith.constant 0 : index
    %668 = vector.load %arg12[%c1_406, %c0_407, %c0_408] : memref<2x1x128xf32, #tpu.memory_space<vmem>>, vector<1x1x128xf32>
    %669 = vector.shape_cast %668 : vector<1x1x128xf32> to vector<1x128xf32>
    %670 = vector.broadcast %669 : vector<1x128xf32> to vector<8x128xf32>
    %671 = arith.addf %667, %670 : vector<8x128xf32>
    %cst_409 = arith.constant 0.000000e+00 : f32
    %672 = vector.broadcast %cst_409 : f32 to vector<8x128xf32>
    %673 = arith.maximumf %671, %672 : vector<8x128xf32>
    %c1_410 = arith.constant 1 : index
    %c0_411 = arith.constant 0 : index
    %c0_412 = arith.constant 0 : index
    %674 = vector.load %arg13[%c1_410, %c0_411, %c0_412] : memref<2x128x32xbf16, #tpu.memory_space<vmem>>, vector<1x128x32xbf16>
    %675 = vector.shape_cast %674 : vector<1x128x32xbf16> to vector<128x32xbf16>
    %676 = arith.truncf %673 : vector<8x128xf32> to vector<8x128xbf16>
    %cst_413 = arith.constant dense<0.000000e+00> : vector<8x32xf32>
    %677 = tpu.matmul %676, %675, %cst_413 {dimension_numbers = #tpu.dot_dimension_numbers<[1], [0], [0], [1], [0, 0, 1, 1], [], []>} : vector<8x128xbf16>, vector<128x32xbf16>, vector<8x32xf32> -> vector<8x32xf32>
    %678 = arith.addf %663, %677 : vector<8x32xf32>
    %c1_414 = arith.constant 1 : index
    %c0_415 = arith.constant 0 : index
    %c0_416 = arith.constant 0 : index
    %679 = vector.load %arg14[%c1_414, %c0_415, %c0_416] : memref<2x1x32xf32, #tpu.memory_space<vmem>>, vector<1x1x32xf32>
    %680 = vector.shape_cast %679 : vector<1x1x32xf32> to vector<1x32xf32>
    %681 = vector.broadcast %680 : vector<1x32xf32> to vector<8x32xf32>
    %682 = arith.addf %678, %681 : vector<8x32xf32>
    %cst_417 = arith.constant dense<0.000000e+00> : vector<8xf32>
    %683 = vector.multi_reduction <add>, %682, %cst_417 [1] : vector<8x32xf32> to vector<8xf32>
    %684 = vector.shape_cast %683 : vector<8xf32> to vector<8x1xf32>
    %cst_418 = arith.constant 3.200000e+01 : f32
    %685 = vector.broadcast %cst_418 : f32 to vector<8x1xf32>
    %686 = arith.divf %684, %685 : vector<8x1xf32>
    %687 = vector.broadcast %686 : vector<8x1xf32> to vector<8x32xf32>
    %688 = arith.subf %682, %687 : vector<8x32xf32>
    %689 = arith.mulf %688, %688 : vector<8x32xf32>
    %cst_419 = arith.constant dense<0.000000e+00> : vector<8xf32>
    %690 = vector.multi_reduction <add>, %689, %cst_419 [1] : vector<8x32xf32> to vector<8xf32>
    %691 = vector.shape_cast %690 : vector<8xf32> to vector<8x1xf32>
    %cst_420 = arith.constant 3.200000e+01 : f32
    %692 = vector.broadcast %cst_420 : f32 to vector<8x1xf32>
    %693 = arith.divf %691, %692 : vector<8x1xf32>
    %694 = vector.broadcast %686 : vector<8x1xf32> to vector<8x32xf32>
    %695 = arith.subf %682, %694 : vector<8x32xf32>
    %cst_421 = arith.constant 9.99999974E-6 : f32
    %696 = vector.broadcast %cst_421 : f32 to vector<8x1xf32>
    %697 = arith.addf %693, %696 : vector<8x1xf32>
    %698 = math.rsqrt %697 : vector<8x1xf32>
    %699 = vector.broadcast %698 : vector<8x1xf32> to vector<8x32xf32>
    %700 = arith.mulf %695, %699 : vector<8x32xf32>
    %c5_422 = arith.constant 5 : index
    %c0_423 = arith.constant 0 : index
    %c0_424 = arith.constant 0 : index
    %701 = vector.load %arg15[%c5_422, %c0_423, %c0_424] : memref<6x1x32xf32, #tpu.memory_space<vmem>>, vector<1x1x32xf32>
    %702 = vector.shape_cast %701 : vector<1x1x32xf32> to vector<1x32xf32>
    %703 = vector.broadcast %702 : vector<1x32xf32> to vector<8x32xf32>
    %704 = arith.mulf %700, %703 : vector<8x32xf32>
    %c5_425 = arith.constant 5 : index
    %c0_426 = arith.constant 0 : index
    %c0_427 = arith.constant 0 : index
    %705 = vector.load %arg16[%c5_425, %c0_426, %c0_427] : memref<6x1x32xf32, #tpu.memory_space<vmem>>, vector<1x1x32xf32>
    %706 = vector.shape_cast %705 : vector<1x1x32xf32> to vector<1x32xf32>
    %707 = vector.broadcast %706 : vector<1x32xf32> to vector<8x32xf32>
    %708 = arith.addf %704, %707 : vector<8x32xf32>
    %c0_428 = arith.constant 0 : index
    %c0_429 = arith.constant 0 : index
    %709 = vector.load %arg17[%c0_428, %c0_429] : memref<32x1xf32, #tpu.memory_space<vmem>>, vector<32x1xf32>
    %cst_430 = arith.constant dense<0.000000e+00> : vector<8x1xf32>
    %710 = tpu.matmul %708, %709, %cst_430 {dimension_numbers = #tpu.dot_dimension_numbers<[1], [0], [0], [1], [0, 0, 1, 1], [], []>} : vector<8x32xf32>, vector<32x1xf32>, vector<8x1xf32> -> vector<8x1xf32>
    %c0_431 = arith.constant 0 : index
    %c0_432 = arith.constant 0 : index
    %711 = vector.load %arg18[%c0_431, %c0_432] : memref<1x1xf32, #tpu.memory_space<vmem>>, vector<1x1xf32>
    %712 = vector.broadcast %711 : vector<1x1xf32> to vector<8x1xf32>
    %713 = arith.addf %710, %712 : vector<8x1xf32>
    %c0_433 = arith.constant 0 : index
    %c0_434 = arith.constant 0 : index
    %c0_435 = arith.constant 0 : index
    %714 = vector.load %arg19[%c0_433, %c0_434, %c0_435] : memref<1x8x1xf32, #tpu.memory_space<vmem>>, vector<1x8x1xf32>
    %715 = vector.shape_cast %714 : vector<1x8x1xf32> to vector<8x1xf32>
    %716 = vector.shape_cast %713 : vector<8x1xf32> to vector<1x8x1xf32>
    tpu.vector_store %arg19[%c0_433, %c0_434, %c0_435], %716 {strides = array<i32>} : memref<1x8x1xf32, #tpu.memory_space<vmem>>, vector<1x8x1xf32>,
    return
  }
  func.func @transform_0(%arg0: i32) -> (i32, i32, i32) {
    %c0_i32 = arith.constant 0 : i32
    %c0_i32_0 = arith.constant 0 : i32
    %c0_i32_1 = arith.constant 0 : i32
    return %arg0, %c0_i32, %c0_i32_0 : i32, i32, i32
  }
  func.func @transform_1(%arg0: i32) -> (i32, i32) {
    %c0_i32 = arith.constant 0 : i32
    %c0_i32_0 = arith.constant 0 : i32
    %c0_i32_1 = arith.constant 0 : i32
    return %c0_i32, %c0_i32_0 : i32, i32
  }
  func.func @transform_2(%arg0: i32) -> (i32, i32, i32) {
    %c0_i32 = arith.constant 0 : i32
    %c0_i32_0 = arith.constant 0 : i32
    %c0_i32_1 = arith.constant 0 : i32
    %c0_i32_2 = arith.constant 0 : i32
    return %c0_i32, %c0_i32_0, %c0_i32_1 : i32, i32, i32
  }
  func.func @transform_3(%arg0: i32) -> (i32, i32, i32) {
    %c0_i32 = arith.constant 0 : i32
    %c0_i32_0 = arith.constant 0 : i32
    %c0_i32_1 = arith.constant 0 : i32
    %c0_i32_2 = arith.constant 0 : i32
    return %c0_i32, %c0_i32_0, %c0_i32_1 : i32, i32, i32
  }
  func.func @transform_4(%arg0: i32) -> (i32, i32, i32) {
    %c0_i32 = arith.constant 0 : i32
    %c0_i32_0 = arith.constant 0 : i32
    %c0_i32_1 = arith.constant 0 : i32
    %c0_i32_2 = arith.constant 0 : i32
    return %c0_i32, %c0_i32_0, %c0_i32_1 : i32, i32, i32
  }
  func.func @transform_5(%arg0: i32) -> (i32, i32, i32) {
    %c0_i32 = arith.constant 0 : i32
    %c0_i32_0 = arith.constant 0 : i32
    %c0_i32_1 = arith.constant 0 : i32
    %c0_i32_2 = arith.constant 0 : i32
    return %c0_i32, %c0_i32_0, %c0_i32_1 : i32, i32, i32
  }
  func.func @transform_6(%arg0: i32) -> (i32, i32, i32) {
    %c0_i32 = arith.constant 0 : i32
    %c0_i32_0 = arith.constant 0 : i32
    %c0_i32_1 = arith.constant 0 : i32
    %c0_i32_2 = arith.constant 0 : i32
    return %c0_i32, %c0_i32_0, %c0_i32_1 : i32, i32, i32
  }
  func.func @transform_7(%arg0: i32) -> (i32, i32, i32) {
    %c0_i32 = arith.constant 0 : i32
    %c0_i32_0 = arith.constant 0 : i32
    %c0_i32_1 = arith.constant 0 : i32
    %c0_i32_2 = arith.constant 0 : i32
    return %c0_i32, %c0_i32_0, %c0_i32_1 : i32, i32, i32
  }
  func.func @transform_8(%arg0: i32) -> (i32, i32, i32) {
    %c0_i32 = arith.constant 0 : i32
    %c0_i32_0 = arith.constant 0 : i32
    %c0_i32_1 = arith.constant 0 : i32
    %c0_i32_2 = arith.constant 0 : i32
    return %c0_i32, %c0_i32_0, %c0_i32_1 : i32, i32, i32
  }
  func.func @transform_9(%arg0: i32) -> (i32, i32, i32) {
    %c0_i32 = arith.constant 0 : i32
    %c0_i32_0 = arith.constant 0 : i32
    %c0_i32_1 = arith.constant 0 : i32
    %c0_i32_2 = arith.constant 0 : i32
    return %c0_i32, %c0_i32_0, %c0_i32_1 : i32, i32, i32
  }
  func.func @transform_10(%arg0: i32) -> (i32, i32, i32) {
    %c0_i32 = arith.constant 0 : i32
    %c0_i32_0 = arith.constant 0 : i32
    %c0_i32_1 = arith.constant 0 : i32
    %c0_i32_2 = arith.constant 0 : i32
    return %c0_i32, %c0_i32_0, %c0_i32_1 : i32, i32, i32
  }
  func.func @transform_11(%arg0: i32) -> (i32, i32, i32) {
    %c0_i32 = arith.constant 0 : i32
    %c0_i32_0 = arith.constant 0 : i32
    %c0_i32_1 = arith.constant 0 : i32
    %c0_i32_2 = arith.constant 0 : i32
    return %c0_i32, %c0_i32_0, %c0_i32_1 : i32, i32, i32
  }
  func.func @transform_12(%arg0: i32) -> (i32, i32, i32) {
    %c0_i32 = arith.constant 0 : i32
    %c0_i32_0 = arith.constant 0 : i32
    %c0_i32_1 = arith.constant 0 : i32
    %c0_i32_2 = arith.constant 0 : i32
    return %c0_i32, %c0_i32_0, %c0_i32_1 : i32, i32, i32
  }
  func.func @transform_13(%arg0: i32) -> (i32, i32, i32) {
    %c0_i32 = arith.constant 0 : i32
    %c0_i32_0 = arith.constant 0 : i32
    %c0_i32_1 = arith.constant 0 : i32
    %c0_i32_2 = arith.constant 0 : i32
    return %c0_i32, %c0_i32_0, %c0_i32_1 : i32, i32, i32
  }
  func.func @transform_14(%arg0: i32) -> (i32, i32, i32) {
    %c0_i32 = arith.constant 0 : i32
    %c0_i32_0 = arith.constant 0 : i32
    %c0_i32_1 = arith.constant 0 : i32
    %c0_i32_2 = arith.constant 0 : i32
    return %c0_i32, %c0_i32_0, %c0_i32_1 : i32, i32, i32
  }
  func.func @transform_15(%arg0: i32) -> (i32, i32, i32) {
    %c0_i32 = arith.constant 0 : i32
    %c0_i32_0 = arith.constant 0 : i32
    %c0_i32_1 = arith.constant 0 : i32
    %c0_i32_2 = arith.constant 0 : i32
    return %c0_i32, %c0_i32_0, %c0_i32_1 : i32, i32, i32
  }
  func.func @transform_16(%arg0: i32) -> (i32, i32) {
    %c0_i32 = arith.constant 0 : i32
    %c0_i32_0 = arith.constant 0 : i32
    %c0_i32_1 = arith.constant 0 : i32
    return %c0_i32, %c0_i32_0 : i32, i32
  }
  func.func @transform_17(%arg0: i32) -> (i32, i32) {
    %c0_i32 = arith.constant 0 : i32
    %c0_i32_0 = arith.constant 0 : i32
    %c0_i32_1 = arith.constant 0 : i32
    return %c0_i32, %c0_i32_0 : i32, i32
  }
  func.func @transform_18(%arg0: i32) -> (i32, i32, i32) {
    %c0_i32 = arith.constant 0 : i32
    %c0_i32_0 = arith.constant 0 : i32
    %c0_i32_1 = arith.constant 0 : i32
    return %arg0, %c0_i32, %c0_i32_0 : i32, i32, i32
  }
}

</mosaic_0001>

<llo_original>
// kernel: _lambda_.2
$region0: #{_lambda_.2}
  #allocation0 [shape = 'u32[]', space=smem, size = 0x4, offset = 0x4, fixed_abs, tag = 'smem constant byte address 0x4 - core index']
  #allocation1 [shape = 'u32[144,128]{1,0:T(1,128)}', space=vmem, size = 0x12000, scoped, tag = 'internal scratch']
  %s0 = inlined_call_operand.vmem [shape: f32[2,4,192], index: 0, kind: input, shape index: {}]
  %s1 = inlined_call_operand.hbm [shape: f32[2,1,8], index: 1, kind: input, shape index: {}]
  %s2 = inlined_call_operand.vmem [shape: bf16[192,64], index: 2, kind: input, shape index: {}]
  %s3 = inlined_call_operand.vmem [shape: f32[1,64], index: 3, kind: input, shape index: {}]
  %s4 = inlined_call_operand.vmem [shape: bf16[8,32], index: 4, kind: input, shape index: {}]
  %s5 = inlined_call_operand.vmem [shape: f32[1,32], index: 5, kind: input, shape index: {}]
  %s6 = inlined_call_operand.vmem [shape: bf16[32,16], index: 6, kind: input, shape index: {}]
  %s7 = inlined_call_operand.vmem [shape: f32[1,16], index: 7, kind: input, shape index: {}]
  %s8 = inlined_call_operand.vmem [shape: bf16[64,32], index: 8, kind: input, shape index: {}]
  %s9 = inlined_call_operand.vmem [shape: bf16[16,32], index: 9, kind: input, shape index: {}]
  %s10 = inlined_call_operand.vmem [shape: f32[1,32], index: 10, kind: input, shape index: {}]
  %s11 = inlined_call_operand.vmem [shape: f32[2,1,32], index: 11, kind: output, shape index: {}]
  %s12 = sld [smem:[#allocation0]]
  $region81: #{_lambda_.2} parent=0
    _
  %s14 = ssub.s32 1, %s12
  %s15 = scalar_select 0, %s14, %s12
  $region1: #{_lambda_.2} parent=0
    #allocation2 [shape = 'u8[1024]{0}', space=vmem, size = 0x400, scoped, tag = 'input window, operand 1']
    #allocation3 [shape = 's32[2]{0}', space=sflag, size = 0x8, scoped, tag = 'scoped memory for _lambda_.2']
    %16 = vsyncpa [#allocation3], 0
    %s17 = scalar_lea.sflag [#allocation3], 1
    %18 = vsyncpa %s17, 0
    loop: start=0, step=1, limit=4
    $region2: #{_lambda_.2} parent=1 // loop_pre_header
      _
    $region3: #{_lambda_.2} parent=1 // loop_header
      %s20 = sphi 0, %s24
      %p21 = scmp.ge.s32.totalorder %s20, 4
      %s30 = sphi 0, %s32
      %s33 = sphi 0, %s30
      %s34 = sphi 0, %s33
      %s50 = sphi 0, %s34
      %s56 = sphi 0, %s58
      %s59 = sphi 0, %s56
      %s60 = sphi 0, %s59
      %s76 = sphi 0, %s60
      %s80 = sphi 0, %s80
      %s82 = sphi 0, %s80
      %s83 = sphi 0, %s82
      %s97 = sphi 0, %s83
      %s101 = sphi 0, %s101
      %s103 = sphi 0, %s101
      %s104 = sphi 0, %s103
      %s118 = sphi 0, %s104
      %s122 = sphi 0, %s122
      %s124 = sphi 0, %s122
      %s125 = sphi 0, %s124
      %s139 = sphi 0, %s125
      %s143 = sphi 0, %s143
      %s145 = sphi 0, %s143
      %s146 = sphi 0, %s145
      %s160 = sphi 0, %s146
      %s164 = sphi 0, %s164
      %s166 = sphi 0, %s164
      %s167 = sphi 0, %s166
      %s181 = sphi 0, %s167
      %s185 = sphi 0, %s185
      %s187 = sphi 0, %s185
      %s188 = sphi 0, %s187
      %s202 = sphi 0, %s188
      %s206 = sphi 0, %s206
      %s208 = sphi 0, %s206
      %s209 = sphi 0, %s208
      %s223 = sphi 0, %s209
      %s227 = sphi 0, %s227
      %s229 = sphi 0, %s227
      %s230 = sphi 0, %s229
      %s244 = sphi 0, %s230
      %s248 = sphi 0, %s248
      %s250 = sphi 0, %s248
      %s251 = sphi 0, %s250
      %s265 = sphi 0, %s251
      %s271 = sphi 0, %s273
      %s274 = sphi 0, %s271
      %s275 = sphi 0, %s274
      %s291 = sphi 0, %s275
    $region4: #{_lambda_.2} parent=1 // loop_header_branch
      %23 = sbr.rel (%p21) target = $region8
    $region5: #{_lambda_.2} parent=1 // loop_body
      %s25 = ssub.s32 %s20, 1
      %s26 = ssub.s32 %s20, 2
      %s27 = sadd.s32 %s20, 1
      %s28 = ssub.s32 %s20, %s27
      %p29 = scmp.eq.s32.totalorder %s28, 0
      %s31 = sadd.s32 %s30, 1
      %s32 = scalar_select %p29, %s30, %s31
      %p35 = pneg %p29
      %p36 = scmp.eq.s32.totalorder %s20, 1
      %p37 = por %p35, %p36
      %p38 = scmp.ne.s32.totalorder %s30, %s33
      %p39 = scmp.eq.s32.totalorder %s20, 0
      %p40 = por %p38, %p39
      %p41 = scmp.ne.s32.totalorder %s30, %s33
      %p42 = scmp.eq.s32.totalorder %s25, 1
      %p43 = por %p41, %p42
      %p44 = scmp.ne.s32.totalorder %s33, %s34
      %p45 = scmp.eq.s32.totalorder %s25, 0
      %p46 = por %p44, %p45
      %p47 = scmp.ne.s32.totalorder %s33, %s34
      %p48 = scmp.eq.s32.totalorder %s26, 1
      %p49 = por %p47, %p48
      %p51 = scmp.ne.s32.totalorder %s34, %s50
      %p52 = scmp.eq.s32.totalorder %s26, 0
      %p53 = por %p51, %p52
      %s54 = ssub.s32 %s20, %s27
      %p55 = scmp.eq.s32.totalorder %s54, 0
      %s57 = sadd.s32 %s56, 1
      %s58 = scalar_select %p55, %s56, %s57
      %p61 = pneg %p55
      %p62 = scmp.eq.s32.totalorder %s20, 1
      %p63 = por %p61, %p62
      %p64 = scmp.ne.s32.totalorder %s56, %s59
      %p65 = scmp.eq.s32.totalorder %s20, 0
      %p66 = por %p64, %p65
      %p67 = scmp.ne.s32.totalorder %s56, %s59
      %p68 = scmp.eq.s32.totalorder %s25, 1
      %p69 = por %p67, %p68
      %p70 = scmp.ne.s32.totalorder %s59, %s60
      %p71 = scmp.eq.s32.totalorder %s25, 0
      %p72 = por %p70, %p71
      %p73 = scmp.ne.s32.totalorder %s59, %s60
      %p74 = scmp.eq.s32.totalorder %s26, 1
      %p75 = por %p73, %p74
      %p77 = scmp.ne.s32.totalorder %s60, %s76
      %p78 = scmp.eq.s32.totalorder %s26, 0
      %p79 = por %p77, %p78
      %s81 = sadd.s32 %s80, 1
      %p84 = scmp.eq.s32.totalorder %s20, 1
      %p85 = scmp.ne.s32.totalorder %s80, %s82
      %p86 = scmp.eq.s32.totalorder %s20, 0
      %p87 = por %p85, %p86
      %p88 = scmp.ne.s32.totalorder %s80, %s82
      %p89 = scmp.eq.s32.totalorder %s25, 1
      %p90 = por %p88, %p89
      %p91 = scmp.ne.s32.totalorder %s82, %s83
      %p92 = scmp.eq.s32.totalorder %s25, 0
      %p93 = por %p91, %p92
      %p94 = scmp.ne.s32.totalorder %s82, %s83
      %p95 = scmp.eq.s32.totalorder %s26, 1
      %p96 = por %p94, %p95
      %p98 = scmp.ne.s32.totalorder %s83, %s97
      %p99 = scmp.eq.s32.totalorder %s26, 0
      %p100 = por %p98, %p99
      %s102 = sadd.s32 %s101, 1
      %p105 = scmp.eq.s32.totalorder %s20, 1
      %p106 = scmp.ne.s32.totalorder %s101, %s103
      %p107 = scmp.eq.s32.totalorder %s20, 0
      %p108 = por %p106, %p107
      %p109 = scmp.ne.s32.totalorder %s101, %s103
      %p110 = scmp.eq.s32.totalorder %s25, 1
      %p111 = por %p109, %p110
      %p112 = scmp.ne.s32.totalorder %s103, %s104
      %p113 = scmp.eq.s32.totalorder %s25, 0
      %p114 = por %p112, %p113
      %p115 = scmp.ne.s32.totalorder %s103, %s104
      %p116 = scmp.eq.s32.totalorder %s26, 1
      %p117 = por %p115, %p116
      %p119 = scmp.ne.s32.totalorder %s104, %s118
      %p120 = scmp.eq.s32.totalorder %s26, 0
      %p121 = por %p119, %p120
      %s123 = sadd.s32 %s122, 1
      %p126 = scmp.eq.s32.totalorder %s20, 1
      %p127 = scmp.ne.s32.totalorder %s122, %s124
      %p128 = scmp.eq.s32.totalorder %s20, 0
      %p129 = por %p127, %p128
      %p130 = scmp.ne.s32.totalorder %s122, %s124
      %p131 = scmp.eq.s32.totalorder %s25, 1
      %p132 = por %p130, %p131
      %p133 = scmp.ne.s32.totalorder %s124, %s125
      %p134 = scmp.eq.s32.totalorder %s25, 0
      %p135 = por %p133, %p134
      %p136 = scmp.ne.s32.totalorder %s124, %s125
      %p137 = scmp.eq.s32.totalorder %s26, 1
      %p138 = por %p136, %p137
      %p140 = scmp.ne.s32.totalorder %s125, %s139
      %p141 = scmp.eq.s32.totalorder %s26, 0
      %p142 = por %p140, %p141
      %s144 = sadd.s32 %s143, 1
      %p147 = scmp.eq.s32.totalorder %s20, 1
      %p148 = scmp.ne.s32.totalorder %s143, %s145
      %p149 = scmp.eq.s32.totalorder %s20, 0
      %p150 = por %p148, %p149
      %p151 = scmp.ne.s32.totalorder %s143, %s145
      %p152 = scmp.eq.s32.totalorder %s25, 1
      %p153 = por %p151, %p152
      %p154 = scmp.ne.s32.totalorder %s145, %s146
      %p155 = scmp.eq.s32.totalorder %s25, 0
      %p156 = por %p154, %p155
      %p157 = scmp.ne.s32.totalorder %s145, %s146
      %p158 = scmp.eq.s32.totalorder %s26, 1
      %p159 = por %p157, %p158
      %p161 = scmp.ne.s32.totalorder %s146, %s160
      %p162 = scmp.eq.s32.totalorder %s26, 0
      %p163 = por %p161, %p162
      %s165 = sadd.s32 %s164, 1
      %p168 = scmp.eq.s32.totalorder %s20, 1
      %p169 = scmp.ne.s32.totalorder %s164, %s166
      %p170 = scmp.eq.s32.totalorder %s20, 0
      %p171 = por %p169, %p170
      %p172 = scmp.ne.s32.totalorder %s164, %s166
      %p173 = scmp.eq.s32.totalorder %s25, 1
      %p174 = por %p172, %p173
      %p175 = scmp.ne.s32.totalorder %s166, %s167
      %p176 = scmp.eq.s32.totalorder %s25, 0
      %p177 = por %p175, %p176
      %p178 = scmp.ne.s32.totalorder %s166, %s167
      %p179 = scmp.eq.s32.totalorder %s26, 1
      %p180 = por %p178, %p179
      %p182 = scmp.ne.s32.totalorder %s167, %s181
      %p183 = scmp.eq.s32.totalorder %s26, 0
      %p184 = por %p182, %p183
      %s186 = sadd.s32 %s185, 1
      %p189 = scmp.eq.s32.totalorder %s20, 1
      %p190 = scmp.ne.s32.totalorder %s185, %s187
      %p191 = scmp.eq.s32.totalorder %s20, 0
      %p192 = por %p190, %p191
      %p193 = scmp.ne.s32.totalorder %s185, %s187
      %p194 = scmp.eq.s32.totalorder %s25, 1
      %p195 = por %p193, %p194
      %p196 = scmp.ne.s32.totalorder %s187, %s188
      %p197 = scmp.eq.s32.totalorder %s25, 0
      %p198 = por %p196, %p197
      %p199 = scmp.ne.s32.totalorder %s187, %s188
      %p200 = scmp.eq.s32.totalorder %s26, 1
      %p201 = por %p199, %p200
      %p203 = scmp.ne.s32.totalorder %s188, %s202
      %p204 = scmp.eq.s32.totalorder %s26, 0
      %p205 = por %p203, %p204
      %s207 = sadd.s32 %s206, 1
      %p210 = scmp.eq.s32.totalorder %s20, 1
      %p211 = scmp.ne.s32.totalorder %s206, %s208
      %p212 = scmp.eq.s32.totalorder %s20, 0
      %p213 = por %p211, %p212
      %p214 = scmp.ne.s32.totalorder %s206, %s208
      %p215 = scmp.eq.s32.totalorder %s25, 1
      %p216 = por %p214, %p215
      %p217 = scmp.ne.s32.totalorder %s208, %s209
      %p218 = scmp.eq.s32.totalorder %s25, 0
      %p219 = por %p217, %p218
      %p220 = scmp.ne.s32.totalorder %s208, %s209
      %p221 = scmp.eq.s32.totalorder %s26, 1
      %p222 = por %p220, %p221
      %p224 = scmp.ne.s32.totalorder %s209, %s223
      %p225 = scmp.eq.s32.totalorder %s26, 0
      %p226 = por %p224, %p225
      %s228 = sadd.s32 %s227, 1
      %p231 = scmp.eq.s32.totalorder %s20, 1
      %p232 = scmp.ne.s32.totalorder %s227, %s229
      %p233 = scmp.eq.s32.totalorder %s20, 0
      %p234 = por %p232, %p233
      %p235 = scmp.ne.s32.totalorder %s227, %s229
      %p236 = scmp.eq.s32.totalorder %s25, 1
      %p237 = por %p235, %p236
      %p238 = scmp.ne.s32.totalorder %s229, %s230
      %p239 = scmp.eq.s32.totalorder %s25, 0
      %p240 = por %p238, %p239
      %p241 = scmp.ne.s32.totalorder %s229, %s230
      %p242 = scmp.eq.s32.totalorder %s26, 1
      %p243 = por %p241, %p242
      %p245 = scmp.ne.s32.totalorder %s230, %s244
      %p246 = scmp.eq.s32.totalorder %s26, 0
      %p247 = por %p245, %p246
      %s249 = sadd.s32 %s248, 1
      %p252 = scmp.eq.s32.totalorder %s20, 1
      %p253 = scmp.ne.s32.totalorder %s248, %s250
      %p254 = scmp.eq.s32.totalorder %s20, 0
      %p255 = por %p253, %p254
      %p256 = scmp.ne.s32.totalorder %s248, %s250
      %p257 = scmp.eq.s32.totalorder %s25, 1
      %p258 = por %p256, %p257
      %p259 = scmp.ne.s32.totalorder %s250, %s251
      %p260 = scmp.eq.s32.totalorder %s25, 0
      %p261 = por %p259, %p260
      %p262 = scmp.ne.s32.totalorder %s250, %s251
      %p263 = scmp.eq.s32.totalorder %s26, 1
      %p264 = por %p262, %p263
      %p266 = scmp.ne.s32.totalorder %s251, %s265
      %p267 = scmp.eq.s32.totalorder %s26, 0
      %p268 = por %p266, %p267
      %s269 = ssub.s32 %s20, %s27
      %p270 = scmp.eq.s32.totalorder %s269, 0
      %s272 = sadd.s32 %s271, 1
      %s273 = scalar_select %p270, %s271, %s272
      %p276 = pneg %p270
      %p277 = scmp.eq.s32.totalorder %s20, 1
      %p278 = por %p276, %p277
      %p279 = scmp.ne.s32.totalorder %s271, %s274
      %p280 = scmp.eq.s32.totalorder %s20, 0
      %p281 = por %p279, %p280
      %p282 = scmp.ne.s32.totalorder %s271, %s274
      %p283 = scmp.eq.s32.totalorder %s25, 1
      %p284 = por %p282, %p283
      %p285 = scmp.ne.s32.totalorder %s274, %s275
      %p286 = scmp.eq.s32.totalorder %s25, 0
      %p287 = por %p285, %p286
      %p288 = scmp.ne.s32.totalorder %s274, %s275
      %p289 = scmp.eq.s32.totalorder %s26, 1
      %p290 = por %p288, %p289
      %p292 = scmp.ne.s32.totalorder %s275, %s291
      %p293 = scmp.eq.s32.totalorder %s26, 0
      %p294 = por %p292, %p293
      %p295 = scmp.le.s32.totalorder 1, %s20
      %p296 = scmp.lt.s32.totalorder %s20, 3
      %p297 = pnand %p295, %p296
      %p298 = pneg %p297
      // Predicated region
      $region9: #{_lambda_.2} parent=5 // pred_check
        _
      $region10: #{_lambda_.2} parent=5 // pred_check_branch
        %300 = sbr.rel (%p297) target = $region12
      $region11: #{_lambda_.2} parent=5 // pred_region
        %s301 = ssub.s32 %s20, 1
        // Predicated region
        $region13: #{_lambda_.2} parent=11 // pred_check
          %p302 = pneg %p93
        $region14: #{_lambda_.2} parent=11 // pred_check_branch
          %304 = sbr.rel (%p302) target = $region16
        $region15: #{_lambda_.2} parent=11 // pred_region
          _
        $region16: #{_lambda_.2} parent=11 // pred_fallthru
          _
        // Predicated region
        $region17: #{_lambda_.2} parent=11 // pred_check
          %p305 = pneg %p114
        $region18: #{_lambda_.2} parent=11 // pred_check_branch
          %307 = sbr.rel (%p305) target = $region20
        $region19: #{_lambda_.2} parent=11 // pred_region
          _
        $region20: #{_lambda_.2} parent=11 // pred_fallthru
          _
        // Predicated region
        $region21: #{_lambda_.2} parent=11 // pred_check
          %p308 = pneg %p135
        $region22: #{_lambda_.2} parent=11 // pred_check_branch
          %310 = sbr.rel (%p308) target = $region24
        $region23: #{_lambda_.2} parent=11 // pred_region
          _
        $region24: #{_lambda_.2} parent=11 // pred_fallthru
          _
        // Predicated region
        $region25: #{_lambda_.2} parent=11 // pred_check
          %p311 = pneg %p156
        $region26: #{_lambda_.2} parent=11 // pred_check_branch
          %313 = sbr.rel (%p311) target = $region28
        $region27: #{_lambda_.2} parent=11 // pred_region
          _
        $region28: #{_lambda_.2} parent=11 // pred_fallthru
          _
        // Predicated region
        $region29: #{_lambda_.2} parent=11 // pred_check
          %p314 = pneg %p177
        $region30: #{_lambda_.2} parent=11 // pred_check_branch
          %316 = sbr.rel (%p314) target = $region32
        $region31: #{_lambda_.2} parent=11 // pred_region
          _
        $region32: #{_lambda_.2} parent=11 // pred_fallthru
          _
        // Predicated region
        $region33: #{_lambda_.2} parent=11 // pred_check
          %p317 = pneg %p198
        $region34: #{_lambda_.2} parent=11 // pred_check_branch
          %319 = sbr.rel (%p317) target = $region36
        $region35: #{_lambda_.2} parent=11 // pred_region
          _
        $region36: #{_lambda_.2} parent=11 // pred_fallthru
          _
        // Predicated region
        $region37: #{_lambda_.2} parent=11 // pred_check
          %p320 = pneg %p219
        $region38: #{_lambda_.2} parent=11 // pred_check_branch
          %322 = sbr.rel (%p320) target = $region40
        $region39: #{_lambda_.2} parent=11 // pred_region
          _
        $region40: #{_lambda_.2} parent=11 // pred_fallthru
          _
        // Predicated region
        $region41: #{_lambda_.2} parent=11 // pred_check
          %p323 = pneg %p240
        $region42: #{_lambda_.2} parent=11 // pred_check_branch
          %325 = sbr.rel (%p323) target = $region44
        $region43: #{_lambda_.2} parent=11 // pred_region
          _
        $region44: #{_lambda_.2} parent=11 // pred_fallthru
          _
        // Predicated region
        $region45: #{_lambda_.2} parent=11 // pred_check
          %p326 = pneg %p261
        $region46: #{_lambda_.2} parent=11 // pred_check_branch
          %328 = sbr.rel (%p326) target = $region48
        $region47: #{_lambda_.2} parent=11 // pred_region
          _
        $region48: #{_lambda_.2} parent=11 // pred_fallthru
          _
      $region12: #{_lambda_.2} parent=5 // pred_fallthru
        _
      %p329 = scmp.lt.s32.totalorder %s20, 2
      // Predicated region
      $region49: #{_lambda_.2} parent=5 // pred_check
        %p330 = pneg %p329
      $region50: #{_lambda_.2} parent=5 // pred_check_branch
        %332 = sbr.rel (%p330) target = $region52
      $region51: #{_lambda_.2} parent=5 // pred_region
        // Predicated region
        $region53: #{_lambda_.2} parent=51 // pred_check
          %p333 = pneg %p40
        $region54: #{_lambda_.2} parent=51 // pred_check_branch
          %335 = sbr.rel (%p333) target = $region56
        $region55: #{_lambda_.2} parent=51 // pred_region
          %p336 = scmp.lt.s32.totalorder %s20, 1
          %s337 = scalar_select %p336, %s20, 1
          %s338 = smul.addr %s337, 2
          %s339 = smul.addr %s338, 4
          %s340 = scalar_lea.vmem %s0, %s339
        $region56: #{_lambda_.2} parent=51 // pred_fallthru
          _
        // Predicated region
        $region57: #{_lambda_.2} parent=51 // pred_check
          %p341 = pneg %p66
        $region58: #{_lambda_.2} parent=51 // pred_check_branch
          %343 = sbr.rel (%p341) target = $region60
        $region59: #{_lambda_.2} parent=51 // pred_region
          %s344 = sand.u32 %s56, 1
          %s345 = scalar_lea.sflag [#allocation3], %s344
          %s346 = sand.u32 %s56, 1
          %s347 = scalar_lea.vmem [#allocation2], %s346
          %s349 = ssub.s32 16, 16
          %350 = vsyncadd %s345, %s349
          %s351 = smul.addr %s20, 16
          %s352 = scalar_lea.hbm %s1, %s351
          %s354 = sshll.u32 %s347, 4
          %s355 = int_to_ptr.vmem [resolvable:$true] %s354
          %357 = dma.hbm_to_vmem [thread:$0]  %s352, 16, %s355, %s345
        $region60: #{_lambda_.2} parent=51 // pred_fallthru
          _
      $region52: #{_lambda_.2} parent=5 // pred_fallthru
        _
      %p358 = scmp.le.s32.totalorder 1, %s20
      %p359 = scmp.lt.s32.totalorder %s20, 3
      %p360 = pnand %p358, %p359
      %p361 = pneg %p360
      // Predicated region
      $region61: #{_lambda_.2} parent=5 // pred_check
        _
      $region62: #{_lambda_.2} parent=5 // pred_check_branch
        %363 = sbr.rel (%p360) target = $region64
      $region63: #{_lambda_.2} parent=5 // pred_region
        %s364 = ssub.s32 %s20, 1
        %s365 = sand.u32 %s59, 1
        %s366 = scalar_lea.sflag [#allocation3], %s365
        %s367 = sand.u32 %s59, 1
        %s368 = scalar_lea.vmem [#allocation2], %s367
        // Predicated region
        $region65: #{_lambda_.2} parent=63 // pred_check
          %p369 = pneg %p72
        $region66: #{_lambda_.2} parent=63 // pred_check_branch
          %371 = sbr.rel (%p369) target = $region68
        $region67: #{_lambda_.2} parent=63 // pred_region
          %372 = dma.done %s366, 16
        $region68: #{_lambda_.2} parent=63 // pred_fallthru
          _
        %p373 = scmp.lt.s32.totalorder %s25, 1
        %s374 = scalar_select %p373, %s25, 1
        %s375 = smul.addr %s374, 2
        %s376 = smul.addr %s375, 4
        %s377 = scalar_lea.vmem %s0, %s376
        %p378 = pneg %p46
        %p379 = pneg %p43
        %s380 = sand.u32 %s59, 1
        %s381 = scalar_lea.sflag [#allocation3], %s380
        %s382 = sand.u32 %s59, 1
        %s383 = scalar_lea.vmem [#allocation2], %s382
        %p384 = pneg %p72
        %p385 = pneg %p69
        %p386 = pneg %p93
        %p387 = pneg %p90
        %p388 = pneg %p114
        %p389 = pneg %p111
        %p390 = pneg %p135
        %p391 = pneg %p132
        %p392 = pneg %p156
        %p393 = pneg %p153
        %p394 = pneg %p177
        %p395 = pneg %p174
        %p396 = pneg %p198
        %p397 = pneg %p195
        %p398 = pneg %p219
        %p399 = pneg %p216
        %p400 = pneg %p240
        %p401 = pneg %p237
        %p402 = pneg %p261
        %p403 = pneg %p258
        %p404 = pneg %p287
        %p405 = pneg %p284
        %p406 = scmp.lt.s32.totalorder %s25, 1
        %s407 = scalar_select %p406, %s25, 1
        %s408 = scalar_lea.vmem %s11, %s407
        %p409 = scmp.lt.s32.totalorder %s25, 1
        %s410 = scalar_select %p409, %s25, 1
        %s411 = smul.addr %s410, 2
        %s412 = smul.addr %s411, 4
        %s413 = scalar_lea.vmem %s0, %s412
        %p414 = scmp.lt.s32.totalorder %s25, 1
        %s415 = scalar_select %p414, %s25, 1
        %s416 = scalar_lea.vmem %s11, %s415
        %v418 = vld [vmem:[%s413] sm:$0xff]
        %v420 = vcombine.high %v418, %v418
        %v422 = vpack.c.bf16 %v418, %v418
        %v423 = vpack.c.bf16 %v420, %v420
        %v424 = vld [vmem:[%s2] sm:$0xf]
        %v425 = vld [vmem:[%s2 + $0x4] sm:$0xf]
        %v426 = vld [vmem:[%s2 + $0x8] sm:$0xf]
        %v427 = vld [vmem:[%s2 + $0xc] sm:$0xf]
        %v428 = vld [vmem:[%s2 + $0x10] sm:$0xf]
        %v429 = vld [vmem:[%s2 + $0x14] sm:$0xf]
        %v430 = vld [vmem:[%s2 + $0x18] sm:$0xf]
        %v431 = vld [vmem:[%s2 + $0x1c] sm:$0xf]
        %v432 = vld [vmem:[%s2 + $0x20] sm:$0xf]
        %v433 = vld [vmem:[%s2 + $0x24] sm:$0xf]
        %v434 = vld [vmem:[%s2 + $0x28] sm:$0xf]
        %v435 = vld [vmem:[%s2 + $0x2c] sm:$0xf]
        %v436 = vld [vmem:[%s2 + $0x30] sm:$0xf]
        %v437 = vld [vmem:[%s2 + $0x34] sm:$0xf]
        %v438 = vld [vmem:[%s2 + $0x38] sm:$0xf]
        %v439 = vld [vmem:[%s2 + $0x3c] sm:$0xf]
        %v440 = vld [vmem:[%s2 + $0x40] sm:$0xf]
        %v441 = vld [vmem:[%s2 + $0x44] sm:$0xf]
        %v442 = vld [vmem:[%s2 + $0x48] sm:$0xf]
        %v443 = vld [vmem:[%s2 + $0x4c] sm:$0xf]
        %v444 = vld [vmem:[%s2 + $0x50] sm:$0xf]
        %v445 = vld [vmem:[%s2 + $0x54] sm:$0xf]
        %v446 = vld [vmem:[%s2 + $0x58] sm:$0xf]
        %v447 = vld [vmem:[%s2 + $0x5c] sm:$0xf]
        %v448 = vld [vmem:[%s3] sm:$0x1]
        %v450 = vlaneseq
        %v451 = vshrl.u32 %v450, 7
        %v452 = vsub.s32 0, %v451
        %v453 = vrot.slane %v448, %v452
        %v479 = vunpack.c.l.b16 %v424
        %v480 = vunpack.c.l.b16 %v425
        %v481 = vunpack.c.l.b16 %v426
        %v482 = vunpack.c.l.b16 %v427
        %v483 = vunpack.c.l.b16 %v428
        %v484 = vunpack.c.l.b16 %v429
        %v485 = vunpack.c.l.b16 %v430
        %v486 = vunpack.c.l.b16 %v431
        %v487 = vunpack.c.l.b16 %v432
        %v488 = vunpack.c.l.b16 %v433
        %v489 = vunpack.c.l.b16 %v434
        %v490 = vunpack.c.l.b16 %v435
        %v491 = vunpack.c.l.b16 %v436
        %v492 = vunpack.c.l.b16 %v437
        %v493 = vunpack.c.l.b16 %v438
        %v494 = vunpack.c.l.b16 %v439
        %v495 = vunpack.c.l.b16 %v440
        %v496 = vunpack.c.l.b16 %v441
        %v497 = vunpack.c.l.b16 %v442
        %v498 = vunpack.c.l.b16 %v443
        %v499 = vunpack.c.l.b16 %v444
        %v500 = vunpack.c.l.b16 %v445
        %v501 = vunpack.c.l.b16 %v446
        %v502 = vunpack.c.l.b16 %v447
        %v503 = vpack.c.b16 %v480, %v479
        %v504 = vpack.c.b16 %v482, %v481
        %v505 = vpack.c.b16 %v484, %v483
        %v506 = vpack.c.b16 %v486, %v485
        %v507 = vpack.c.b16 %v488, %v487
        %v508 = vpack.c.b16 %v490, %v489
        %v509 = vpack.c.b16 %v492, %v491
        %v510 = vpack.c.b16 %v494, %v493
        %v511 = vpack.c.b16 %v496, %v495
        %v512 = vpack.c.b16 %v498, %v497
        %v513 = vpack.c.b16 %v500, %v499
        %v514 = vpack.c.b16 %v502, %v501
        %vm527 = vcmask 523264
        %v529 = vsel %vm527, %v423, 0
        %531 = vmatprep.subr.bf16.mxu0 0
        %532 = vmatpush1.bf16.msra.mxu0 %v503
        %533 = vmatprep.subr.bf16.mxu0 0
        %534 = vmatpush1.bf16.msra.mxu0 %v504
        %535 = vmatprep.subr.bf16.mxu0 0
        %536 = vmatpush1.bf16.msra.mxu0 %v505
        %537 = vmatprep.subr.bf16.mxu0 0
        %538 = vmatpush1.bf16.msra.mxu0 %v506
        %539 = vmatprep.subr.bf16.mxu0 0
        %540 = vmatpush1.bf16.msra.mxu0 %v507
        %541 = vmatprep.subr.bf16.mxu0 0
        %542 = vmatpush1.bf16.msra.mxu0 %v508
        %543 = vmatprep.subr.bf16.mxu0 0
        %544 = vmatpush1.bf16.msra.mxu0 %v509
        %545 = vmatprep.subr.bf16.mxu0 0
        %546 = vmatpush1.bf16.msra.mxu0 %v510
        %547 = vmatprep.subr.bf16.mxu0 0
        %548 = vmatpush1.bf16.msra.mxu0 %v511
        %549 = vmatprep.subr.bf16.mxu0 0
        %550 = vmatpush1.bf16.msra.mxu0 %v512
        %551 = vmatprep.subr.bf16.mxu0 0
        %552 = vmatpush1.bf16.msra.mxu0 %v513
        %553 = vmatprep.subr.bf16.mxu0 0
        %554 = vmatpush1.bf16.msra.mxu0 %v514
        %555 = vmatprep.subr.bf16.mxu0 0
        %556 = vmatpush1.bf16.msra.mxu0 0
        %557 = vmatprep.subr.bf16.mxu0 0
        %558 = vmatpush1.bf16.msra.mxu0 0
        %559 = vmatprep.subr.bf16.mxu0 0
        %560 = vmatpush1.bf16.msra.mxu0 0
        %561 = vmatprep.subr.bf16.mxu0 0
        %562 = vmatpush1.bf16.msra.mxu0 0
        %563 = vmatprep.mubr.bf16.mxu0 %v529
        %564 = vmatmul.mubr.bf16.gmra.mrb[0].mxu0 %v422
        %v565 = vpop.f32.mrb[0].mxu0
        %v566 = vadd.f32 %v453, %v565
        %v567 = vpop.f32.mrb[0].mxu0
        %v568 = vpop.f32.mrb[0].mxu0
        %v569 = vpop.f32.mrb[0].mxu0
        %570 = vdwg.mxu0
        %v571 = vmax.f32 %v566, 0.0
        %vm572 = vcmask 519168
        %v573 = vsel %vm572, %v571, 0.0
        %v574 = vrot.slane %v573, 4
        %v575 = vadd.f32 %v573, %v574
        %v576 = vrot.slane %v575, 2
        %v577 = vadd.f32 %v575, %v576
        %v578 = vrot.slane %v577, 1
        %v579 = vadd.f32 %v577, %v578
        %v580 = vmul.f32 %v579, 0.25
        %v581 = vld [vmem:[%s368] sm:$0x1]
        %v582 = vpack.c.bf16 %v581, %v581
        %v583 = vld [vmem:[%s4] sm:$0xf]
        %v584 = vld [vmem:[%s5] sm:$0x1]
        %vm585 = vcmask 64512
        %v587 = vsel %vm585, %v582, 0
        %vm589 = vcmask 1043456
        %v591 = vsel %vm589, %v583, 0
        %593 = vmatprep.subr.bf16.mxu0 0
        %594 = vmatpush1.bf16.msra.mxu0 %v591
        %595 = vmatprep.subr.bf16.mxu0 0
        %596 = vmatpush1.bf16.msra.mxu0 0
        %597 = vmatprep.subr.bf16.mxu0 0
        %598 = vmatpush1.bf16.msra.mxu0 0
        %599 = vmatprep.subr.bf16.mxu0 0
        %600 = vmatpush1.bf16.msra.mxu0 0
        %601 = vmatprep.subr.bf16.mxu0 0
        %602 = vmatpush1.bf16.msra.mxu0 0
        %603 = vmatprep.subr.bf16.mxu0 0
        %604 = vmatpush1.bf16.msra.mxu0 0
        %605 = vmatprep.subr.bf16.mxu0 0
        %606 = vmatpush1.bf16.msra.mxu0 0
        %607 = vmatprep.subr.bf16.mxu0 0
        %608 = vmatpush1.bf16.msra.mxu0 0
        %609 = vmatprep.subr.bf16.mxu0 0
        %610 = vmatpush1.bf16.msra.mxu0 0
        %611 = vmatprep.subr.bf16.mxu0 0
        %612 = vmatpush1.bf16.msra.mxu0 0
        %613 = vmatprep.subr.bf16.mxu0 0
        %614 = vmatpush1.bf16.msra.mxu0 0
        %615 = vmatprep.subr.bf16.mxu0 0
        %616 = vmatpush1.bf16.msra.mxu0 0
        %617 = vmatprep.subr.bf16.mxu0 0
        %618 = vmatpush1.bf16.msra.mxu0 0
        %619 = vmatprep.subr.bf16.mxu0 0
        %620 = vmatpush1.bf16.msra.mxu0 0
        %621 = vmatprep.subr.bf16.mxu0 0
        %622 = vmatpush1.bf16.msra.mxu0 0
        %623 = vmatprep.subr.bf16.mxu0 0
        %624 = vmatpush1.bf16.msra.mxu0 0
        %625 = vmatprep.mubr.bf16.mxu0 0
        %626 = vmatmul.mubr.bf16.gmra.mrb[0].mxu0 %v587
        %v627 = vpop.f32.mrb[0].mxu0
        %v628 = vadd.f32 %v584, %v627
        %v629 = vpop.f32.mrb[0].mxu0
        %v630 = vpop.f32.mrb[0].mxu0
        %v631 = vpop.f32.mrb[0].mxu0
        %632 = vdwg.mxu0
        %v633 = vmax.f32 %v628, 0.0
        %v634 = vpack.c.bf16 %v633, %v633
        %v635 = vld [vmem:[%s6] sm:$0xf]
        %v636 = vld [vmem:[%s6 + $0x4] sm:$0xf]
        %v637 = vld [vmem:[%s6 + $0x8] sm:$0xf]
        %v638 = vld [vmem:[%s6 + $0xc] sm:$0xf]
        %v639 = vld [vmem:[%s7] sm:$0x1]
        %v644 = vunpack.c.l.b16 %v635
        %v645 = vunpack.c.l.b16 %v636
        %v646 = vunpack.c.l.b16 %v637
        %v647 = vunpack.c.l.b16 %v638
        %v648 = vpack.c.b16 %v645, %v644
        %v649 = vpack.c.b16 %v647, %v646
        %vm652 = vcmask 261120
        %v654 = vsel %vm652, %v634, 0
        %656 = vmatprep.subr.bf16.mxu0 0
        %657 = vmatpush1.bf16.msra.mxu0 %v648
        %658 = vmatprep.subr.bf16.mxu0 0
        %659 = vmatpush1.bf16.msra.mxu0 %v649
        %660 = vmatprep.subr.bf16.mxu0 0
        %661 = vmatpush1.bf16.msra.mxu0 0
        %662 = vmatprep.subr.bf16.mxu0 0
        %663 = vmatpush1.bf16.msra.mxu0 0
        %664 = vmatprep.subr.bf16.mxu0 0
        %665 = vmatpush1.bf16.msra.mxu0 0
        %666 = vmatprep.subr.bf16.mxu0 0
        %667 = vmatpush1.bf16.msra.mxu0 0
        %668 = vmatprep.subr.bf16.mxu0 0
        %669 = vmatpush1.bf16.msra.mxu0 0
        %670 = vmatprep.subr.bf16.mxu0 0
        %671 = vmatpush1.bf16.msra.mxu0 0
        %672 = vmatprep.subr.bf16.mxu0 0
        %673 = vmatpush1.bf16.msra.mxu0 0
        %674 = vmatprep.subr.bf16.mxu0 0
        %675 = vmatpush1.bf16.msra.mxu0 0
        %676 = vmatprep.subr.bf16.mxu0 0
        %677 = vmatpush1.bf16.msra.mxu0 0
        %678 = vmatprep.subr.bf16.mxu0 0
        %679 = vmatpush1.bf16.msra.mxu0 0
        %680 = vmatprep.subr.bf16.mxu0 0
        %681 = vmatpush1.bf16.msra.mxu0 0
        %682 = vmatprep.subr.bf16.mxu0 0
        %683 = vmatpush1.bf16.msra.mxu0 0
        %684 = vmatprep.subr.bf16.mxu0 0
        %685 = vmatpush1.bf16.msra.mxu0 0
        %686 = vmatprep.subr.bf16.mxu0 0
        %687 = vmatpush1.bf16.msra.mxu0 0
        %688 = vmatprep.mubr.bf16.mxu0 0
        %689 = vmatmul.mubr.bf16.gmra.mrb[0].mxu0 %v654
        %v690 = vpop.f32.mrb[0].mxu0
        %v691 = vadd.f32 %v639, %v690
        %v692 = vpop.f32.mrb[0].mxu0
        %v693 = vpop.f32.mrb[0].mxu0
        %v694 = vpop.f32.mrb[0].mxu0
        %695 = vdwg.mxu0
        %v696 = vmax.f32 %v691, 0.0
        %v697 = vpack.c.bf16 %v580, %v580
        %v698 = vld [vmem:[%s8] sm:$0xf]
        %v699 = vld [vmem:[%s8 + $0x4] sm:$0xf]
        %v700 = vld [vmem:[%s8 + $0x8] sm:$0xf]
        %v701 = vld [vmem:[%s8 + $0xc] sm:$0xf]
        %v702 = vld [vmem:[%s8 + $0x10] sm:$0xf]
        %v703 = vld [vmem:[%s8 + $0x14] sm:$0xf]
        %v704 = vld [vmem:[%s8 + $0x18] sm:$0xf]
        %v705 = vld [vmem:[%s8 + $0x1c] sm:$0xf]
        %v706 = vpack.c.bf16 %v696, %v696
        %v707 = vld [vmem:[%s9] sm:$0xf]
        %v708 = vld [vmem:[%s9 + $0x4] sm:$0xf]
        %v711 = vunpack.c.l.b16 %v707
        %v712 = vunpack.c.l.b16 %v708
        %v713 = vpack.c.b16 %v712, %v711
        %vm715 = vcmask 130048
        %v717 = vsel %vm715, %v706, 0
        %719 = vmatprep.subr.bf16.mxu0 0
        %720 = vmatpush1.bf16.msra.mxu0 %v713
        %721 = vmatprep.subr.bf16.mxu0 0
        %722 = vmatpush1.bf16.msra.mxu0 0
        %723 = vmatprep.subr.bf16.mxu0 0
        %724 = vmatpush1.bf16.msra.mxu0 0
        %725 = vmatprep.subr.bf16.mxu0 0
        %726 = vmatpush1.bf16.msra.mxu0 0
        %727 = vmatprep.subr.bf16.mxu0 0
        %728 = vmatpush1.bf16.msra.mxu0 0
        %729 = vmatprep.subr.bf16.mxu0 0
        %730 = vmatpush1.bf16.msra.mxu0 0
        %731 = vmatprep.subr.bf16.mxu0 0
        %732 = vmatpush1.bf16.msra.mxu0 0
        %733 = vmatprep.subr.bf16.mxu0 0
        %734 = vmatpush1.bf16.msra.mxu0 0
        %735 = vmatprep.subr.bf16.mxu0 0
        %736 = vmatpush1.bf16.msra.mxu0 0
        %737 = vmatprep.subr.bf16.mxu0 0
        %738 = vmatpush1.bf16.msra.mxu0 0
        %739 = vmatprep.subr.bf16.mxu0 0
        %740 = vmatpush1.bf16.msra.mxu0 0
        %741 = vmatprep.subr.bf16.mxu0 0
        %742 = vmatpush1.bf16.msra.mxu0 0
        %743 = vmatprep.subr.bf16.mxu0 0
        %744 = vmatpush1.bf16.msra.mxu0 0
        %745 = vmatprep.subr.bf16.mxu0 0
        %746 = vmatpush1.bf16.msra.mxu0 0
        %747 = vmatprep.subr.bf16.mxu0 0
        %748 = vmatpush1.bf16.msra.mxu0 0
        %749 = vmatprep.subr.bf16.mxu0 0
        %750 = vmatpush1.bf16.msra.mxu0 0
        %751 = vmatprep.mubr.bf16.mxu0 0
        %752 = vmatmul.mubr.bf16.gmra.mrb[0].mxu0 %v717
        %v753 = vpop.f32.mrb[0].mxu0
        %v754 = vadd.f32 0.0, %v753
        %v755 = vpop.f32.mrb[0].mxu0
        %v756 = vpop.f32.mrb[0].mxu0
        %v757 = vpop.f32.mrb[0].mxu0
        %758 = vdwg.mxu0
        %v767 = vunpack.c.l.b16 %v698
        %v768 = vunpack.c.l.b16 %v699
        %v769 = vunpack.c.l.b16 %v700
        %v770 = vunpack.c.l.b16 %v701
        %v771 = vunpack.c.l.b16 %v702
        %v772 = vunpack.c.l.b16 %v703
        %v773 = vunpack.c.l.b16 %v704
        %v774 = vunpack.c.l.b16 %v705
        %v775 = vpack.c.b16 %v768, %v767
        %v776 = vpack.c.b16 %v770, %v769
        %v777 = vpack.c.b16 %v772, %v771
        %v778 = vpack.c.b16 %v774, %v773
        %v784 = vsel %vm527, %v697, 0
        %786 = vmatprep.subr.bf16.mxu0 0
        %787 = vmatpush1.bf16.msra.mxu0 %v775
        %788 = vmatprep.subr.bf16.mxu0 0
        %789 = vmatpush1.bf16.msra.mxu0 %v776
        %790 = vmatprep.subr.bf16.mxu0 0
        %791 = vmatpush1.bf16.msra.mxu0 %v777
        %792 = vmatprep.subr.bf16.mxu0 0
        %793 = vmatpush1.bf16.msra.mxu0 %v778
        %794 = vmatprep.subr.bf16.mxu0 0
        %795 = vmatpush1.bf16.msra.mxu0 0
        %796 = vmatprep.subr.bf16.mxu0 0
        %797 = vmatpush1.bf16.msra.mxu0 0
        %798 = vmatprep.subr.bf16.mxu0 0
        %799 = vmatpush1.bf16.msra.mxu0 0
        %800 = vmatprep.subr.bf16.mxu0 0
        %801 = vmatpush1.bf16.msra.mxu0 0
        %802 = vmatprep.subr.bf16.mxu0 0
        %803 = vmatpush1.bf16.msra.mxu0 0
        %804 = vmatprep.subr.bf16.mxu0 0
        %805 = vmatpush1.bf16.msra.mxu0 0
        %806 = vmatprep.subr.bf16.mxu0 0
        %807 = vmatpush1.bf16.msra.mxu0 0
        %808 = vmatprep.subr.bf16.mxu0 0
        %809 = vmatpush1.bf16.msra.mxu0 0
        %810 = vmatprep.subr.bf16.mxu0 0
        %811 = vmatpush1.bf16.msra.mxu0 0
        %812 = vmatprep.subr.bf16.mxu0 0
        %813 = vmatpush1.bf16.msra.mxu0 0
        %814 = vmatprep.subr.bf16.mxu0 0
        %815 = vmatpush1.bf16.msra.mxu0 0
        %816 = vmatprep.subr.bf16.mxu0 0
        %817 = vmatpush1.bf16.msra.mxu0 0
        %818 = vmatprep.mubr.bf16.mxu0 0
        %819 = vmatmul.mubr.bf16.gmra.mrb[0].mxu0 %v784
        %v820 = vpop.f32.mrb[0].mxu0
        %v821 = vadd.f32 %v754, %v820
        %v822 = vpop.f32.mrb[0].mxu0
        %v823 = vpop.f32.mrb[0].mxu0
        %v824 = vpop.f32.mrb[0].mxu0
        %825 = vdwg.mxu0
        %v826 = vld [vmem:[%s10] sm:$0x1]
        %v827 = vadd.f32 %v821, %v826
        %vm828 = vcmask 253952
        %829 = vst.msk [vmem:[%s416] sm:$0x1] %vm828, %v827
        %p830 = scmp.lt.s32.totalorder %s25, 1
        %s831 = scalar_select %p830, %s25, 1
        %s832 = scalar_lea.vmem %s11, %s831
        // Predicated region
        $region69: #{_lambda_.2} parent=63 // pred_check
          %p833 = pneg %p284
        $region70: #{_lambda_.2} parent=63 // pred_check_branch
          %835 = sbr.rel (%p833) target = $region72
        $region71: #{_lambda_.2} parent=63 // pred_region
          _
        $region72: #{_lambda_.2} parent=63 // pred_fallthru
          _
      $region64: #{_lambda_.2} parent=5 // pred_fallthru
        _
      %p836 = scmp.le.s32.totalorder 2, %s20
      // Predicated region
      $region73: #{_lambda_.2} parent=5 // pred_check
        %p837 = pneg %p836
      $region74: #{_lambda_.2} parent=5 // pred_check_branch
        %839 = sbr.rel (%p837) target = $region76
      $region75: #{_lambda_.2} parent=5 // pred_region
        %s840 = ssub.s32 %s20, 2
        // Predicated region
        $region77: #{_lambda_.2} parent=75 // pred_check
          %p841 = pneg %p290
        $region78: #{_lambda_.2} parent=75 // pred_check_branch
          %843 = sbr.rel (%p841) target = $region80
        $region79: #{_lambda_.2} parent=75 // pred_region
          %p844 = scmp.lt.s32.totalorder %s26, 1
          %s845 = scalar_select %p844, %s26, 1
          %s846 = scalar_lea.vmem %s11, %s845
        $region80: #{_lambda_.2} parent=75 // pred_fallthru
          _
      $region76: #{_lambda_.2} parent=5 // pred_fallthru
        _
    $region6: #{_lambda_.2} parent=1 // loop_footer
      %s24 = sadd.s32 1, %s20
    $region7: #{_lambda_.2} parent=1 // loop_footer_branch
      %19 = sbr.rel target = $region3
    $region8: #{_lambda_.2} parent=1 // loop_exit
      _
    %847 = vsyncpa [#allocation3], 1
    %s848 = scalar_lea.sflag [#allocation3], 1
    %849 = vsyncpa %s848, 1

// kernel: _lambda_.3
$region0: #{_lambda_.3}
  #allocation0 [shape = 'u32[]', space=smem, size = 0x4, offset = 0x4, fixed_abs, tag = 'smem constant byte address 0x4 - core index']
  #allocation1 [shape = 'u32[144,128]{1,0:T(1,128)}', space=vmem, size = 0x12000, scoped, tag = 'internal scratch']
  #allocation2 [shape = 'f32[1,1]{1,0:T(1,128)S(1)}', space=vmem, size = 0x200, scoped, tag = 'scoped memory for _lambda_.3']
  %s0 = inlined_call_operand.vmem [shape: f32[2,1,32], index: 0, kind: input, shape index: {}]
  %s1 = inlined_call_operand.vmem [shape: f32[8,32], index: 1, kind: input, shape index: {}]
  %s2 = inlined_call_operand.vmem [shape: bf16[16,32,8], index: 2, kind: input, shape index: {}]
  %s3 = inlined_call_operand.hbm [shape: f32[16,1,8], index: 3, kind: input, shape index: {}]
  %s4 = inlined_call_operand.vmem [shape: bf16[16,32,8], index: 4, kind: input, shape index: {}]
  %s5 = inlined_call_operand.hbm [shape: f32[16,1,8], index: 5, kind: input, shape index: {}]
  %s6 = inlined_call_operand.vmem [shape: bf16[16,32,8], index: 6, kind: input, shape index: {}]
  %s7 = inlined_call_operand.hbm [shape: f32[16,1,8], index: 7, kind: input, shape index: {}]
  %s8 = inlined_call_operand.vmem [shape: bf16[16,8,32], index: 8, kind: input, shape index: {}]
  %s9 = inlined_call_operand.hbm [shape: f32[4,1,32], index: 9, kind: input, shape index: {}]
  %s10 = inlined_call_operand.vmem [shape: bf16[2,32,128], index: 10, kind: input, shape index: {}]
  %s11 = inlined_call_operand.hbm [shape: f32[2,1,128], index: 11, kind: input, shape index: {}]
  %s12 = inlined_call_operand.vmem [shape: bf16[2,128,32], index: 12, kind: input, shape index: {}]
  %s13 = inlined_call_operand.hbm [shape: f32[2,1,32], index: 13, kind: input, shape index: {}]
  %s14 = inlined_call_operand.vmem [shape: f32[6,1,32], index: 14, kind: input, shape index: {}]
  %s15 = inlined_call_operand.vmem [shape: f32[6,1,32], index: 15, kind: input, shape index: {}]
  %s16 = inlined_call_operand.hbm [shape: f32[32,1], index: 16, kind: input, shape index: {}]
  %s17 = inlined_call_operand.<no memory space> [shape: f32[1,1], index: 17, kind: input, shape index: {}]
  %s18 = inlined_call_operand.vmem [shape: f32[2,8,1], index: 18, kind: output, shape index: {}]
  %s19 = sld [smem:[#allocation0]]
  $region133: #{_lambda_.3} parent=0
    _
  %s21 = ssub.s32 1, %s19
  %s22 = scalar_select 0, %s21, %s19
  %v23 = vstv %s17
  %24 = vst [vmem:[#allocation2] sm:$0x1] %v23
  $region1: #{_lambda_.3} parent=0
    #allocation3 [shape = 'u8[8192]{0}', space=vmem, size = 0x2000, scoped, tag = 'input window, operand 3, single buffered']
    #allocation4 [shape = 's32[2]{0}', space=sflag, size = 0x8, scoped, tag = 'scoped memory for _lambda_.3']
    #allocation5 [shape = 'u8[8192]{0}', space=vmem, size = 0x2000, scoped, tag = 'input window, operand 5, single buffered']
    #allocation6 [shape = 's32[1]{0}', space=sflag, size = 0x4, scoped, tag = 'scoped memory for _lambda_.3']
    #allocation7 [shape = 'u8[8192]{0}', space=vmem, size = 0x2000, scoped, tag = 'input window, operand 7, single buffered']
    #allocation8 [shape = 'u8[2048]{0}', space=vmem, size = 0x800, scoped, tag = 'input window, operand 9, single buffered']
    #allocation9 [shape = 's32[1]{0}', space=sflag, size = 0x4, scoped, tag = 'scoped memory for _lambda_.3']
    #allocation10 [shape = 'u8[1024]{0}', space=vmem, size = 0x400, scoped, tag = 'input window, operand 11, single buffered']
    #allocation11 [shape = 'u8[1024]{0}', space=vmem, size = 0x400, scoped, tag = 'input window, operand 13, single buffered']
    #allocation12 [shape = 's32[1]{0}', space=sflag, size = 0x4, scoped, tag = 'scoped memory for _lambda_.3']
    #allocation13 [shape = 'u8[16384]{0}', space=vmem, size = 0x4000, scoped, tag = 'input window, operand 16, single buffered']
    %25 = vsyncpa [#allocation4], 0
    %26 = vsyncpa [#allocation6], 0
    %27 = vsyncpa [#allocation9], 0
    %28 = vsyncpa [#allocation12], 0
    loop: start=0, step=1, limit=4
    $region2: #{_lambda_.3} parent=1 // loop_pre_header
      _
    $region3: #{_lambda_.3} parent=1 // loop_header
      %s30 = sphi 0, %s34
      %p31 = scmp.ge.s32.totalorder %s30, 4
      %s40 = sphi 0, %s42
      %s43 = sphi 0, %s40
      %s44 = sphi 0, %s43
      %s60 = sphi 0, %s44
      %s64 = sphi 0, %s64
      %s66 = sphi 0, %s64
      %s67 = sphi 0, %s66
      %s81 = sphi 0, %s67
      %s85 = sphi 0, %s85
      %s87 = sphi 0, %s85
      %s88 = sphi 0, %s87
      %s102 = sphi 0, %s88
      %s106 = sphi 0, %s106
      %s108 = sphi 0, %s106
      %s109 = sphi 0, %s108
      %s123 = sphi 0, %s109
      %s127 = sphi 0, %s127
      %s129 = sphi 0, %s127
      %s130 = sphi 0, %s129
      %s144 = sphi 0, %s130
      %s148 = sphi 0, %s148
      %s150 = sphi 0, %s148
      %s151 = sphi 0, %s150
      %s165 = sphi 0, %s151
      %s169 = sphi 0, %s169
      %s171 = sphi 0, %s169
      %s172 = sphi 0, %s171
      %s186 = sphi 0, %s172
      %s190 = sphi 0, %s190
      %s192 = sphi 0, %s190
      %s193 = sphi 0, %s192
      %s207 = sphi 0, %s193
      %s211 = sphi 0, %s211
      %s213 = sphi 0, %s211
      %s214 = sphi 0, %s213
      %s228 = sphi 0, %s214
      %s232 = sphi 0, %s232
      %s234 = sphi 0, %s232
      %s235 = sphi 0, %s234
      %s249 = sphi 0, %s235
      %s253 = sphi 0, %s253
      %s255 = sphi 0, %s253
      %s256 = sphi 0, %s255
      %s270 = sphi 0, %s256
      %s274 = sphi 0, %s274
      %s276 = sphi 0, %s274
      %s277 = sphi 0, %s276
      %s291 = sphi 0, %s277
      %s295 = sphi 0, %s295
      %s297 = sphi 0, %s295
      %s298 = sphi 0, %s297
      %s312 = sphi 0, %s298
      %s316 = sphi 0, %s316
      %s318 = sphi 0, %s316
      %s319 = sphi 0, %s318
      %s333 = sphi 0, %s319
      %s337 = sphi 0, %s337
      %s339 = sphi 0, %s337
      %s340 = sphi 0, %s339
      %s354 = sphi 0, %s340
      %s358 = sphi 0, %s358
      %s360 = sphi 0, %s358
      %s361 = sphi 0, %s360
      %s375 = sphi 0, %s361
      %s379 = sphi 0, %s379
      %s381 = sphi 0, %s379
      %s382 = sphi 0, %s381
      %s396 = sphi 0, %s382
      %s400 = sphi 0, %s400
      %s402 = sphi 0, %s400
      %s403 = sphi 0, %s402
      %s417 = sphi 0, %s403
      %s423 = sphi 0, %s425
      %s426 = sphi 0, %s423
      %s427 = sphi 0, %s426
      %s443 = sphi 0, %s427
    $region4: #{_lambda_.3} parent=1 // loop_header_branch
      %33 = sbr.rel (%p31) target = $region8
    $region5: #{_lambda_.3} parent=1 // loop_body
      %s35 = ssub.s32 %s30, 1
      %s36 = ssub.s32 %s30, 2
      %s37 = sadd.s32 %s30, 1
      %s38 = ssub.s32 %s30, %s37
      %p39 = scmp.eq.s32.totalorder %s38, 0
      %s41 = sadd.s32 %s40, 1
      %s42 = scalar_select %p39, %s40, %s41
      %p45 = pneg %p39
      %p46 = scmp.eq.s32.totalorder %s30, 1
      %p47 = por %p45, %p46
      %p48 = scmp.ne.s32.totalorder %s40, %s43
      %p49 = scmp.eq.s32.totalorder %s30, 0
      %p50 = por %p48, %p49
      %p51 = scmp.ne.s32.totalorder %s40, %s43
      %p52 = scmp.eq.s32.totalorder %s35, 1
      %p53 = por %p51, %p52
      %p54 = scmp.ne.s32.totalorder %s43, %s44
      %p55 = scmp.eq.s32.totalorder %s35, 0
      %p56 = por %p54, %p55
      %p57 = scmp.ne.s32.totalorder %s43, %s44
      %p58 = scmp.eq.s32.totalorder %s36, 1
      %p59 = por %p57, %p58
      %p61 = scmp.ne.s32.totalorder %s44, %s60
      %p62 = scmp.eq.s32.totalorder %s36, 0
      %p63 = por %p61, %p62
      %s65 = sadd.s32 %s64, 1
      %p68 = scmp.eq.s32.totalorder %s30, 1
      %p69 = scmp.ne.s32.totalorder %s64, %s66
      %p70 = scmp.eq.s32.totalorder %s30, 0
      %p71 = por %p69, %p70
      %p72 = scmp.ne.s32.totalorder %s64, %s66
      %p73 = scmp.eq.s32.totalorder %s35, 1
      %p74 = por %p72, %p73
      %p75 = scmp.ne.s32.totalorder %s66, %s67
      %p76 = scmp.eq.s32.totalorder %s35, 0
      %p77 = por %p75, %p76
      %p78 = scmp.ne.s32.totalorder %s66, %s67
      %p79 = scmp.eq.s32.totalorder %s36, 1
      %p80 = por %p78, %p79
      %p82 = scmp.ne.s32.totalorder %s67, %s81
      %p83 = scmp.eq.s32.totalorder %s36, 0
      %p84 = por %p82, %p83
      %s86 = sadd.s32 %s85, 1
      %p89 = scmp.eq.s32.totalorder %s30, 1
      %p90 = scmp.ne.s32.totalorder %s85, %s87
      %p91 = scmp.eq.s32.totalorder %s30, 0
      %p92 = por %p90, %p91
      %p93 = scmp.ne.s32.totalorder %s85, %s87
      %p94 = scmp.eq.s32.totalorder %s35, 1
      %p95 = por %p93, %p94
      %p96 = scmp.ne.s32.totalorder %s87, %s88
      %p97 = scmp.eq.s32.totalorder %s35, 0
      %p98 = por %p96, %p97
      %p99 = scmp.ne.s32.totalorder %s87, %s88
      %p100 = scmp.eq.s32.totalorder %s36, 1
      %p101 = por %p99, %p100
      %p103 = scmp.ne.s32.totalorder %s88, %s102
      %p104 = scmp.eq.s32.totalorder %s36, 0
      %p105 = por %p103, %p104
      %s107 = sadd.s32 %s106, 1
      %p110 = scmp.eq.s32.totalorder %s30, 1
      %p111 = scmp.ne.s32.totalorder %s106, %s108
      %p112 = scmp.eq.s32.totalorder %s30, 0
      %p113 = por %p111, %p112
      %p114 = scmp.ne.s32.totalorder %s106, %s108
      %p115 = scmp.eq.s32.totalorder %s35, 1
      %p116 = por %p114, %p115
      %p117 = scmp.ne.s32.totalorder %s108, %s109
      %p118 = scmp.eq.s32.totalorder %s35, 0
      %p119 = por %p117, %p118
      %p120 = scmp.ne.s32.totalorder %s108, %s109
      %p121 = scmp.eq.s32.totalorder %s36, 1
      %p122 = por %p120, %p121
      %p124 = scmp.ne.s32.totalorder %s109, %s123
      %p125 = scmp.eq.s32.totalorder %s36, 0
      %p126 = por %p124, %p125
      %s128 = sadd.s32 %s127, 1
      %p131 = scmp.eq.s32.totalorder %s30, 1
      %p132 = scmp.ne.s32.totalorder %s127, %s129
      %p133 = scmp.eq.s32.totalorder %s30, 0
      %p134 = por %p132, %p133
      %p135 = scmp.ne.s32.totalorder %s127, %s129
      %p136 = scmp.eq.s32.totalorder %s35, 1
      %p137 = por %p135, %p136
      %p138 = scmp.ne.s32.totalorder %s129, %s130
      %p139 = scmp.eq.s32.totalorder %s35, 0
      %p140 = por %p138, %p139
      %p141 = scmp.ne.s32.totalorder %s129, %s130
      %p142 = scmp.eq.s32.totalorder %s36, 1
      %p143 = por %p141, %p142
      %p145 = scmp.ne.s32.totalorder %s130, %s144
      %p146 = scmp.eq.s32.totalorder %s36, 0
      %p147 = por %p145, %p146
      %s149 = sadd.s32 %s148, 1
      %p152 = scmp.eq.s32.totalorder %s30, 1
      %p153 = scmp.ne.s32.totalorder %s148, %s150
      %p154 = scmp.eq.s32.totalorder %s30, 0
      %p155 = por %p153, %p154
      %p156 = scmp.ne.s32.totalorder %s148, %s150
      %p157 = scmp.eq.s32.totalorder %s35, 1
      %p158 = por %p156, %p157
      %p159 = scmp.ne.s32.totalorder %s150, %s151
      %p160 = scmp.eq.s32.totalorder %s35, 0
      %p161 = por %p159, %p160
      %p162 = scmp.ne.s32.totalorder %s150, %s151
      %p163 = scmp.eq.s32.totalorder %s36, 1
      %p164 = por %p162, %p163
      %p166 = scmp.ne.s32.totalorder %s151, %s165
      %p167 = scmp.eq.s32.totalorder %s36, 0
      %p168 = por %p166, %p167
      %s170 = sadd.s32 %s169, 1
      %p173 = scmp.eq.s32.totalorder %s30, 1
      %p174 = scmp.ne.s32.totalorder %s169, %s171
      %p175 = scmp.eq.s32.totalorder %s30, 0
      %p176 = por %p174, %p175
      %p177 = scmp.ne.s32.totalorder %s169, %s171
      %p178 = scmp.eq.s32.totalorder %s35, 1
      %p179 = por %p177, %p178
      %p180 = scmp.ne.s32.totalorder %s171, %s172
      %p181 = scmp.eq.s32.totalorder %s35, 0
      %p182 = por %p180, %p181
      %p183 = scmp.ne.s32.totalorder %s171, %s172
      %p184 = scmp.eq.s32.totalorder %s36, 1
      %p185 = por %p183, %p184
      %p187 = scmp.ne.s32.totalorder %s172, %s186
      %p188 = scmp.eq.s32.totalorder %s36, 0
      %p189 = por %p187, %p188
      %s191 = sadd.s32 %s190, 1
      %p194 = scmp.eq.s32.totalorder %s30, 1
      %p195 = scmp.ne.s32.totalorder %s190, %s192
      %p196 = scmp.eq.s32.totalorder %s30, 0
      %p197 = por %p195, %p196
      %p198 = scmp.ne.s32.totalorder %s190, %s192
      %p199 = scmp.eq.s32.totalorder %s35, 1
      %p200 = por %p198, %p199
      %p201 = scmp.ne.s32.totalorder %s192, %s193
      %p202 = scmp.eq.s32.totalorder %s35, 0
      %p203 = por %p201, %p202
      %p204 = scmp.ne.s32.totalorder %s192, %s193
      %p205 = scmp.eq.s32.totalorder %s36, 1
      %p206 = por %p204, %p205
      %p208 = scmp.ne.s32.totalorder %s193, %s207
      %p209 = scmp.eq.s32.totalorder %s36, 0
      %p210 = por %p208, %p209
      %s212 = sadd.s32 %s211, 1
      %p215 = scmp.eq.s32.totalorder %s30, 1
      %p216 = scmp.ne.s32.totalorder %s211, %s213
      %p217 = scmp.eq.s32.totalorder %s30, 0
      %p218 = por %p216, %p217
      %p219 = scmp.ne.s32.totalorder %s211, %s213
      %p220 = scmp.eq.s32.totalorder %s35, 1
      %p221 = por %p219, %p220
      %p222 = scmp.ne.s32.totalorder %s213, %s214
      %p223 = scmp.eq.s32.totalorder %s35, 0
      %p224 = por %p222, %p223
      %p225 = scmp.ne.s32.totalorder %s213, %s214
      %p226 = scmp.eq.s32.totalorder %s36, 1
      %p227 = por %p225, %p226
      %p229 = scmp.ne.s32.totalorder %s214, %s228
      %p230 = scmp.eq.s32.totalorder %s36, 0
      %p231 = por %p229, %p230
      %s233 = sadd.s32 %s232, 1
      %p236 = scmp.eq.s32.totalorder %s30, 1
      %p237 = scmp.ne.s32.totalorder %s232, %s234
      %p238 = scmp.eq.s32.totalorder %s30, 0
      %p239 = por %p237, %p238
      %p240 = scmp.ne.s32.totalorder %s232, %s234
      %p241 = scmp.eq.s32.totalorder %s35, 1
      %p242 = por %p240, %p241
      %p243 = scmp.ne.s32.totalorder %s234, %s235
      %p244 = scmp.eq.s32.totalorder %s35, 0
      %p245 = por %p243, %p244
      %p246 = scmp.ne.s32.totalorder %s234, %s235
      %p247 = scmp.eq.s32.totalorder %s36, 1
      %p248 = por %p246, %p247
      %p250 = scmp.ne.s32.totalorder %s235, %s249
      %p251 = scmp.eq.s32.totalorder %s36, 0
      %p252 = por %p250, %p251
      %s254 = sadd.s32 %s253, 1
      %p257 = scmp.eq.s32.totalorder %s30, 1
      %p258 = scmp.ne.s32.totalorder %s253, %s255
      %p259 = scmp.eq.s32.totalorder %s30, 0
      %p260 = por %p258, %p259
      %p261 = scmp.ne.s32.totalorder %s253, %s255
      %p262 = scmp.eq.s32.totalorder %s35, 1
      %p263 = por %p261, %p262
      %p264 = scmp.ne.s32.totalorder %s255, %s256
      %p265 = scmp.eq.s32.totalorder %s35, 0
      %p266 = por %p264, %p265
      %p267 = scmp.ne.s32.totalorder %s255, %s256
      %p268 = scmp.eq.s32.totalorder %s36, 1
      %p269 = por %p267, %p268
      %p271 = scmp.ne.s32.totalorder %s256, %s270
      %p272 = scmp.eq.s32.totalorder %s36, 0
      %p273 = por %p271, %p272
      %s275 = sadd.s32 %s274, 1
      %p278 = scmp.eq.s32.totalorder %s30, 1
      %p279 = scmp.ne.s32.totalorder %s274, %s276
      %p280 = scmp.eq.s32.totalorder %s30, 0
      %p281 = por %p279, %p280
      %p282 = scmp.ne.s32.totalorder %s274, %s276
      %p283 = scmp.eq.s32.totalorder %s35, 1
      %p284 = por %p282, %p283
      %p285 = scmp.ne.s32.totalorder %s276, %s277
      %p286 = scmp.eq.s32.totalorder %s35, 0
      %p287 = por %p285, %p286
      %p288 = scmp.ne.s32.totalorder %s276, %s277
      %p289 = scmp.eq.s32.totalorder %s36, 1
      %p290 = por %p288, %p289
      %p292 = scmp.ne.s32.totalorder %s277, %s291
      %p293 = scmp.eq.s32.totalorder %s36, 0
      %p294 = por %p292, %p293
      %s296 = sadd.s32 %s295, 1
      %p299 = scmp.eq.s32.totalorder %s30, 1
      %p300 = scmp.ne.s32.totalorder %s295, %s297
      %p301 = scmp.eq.s32.totalorder %s30, 0
      %p302 = por %p300, %p301
      %p303 = scmp.ne.s32.totalorder %s295, %s297
      %p304 = scmp.eq.s32.totalorder %s35, 1
      %p305 = por %p303, %p304
      %p306 = scmp.ne.s32.totalorder %s297, %s298
      %p307 = scmp.eq.s32.totalorder %s35, 0
      %p308 = por %p306, %p307
      %p309 = scmp.ne.s32.totalorder %s297, %s298
      %p310 = scmp.eq.s32.totalorder %s36, 1
      %p311 = por %p309, %p310
      %p313 = scmp.ne.s32.totalorder %s298, %s312
      %p314 = scmp.eq.s32.totalorder %s36, 0
      %p315 = por %p313, %p314
      %s317 = sadd.s32 %s316, 1
      %p320 = scmp.eq.s32.totalorder %s30, 1
      %p321 = scmp.ne.s32.totalorder %s316, %s318
      %p322 = scmp.eq.s32.totalorder %s30, 0
      %p323 = por %p321, %p322
      %p324 = scmp.ne.s32.totalorder %s316, %s318
      %p325 = scmp.eq.s32.totalorder %s35, 1
      %p326 = por %p324, %p325
      %p327 = scmp.ne.s32.totalorder %s318, %s319
      %p328 = scmp.eq.s32.totalorder %s35, 0
      %p329 = por %p327, %p328
      %p330 = scmp.ne.s32.totalorder %s318, %s319
      %p331 = scmp.eq.s32.totalorder %s36, 1
      %p332 = por %p330, %p331
      %p334 = scmp.ne.s32.totalorder %s319, %s333
      %p335 = scmp.eq.s32.totalorder %s36, 0
      %p336 = por %p334, %p335
      %s338 = sadd.s32 %s337, 1
      %p341 = scmp.eq.s32.totalorder %s30, 1
      %p342 = scmp.ne.s32.totalorder %s337, %s339
      %p343 = scmp.eq.s32.totalorder %s30, 0
      %p344 = por %p342, %p343
      %p345 = scmp.ne.s32.totalorder %s337, %s339
      %p346 = scmp.eq.s32.totalorder %s35, 1
      %p347 = por %p345, %p346
      %p348 = scmp.ne.s32.totalorder %s339, %s340
      %p349 = scmp.eq.s32.totalorder %s35, 0
      %p350 = por %p348, %p349
      %p351 = scmp.ne.s32.totalorder %s339, %s340
      %p352 = scmp.eq.s32.totalorder %s36, 1
      %p353 = por %p351, %p352
      %p355 = scmp.ne.s32.totalorder %s340, %s354
      %p356 = scmp.eq.s32.totalorder %s36, 0
      %p357 = por %p355, %p356
      %s359 = sadd.s32 %s358, 1
      %p362 = scmp.eq.s32.totalorder %s30, 1
      %p363 = scmp.ne.s32.totalorder %s358, %s360
      %p364 = scmp.eq.s32.totalorder %s30, 0
      %p365 = por %p363, %p364
      %p366 = scmp.ne.s32.totalorder %s358, %s360
      %p367 = scmp.eq.s32.totalorder %s35, 1
      %p368 = por %p366, %p367
      %p369 = scmp.ne.s32.totalorder %s360, %s361
      %p370 = scmp.eq.s32.totalorder %s35, 0
      %p371 = por %p369, %p370
      %p372 = scmp.ne.s32.totalorder %s360, %s361
      %p373 = scmp.eq.s32.totalorder %s36, 1
      %p374 = por %p372, %p373
      %p376 = scmp.ne.s32.totalorder %s361, %s375
      %p377 = scmp.eq.s32.totalorder %s36, 0
      %p378 = por %p376, %p377
      %s380 = sadd.s32 %s379, 1
      %p383 = scmp.eq.s32.totalorder %s30, 1
      %p384 = scmp.ne.s32.totalorder %s379, %s381
      %p385 = scmp.eq.s32.totalorder %s30, 0
      %p386 = por %p384, %p385
      %p387 = scmp.ne.s32.totalorder %s379, %s381
      %p388 = scmp.eq.s32.totalorder %s35, 1
      %p389 = por %p387, %p388
      %p390 = scmp.ne.s32.totalorder %s381, %s382
      %p391 = scmp.eq.s32.totalorder %s35, 0
      %p392 = por %p390, %p391
      %p393 = scmp.ne.s32.totalorder %s381, %s382
      %p394 = scmp.eq.s32.totalorder %s36, 1
      %p395 = por %p393, %p394
      %p397 = scmp.ne.s32.totalorder %s382, %s396
      %p398 = scmp.eq.s32.totalorder %s36, 0
      %p399 = por %p397, %p398
      %s401 = sadd.s32 %s400, 1
      %p404 = scmp.eq.s32.totalorder %s30, 1
      %p405 = scmp.ne.s32.totalorder %s400, %s402
      %p406 = scmp.eq.s32.totalorder %s30, 0
      %p407 = por %p405, %p406
      %p408 = scmp.ne.s32.totalorder %s400, %s402
      %p409 = scmp.eq.s32.totalorder %s35, 1
      %p410 = por %p408, %p409
      %p411 = scmp.ne.s32.totalorder %s402, %s403
      %p412 = scmp.eq.s32.totalorder %s35, 0
      %p413 = por %p411, %p412
      %p414 = scmp.ne.s32.totalorder %s402, %s403
      %p415 = scmp.eq.s32.totalorder %s36, 1
      %p416 = por %p414, %p415
      %p418 = scmp.ne.s32.totalorder %s403, %s417
      %p419 = scmp.eq.s32.totalorder %s36, 0
      %p420 = por %p418, %p419
      %s421 = ssub.s32 %s30, %s37
      %p422 = scmp.eq.s32.totalorder %s421, 0
      %s424 = sadd.s32 %s423, 1
      %s425 = scalar_select %p422, %s423, %s424
      %p428 = pneg %p422
      %p429 = scmp.eq.s32.totalorder %s30, 1
      %p430 = por %p428, %p429
      %p431 = scmp.ne.s32.totalorder %s423, %s426
      %p432 = scmp.eq.s32.totalorder %s30, 0
      %p433 = por %p431, %p432
      %p434 = scmp.ne.s32.totalorder %s423, %s426
      %p435 = scmp.eq.s32.totalorder %s35, 1
      %p436 = por %p434, %p435
      %p437 = scmp.ne.s32.totalorder %s426, %s427
      %p438 = scmp.eq.s32.totalorder %s35, 0
      %p439 = por %p437, %p438
      %p440 = scmp.ne.s32.totalorder %s426, %s427
      %p441 = scmp.eq.s32.totalorder %s36, 1
      %p442 = por %p440, %p441
      %p444 = scmp.ne.s32.totalorder %s427, %s443
      %p445 = scmp.eq.s32.totalorder %s36, 0
      %p446 = por %p444, %p445
      %p447 = scmp.le.s32.totalorder 1, %s30
      %p448 = scmp.lt.s32.totalorder %s30, 3
      %p449 = pnand %p447, %p448
      %p450 = pneg %p449
      // Predicated region
      $region9: #{_lambda_.3} parent=5 // pred_check
        _
      $region10: #{_lambda_.3} parent=5 // pred_check_branch
        %452 = sbr.rel (%p449) target = $region12
      $region11: #{_lambda_.3} parent=5 // pred_region
        %s453 = ssub.s32 %s30, 1
        // Predicated region
        $region13: #{_lambda_.3} parent=11 // pred_check
          %p454 = pneg %p77
        $region14: #{_lambda_.3} parent=11 // pred_check_branch
          %456 = sbr.rel (%p454) target = $region16
        $region15: #{_lambda_.3} parent=11 // pred_region
          _
        $region16: #{_lambda_.3} parent=11 // pred_fallthru
          _
        // Predicated region
        $region17: #{_lambda_.3} parent=11 // pred_check
          %p457 = pneg %p98
        $region18: #{_lambda_.3} parent=11 // pred_check_branch
          %459 = sbr.rel (%p457) target = $region20
        $region19: #{_lambda_.3} parent=11 // pred_region
          _
        $region20: #{_lambda_.3} parent=11 // pred_fallthru
          _
        // Predicated region
        $region21: #{_lambda_.3} parent=11 // pred_check
          %p460 = pneg %p119
        $region22: #{_lambda_.3} parent=11 // pred_check_branch
          %462 = sbr.rel (%p460) target = $region24
        $region23: #{_lambda_.3} parent=11 // pred_region
          %s464 = ssub.s32 256, 256
          %465 = vsyncadd [#allocation4], %s464
          %s466 = sshll.u32 [#allocation3], 4
          %s467 = int_to_ptr.vmem [resolvable:$true] %s466
          %472 = dma.hbm_to_vmem [thread:$0]  %s3, 256, %s467, [#allocation4], 16, 16, 1
        $region24: #{_lambda_.3} parent=11 // pred_fallthru
          _
        // Predicated region
        $region25: #{_lambda_.3} parent=11 // pred_check
          %p473 = pneg %p140
        $region26: #{_lambda_.3} parent=11 // pred_check_branch
          %475 = sbr.rel (%p473) target = $region28
        $region27: #{_lambda_.3} parent=11 // pred_region
          _
        $region28: #{_lambda_.3} parent=11 // pred_fallthru
          _
        // Predicated region
        $region29: #{_lambda_.3} parent=11 // pred_check
          %p476 = pneg %p161
        $region30: #{_lambda_.3} parent=11 // pred_check_branch
          %478 = sbr.rel (%p476) target = $region32
        $region31: #{_lambda_.3} parent=11 // pred_region
          %s480 = ssub.s32 256, 256
          %481 = vsyncadd [#allocation6], %s480
          %s482 = sshll.u32 [#allocation5], 4
          %s483 = int_to_ptr.vmem [resolvable:$true] %s482
          %488 = dma.hbm_to_vmem [thread:$0]  %s5, 256, %s483, [#allocation6], 16, 16, 1
        $region32: #{_lambda_.3} parent=11 // pred_fallthru
          _
        // Predicated region
        $region33: #{_lambda_.3} parent=11 // pred_check
          %p489 = pneg %p182
        $region34: #{_lambda_.3} parent=11 // pred_check_branch
          %491 = sbr.rel (%p489) target = $region36
        $region35: #{_lambda_.3} parent=11 // pred_region
          _
        $region36: #{_lambda_.3} parent=11 // pred_fallthru
          _
        // Predicated region
        $region37: #{_lambda_.3} parent=11 // pred_check
          %p492 = pneg %p203
        $region38: #{_lambda_.3} parent=11 // pred_check_branch
          %494 = sbr.rel (%p492) target = $region40
        $region39: #{_lambda_.3} parent=11 // pred_region
          %s496 = ssub.s32 256, 256
          %497 = vsyncadd [#allocation6], %s496
          %s498 = sshll.u32 [#allocation7], 4
          %s499 = int_to_ptr.vmem [resolvable:$true] %s498
          %504 = dma.hbm_to_vmem [thread:$0]  %s7, 256, %s499, [#allocation6], 16, 16, 1
        $region40: #{_lambda_.3} parent=11 // pred_fallthru
          _
        // Predicated region
        $region41: #{_lambda_.3} parent=11 // pred_check
          %p505 = pneg %p224
        $region42: #{_lambda_.3} parent=11 // pred_check_branch
          %507 = sbr.rel (%p505) target = $region44
        $region43: #{_lambda_.3} parent=11 // pred_region
          _
        $region44: #{_lambda_.3} parent=11 // pred_fallthru
          _
        // Predicated region
        $region45: #{_lambda_.3} parent=11 // pred_check
          %p508 = pneg %p245
        $region46: #{_lambda_.3} parent=11 // pred_check_branch
          %510 = sbr.rel (%p508) target = $region48
        $region47: #{_lambda_.3} parent=11 // pred_region
          %s512 = ssub.s32 64, 64
          %513 = vsyncadd [#allocation9], %s512
          %s514 = sshll.u32 [#allocation8], 4
          %s515 = int_to_ptr.vmem [resolvable:$true] %s514
          %520 = dma.hbm_to_vmem [thread:$0]  %s9, 64, %s515, [#allocation9], 16, 16, 1
        $region48: #{_lambda_.3} parent=11 // pred_fallthru
          _
        // Predicated region
        $region49: #{_lambda_.3} parent=11 // pred_check
          %p521 = pneg %p266
        $region50: #{_lambda_.3} parent=11 // pred_check_branch
          %523 = sbr.rel (%p521) target = $region52
        $region51: #{_lambda_.3} parent=11 // pred_region
          _
        $region52: #{_lambda_.3} parent=11 // pred_fallthru
          _
        // Predicated region
        $region53: #{_lambda_.3} parent=11 // pred_check
          %p524 = pneg %p287
        $region54: #{_lambda_.3} parent=11 // pred_check_branch
          %526 = sbr.rel (%p524) target = $region56
        $region55: #{_lambda_.3} parent=11 // pred_region
          %s528 = ssub.s32 32, 32
          %529 = vsyncadd [#allocation9], %s528
          %s530 = sshll.u32 [#allocation10], 4
          %s531 = int_to_ptr.vmem [resolvable:$true] %s530
          %536 = dma.hbm_to_vmem [thread:$0]  %s11, 32, %s531, [#allocation9], 16, 16, 1
        $region56: #{_lambda_.3} parent=11 // pred_fallthru
          _
        // Predicated region
        $region57: #{_lambda_.3} parent=11 // pred_check
          %p537 = pneg %p308
        $region58: #{_lambda_.3} parent=11 // pred_check_branch
          %539 = sbr.rel (%p537) target = $region60
        $region59: #{_lambda_.3} parent=11 // pred_region
          _
        $region60: #{_lambda_.3} parent=11 // pred_fallthru
          _
        // Predicated region
        $region61: #{_lambda_.3} parent=11 // pred_check
          %p540 = pneg %p329
        $region62: #{_lambda_.3} parent=11 // pred_check_branch
          %542 = sbr.rel (%p540) target = $region64
        $region63: #{_lambda_.3} parent=11 // pred_region
          %s544 = ssub.s32 32, 32
          %545 = vsyncadd [#allocation12], %s544
          %s546 = sshll.u32 [#allocation11], 4
          %s547 = int_to_ptr.vmem [resolvable:$true] %s546
          %552 = dma.hbm_to_vmem [thread:$0]  %s13, 32, %s547, [#allocation12], 16, 16, 1
        $region64: #{_lambda_.3} parent=11 // pred_fallthru
          _
        // Predicated region
        $region65: #{_lambda_.3} parent=11 // pred_check
          %p553 = pneg %p350
        $region66: #{_lambda_.3} parent=11 // pred_check_branch
          %555 = sbr.rel (%p553) target = $region68
        $region67: #{_lambda_.3} parent=11 // pred_region
          _
        $region68: #{_lambda_.3} parent=11 // pred_fallthru
          _
        // Predicated region
        $region69: #{_lambda_.3} parent=11 // pred_check
          %p556 = pneg %p371
        $region70: #{_lambda_.3} parent=11 // pred_check_branch
          %558 = sbr.rel (%p556) target = $region72
        $region71: #{_lambda_.3} parent=11 // pred_region
          _
        $region72: #{_lambda_.3} parent=11 // pred_fallthru
          _
        // Predicated region
        $region73: #{_lambda_.3} parent=11 // pred_check
          %p559 = pneg %p392
        $region74: #{_lambda_.3} parent=11 // pred_check_branch
          %561 = sbr.rel (%p559) target = $region76
        $region75: #{_lambda_.3} parent=11 // pred_region
          %s563 = ssub.s32 512, 512
          %564 = vsyncadd [#allocation12], %s563
          %s565 = sshll.u32 [#allocation13], 4
          %s566 = int_to_ptr.vmem [resolvable:$true] %s565
          %571 = dma.hbm_to_vmem [thread:$0]  %s16, 512, %s566, [#allocation12], 128, 128, 8
        $region76: #{_lambda_.3} parent=11 // pred_fallthru
          _
        // Predicated region
        $region77: #{_lambda_.3} parent=11 // pred_check
          %p572 = pneg %p413
        $region78: #{_lambda_.3} parent=11 // pred_check_branch
          %574 = sbr.rel (%p572) target = $region80
        $region79: #{_lambda_.3} parent=11 // pred_region
          _
        $region80: #{_lambda_.3} parent=11 // pred_fallthru
          _
      $region12: #{_lambda_.3} parent=5 // pred_fallthru
        _
      %p575 = scmp.lt.s32.totalorder %s30, 2
      // Predicated region
      $region81: #{_lambda_.3} parent=5 // pred_check
        %p576 = pneg %p575
      $region82: #{_lambda_.3} parent=5 // pred_check_branch
        %578 = sbr.rel (%p576) target = $region84
      $region83: #{_lambda_.3} parent=5 // pred_region
        // Predicated region
        $region85: #{_lambda_.3} parent=83 // pred_check
          %p579 = pneg %p50
        $region86: #{_lambda_.3} parent=83 // pred_check_branch
          %581 = sbr.rel (%p579) target = $region88
        $region87: #{_lambda_.3} parent=83 // pred_region
          %p582 = scmp.lt.s32.totalorder %s30, 1
          %s583 = scalar_select %p582, %s30, 1
          %s584 = scalar_lea.vmem %s0, %s583
        $region88: #{_lambda_.3} parent=83 // pred_fallthru
          _
      $region84: #{_lambda_.3} parent=5 // pred_fallthru
        _
      %p585 = scmp.le.s32.totalorder 1, %s30
      %p586 = scmp.lt.s32.totalorder %s30, 3
      %p587 = pnand %p585, %p586
      %p588 = pneg %p587
      // Predicated region
      $region89: #{_lambda_.3} parent=5 // pred_check
        _
      $region90: #{_lambda_.3} parent=5 // pred_check_branch
        %590 = sbr.rel (%p587) target = $region92
      $region91: #{_lambda_.3} parent=5 // pred_region
        %s591 = ssub.s32 %s30, 1
        // Predicated region
        $region93: #{_lambda_.3} parent=91 // pred_check
          %p592 = pneg %p119
        $region94: #{_lambda_.3} parent=91 // pred_check_branch
          %594 = sbr.rel (%p592) target = $region96
        $region95: #{_lambda_.3} parent=91 // pred_region
          %595 = dma.done [#allocation4], 256
        $region96: #{_lambda_.3} parent=91 // pred_fallthru
          _
        // Predicated region
        $region97: #{_lambda_.3} parent=91 // pred_check
          %p596 = pneg %p161
        $region98: #{_lambda_.3} parent=91 // pred_check_branch
          %598 = sbr.rel (%p596) target = $region100
        $region99: #{_lambda_.3} parent=91 // pred_region
          %599 = dma.done [#allocation6], 256
        $region100: #{_lambda_.3} parent=91 // pred_fallthru
          _
        // Predicated region
        $region101: #{_lambda_.3} parent=91 // pred_check
          %p600 = pneg %p203
        $region102: #{_lambda_.3} parent=91 // pred_check_branch
          %602 = sbr.rel (%p600) target = $region104
        $region103: #{_lambda_.3} parent=91 // pred_region
          %603 = dma.done [#allocation6], 256
        $region104: #{_lambda_.3} parent=91 // pred_fallthru
          _
        // Predicated region
        $region105: #{_lambda_.3} parent=91 // pred_check
          %p604 = pneg %p245
        $region106: #{_lambda_.3} parent=91 // pred_check_branch
          %606 = sbr.rel (%p604) target = $region108
        $region107: #{_lambda_.3} parent=91 // pred_region
          %607 = dma.done [#allocation9], 64
        $region108: #{_lambda_.3} parent=91 // pred_fallthru
          _
        // Predicated region
        $region109: #{_lambda_.3} parent=91 // pred_check
          %p608 = pneg %p287
        $region110: #{_lambda_.3} parent=91 // pred_check_branch
          %610 = sbr.rel (%p608) target = $region112
        $region111: #{_lambda_.3} parent=91 // pred_region
          %611 = dma.done [#allocation9], 32
        $region112: #{_lambda_.3} parent=91 // pred_fallthru
          _
        // Predicated region
        $region113: #{_lambda_.3} parent=91 // pred_check
          %p612 = pneg %p329
        $region114: #{_lambda_.3} parent=91 // pred_check_branch
          %614 = sbr.rel (%p612) target = $region116
        $region115: #{_lambda_.3} parent=91 // pred_region
          %615 = dma.done [#allocation12], 32
        $region116: #{_lambda_.3} parent=91 // pred_fallthru
          _
        // Predicated region
        $region117: #{_lambda_.3} parent=91 // pred_check
          %p616 = pneg %p392
        $region118: #{_lambda_.3} parent=91 // pred_check_branch
          %618 = sbr.rel (%p616) target = $region120
        $region119: #{_lambda_.3} parent=91 // pred_region
          %619 = dma.done [#allocation12], 512
        $region120: #{_lambda_.3} parent=91 // pred_fallthru
          _
        %p620 = scmp.lt.s32.totalorder %s35, 1
        %s621 = scalar_select %p620, %s35, 1
        %s622 = scalar_lea.vmem %s0, %s621
        %p623 = pneg %p56
        %p624 = pneg %p53
        %p625 = pneg %p77
        %p626 = pneg %p74
        %p627 = pneg %p98
        %p628 = pneg %p95
        %p629 = pneg %p119
        %p630 = pneg %p116
        %p631 = pneg %p140
        %p632 = pneg %p137
        %p633 = pneg %p161
        %p634 = pneg %p158
        %p635 = pneg %p182
        %p636 = pneg %p179
        %p637 = pneg %p203
        %p638 = pneg %p200
        %p639 = pneg %p224
        %p640 = pneg %p221
        %p641 = pneg %p245
        %p642 = pneg %p242
        %p643 = pneg %p266
        %p644 = pneg %p263
        %p645 = pneg %p287
        %p646 = pneg %p284
        %p647 = pneg %p308
        %p648 = pneg %p305
        %p649 = pneg %p329
        %p650 = pneg %p326
        %p651 = pneg %p350
        %p652 = pneg %p347
        %p653 = pneg %p371
        %p654 = pneg %p368
        %p655 = pneg %p392
        %p656 = pneg %p389
        %p657 = pneg %p413
        %p658 = pneg %p410
        %p659 = pneg %p439
        %p660 = pneg %p436
        %p661 = scmp.lt.s32.totalorder %s35, 1
        %s662 = scalar_select %p661, %s35, 1
        %s663 = smul.addr %s662, 8
        %s664 = scalar_lea.vmem %s18, %s663
        %p665 = scmp.lt.s32.totalorder %s35, 1
        %s666 = scalar_select %p665, %s35, 1
        %s667 = scalar_lea.vmem %s0, %s666
        %p668 = scmp.lt.s32.totalorder %s35, 1
        %s669 = scalar_select %p668, %s35, 1
        %s670 = smul.addr %s669, 8
        %s671 = scalar_lea.vmem %s18, %s670
        %v673 = vld [vmem:[%s1] sm:$0xff]
        %v674 = vld [vmem:[%s667] sm:$0x1]
        %v675 = vld [vmem:[%s6] sm:$0xf]
        %v676 = vld [vmem:[%s6 + $0x4] sm:$0xf]
        %v677 = vld [vmem:[%s6 + $0x8] sm:$0xf]
        %v678 = vld [vmem:[%s6 + $0xc] sm:$0xf]
        %v679 = vpack.c.bf16 %v673, %v673
        %v680 = vld [vmem:[#allocation7] sm:$0x1]
        %v682 = vlaneseq
        %v683 = vshrl.u32 %v682, 7
        %v684 = vsub.s32 0, %v683
        %v685 = vrot.slane %v680, %v684
        %v691 = vunpack.c.l.b16 %v675
        %v692 = vunpack.c.l.b16 %v676
        %v693 = vunpack.c.l.b16 %v677
        %v694 = vunpack.c.l.b16 %v678
        %v695 = vpack.c.b16 %v692, %v691
        %v696 = vpack.c.b16 %v694, %v693
        %vm699 = vcmask 261120
        %v701 = vsel %vm699, %v679, 0
        %703 = vmatprep.subr.bf16.mxu0 0
        %704 = vmatpush1.bf16.msra.mxu0 %v695
        %705 = vmatprep.subr.bf16.mxu0 0
        %706 = vmatpush1.bf16.msra.mxu0 %v696
        %707 = vmatprep.subr.bf16.mxu0 0
        %708 = vmatpush1.bf16.msra.mxu0 0
        %709 = vmatprep.subr.bf16.mxu0 0
        %710 = vmatpush1.bf16.msra.mxu0 0
        %711 = vmatprep.subr.bf16.mxu0 0
        %712 = vmatpush1.bf16.msra.mxu0 0
        %713 = vmatprep.subr.bf16.mxu0 0
        %714 = vmatpush1.bf16.msra.mxu0 0
        %715 = vmatprep.subr.bf16.mxu0 0
        %716 = vmatpush1.bf16.msra.mxu0 0
        %717 = vmatprep.subr.bf16.mxu0 0
        %718 = vmatpush1.bf16.msra.mxu0 0
        %719 = vmatprep.subr.bf16.mxu0 0
        %720 = vmatpush1.bf16.msra.mxu0 0
        %721 = vmatprep.subr.bf16.mxu0 0
        %722 = vmatpush1.bf16.msra.mxu0 0
        %723 = vmatprep.subr.bf16.mxu0 0
        %724 = vmatpush1.bf16.msra.mxu0 0
        %725 = vmatprep.subr.bf16.mxu0 0
        %726 = vmatpush1.bf16.msra.mxu0 0
        %727 = vmatprep.subr.bf16.mxu0 0
        %728 = vmatpush1.bf16.msra.mxu0 0
        %729 = vmatprep.subr.bf16.mxu0 0
        %730 = vmatpush1.bf16.msra.mxu0 0
        %731 = vmatprep.subr.bf16.mxu0 0
        %732 = vmatpush1.bf16.msra.mxu0 0
        %733 = vmatprep.subr.bf16.mxu0 0
        %734 = vmatpush1.bf16.msra.mxu0 0
        %735 = vmatprep.mubr.bf16.mxu0 0
        %736 = vmatmul.mubr.bf16.gmra.mrb[0].mxu0 %v701
        %v737 = vpop.f32.mrb[0].mxu0
        %v738 = vadd.f32 %v685, %v737
        %v739 = vpop.f32.mrb[0].mxu0
        %v740 = vpop.f32.mrb[0].mxu0
        %v741 = vpop.f32.mrb[0].mxu0
        %742 = vdwg.mxu0
        %v743 = vld [vmem:[%s2] sm:$0xf]
        %v744 = vld [vmem:[%s2 + $0x4] sm:$0xf]
        %v745 = vld [vmem:[%s2 + $0x8] sm:$0xf]
        %v746 = vld [vmem:[%s2 + $0xc] sm:$0xf]
        %v747 = vld [vmem:[#allocation3] sm:$0x1]
        %v749 = vlaneseq
        %v750 = vshrl.u32 %v749, 7
        %v751 = vsub.s32 0, %v750
        %v752 = vrot.slane %v747, %v751
        %v758 = vunpack.c.l.b16 %v743
        %v759 = vunpack.c.l.b16 %v744
        %v760 = vunpack.c.l.b16 %v745
        %v761 = vunpack.c.l.b16 %v746
        %v762 = vpack.c.b16 %v759, %v758
        %v763 = vpack.c.b16 %v761, %v760
        %766 = vmatprep.subr.bf16.mxu0 0
        %767 = vmatpush1.bf16.msra.mxu0 %v762
        %768 = vmatprep.subr.bf16.mxu0 0
        %769 = vmatpush1.bf16.msra.mxu0 %v763
        %770 = vmatprep.subr.bf16.mxu0 0
        %771 = vmatpush1.bf16.msra.mxu0 0
        %772 = vmatprep.subr.bf16.mxu0 0
        %773 = vmatpush1.bf16.msra.mxu0 0
        %774 = vmatprep.subr.bf16.mxu0 0
        %775 = vmatpush1.bf16.msra.mxu0 0
        %776 = vmatprep.subr.bf16.mxu0 0
        %777 = vmatpush1.bf16.msra.mxu0 0
        %778 = vmatprep.subr.bf16.mxu0 0
        %779 = vmatpush1.bf16.msra.mxu0 0
        %780 = vmatprep.subr.bf16.mxu0 0
        %781 = vmatpush1.bf16.msra.mxu0 0
        %782 = vmatprep.subr.bf16.mxu0 0
        %783 = vmatpush1.bf16.msra.mxu0 0
        %784 = vmatprep.subr.bf16.mxu0 0
        %785 = vmatpush1.bf16.msra.mxu0 0
        %786 = vmatprep.subr.bf16.mxu0 0
        %787 = vmatpush1.bf16.msra.mxu0 0
        %788 = vmatprep.subr.bf16.mxu0 0
        %789 = vmatpush1.bf16.msra.mxu0 0
        %790 = vmatprep.subr.bf16.mxu0 0
        %791 = vmatpush1.bf16.msra.mxu0 0
        %792 = vmatprep.subr.bf16.mxu0 0
        %793 = vmatpush1.bf16.msra.mxu0 0
        %794 = vmatprep.subr.bf16.mxu0 0
        %795 = vmatpush1.bf16.msra.mxu0 0
        %796 = vmatprep.subr.bf16.mxu0 0
        %797 = vmatpush1.bf16.msra.mxu0 0
        %798 = vmatprep.mubr.bf16.mxu0 0
        %799 = vmatmul.mubr.bf16.gmra.mrb[0].mxu0 %v701
        %v800 = vpop.f32.mrb[0].mxu0
        %v801 = vadd.f32 %v752, %v800
        %v802 = vpop.f32.mrb[0].mxu0
        %v803 = vpop.f32.mrb[0].mxu0
        %v804 = vpop.f32.mrb[0].mxu0
        %805 = vdwg.mxu0
        %v806 = vld [vmem:[%s4] sm:$0xf]
        %v807 = vld [vmem:[%s4 + $0x4] sm:$0xf]
        %v808 = vld [vmem:[%s4 + $0x8] sm:$0xf]
        %v809 = vld [vmem:[%s4 + $0xc] sm:$0xf]
        %v810 = vld [vmem:[#allocation5] sm:$0x1]
        %v812 = vlaneseq
        %v813 = vshrl.u32 %v812, 7
        %v814 = vsub.s32 0, %v813
        %v815 = vrot.slane %v810, %v814
        %v821 = vunpack.c.l.b16 %v806
        %v822 = vunpack.c.l.b16 %v807
        %v823 = vunpack.c.l.b16 %v808
        %v824 = vunpack.c.l.b16 %v809
        %v825 = vpack.c.b16 %v822, %v821
        %v826 = vpack.c.b16 %v824, %v823
        %829 = vmatprep.subr.bf16.mxu0 0
        %830 = vmatpush1.bf16.msra.mxu0 %v825
        %831 = vmatprep.subr.bf16.mxu0 0
        %832 = vmatpush1.bf16.msra.mxu0 %v826
        %833 = vmatprep.subr.bf16.mxu0 0
        %834 = vmatpush1.bf16.msra.mxu0 0
        %835 = vmatprep.subr.bf16.mxu0 0
        %836 = vmatpush1.bf16.msra.mxu0 0
        %837 = vmatprep.subr.bf16.mxu0 0
        %838 = vmatpush1.bf16.msra.mxu0 0
        %839 = vmatprep.subr.bf16.mxu0 0
        %840 = vmatpush1.bf16.msra.mxu0 0
        %841 = vmatprep.subr.bf16.mxu0 0
        %842 = vmatpush1.bf16.msra.mxu0 0
        %843 = vmatprep.subr.bf16.mxu0 0
        %844 = vmatpush1.bf16.msra.mxu0 0
        %845 = vmatprep.subr.bf16.mxu0 0
        %846 = vmatpush1.bf16.msra.mxu0 0
        %847 = vmatprep.subr.bf16.mxu0 0
        %848 = vmatpush1.bf16.msra.mxu0 0
        %849 = vmatprep.subr.bf16.mxu0 0
        %850 = vmatpush1.bf16.msra.mxu0 0
        %851 = vmatprep.subr.bf16.mxu0 0
        %852 = vmatpush1.bf16.msra.mxu0 0
        %853 = vmatprep.subr.bf16.mxu0 0
        %854 = vmatpush1.bf16.msra.mxu0 0
        %855 = vmatprep.subr.bf16.mxu0 0
        %856 = vmatpush1.bf16.msra.mxu0 0
        %857 = vmatprep.subr.bf16.mxu0 0
        %858 = vmatpush1.bf16.msra.mxu0 0
        %859 = vmatprep.subr.bf16.mxu0 0
        %860 = vmatpush1.bf16.msra.mxu0 0
        %861 = vmatprep.mubr.bf16.mxu0 0
        %862 = vmatmul.mubr.bf16.gmra.mrb[0].mxu0 %v701
        %v863 = vpop.f32.mrb[0].mxu0
        %v864 = vadd.f32 %v815, %v863
        %v865 = vpop.f32.mrb[0].mxu0
        %v866 = vpop.f32.mrb[0].mxu0
        %v867 = vpop.f32.mrb[0].mxu0
        %868 = vdwg.mxu0
        %v869 = vpack.c.bf16 %v801, %v801
        %v870 = vpack.c.bf16 %v864, %v864
        %vm871 = vcmask 64512
        %v873 = vsel %vm871, %v869, 0
        %v876 = vsel %vm871, %v870, 0
        %878 = vmatprep.subr.bf16.mxu0 0
        %879 = vmatpush1.bf16.xpose.msra.mxu0 %v876
        %880 = vmatprep.subr.bf16.mxu0 0
        %881 = vmatpush1.bf16.xpose.msra.mxu0 0
        %882 = vmatprep.subr.bf16.mxu0 0
        %883 = vmatpush1.bf16.xpose.msra.mxu0 0
        %884 = vmatprep.subr.bf16.mxu0 0
        %885 = vmatpush1.bf16.xpose.msra.mxu0 0
        %886 = vmatprep.subr.bf16.mxu0 0
        %887 = vmatpush1.bf16.xpose.msra.mxu0 0
        %888 = vmatprep.subr.bf16.mxu0 0
        %889 = vmatpush1.bf16.xpose.msra.mxu0 0
        %890 = vmatprep.subr.bf16.mxu0 0
        %891 = vmatpush1.bf16.xpose.msra.mxu0 0
        %892 = vmatprep.subr.bf16.mxu0 0
        %893 = vmatpush1.bf16.xpose.msra.mxu0 0
        %894 = vmatprep.subr.bf16.mxu0 0
        %895 = vmatpush1.bf16.xpose.msra.mxu0 0
        %896 = vmatprep.subr.bf16.mxu0 0
        %897 = vmatpush1.bf16.xpose.msra.mxu0 0
        %898 = vmatprep.subr.bf16.mxu0 0
        %899 = vmatpush1.bf16.xpose.msra.mxu0 0
        %900 = vmatprep.subr.bf16.mxu0 0
        %901 = vmatpush1.bf16.xpose.msra.mxu0 0
        %902 = vmatprep.subr.bf16.mxu0 0
        %903 = vmatpush1.bf16.xpose.msra.mxu0 0
        %904 = vmatprep.subr.bf16.mxu0 0
        %905 = vmatpush1.bf16.xpose.msra.mxu0 0
        %906 = vmatprep.subr.bf16.mxu0 0
        %907 = vmatpush1.bf16.xpose.msra.mxu0 0
        %908 = vmatprep.subr.bf16.mxu0 0
        %909 = vmatpush1.bf16.xpose.msra.mxu0 0
        %910 = vmatprep.mubr.bf16.mxu0 0
        %911 = vmatmul.mubr.bf16.gmra.mrb[0].mxu0 %v873
        %v912 = vpop.f32.mrb[0].mxu0
        %v913 = vadd.f32 0.0, %v912
        %v914 = vpop.f32.mrb[0].mxu0
        %v915 = vpop.f32.mrb[0].mxu0
        %v916 = vpop.f32.mrb[0].mxu0
        %917 = vdwg.mxu0
        %v918 = vmul.f32 %v913, 0.35355338
        %v919 = vsel %vm871, %v918, -inf
        %920 = vmax.xlane.f32.xlu0 %v919
        %v921 = vpop.xlane.xlu0 %920
        %v922 = vsub.f32 %v918, %v921
        %v923 = vmul.f32 %v922, 1.442695
        %v924 = vpow.pop %v923
        %v925 = vsel %vm871, %v924, 0.0
        %926 = vadd.xlane.f32.xlu0 %v925
        %v927 = vpop.xlane.xlu0 %926
        %v928 = vrcp.pop %v927
        %v929 = vmul.f32 %v924, %v928
        %v930 = vpack.c.bf16 %v929, %v929
        %v931 = vpack.c.bf16 %v738, %v738
        %v933 = vsel %vm871, %v930, 0
        %vm935 = vcmask 1043456
        %v937 = vsel %vm935, %v931, 0
        %939 = vmatprep.subr.bf16.mxu0 0
        %940 = vmatpush1.bf16.msra.mxu0 %v937
        %941 = vmatprep.subr.bf16.mxu0 0
        %942 = vmatpush1.bf16.msra.mxu0 0
        %943 = vmatprep.subr.bf16.mxu0 0
        %944 = vmatpush1.bf16.msra.mxu0 0
        %945 = vmatprep.subr.bf16.mxu0 0
        %946 = vmatpush1.bf16.msra.mxu0 0
        %947 = vmatprep.subr.bf16.mxu0 0
        %948 = vmatpush1.bf16.msra.mxu0 0
        %949 = vmatprep.subr.bf16.mxu0 0
        %950 = vmatpush1.bf16.msra.mxu0 0
        %951 = vmatprep.subr.bf16.mxu0 0
        %952 = vmatpush1.bf16.msra.mxu0 0
        %953 = vmatprep.subr.bf16.mxu0 0
        %954 = vmatpush1.bf16.msra.mxu0 0
        %955 = vmatprep.subr.bf16.mxu0 0
        %956 = vmatpush1.bf16.msra.mxu0 0
        %957 = vmatprep.subr.bf16.mxu0 0
        %958 = vmatpush1.bf16.msra.mxu0 0
        %959 = vmatprep.subr.bf16.mxu0 0
        %960 = vmatpush1.bf16.msra.mxu0 0
        %961 = vmatprep.subr.bf16.mxu0 0
        %962 = vmatpush1.bf16.msra.mxu0 0
        %963 = vmatprep.subr.bf16.mxu0 0
        %964 = vmatpush1.bf16.msra.mxu0 0
        %965 = vmatprep.subr.bf16.mxu0 0
        %966 = vmatpush1.bf16.msra.mxu0 0
        %967 = vmatprep.subr.bf16.mxu0 0
        %968 = vmatpush1.bf16.msra.mxu0 0
        %969 = vmatprep.subr.bf16.mxu0 0
        %970 = vmatpush1.bf16.msra.mxu0 0
        %971 = vmatprep.mubr.bf16.mxu0 0
        %972 = vmatmul.mubr.bf16.gmra.mrb[0].mxu0 %v933
        %v973 = vpop.f32.mrb[0].mxu0
        %v974 = vadd.f32 0.0, %v973
        %v975 = vpop.f32.mrb[0].mxu0
        %v976 = vpop.f32.mrb[0].mxu0
        %v977 = vpop.f32.mrb[0].mxu0
        %978 = vdwg.mxu0
        %v979 = vld [vmem:[%s8] sm:$0xf]
        %v980 = vpack.c.bf16 %v974, %v974
        %s981 = scalar_lea.vmem %s6, 16
        %v982 = vld [vmem:[%s981] sm:$0xf]
        %v983 = vld [vmem:[%s981 + $0x4] sm:$0xf]
        %v984 = vld [vmem:[%s981 + $0x8] sm:$0xf]
        %v985 = vld [vmem:[%s981 + $0xc] sm:$0xf]
        %s986 = scalar_lea.vmem [#allocation7], 1
        %v987 = vld [vmem:[%s986] sm:$0x1]
        %v989 = vlaneseq
        %v990 = vshrl.u32 %v989, 7
        %v991 = vsub.s32 0, %v990
        %v992 = vrot.slane %v987, %v991
        %v998 = vunpack.c.l.b16 %v982
        %v999 = vunpack.c.l.b16 %v983
        %v1000 = vunpack.c.l.b16 %v984
        %v1001 = vunpack.c.l.b16 %v985
        %v1002 = vpack.c.b16 %v999, %v998
        %v1003 = vpack.c.b16 %v1001, %v1000
        %1006 = vmatprep.subr.bf16.mxu0 0
        %1007 = vmatpush1.bf16.msra.mxu0 %v1002
        %1008 = vmatprep.subr.bf16.mxu0 0
        %1009 = vmatpush1.bf16.msra.mxu0 %v1003
        %1010 = vmatprep.subr.bf16.mxu0 0
        %1011 = vmatpush1.bf16.msra.mxu0 0
        %1012 = vmatprep.subr.bf16.mxu0 0
        %1013 = vmatpush1.bf16.msra.mxu0 0
        %1014 = vmatprep.subr.bf16.mxu0 0
        %1015 = vmatpush1.bf16.msra.mxu0 0
        %1016 = vmatprep.subr.bf16.mxu0 0
        %1017 = vmatpush1.bf16.msra.mxu0 0
        %1018 = vmatprep.subr.bf16.mxu0 0
        %1019 = vmatpush1.bf16.msra.mxu0 0
        %1020 = vmatprep.subr.bf16.mxu0 0
        %1021 = vmatpush1.bf16.msra.mxu0 0
        %1022 = vmatprep.subr.bf16.mxu0 0
        %1023 = vmatpush1.bf16.msra.mxu0 0
        %1024 = vmatprep.subr.bf16.mxu0 0
        %1025 = vmatpush1.bf16.msra.mxu0 0
        %1026 = vmatprep.subr.bf16.mxu0 0
        %1027 = vmatpush1.bf16.msra.mxu0 0
        %1028 = vmatprep.subr.bf16.mxu0 0
        %1029 = vmatpush1.bf16.msra.mxu0 0
        %1030 = vmatprep.subr.bf16.mxu0 0
        %1031 = vmatpush1.bf16.msra.mxu0 0
        %1032 = vmatprep.subr.bf16.mxu0 0
        %1033 = vmatpush1.bf16.msra.mxu0 0
        %1034 = vmatprep.subr.bf16.mxu0 0
        %1035 = vmatpush1.bf16.msra.mxu0 0
        %1036 = vmatprep.subr.bf16.mxu0 0
        %1037 = vmatpush1.bf16.msra.mxu0 0
        %1038 = vmatprep.mubr.bf16.mxu0 0
        %1039 = vmatmul.mubr.bf16.gmra.mrb[0].mxu0 %v701
        %v1040 = vpop.f32.mrb[0].mxu0
        %v1041 = vadd.f32 %v992, %v1040
        %v1042 = vpop.f32.mrb[0].mxu0
        %v1043 = vpop.f32.mrb[0].mxu0
        %v1044 = vpop.f32.mrb[0].mxu0
        %1045 = vdwg.mxu0
        %s1046 = scalar_lea.vmem %s2, 16
        %v1047 = vld [vmem:[%s1046] sm:$0xf]
        %v1048 = vld [vmem:[%s1046 + $0x4] sm:$0xf]
        %v1049 = vld [vmem:[%s1046 + $0x8] sm:$0xf]
        %v1050 = vld [vmem:[%s1046 + $0xc] sm:$0xf]
        %s1051 = scalar_lea.vmem [#allocation3], 1
        %v1052 = vld [vmem:[%s1051] sm:$0x1]
        %v1054 = vlaneseq
        %v1055 = vshrl.u32 %v1054, 7
        %v1056 = vsub.s32 0, %v1055
        %v1057 = vrot.slane %v1052, %v1056
        %v1063 = vunpack.c.l.b16 %v1047
        %v1064 = vunpack.c.l.b16 %v1048
        %v1065 = vunpack.c.l.b16 %v1049
        %v1066 = vunpack.c.l.b16 %v1050
        %v1067 = vpack.c.b16 %v1064, %v1063
        %v1068 = vpack.c.b16 %v1066, %v1065
        %1071 = vmatprep.subr.bf16.mxu0 0
        %1072 = vmatpush1.bf16.msra.mxu0 %v1067
        %1073 = vmatprep.subr.bf16.mxu0 0
        %1074 = vmatpush1.bf16.msra.mxu0 %v1068
        %1075 = vmatprep.subr.bf16.mxu0 0
        %1076 = vmatpush1.bf16.msra.mxu0 0
        %1077 = vmatprep.subr.bf16.mxu0 0
        %1078 = vmatpush1.bf16.msra.mxu0 0
        %1079 = vmatprep.subr.bf16.mxu0 0
        %1080 = vmatpush1.bf16.msra.mxu0 0
        %1081 = vmatprep.subr.bf16.mxu0 0
        %1082 = vmatpush1.bf16.msra.mxu0 0
        %1083 = vmatprep.subr.bf16.mxu0 0
        %1084 = vmatpush1.bf16.msra.mxu0 0
        %1085 = vmatprep.subr.bf16.mxu0 0
        %1086 = vmatpush1.bf16.msra.mxu0 0
        %1087 = vmatprep.subr.bf16.mxu0 0
        %1088 = vmatpush1.bf16.msra.mxu0 0
        %1089 = vmatprep.subr.bf16.mxu0 0
        %1090 = vmatpush1.bf16.msra.mxu0 0
        %1091 = vmatprep.subr.bf16.mxu0 0
        %1092 = vmatpush1.bf16.msra.mxu0 0
        %1093 = vmatprep.subr.bf16.mxu0 0
        %1094 = vmatpush1.bf16.msra.mxu0 0
        %1095 = vmatprep.subr.bf16.mxu0 0
        %1096 = vmatpush1.bf16.msra.mxu0 0
        %1097 = vmatprep.subr.bf16.mxu0 0
        %1098 = vmatpush1.bf16.msra.mxu0 0
        %1099 = vmatprep.subr.bf16.mxu0 0
        %1100 = vmatpush1.bf16.msra.mxu0 0
        %1101 = vmatprep.subr.bf16.mxu0 0
        %1102 = vmatpush1.bf16.msra.mxu0 0
        %1103 = vmatprep.mubr.bf16.mxu0 0
        %1104 = vmatmul.mubr.bf16.gmra.mrb[0].mxu0 %v701
        %v1105 = vpop.f32.mrb[0].mxu0
        %v1106 = vadd.f32 %v1057, %v1105
        %v1107 = vpop.f32.mrb[0].mxu0
        %v1108 = vpop.f32.mrb[0].mxu0
        %v1109 = vpop.f32.mrb[0].mxu0
        %1110 = vdwg.mxu0
        %s1111 = scalar_lea.vmem %s4, 16
        %v1112 = vld [vmem:[%s1111] sm:$0xf]
        %v1113 = vld [vmem:[%s1111 + $0x4] sm:$0xf]
        %v1114 = vld [vmem:[%s1111 + $0x8] sm:$0xf]
        %v1115 = vld [vmem:[%s1111 + $0xc] sm:$0xf]
        %s1116 = scalar_lea.vmem [#allocation5], 1
        %v1117 = vld [vmem:[%s1116] sm:$0x1]
        %v1119 = vlaneseq
        %v1120 = vshrl.u32 %v1119, 7
        %v1121 = vsub.s32 0, %v1120
        %v1122 = vrot.slane %v1117, %v1121
        %v1128 = vunpack.c.l.b16 %v1112
        %v1129 = vunpack.c.l.b16 %v1113
        %v1130 = vunpack.c.l.b16 %v1114
        %v1131 = vunpack.c.l.b16 %v1115
        %v1132 = vpack.c.b16 %v1129, %v1128
        %v1133 = vpack.c.b16 %v1131, %v1130
        %1136 = vmatprep.subr.bf16.mxu0 0
        %1137 = vmatpush1.bf16.msra.mxu0 %v1132
        %1138 = vmatprep.subr.bf16.mxu0 0
        %1139 = vmatpush1.bf16.msra.mxu0 %v1133
        %1140 = vmatprep.subr.bf16.mxu0 0
        %1141 = vmatpush1.bf16.msra.mxu0 0
        %1142 = vmatprep.subr.bf16.mxu0 0
        %1143 = vmatpush1.bf16.msra.mxu0 0
        %1144 = vmatprep.subr.bf16.mxu0 0
        %1145 = vmatpush1.bf16.msra.mxu0 0
        %1146 = vmatprep.subr.bf16.mxu0 0
        %1147 = vmatpush1.bf16.msra.mxu0 0
        %1148 = vmatprep.subr.bf16.mxu0 0
        %1149 = vmatpush1.bf16.msra.mxu0 0
        %1150 = vmatprep.subr.bf16.mxu0 0
        %1151 = vmatpush1.bf16.msra.mxu0 0
        %1152 = vmatprep.subr.bf16.mxu0 0
        %1153 = vmatpush1.bf16.msra.mxu0 0
        %1154 = vmatprep.subr.bf16.mxu0 0
        %1155 = vmatpush1.bf16.msra.mxu0 0
        %1156 = vmatprep.subr.bf16.mxu0 0
        %1157 = vmatpush1.bf16.msra.mxu0 0
        %1158 = vmatprep.subr.bf16.mxu0 0
        %1159 = vmatpush1.bf16.msra.mxu0 0
        %1160 = vmatprep.subr.bf16.mxu0 0
        %1161 = vmatpush1.bf16.msra.mxu0 0
        %1162 = vmatprep.subr.bf16.mxu0 0
        %1163 = vmatpush1.bf16.msra.mxu0 0
        %1164 = vmatprep.subr.bf16.mxu0 0
        %1165 = vmatpush1.bf16.msra.mxu0 0
        %1166 = vmatprep.subr.bf16.mxu0 0
        %1167 = vmatpush1.bf16.msra.mxu0 0
        %1168 = vmatprep.mubr.bf16.mxu0 0
        %1169 = vmatmul.mubr.bf16.gmra.mrb[0].mxu0 %v701
        %v1170 = vpop.f32.mrb[0].mxu0
        %v1171 = vadd.f32 %v1122, %v1170
        %v1172 = vpop.f32.mrb[0].mxu0
        %v1173 = vpop.f32.mrb[0].mxu0
        %v1174 = vpop.f32.mrb[0].mxu0
        %1175 = vdwg.mxu0
        %v1176 = vpack.c.bf16 %v1106, %v1106
        %v1177 = vpack.c.bf16 %v1171, %v1171
        %v1179 = vsel %vm871, %v1176, 0
        %v1182 = vsel %vm871, %v1177, 0
        %1184 = vmatprep.subr.bf16.mxu0 0
        %1185 = vmatpush1.bf16.xpose.msra.mxu0 %v1182
        %1186 = vmatprep.subr.bf16.mxu0 0
        %1187 = vmatpush1.bf16.xpose.msra.mxu0 0
        %1188 = vmatprep.subr.bf16.mxu0 0
        %1189 = vmatpush1.bf16.xpose.msra.mxu0 0
        %1190 = vmatprep.subr.bf16.mxu0 0
        %1191 = vmatpush1.bf16.xpose.msra.mxu0 0
        %1192 = vmatprep.subr.bf16.mxu0 0
        %1193 = vmatpush1.bf16.xpose.msra.mxu0 0
        %1194 = vmatprep.subr.bf16.mxu0 0
        %1195 = vmatpush1.bf16.xpose.msra.mxu0 0
        %1196 = vmatprep.subr.bf16.mxu0 0
        %1197 = vmatpush1.bf16.xpose.msra.mxu0 0
        %1198 = vmatprep.subr.bf16.mxu0 0
        %1199 = vmatpush1.bf16.xpose.msra.mxu0 0
        %1200 = vmatprep.subr.bf16.mxu0 0
        %1201 = vmatpush1.bf16.xpose.msra.mxu0 0
        %1202 = vmatprep.subr.bf16.mxu0 0
        %1203 = vmatpush1.bf16.xpose.msra.mxu0 0
        %1204 = vmatprep.subr.bf16.mxu0 0
        %1205 = vmatpush1.bf16.xpose.msra.mxu0 0
        %1206 = vmatprep.subr.bf16.mxu0 0
        %1207 = vmatpush1.bf16.xpose.msra.mxu0 0
        %1208 = vmatprep.subr.bf16.mxu0 0
        %1209 = vmatpush1.bf16.xpose.msra.mxu0 0
        %1210 = vmatprep.subr.bf16.mxu0 0
        %1211 = vmatpush1.bf16.xpose.msra.mxu0 0
        %1212 = vmatprep.subr.bf16.mxu0 0
        %1213 = vmatpush1.bf16.xpose.msra.mxu0 0
        %1214 = vmatprep.subr.bf16.mxu0 0
        %1215 = vmatpush1.bf16.xpose.msra.mxu0 0
        %1216 = vmatprep.mubr.bf16.mxu0 0
        %1217 = vmatmul.mubr.bf16.gmra.mrb[0].mxu0 %v1179
        %v1218 = vpop.f32.mrb[0].mxu0
        %v1219 = vadd.f32 0.0, %v1218
        %v1220 = vpop.f32.mrb[0].mxu0
        %v1221 = vpop.f32.mrb[0].mxu0
        %v1222 = vpop.f32.mrb[0].mxu0
        %1223 = vdwg.mxu0
        %v1224 = vmul.f32 %v1219, 0.35355338
        %v1225 = vsel %vm871, %v1224, -inf
        %1226 = vmax.xlane.f32.xlu0 %v1225
        %v1227 = vpop.xlane.xlu0 %1226
        %v1228 = vsub.f32 %v1224, %v1227
        %v1229 = vmul.f32 %v1228, 1.442695
        %v1230 = vpow.pop %v1229
        %v1231 = vsel %vm871, %v1230, 0.0
        %1232 = vadd.xlane.f32.xlu0 %v1231
        %v1233 = vpop.xlane.xlu0 %1232
        %v1234 = vrcp.pop %v1233
        %v1235 = vmul.f32 %v1230, %v1234
        %v1236 = vpack.c.bf16 %v1235, %v1235
        %v1237 = vpack.c.bf16 %v1041, %v1041
        %v1239 = vsel %vm871, %v1236, 0
        %v1242 = vsel %vm935, %v1237, 0
        %1244 = vmatprep.subr.bf16.mxu0 0
        %1245 = vmatpush1.bf16.msra.mxu0 %v1242
        %1246 = vmatprep.subr.bf16.mxu0 0
        %1247 = vmatpush1.bf16.msra.mxu0 0
        %1248 = vmatprep.subr.bf16.mxu0 0
        %1249 = vmatpush1.bf16.msra.mxu0 0
        %1250 = vmatprep.subr.bf16.mxu0 0
        %1251 = vmatpush1.bf16.msra.mxu0 0
        %1252 = vmatprep.subr.bf16.mxu0 0
        %1253 = vmatpush1.bf16.msra.mxu0 0
        %1254 = vmatprep.subr.bf16.mxu0 0
        %1255 = vmatpush1.bf16.msra.mxu0 0
        %1256 = vmatprep.subr.bf16.mxu0 0
        %1257 = vmatpush1.bf16.msra.mxu0 0
        %1258 = vmatprep.subr.bf16.mxu0 0
        %1259 = vmatpush1.bf16.msra.mxu0 0
        %1260 = vmatprep.subr.bf16.mxu0 0
        %1261 = vmatpush1.bf16.msra.mxu0 0
        %1262 = vmatprep.subr.bf16.mxu0 0
        %1263 = vmatpush1.bf16.msra.mxu0 0
        %1264 = vmatprep.subr.bf16.mxu0 0
        %1265 = vmatpush1.bf16.msra.mxu0 0
        %1266 = vmatprep.subr.bf16.mxu0 0
        %1267 = vmatpush1.bf16.msra.mxu0 0
        %1268 = vmatprep.subr.bf16.mxu0 0
        %1269 = vmatpush1.bf16.msra.mxu0 0
        %1270 = vmatprep.subr.bf16.mxu0 0
        %1271 = vmatpush1.bf16.msra.mxu0 0
        %1272 = vmatprep.subr.bf16.mxu0 0
        %1273 = vmatpush1.bf16.msra.mxu0 0
        %1274 = vmatprep.subr.bf16.mxu0 0
        %1275 = vmatpush1.bf16.msra.mxu0 0
        %1276 = vmatprep.mubr.bf16.mxu0 0
        %1277 = vmatmul.mubr.bf16.gmra.mrb[0].mxu0 %v1239
        %v1278 = vpop.f32.mrb[0].mxu0
        %v1279 = vadd.f32 0.0, %v1278
        %v1280 = vpop.f32.mrb[0].mxu0
        %v1281 = vpop.f32.mrb[0].mxu0
        %v1282 = vpop.f32.mrb[0].mxu0
        %1283 = vdwg.mxu0
        %s1284 = scalar_lea.vmem %s8, 4
        %v1285 = vld [vmem:[%s1284] sm:$0xf]
        %v1286 = vpack.c.bf16 %v1279, %v1279
        %v1288 = vsel %vm871, %v1286, 0
        %v1291 = vsel %vm935, %v1285, 0
        %1293 = vmatprep.subr.bf16.mxu0 0
        %1294 = vmatpush1.bf16.msra.mxu0 %v1291
        %1295 = vmatprep.subr.bf16.mxu0 0
        %1296 = vmatpush1.bf16.msra.mxu0 0
        %1297 = vmatprep.subr.bf16.mxu0 0
        %1298 = vmatpush1.bf16.msra.mxu0 0
        %1299 = vmatprep.subr.bf16.mxu0 0
        %1300 = vmatpush1.bf16.msra.mxu0 0
        %1301 = vmatprep.subr.bf16.mxu0 0
        %1302 = vmatpush1.bf16.msra.mxu0 0
        %1303 = vmatprep.subr.bf16.mxu0 0
        %1304 = vmatpush1.bf16.msra.mxu0 0
        %1305 = vmatprep.subr.bf16.mxu0 0
        %1306 = vmatpush1.bf16.msra.mxu0 0
        %1307 = vmatprep.subr.bf16.mxu0 0
        %1308 = vmatpush1.bf16.msra.mxu0 0
        %1309 = vmatprep.subr.bf16.mxu0 0
        %1310 = vmatpush1.bf16.msra.mxu0 0
        %1311 = vmatprep.subr.bf16.mxu0 0
        %1312 = vmatpush1.bf16.msra.mxu0 0
        %1313 = vmatprep.subr.bf16.mxu0 0
        %1314 = vmatpush1.bf16.msra.mxu0 0
        %1315 = vmatprep.subr.bf16.mxu0 0
        %1316 = vmatpush1.bf16.msra.mxu0 0
        %1317 = vmatprep.subr.bf16.mxu0 0
        %1318 = vmatpush1.bf16.msra.mxu0 0
        %1319 = vmatprep.subr.bf16.mxu0 0
        %1320 = vmatpush1.bf16.msra.mxu0 0
        %1321 = vmatprep.subr.bf16.mxu0 0
        %1322 = vmatpush1.bf16.msra.mxu0 0
        %1323 = vmatprep.subr.bf16.mxu0 0
        %1324 = vmatpush1.bf16.msra.mxu0 0
        %1325 = vmatprep.mubr.bf16.mxu0 0
        %1326 = vmatmul.mubr.bf16.gmra.mrb[0].mxu0 %v1288
        %v1327 = vpop.f32.mrb[0].mxu0
        %v1328 = vadd.f32 0.0, %v1327
        %v1329 = vpop.f32.mrb[0].mxu0
        %v1330 = vpop.f32.mrb[0].mxu0
        %v1331 = vpop.f32.mrb[0].mxu0
        %1332 = vdwg.mxu0
        %v1334 = vsel %vm871, %v980, 0
        %v1337 = vsel %vm935, %v979, 0
        %1339 = vmatprep.subr.bf16.mxu0 0
        %1340 = vmatpush1.bf16.msra.mxu0 %v1337
        %1341 = vmatprep.subr.bf16.mxu0 0
        %1342 = vmatpush1.bf16.msra.mxu0 0
        %1343 = vmatprep.subr.bf16.mxu0 0
        %1344 = vmatpush1.bf16.msra.mxu0 0
        %1345 = vmatprep.subr.bf16.mxu0 0
        %1346 = vmatpush1.bf16.msra.mxu0 0
        %1347 = vmatprep.subr.bf16.mxu0 0
        %1348 = vmatpush1.bf16.msra.mxu0 0
        %1349 = vmatprep.subr.bf16.mxu0 0
        %1350 = vmatpush1.bf16.msra.mxu0 0
        %1351 = vmatprep.subr.bf16.mxu0 0
        %1352 = vmatpush1.bf16.msra.mxu0 0
        %1353 = vmatprep.subr.bf16.mxu0 0
        %1354 = vmatpush1.bf16.msra.mxu0 0
        %1355 = vmatprep.subr.bf16.mxu0 0
        %1356 = vmatpush1.bf16.msra.mxu0 0
        %1357 = vmatprep.subr.bf16.mxu0 0
        %1358 = vmatpush1.bf16.msra.mxu0 0
        %1359 = vmatprep.subr.bf16.mxu0 0
        %1360 = vmatpush1.bf16.msra.mxu0 0
        %1361 = vmatprep.subr.bf16.mxu0 0
        %1362 = vmatpush1.bf16.msra.mxu0 0
        %1363 = vmatprep.subr.bf16.mxu0 0
        %1364 = vmatpush1.bf16.msra.mxu0 0
        %1365 = vmatprep.subr.bf16.mxu0 0
        %1366 = vmatpush1.bf16.msra.mxu0 0
        %1367 = vmatprep.subr.bf16.mxu0 0
        %1368 = vmatpush1.bf16.msra.mxu0 0
        %1369 = vmatprep.subr.bf16.mxu0 0
        %1370 = vmatpush1.bf16.msra.mxu0 0
        %1371 = vmatprep.mubr.bf16.mxu0 0
        %1372 = vmatmul.mubr.bf16.gmra.mrb[0].mxu0 %v1334
        %v1373 = vpop.f32.mrb[0].mxu0
        %v1374 = vadd.f32 %v1328, %v1373
        %v1375 = vpop.f32.mrb[0].mxu0
        %v1376 = vpop.f32.mrb[0].mxu0
        %v1377 = vpop.f32.mrb[0].mxu0
        %1378 = vdwg.mxu0
        %s1379 = scalar_lea.vmem %s6, 32
        %v1380 = vld [vmem:[%s1379] sm:$0xf]
        %v1381 = vld [vmem:[%s1379 + $0x4] sm:$0xf]
        %v1382 = vld [vmem:[%s1379 + $0x8] sm:$0xf]
        %v1383 = vld [vmem:[%s1379 + $0xc] sm:$0xf]
        %s1384 = scalar_lea.vmem [#allocation7], 2
        %v1385 = vld [vmem:[%s1384] sm:$0x1]
        %v1387 = vlaneseq
        %v1388 = vshrl.u32 %v1387, 7
        %v1389 = vsub.s32 0, %v1388
        %v1390 = vrot.slane %v1385, %v1389
        %v1396 = vunpack.c.l.b16 %v1380
        %v1397 = vunpack.c.l.b16 %v1381
        %v1398 = vunpack.c.l.b16 %v1382
        %v1399 = vunpack.c.l.b16 %v1383
        %v1400 = vpack.c.b16 %v1397, %v1396
        %v1401 = vpack.c.b16 %v1399, %v1398
        %1404 = vmatprep.subr.bf16.mxu0 0
        %1405 = vmatpush1.bf16.msra.mxu0 %v1400
        %1406 = vmatprep.subr.bf16.mxu0 0
        %1407 = vmatpush1.bf16.msra.mxu0 %v1401
        %1408 = vmatprep.subr.bf16.mxu0 0
        %1409 = vmatpush1.bf16.msra.mxu0 0
        %1410 = vmatprep.subr.bf16.mxu0 0
        %1411 = vmatpush1.bf16.msra.mxu0 0
        %1412 = vmatprep.subr.bf16.mxu0 0
        %1413 = vmatpush1.bf16.msra.mxu0 0
        %1414 = vmatprep.subr.bf16.mxu0 0
        %1415 = vmatpush1.bf16.msra.mxu0 0
        %1416 = vmatprep.subr.bf16.mxu0 0
        %1417 = vmatpush1.bf16.msra.mxu0 0
        %1418 = vmatprep.subr.bf16.mxu0 0
        %1419 = vmatpush1.bf16.msra.mxu0 0
        %1420 = vmatprep.subr.bf16.mxu0 0
        %1421 = vmatpush1.bf16.msra.mxu0 0
        %1422 = vmatprep.subr.bf16.mxu0 0
        %1423 = vmatpush1.bf16.msra.mxu0 0
        %1424 = vmatprep.subr.bf16.mxu0 0
        %1425 = vmatpush1.bf16.msra.mxu0 0
        %1426 = vmatprep.subr.bf16.mxu0 0
        %1427 = vmatpush1.bf16.msra.mxu0 0
        %1428 = vmatprep.subr.bf16.mxu0 0
        %1429 = vmatpush1.bf16.msra.mxu0 0
        %1430 = vmatprep.subr.bf16.mxu0 0
        %1431 = vmatpush1.bf16.msra.mxu0 0
        %1432 = vmatprep.subr.bf16.mxu0 0
        %1433 = vmatpush1.bf16.msra.mxu0 0
        %1434 = vmatprep.subr.bf16.mxu0 0
        %1435 = vmatpush1.bf16.msra.mxu0 0
        %1436 = vmatprep.mubr.bf16.mxu0 0
        %1437 = vmatmul.mubr.bf16.gmra.mrb[0].mxu0 %v701
        %v1438 = vpop.f32.mrb[0].mxu0
        %v1439 = vadd.f32 %v1390, %v1438
        %v1440 = vpop.f32.mrb[0].mxu0
        %v1441 = vpop.f32.mrb[0].mxu0
        %v1442 = vpop.f32.mrb[0].mxu0
        %1443 = vdwg.mxu0
        %s1444 = scalar_lea.vmem %s2, 32
        %v1445 = vld [vmem:[%s1444] sm:$0xf]
        %v1446 = vld [vmem:[%s1444 + $0x4] sm:$0xf]
        %v1447 = vld [vmem:[%s1444 + $0x8] sm:$0xf]
        %v1448 = vld [vmem:[%s1444 + $0xc] sm:$0xf]
        %s1449 = scalar_lea.vmem [#allocation3], 2
        %v1450 = vld [vmem:[%s1449] sm:$0x1]
        %v1452 = vlaneseq
        %v1453 = vshrl.u32 %v1452, 7
        %v1454 = vsub.s32 0, %v1453
        %v1455 = vrot.slane %v1450, %v1454
        %v1461 = vunpack.c.l.b16 %v1445
        %v1462 = vunpack.c.l.b16 %v1446
        %v1463 = vunpack.c.l.b16 %v1447
        %v1464 = vunpack.c.l.b16 %v1448
        %v1465 = vpack.c.b16 %v1462, %v1461
        %v1466 = vpack.c.b16 %v1464, %v1463
        %1469 = vmatprep.subr.bf16.mxu0 0
        %1470 = vmatpush1.bf16.msra.mxu0 %v1465
        %1471 = vmatprep.subr.bf16.mxu0 0
        %1472 = vmatpush1.bf16.msra.mxu0 %v1466
        %1473 = vmatprep.subr.bf16.mxu0 0
        %1474 = vmatpush1.bf16.msra.mxu0 0
        %1475 = vmatprep.subr.bf16.mxu0 0
        %1476 = vmatpush1.bf16.msra.mxu0 0
        %1477 = vmatprep.subr.bf16.mxu0 0
        %1478 = vmatpush1.bf16.msra.mxu0 0
        %1479 = vmatprep.subr.bf16.mxu0 0
        %1480 = vmatpush1.bf16.msra.mxu0 0
        %1481 = vmatprep.subr.bf16.mxu0 0
        %1482 = vmatpush1.bf16.msra.mxu0 0
        %1483 = vmatprep.subr.bf16.mxu0 0
        %1484 = vmatpush1.bf16.msra.mxu0 0
        %1485 = vmatprep.subr.bf16.mxu0 0
        %1486 = vmatpush1.bf16.msra.mxu0 0
        %1487 = vmatprep.subr.bf16.mxu0 0
        %1488 = vmatpush1.bf16.msra.mxu0 0
        %1489 = vmatprep.subr.bf16.mxu0 0
        %1490 = vmatpush1.bf16.msra.mxu0 0
        %1491 = vmatprep.subr.bf16.mxu0 0
        %1492 = vmatpush1.bf16.msra.mxu0 0
        %1493 = vmatprep.subr.bf16.mxu0 0
        %1494 = vmatpush1.bf16.msra.mxu0 0
        %1495 = vmatprep.subr.bf16.mxu0 0
        %1496 = vmatpush1.bf16.msra.mxu0 0
        %1497 = vmatprep.subr.bf16.mxu0 0
        %1498 = vmatpush1.bf16.msra.mxu0 0
        %1499 = vmatprep.subr.bf16.mxu0 0
        %1500 = vmatpush1.bf16.msra.mxu0 0
        %1501 = vmatprep.mubr.bf16.mxu0 0
        %1502 = vmatmul.mubr.bf16.gmra.mrb[0].mxu0 %v701
        %v1503 = vpop.f32.mrb[0].mxu0
        %v1504 = vadd.f32 %v1455, %v1503
        %v1505 = vpop.f32.mrb[0].mxu0
        %v1506 = vpop.f32.mrb[0].mxu0
        %v1507 = vpop.f32.mrb[0].mxu0
        %1508 = vdwg.mxu0
        %s1509 = scalar_lea.vmem %s4, 32
        %v1510 = vld [vmem:[%s1509] sm:$0xf]
        %v1511 = vld [vmem:[%s1509 + $0x4] sm:$0xf]
        %v1512 = vld [vmem:[%s1509 + $0x8] sm:$0xf]
        %v1513 = vld [vmem:[%s1509 + $0xc] sm:$0xf]
        %s1514 = scalar_lea.vmem [#allocation5], 2
        %v1515 = vld [vmem:[%s1514] sm:$0x1]
        %v1517 = vlaneseq
        %v1518 = vshrl.u32 %v1517, 7
        %v1519 = vsub.s32 0, %v1518
        %v1520 = vrot.slane %v1515, %v1519
        %v1526 = vunpack.c.l.b16 %v1510
        %v1527 = vunpack.c.l.b16 %v1511
        %v1528 = vunpack.c.l.b16 %v1512
        %v1529 = vunpack.c.l.b16 %v1513
        %v1530 = vpack.c.b16 %v1527, %v1526
        %v1531 = vpack.c.b16 %v1529, %v1528
        %1534 = vmatprep.subr.bf16.mxu0 0
        %1535 = vmatpush1.bf16.msra.mxu0 %v1530
        %1536 = vmatprep.subr.bf16.mxu0 0
        %1537 = vmatpush1.bf16.msra.mxu0 %v1531
        %1538 = vmatprep.subr.bf16.mxu0 0
        %1539 = vmatpush1.bf16.msra.mxu0 0
        %1540 = vmatprep.subr.bf16.mxu0 0
        %1541 = vmatpush1.bf16.msra.mxu0 0
        %1542 = vmatprep.subr.bf16.mxu0 0
        %1543 = vmatpush1.bf16.msra.mxu0 0
        %1544 = vmatprep.subr.bf16.mxu0 0
        %1545 = vmatpush1.bf16.msra.mxu0 0
        %1546 = vmatprep.subr.bf16.mxu0 0
        %1547 = vmatpush1.bf16.msra.mxu0 0
        %1548 = vmatprep.subr.bf16.mxu0 0
        %1549 = vmatpush1.bf16.msra.mxu0 0
        %1550 = vmatprep.subr.bf16.mxu0 0
        %1551 = vmatpush1.bf16.msra.mxu0 0
        %1552 = vmatprep.subr.bf16.mxu0 0
        %1553 = vmatpush1.bf16.msra.mxu0 0
        %1554 = vmatprep.subr.bf16.mxu0 0
        %1555 = vmatpush1.bf16.msra.mxu0 0
        %1556 = vmatprep.subr.bf16.mxu0 0
        %1557 = vmatpush1.bf16.msra.mxu0 0
        %1558 = vmatprep.subr.bf16.mxu0 0
        %1559 = vmatpush1.bf16.msra.mxu0 0
        %1560 = vmatprep.subr.bf16.mxu0 0
        %1561 = vmatpush1.bf16.msra.mxu0 0
        %1562 = vmatprep.subr.bf16.mxu0 0
        %1563 = vmatpush1.bf16.msra.mxu0 0
        %1564 = vmatprep.subr.bf16.mxu0 0
        %1565 = vmatpush1.bf16.msra.mxu0 0
        %1566 = vmatprep.mubr.bf16.mxu0 0
        %1567 = vmatmul.mubr.bf16.gmra.mrb[0].mxu0 %v701
        %v1568 = vpop.f32.mrb[0].mxu0
        %v1569 = vadd.f32 %v1520, %v1568
        %v1570 = vpop.f32.mrb[0].mxu0
        %v1571 = vpop.f32.mrb[0].mxu0
        %v1572 = vpop.f32.mrb[0].mxu0
        %1573 = vdwg.mxu0
        %v1574 = vpack.c.bf16 %v1504, %v1504
        %v1575 = vpack.c.bf16 %v1569, %v1569
        %v1577 = vsel %vm871, %v1574, 0
        %v1580 = vsel %vm871, %v1575, 0
        %1582 = vmatprep.subr.bf16.mxu0 0
        %1583 = vmatpush1.bf16.xpose.msra.mxu0 %v1580
        %1584 = vmatprep.subr.bf16.mxu0 0
        %1585 = vmatpush1.bf16.xpose.msra.mxu0 0
        %1586 = vmatprep.subr.bf16.mxu0 0
        %1587 = vmatpush1.bf16.xpose.msra.mxu0 0
        %1588 = vmatprep.subr.bf16.mxu0 0
        %1589 = vmatpush1.bf16.xpose.msra.mxu0 0
        %1590 = vmatprep.subr.bf16.mxu0 0
        %1591 = vmatpush1.bf16.xpose.msra.mxu0 0
        %1592 = vmatprep.subr.bf16.mxu0 0
        %1593 = vmatpush1.bf16.xpose.msra.mxu0 0
        %1594 = vmatprep.subr.bf16.mxu0 0
        %1595 = vmatpush1.bf16.xpose.msra.mxu0 0
        %1596 = vmatprep.subr.bf16.mxu0 0
        %1597 = vmatpush1.bf16.xpose.msra.mxu0 0
        %1598 = vmatprep.subr.bf16.mxu0 0
        %1599 = vmatpush1.bf16.xpose.msra.mxu0 0
        %1600 = vmatprep.subr.bf16.mxu0 0
        %1601 = vmatpush1.bf16.xpose.msra.mxu0 0
        %1602 = vmatprep.subr.bf16.mxu0 0
        %1603 = vmatpush1.bf16.xpose.msra.mxu0 0
        %1604 = vmatprep.subr.bf16.mxu0 0
        %1605 = vmatpush1.bf16.xpose.msra.mxu0 0
        %1606 = vmatprep.subr.bf16.mxu0 0
        %1607 = vmatpush1.bf16.xpose.msra.mxu0 0
        %1608 = vmatprep.subr.bf16.mxu0 0
        %1609 = vmatpush1.bf16.xpose.msra.mxu0 0
        %1610 = vmatprep.subr.bf16.mxu0 0
        %1611 = vmatpush1.bf16.xpose.msra.mxu0 0
        %1612 = vmatprep.subr.bf16.mxu0 0
        %1613 = vmatpush1.bf16.xpose.msra.mxu0 0
        %1614 = vmatprep.mubr.bf16.mxu0 0
        %1615 = vmatmul.mubr.bf16.gmra.mrb[0].mxu0 %v1577
        %v1616 = vpop.f32.mrb[0].mxu0
        %v1617 = vadd.f32 0.0, %v1616
        %v1618 = vpop.f32.mrb[0].mxu0
        %v1619 = vpop.f32.mrb[0].mxu0
        %v1620 = vpop.f32.mrb[0].mxu0
        %1621 = vdwg.mxu0
        %v1622 = vmul.f32 %v1617, 0.35355338
        %v1623 = vsel %vm871, %v1622, -inf
        %1624 = vmax.xlane.f32.xlu0 %v1623
        %v1625 = vpop.xlane.xlu0 %1624
        %v1626 = vsub.f32 %v1622, %v1625
        %v1627 = vmul.f32 %v1626, 1.442695
        %v1628 = vpow.pop %v1627
        %v1629 = vsel %vm871, %v1628, 0.0
        %1630 = vadd.xlane.f32.xlu0 %v1629
        %v1631 = vpop.xlane.xlu0 %1630
        %v1632 = vrcp.pop %v1631
        %v1633 = vmul.f32 %v1628, %v1632
        %v1634 = vpack.c.bf16 %v1633, %v1633
        %v1635 = vpack.c.bf16 %v1439, %v1439
        %v1637 = vsel %vm871, %v1634, 0
        %v1640 = vsel %vm935, %v1635, 0
        %1642 = vmatprep.subr.bf16.mxu0 0
        %1643 = vmatpush1.bf16.msra.mxu0 %v1640
        %1644 = vmatprep.subr.bf16.mxu0 0
        %1645 = vmatpush1.bf16.msra.mxu0 0
        %1646 = vmatprep.subr.bf16.mxu0 0
        %1647 = vmatpush1.bf16.msra.mxu0 0
        %1648 = vmatprep.subr.bf16.mxu0 0
        %1649 = vmatpush1.bf16.msra.mxu0 0
        %1650 = vmatprep.subr.bf16.mxu0 0
        %1651 = vmatpush1.bf16.msra.mxu0 0
        %1652 = vmatprep.subr.bf16.mxu0 0
        %1653 = vmatpush1.bf16.msra.mxu0 0
        %1654 = vmatprep.subr.bf16.mxu0 0
        %1655 = vmatpush1.bf16.msra.mxu0 0
        %1656 = vmatprep.subr.bf16.mxu0 0
        %1657 = vmatpush1.bf16.msra.mxu0 0
        %1658 = vmatprep.subr.bf16.mxu0 0
        %1659 = vmatpush1.bf16.msra.mxu0 0
        %1660 = vmatprep.subr.bf16.mxu0 0
        %1661 = vmatpush1.bf16.msra.mxu0 0
        %1662 = vmatprep.subr.bf16.mxu0 0
        %1663 = vmatpush1.bf16.msra.mxu0 0
        %1664 = vmatprep.subr.bf16.mxu0 0
        %1665 = vmatpush1.bf16.msra.mxu0 0
        %1666 = vmatprep.subr.bf16.mxu0 0
        %1667 = vmatpush1.bf16.msra.mxu0 0
        %1668 = vmatprep.subr.bf16.mxu0 0
        %1669 = vmatpush1.bf16.msra.mxu0 0
        %1670 = vmatprep.subr.bf16.mxu0 0
        %1671 = vmatpush1.bf16.msra.mxu0 0
        %1672 = vmatprep.subr.bf16.mxu0 0
        %1673 = vmatpush1.bf16.msra.mxu0 0
        %1674 = vmatprep.mubr.bf16.mxu0 0
        %1675 = vmatmul.mubr.bf16.gmra.mrb[0].mxu0 %v1637
        %v1676 = vpop.f32.mrb[0].mxu0
        %v1677 = vadd.f32 0.0, %v1676
        %v1678 = vpop.f32.mrb[0].mxu0
        %v1679 = vpop.f32.mrb[0].mxu0
        %v1680 = vpop.f32.mrb[0].mxu0
        %1681 = vdwg.mxu0
        %s1682 = scalar_lea.vmem %s8, 8
        %v1683 = vld [vmem:[%s1682] sm:$0xf]
        %v1684 = vpack.c.bf16 %v1677, %v1677
        %v1686 = vsel %vm871, %v1684, 0
        %v1689 = vsel %vm935, %v1683, 0
        %1691 = vmatprep.subr.bf16.mxu0 0
        %1692 = vmatpush1.bf16.msra.mxu0 %v1689
        %1693 = vmatprep.subr.bf16.mxu0 0
        %1694 = vmatpush1.bf16.msra.mxu0 0
        %1695 = vmatprep.subr.bf16.mxu0 0
        %1696 = vmatpush1.bf16.msra.mxu0 0
        %1697 = vmatprep.subr.bf16.mxu0 0
        %1698 = vmatpush1.bf16.msra.mxu0 0
        %1699 = vmatprep.subr.bf16.mxu0 0
        %1700 = vmatpush1.bf16.msra.mxu0 0
        %1701 = vmatprep.subr.bf16.mxu0 0
        %1702 = vmatpush1.bf16.msra.mxu0 0
        %1703 = vmatprep.subr.bf16.mxu0 0
        %1704 = vmatpush1.bf16.msra.mxu0 0
        %1705 = vmatprep.subr.bf16.mxu0 0
        %1706 = vmatpush1.bf16.msra.mxu0 0
        %1707 = vmatprep.subr.bf16.mxu0 0
        %1708 = vmatpush1.bf16.msra.mxu0 0
        %1709 = vmatprep.subr.bf16.mxu0 0
        %1710 = vmatpush1.bf16.msra.mxu0 0
        %1711 = vmatprep.subr.bf16.mxu0 0
        %1712 = vmatpush1.bf16.msra.mxu0 0
        %1713 = vmatprep.subr.bf16.mxu0 0
        %1714 = vmatpush1.bf16.msra.mxu0 0
        %1715 = vmatprep.subr.bf16.mxu0 0
        %1716 = vmatpush1.bf16.msra.mxu0 0
        %1717 = vmatprep.subr.bf16.mxu0 0
        %1718 = vmatpush1.bf16.msra.mxu0 0
        %1719 = vmatprep.subr.bf16.mxu0 0
        %1720 = vmatpush1.bf16.msra.mxu0 0
        %1721 = vmatprep.subr.bf16.mxu0 0
        %1722 = vmatpush1.bf16.msra.mxu0 0
        %1723 = vmatprep.mubr.bf16.mxu0 0
        %1724 = vmatmul.mubr.bf16.gmra.mrb[0].mxu0 %v1686
        %v1725 = vpop.f32.mrb[0].mxu0
        %v1726 = vadd.f32 0.0, %v1725
        %v1727 = vpop.f32.mrb[0].mxu0
        %v1728 = vpop.f32.mrb[0].mxu0
        %v1729 = vpop.f32.mrb[0].mxu0
        %1730 = vdwg.mxu0
        %v1731 = vadd.f32 %v1374, %v1726
        %s1732 = scalar_lea.vmem %s6, 48
        %v1733 = vld [vmem:[%s1732] sm:$0xf]
        %v1734 = vld [vmem:[%s1732 + $0x4] sm:$0xf]
        %v1735 = vld [vmem:[%s1732 + $0x8] sm:$0xf]
        %v1736 = vld [vmem:[%s1732 + $0xc] sm:$0xf]
        %s1737 = scalar_lea.vmem [#allocation7], 3
        %v1738 = vld [vmem:[%s1737] sm:$0x1]
        %v1740 = vlaneseq
        %v1741 = vshrl.u32 %v1740, 7
        %v1742 = vsub.s32 0, %v1741
        %v1743 = vrot.slane %v1738, %v1742
        %v1749 = vunpack.c.l.b16 %v1733
        %v1750 = vunpack.c.l.b16 %v1734
        %v1751 = vunpack.c.l.b16 %v1735
        %v1752 = vunpack.c.l.b16 %v1736
        %v1753 = vpack.c.b16 %v1750, %v1749
        %v1754 = vpack.c.b16 %v1752, %v1751
        %1757 = vmatprep.subr.bf16.mxu0 0
        %1758 = vmatpush1.bf16.msra.mxu0 %v1753
        %1759 = vmatprep.subr.bf16.mxu0 0
        %1760 = vmatpush1.bf16.msra.mxu0 %v1754
        %1761 = vmatprep.subr.bf16.mxu0 0
        %1762 = vmatpush1.bf16.msra.mxu0 0
        %1763 = vmatprep.subr.bf16.mxu0 0
        %1764 = vmatpush1.bf16.msra.mxu0 0
        %1765 = vmatprep.subr.bf16.mxu0 0
        %1766 = vmatpush1.bf16.msra.mxu0 0
        %1767 = vmatprep.subr.bf16.mxu0 0
        %1768 = vmatpush1.bf16.msra.mxu0 0
        %1769 = vmatprep.subr.bf16.mxu0 0
        %1770 = vmatpush1.bf16.msra.mxu0 0
        %1771 = vmatprep.subr.bf16.mxu0 0
        %1772 = vmatpush1.bf16.msra.mxu0 0
        %1773 = vmatprep.subr.bf16.mxu0 0
        %1774 = vmatpush1.bf16.msra.mxu0 0
        %1775 = vmatprep.subr.bf16.mxu0 0
        %1776 = vmatpush1.bf16.msra.mxu0 0
        %1777 = vmatprep.subr.bf16.mxu0 0
        %1778 = vmatpush1.bf16.msra.mxu0 0
        %1779 = vmatprep.subr.bf16.mxu0 0
        %1780 = vmatpush1.bf16.msra.mxu0 0
        %1781 = vmatprep.subr.bf16.mxu0 0
        %1782 = vmatpush1.bf16.msra.mxu0 0
        %1783 = vmatprep.subr.bf16.mxu0 0
        %1784 = vmatpush1.bf16.msra.mxu0 0
        %1785 = vmatprep.subr.bf16.mxu0 0
        %1786 = vmatpush1.bf16.msra.mxu0 0
        %1787 = vmatprep.subr.bf16.mxu0 0
        %1788 = vmatpush1.bf16.msra.mxu0 0
        %1789 = vmatprep.mubr.bf16.mxu0 0
        %1790 = vmatmul.mubr.bf16.gmra.mrb[0].mxu0 %v701
        %v1791 = vpop.f32.mrb[0].mxu0
        %v1792 = vadd.f32 %v1743, %v1791
        %v1793 = vpop.f32.mrb[0].mxu0
        %v1794 = vpop.f32.mrb[0].mxu0
        %v1795 = vpop.f32.mrb[0].mxu0
        %1796 = vdwg.mxu0
        %s1797 = scalar_lea.vmem %s2, 48
        %v1798 = vld [vmem:[%s1797] sm:$0xf]
        %v1799 = vld [vmem:[%s1797 + $0x4] sm:$0xf]
        %v1800 = vld [vmem:[%s1797 + $0x8] sm:$0xf]
        %v1801 = vld [vmem:[%s1797 + $0xc] sm:$0xf]
        %s1802 = scalar_lea.vmem [#allocation3], 3
        %v1803 = vld [vmem:[%s1802] sm:$0x1]
        %v1805 = vlaneseq
        %v1806 = vshrl.u32 %v1805, 7
        %v1807 = vsub.s32 0, %v1806
        %v1808 = vrot.slane %v1803, %v1807
        %v1814 = vunpack.c.l.b16 %v1798
        %v1815 = vunpack.c.l.b16 %v1799
        %v1816 = vunpack.c.l.b16 %v1800
        %v1817 = vunpack.c.l.b16 %v1801
        %v1818 = vpack.c.b16 %v1815, %v1814
        %v1819 = vpack.c.b16 %v1817, %v1816
        %1822 = vmatprep.subr.bf16.mxu0 0
        %1823 = vmatpush1.bf16.msra.mxu0 %v1818
        %1824 = vmatprep.subr.bf16.mxu0 0
        %1825 = vmatpush1.bf16.msra.mxu0 %v1819
        %1826 = vmatprep.subr.bf16.mxu0 0
        %1827 = vmatpush1.bf16.msra.mxu0 0
        %1828 = vmatprep.subr.bf16.mxu0 0
        %1829 = vmatpush1.bf16.msra.mxu0 0
        %1830 = vmatprep.subr.bf16.mxu0 0
        %1831 = vmatpush1.bf16.msra.mxu0 0
        %1832 = vmatprep.subr.bf16.mxu0 0
        %1833 = vmatpush1.bf16.msra.mxu0 0
        %1834 = vmatprep.subr.bf16.mxu0 0
        %1835 = vmatpush1.bf16.msra.mxu0 0
        %1836 = vmatprep.subr.bf16.mxu0 0
        %1837 = vmatpush1.bf16.msra.mxu0 0
        %1838 = vmatprep.subr.bf16.mxu0 0
        %1839 = vmatpush1.bf16.msra.mxu0 0
        %1840 = vmatprep.subr.bf16.mxu0 0
        %1841 = vmatpush1.bf16.msra.mxu0 0
        %1842 = vmatprep.subr.bf16.mxu0 0
        %1843 = vmatpush1.bf16.msra.mxu0 0
        %1844 = vmatprep.subr.bf16.mxu0 0
        %1845 = vmatpush1.bf16.msra.mxu0 0
        %1846 = vmatprep.subr.bf16.mxu0 0
        %1847 = vmatpush1.bf16.msra.mxu0 0
        %1848 = vmatprep.subr.bf16.mxu0 0
        %1849 = vmatpush1.bf16.msra.mxu0 0
        %1850 = vmatprep.subr.bf16.mxu0 0
        %1851 = vmatpush1.bf16.msra.mxu0 0
        %1852 = vmatprep.subr.bf16.mxu0 0
        %1853 = vmatpush1.bf16.msra.mxu0 0
        %1854 = vmatprep.mubr.bf16.mxu0 0
        %1855 = vmatmul.mubr.bf16.gmra.mrb[0].mxu0 %v701
        %v1856 = vpop.f32.mrb[0].mxu0
        %v1857 = vadd.f32 %v1808, %v1856
        %v1858 = vpop.f32.mrb[0].mxu0
        %v1859 = vpop.f32.mrb[0].mxu0
        %v1860 = vpop.f32.mrb[0].mxu0
        %1861 = vdwg.mxu0
        %s1862 = scalar_lea.vmem %s4, 48
        %v1863 = vld [vmem:[%s1862] sm:$0xf]
        %v1864 = vld [vmem:[%s1862 + $0x4] sm:$0xf]
        %v1865 = vld [vmem:[%s1862 + $0x8] sm:$0xf]
        %v1866 = vld [vmem:[%s1862 + $0xc] sm:$0xf]
        %s1867 = scalar_lea.vmem [#allocation5], 3
        %v1868 = vld [vmem:[%s1867] sm:$0x1]
        %v1870 = vlaneseq
        %v1871 = vshrl.u32 %v1870, 7
        %v1872 = vsub.s32 0, %v1871
        %v1873 = vrot.slane %v1868, %v1872
        %v1879 = vunpack.c.l.b16 %v1863
        %v1880 = vunpack.c.l.b16 %v1864
        %v1881 = vunpack.c.l.b16 %v1865
        %v1882 = vunpack.c.l.b16 %v1866
        %v1883 = vpack.c.b16 %v1880, %v1879
        %v1884 = vpack.c.b16 %v1882, %v1881
        %1887 = vmatprep.subr.bf16.mxu0 0
        %1888 = vmatpush1.bf16.msra.mxu0 %v1883
        %1889 = vmatprep.subr.bf16.mxu0 0
        %1890 = vmatpush1.bf16.msra.mxu0 %v1884
        %1891 = vmatprep.subr.bf16.mxu0 0
        %1892 = vmatpush1.bf16.msra.mxu0 0
        %1893 = vmatprep.subr.bf16.mxu0 0
        %1894 = vmatpush1.bf16.msra.mxu0 0
        %1895 = vmatprep.subr.bf16.mxu0 0
        %1896 = vmatpush1.bf16.msra.mxu0 0
        %1897 = vmatprep.subr.bf16.mxu0 0
        %1898 = vmatpush1.bf16.msra.mxu0 0
        %1899 = vmatprep.subr.bf16.mxu0 0
        %1900 = vmatpush1.bf16.msra.mxu0 0
        %1901 = vmatprep.subr.bf16.mxu0 0
        %1902 = vmatpush1.bf16.msra.mxu0 0
        %1903 = vmatprep.subr.bf16.mxu0 0
        %1904 = vmatpush1.bf16.msra.mxu0 0
        %1905 = vmatprep.subr.bf16.mxu0 0
        %1906 = vmatpush1.bf16.msra.mxu0 0
        %1907 = vmatprep.subr.bf16.mxu0 0
        %1908 = vmatpush1.bf16.msra.mxu0 0
        %1909 = vmatprep.subr.bf16.mxu0 0
        %1910 = vmatpush1.bf16.msra.mxu0 0
        %1911 = vmatprep.subr.bf16.mxu0 0
        %1912 = vmatpush1.bf16.msra.mxu0 0
        %1913 = vmatprep.subr.bf16.mxu0 0
        %1914 = vmatpush1.bf16.msra.mxu0 0
        %1915 = vmatprep.subr.bf16.mxu0 0
        %1916 = vmatpush1.bf16.msra.mxu0 0
        %1917 = vmatprep.subr.bf16.mxu0 0
        %1918 = vmatpush1.bf16.msra.mxu0 0
        %1919 = vmatprep.mubr.bf16.mxu0 0
        %1920 = vmatmul.mubr.bf16.gmra.mrb[0].mxu0 %v701
        %v1921 = vpop.f32.mrb[0].mxu0
        %v1922 = vadd.f32 %v1873, %v1921
        %v1923 = vpop.f32.mrb[0].mxu0
        %v1924 = vpop.f32.mrb[0].mxu0
        %v1925 = vpop.f32.mrb[0].mxu0
        %1926 = vdwg.mxu0
        %v1927 = vpack.c.bf16 %v1857, %v1857
        %v1928 = vpack.c.bf16 %v1922, %v1922
        %v1930 = vsel %vm871, %v1927, 0
        %v1933 = vsel %vm871, %v1928, 0
        %1935 = vmatprep.subr.bf16.mxu0 0
        %1936 = vmatpush1.bf16.xpose.msra.mxu0 %v1933
        %1937 = vmatprep.subr.bf16.mxu0 0
        %1938 = vmatpush1.bf16.xpose.msra.mxu0 0
        %1939 = vmatprep.subr.bf16.mxu0 0
        %1940 = vmatpush1.bf16.xpose.msra.mxu0 0
        %1941 = vmatprep.subr.bf16.mxu0 0
        %1942 = vmatpush1.bf16.xpose.msra.mxu0 0
        %1943 = vmatprep.subr.bf16.mxu0 0
        %1944 = vmatpush1.bf16.xpose.msra.mxu0 0
        %1945 = vmatprep.subr.bf16.mxu0 0
        %1946 = vmatpush1.bf16.xpose.msra.mxu0 0
        %1947 = vmatprep.subr.bf16.mxu0 0
        %1948 = vmatpush1.bf16.xpose.msra.mxu0 0
        %1949 = vmatprep.subr.bf16.mxu0 0
        %1950 = vmatpush1.bf16.xpose.msra.mxu0 0
        %1951 = vmatprep.subr.bf16.mxu0 0
        %1952 = vmatpush1.bf16.xpose.msra.mxu0 0
        %1953 = vmatprep.subr.bf16.mxu0 0
        %1954 = vmatpush1.bf16.xpose.msra.mxu0 0
        %1955 = vmatprep.subr.bf16.mxu0 0
        %1956 = vmatpush1.bf16.xpose.msra.mxu0 0
        %1957 = vmatprep.subr.bf16.mxu0 0
        %1958 = vmatpush1.bf16.xpose.msra.mxu0 0
        %1959 = vmatprep.subr.bf16.mxu0 0
        %1960 = vmatpush1.bf16.xpose.msra.mxu0 0
        %1961 = vmatprep.subr.bf16.mxu0 0
        %1962 = vmatpush1.bf16.xpose.msra.mxu0 0
        %1963 = vmatprep.subr.bf16.mxu0 0
        %1964 = vmatpush1.bf16.xpose.msra.mxu0 0
        %1965 = vmatprep.subr.bf16.mxu0 0
        %1966 = vmatpush1.bf16.xpose.msra.mxu0 0
        %1967 = vmatprep.mubr.bf16.mxu0 0
        %1968 = vmatmul.mubr.bf16.gmra.mrb[0].mxu0 %v1930
        %v1969 = vpop.f32.mrb[0].mxu0
        %v1970 = vadd.f32 0.0, %v1969
        %v1971 = vpop.f32.mrb[0].mxu0
        %v1972 = vpop.f32.mrb[0].mxu0
        %v1973 = vpop.f32.mrb[0].mxu0
        %1974 = vdwg.mxu0
        %v1975 = vmul.f32 %v1970, 0.35355338
        %v1976 = vsel %vm871, %v1975, -inf
        %1977 = vmax.xlane.f32.xlu0 %v1976
        %v1978 = vpop.xlane.xlu0 %1977
        %v1979 = vsub.f32 %v1975, %v1978
        %v1980 = vmul.f32 %v1979, 1.442695
        %v1981 = vpow.pop %v1980
        %v1982 = vsel %vm871, %v1981, 0.0
        %1983 = vadd.xlane.f32.xlu0 %v1982
        %v1984 = vpop.xlane.xlu0 %1983
        %v1985 = vrcp.pop %v1984
        %v1986 = vmul.f32 %v1981, %v1985
        %v1987 = vpack.c.bf16 %v1986, %v1986
        %v1988 = vpack.c.bf16 %v1792, %v1792
        %v1990 = vsel %vm871, %v1987, 0
        %v1993 = vsel %vm935, %v1988, 0
        %1995 = vmatprep.subr.bf16.mxu0 0
        %1996 = vmatpush1.bf16.msra.mxu0 %v1993
        %1997 = vmatprep.subr.bf16.mxu0 0
        %1998 = vmatpush1.bf16.msra.mxu0 0
        %1999 = vmatprep.subr.bf16.mxu0 0
        %2000 = vmatpush1.bf16.msra.mxu0 0
        %2001 = vmatprep.subr.bf16.mxu0 0
        %2002 = vmatpush1.bf16.msra.mxu0 0
        %2003 = vmatprep.subr.bf16.mxu0 0
        %2004 = vmatpush1.bf16.msra.mxu0 0
        %2005 = vmatprep.subr.bf16.mxu0 0
        %2006 = vmatpush1.bf16.msra.mxu0 0
        %2007 = vmatprep.subr.bf16.mxu0 0
        %2008 = vmatpush1.bf16.msra.mxu0 0
        %2009 = vmatprep.subr.bf16.mxu0 0
        %2010 = vmatpush1.bf16.msra.mxu0 0
        %2011 = vmatprep.subr.bf16.mxu0 0
        %2012 = vmatpush1.bf16.msra.mxu0 0
        %2013 = vmatprep.subr.bf16.mxu0 0
        %2014 = vmatpush1.bf16.msra.mxu0 0
        %2015 = vmatprep.subr.bf16.mxu0 0
        %2016 = vmatpush1.bf16.msra.mxu0 0
        %2017 = vmatprep.subr.bf16.mxu0 0
        %2018 = vmatpush1.bf16.msra.mxu0 0
        %2019 = vmatprep.subr.bf16.mxu0 0
        %2020 = vmatpush1.bf16.msra.mxu0 0
        %2021 = vmatprep.subr.bf16.mxu0 0
        %2022 = vmatpush1.bf16.msra.mxu0 0
        %2023 = vmatprep.subr.bf16.mxu0 0
        %2024 = vmatpush1.bf16.msra.mxu0 0
        %2025 = vmatprep.subr.bf16.mxu0 0
        %2026 = vmatpush1.bf16.msra.mxu0 0
        %2027 = vmatprep.mubr.bf16.mxu0 0
        %2028 = vmatmul.mubr.bf16.gmra.mrb[0].mxu0 %v1990
        %v2029 = vpop.f32.mrb[0].mxu0
        %v2030 = vadd.f32 0.0, %v2029
        %v2031 = vpop.f32.mrb[0].mxu0
        %v2032 = vpop.f32.mrb[0].mxu0
        %v2033 = vpop.f32.mrb[0].mxu0
        %2034 = vdwg.mxu0
        %s2035 = scalar_lea.vmem %s8, 12
        %v2036 = vld [vmem:[%s2035] sm:$0xf]
        %v2037 = vpack.c.bf16 %v2030, %v2030
        %v2039 = vsel %vm871, %v2037, 0
        %v2042 = vsel %vm935, %v2036, 0
        %2044 = vmatprep.subr.bf16.mxu0 0
        %2045 = vmatpush1.bf16.msra.mxu0 %v2042
        %2046 = vmatprep.subr.bf16.mxu0 0
        %2047 = vmatpush1.bf16.msra.mxu0 0
        %2048 = vmatprep.subr.bf16.mxu0 0
        %2049 = vmatpush1.bf16.msra.mxu0 0
        %2050 = vmatprep.subr.bf16.mxu0 0
        %2051 = vmatpush1.bf16.msra.mxu0 0
        %2052 = vmatprep.subr.bf16.mxu0 0
        %2053 = vmatpush1.bf16.msra.mxu0 0
        %2054 = vmatprep.subr.bf16.mxu0 0
        %2055 = vmatpush1.bf16.msra.mxu0 0
        %2056 = vmatprep.subr.bf16.mxu0 0
        %2057 = vmatpush1.bf16.msra.mxu0 0
        %2058 = vmatprep.subr.bf16.mxu0 0
        %2059 = vmatpush1.bf16.msra.mxu0 0
        %2060 = vmatprep.subr.bf16.mxu0 0
        %2061 = vmatpush1.bf16.msra.mxu0 0
        %2062 = vmatprep.subr.bf16.mxu0 0
        %2063 = vmatpush1.bf16.msra.mxu0 0
        %2064 = vmatprep.subr.bf16.mxu0 0
        %2065 = vmatpush1.bf16.msra.mxu0 0
        %2066 = vmatprep.subr.bf16.mxu0 0
        %2067 = vmatpush1.bf16.msra.mxu0 0
        %2068 = vmatprep.subr.bf16.mxu0 0
        %2069 = vmatpush1.bf16.msra.mxu0 0
        %2070 = vmatprep.subr.bf16.mxu0 0
        %2071 = vmatpush1.bf16.msra.mxu0 0
        %2072 = vmatprep.subr.bf16.mxu0 0
        %2073 = vmatpush1.bf16.msra.mxu0 0
        %2074 = vmatprep.subr.bf16.mxu0 0
        %2075 = vmatpush1.bf16.msra.mxu0 0
        %2076 = vmatprep.mubr.bf16.mxu0 0
        %2077 = vmatmul.mubr.bf16.gmra.mrb[0].mxu0 %v2039
        %v2078 = vpop.f32.mrb[0].mxu0
        %v2079 = vadd.f32 0.0, %v2078
        %v2080 = vpop.f32.mrb[0].mxu0
        %v2081 = vpop.f32.mrb[0].mxu0
        %v2082 = vpop.f32.mrb[0].mxu0
        %2083 = vdwg.mxu0
        %v2084 = vadd.f32 %v1731, %v2079
        %v2085 = vld [vmem:[#allocation8] sm:$0x1]
        %v2087 = vlaneseq
        %v2088 = vshrl.u32 %v2087, 7
        %v2089 = vsub.s32 0, %v2088
        %v2090 = vrot.slane %v2085, %v2089
        %v2092 = vadd.f32 %v2084, %v2090
        %v2093 = vadd.f32 %v673, %v2092
        %v2094 = vsel %vm699, %v2093, 0.0
        %2095 = vadd.xlane.f32.xlu0 %v2094
        %v2096 = vpop.xlane.xlu0 %2095
        %v2097 = vrcp.pop 32.0
        %v2098 = vmul.f32 %v2096, %v2097
        %v2099 = vsub.f32 %v2093, %v2098
        %v2100 = vmul.f32 %v2099, %v2099
        %v2101 = vsel %vm699, %v2100, 0.0
        %2102 = vadd.xlane.f32.xlu0 %v2101
        %v2103 = vpop.xlane.xlu0 %2102
        %v2104 = vmul.f32 %v2103, %v2097
        %v2105 = vadd.f32 %v2104, 1e-05
        %v2106 = vrsqrt.pop %v2105
        %v2107 = vmul.f32 %v2099, %v2106
        %v2108 = vld [vmem:[%s14] sm:$0x1]
        %v2110 = vlaneseq
        %v2111 = vshrl.u32 %v2110, 7
        %v2112 = vsub.s32 0, %v2111
        %v2113 = vrot.slane %v2108, %v2112
        %v2115 = vmul.f32 %v2107, %v2113
        %v2116 = vld [vmem:[%s15] sm:$0x1]
        %v2118 = vlaneseq
        %v2119 = vshrl.u32 %v2118, 7
        %v2120 = vsub.s32 0, %v2119
        %v2121 = vrot.slane %v2116, %v2120
        %v2123 = vadd.f32 %v2115, %v2121
        %s2124 = scalar_lea.vmem %s6, 128
        %v2125 = vld [vmem:[%s2124] sm:$0xf]
        %v2126 = vld [vmem:[%s2124 + $0x4] sm:$0xf]
        %v2127 = vld [vmem:[%s2124 + $0x8] sm:$0xf]
        %v2128 = vld [vmem:[%s2124 + $0xc] sm:$0xf]
        %v2129 = vpack.c.bf16 %v674, %v674
        %s2130 = scalar_lea.vmem [#allocation7], 8
        %v2131 = vld [vmem:[%s2130] sm:$0x1]
        %v2136 = vunpack.c.l.b16 %v2125
        %v2137 = vunpack.c.l.b16 %v2126
        %v2138 = vunpack.c.l.b16 %v2127
        %v2139 = vunpack.c.l.b16 %v2128
        %v2140 = vpack.c.b16 %v2137, %v2136
        %v2141 = vpack.c.b16 %v2139, %v2138
        %v2145 = vsel %vm699, %v2129, 0
        %2147 = vmatprep.subr.bf16.mxu0 0
        %2148 = vmatpush1.bf16.msra.mxu0 %v2140
        %2149 = vmatprep.subr.bf16.mxu0 0
        %2150 = vmatpush1.bf16.msra.mxu0 %v2141
        %2151 = vmatprep.subr.bf16.mxu0 0
        %2152 = vmatpush1.bf16.msra.mxu0 0
        %2153 = vmatprep.subr.bf16.mxu0 0
        %2154 = vmatpush1.bf16.msra.mxu0 0
        %2155 = vmatprep.subr.bf16.mxu0 0
        %2156 = vmatpush1.bf16.msra.mxu0 0
        %2157 = vmatprep.subr.bf16.mxu0 0
        %2158 = vmatpush1.bf16.msra.mxu0 0
        %2159 = vmatprep.subr.bf16.mxu0 0
        %2160 = vmatpush1.bf16.msra.mxu0 0
        %2161 = vmatprep.subr.bf16.mxu0 0
        %2162 = vmatpush1.bf16.msra.mxu0 0
        %2163 = vmatprep.subr.bf16.mxu0 0
        %2164 = vmatpush1.bf16.msra.mxu0 0
        %2165 = vmatprep.subr.bf16.mxu0 0
        %2166 = vmatpush1.bf16.msra.mxu0 0
        %2167 = vmatprep.subr.bf16.mxu0 0
        %2168 = vmatpush1.bf16.msra.mxu0 0
        %2169 = vmatprep.subr.bf16.mxu0 0
        %2170 = vmatpush1.bf16.msra.mxu0 0
        %2171 = vmatprep.subr.bf16.mxu0 0
        %2172 = vmatpush1.bf16.msra.mxu0 0
        %2173 = vmatprep.subr.bf16.mxu0 0
        %2174 = vmatpush1.bf16.msra.mxu0 0
        %2175 = vmatprep.subr.bf16.mxu0 0
        %2176 = vmatpush1.bf16.msra.mxu0 0
        %2177 = vmatprep.subr.bf16.mxu0 0
        %2178 = vmatpush1.bf16.msra.mxu0 0
        %2179 = vmatprep.mubr.bf16.mxu0 0
        %2180 = vmatmul.mubr.bf16.gmra.mrb[0].mxu0 %v2145
        %v2181 = vpop.f32.mrb[0].mxu0
        %v2182 = vadd.f32 %v2131, %v2181
        %v2183 = vpop.f32.mrb[0].mxu0
        %v2184 = vpop.f32.mrb[0].mxu0
        %v2185 = vpop.f32.mrb[0].mxu0
        %2186 = vdwg.mxu0
        %v2187 = vlaneseq
        %v2188 = vshrl.u32 %v2187, 7
        %v2189 = vsub.s32 0, %v2188
        %v2190 = vrot.slane %v2182, %v2189
        %s2191 = scalar_lea.vmem %s8, 32
        %v2192 = vld [vmem:[%s2191] sm:$0xf]
        %v2193 = vpack.c.bf16 %v2190, %v2190
        %s2194 = scalar_lea.vmem %s6, 144
        %v2195 = vld [vmem:[%s2194] sm:$0xf]
        %v2196 = vld [vmem:[%s2194 + $0x4] sm:$0xf]
        %v2197 = vld [vmem:[%s2194 + $0x8] sm:$0xf]
        %v2198 = vld [vmem:[%s2194 + $0xc] sm:$0xf]
        %s2199 = scalar_lea.vmem [#allocation7], 9
        %v2200 = vld [vmem:[%s2199] sm:$0x1]
        %v2205 = vunpack.c.l.b16 %v2195
        %v2206 = vunpack.c.l.b16 %v2196
        %v2207 = vunpack.c.l.b16 %v2197
        %v2208 = vunpack.c.l.b16 %v2198
        %v2209 = vpack.c.b16 %v2206, %v2205
        %v2210 = vpack.c.b16 %v2208, %v2207
        %2213 = vmatprep.subr.bf16.mxu0 0
        %2214 = vmatpush1.bf16.msra.mxu0 %v2209
        %2215 = vmatprep.subr.bf16.mxu0 0
        %2216 = vmatpush1.bf16.msra.mxu0 %v2210
        %2217 = vmatprep.subr.bf16.mxu0 0
        %2218 = vmatpush1.bf16.msra.mxu0 0
        %2219 = vmatprep.subr.bf16.mxu0 0
        %2220 = vmatpush1.bf16.msra.mxu0 0
        %2221 = vmatprep.subr.bf16.mxu0 0
        %2222 = vmatpush1.bf16.msra.mxu0 0
        %2223 = vmatprep.subr.bf16.mxu0 0
        %2224 = vmatpush1.bf16.msra.mxu0 0
        %2225 = vmatprep.subr.bf16.mxu0 0
        %2226 = vmatpush1.bf16.msra.mxu0 0
        %2227 = vmatprep.subr.bf16.mxu0 0
        %2228 = vmatpush1.bf16.msra.mxu0 0
        %2229 = vmatprep.subr.bf16.mxu0 0
        %2230 = vmatpush1.bf16.msra.mxu0 0
        %2231 = vmatprep.subr.bf16.mxu0 0
        %2232 = vmatpush1.bf16.msra.mxu0 0
        %2233 = vmatprep.subr.bf16.mxu0 0
        %2234 = vmatpush1.bf16.msra.mxu0 0
        %2235 = vmatprep.subr.bf16.mxu0 0
        %2236 = vmatpush1.bf16.msra.mxu0 0
        %2237 = vmatprep.subr.bf16.mxu0 0
        %2238 = vmatpush1.bf16.msra.mxu0 0
        %2239 = vmatprep.subr.bf16.mxu0 0
        %2240 = vmatpush1.bf16.msra.mxu0 0
        %2241 = vmatprep.subr.bf16.mxu0 0
        %2242 = vmatpush1.bf16.msra.mxu0 0
        %2243 = vmatprep.subr.bf16.mxu0 0
        %2244 = vmatpush1.bf16.msra.mxu0 0
        %2245 = vmatprep.mubr.bf16.mxu0 0
        %2246 = vmatmul.mubr.bf16.gmra.mrb[0].mxu0 %v2145
        %v2247 = vpop.f32.mrb[0].mxu0
        %v2248 = vadd.f32 %v2200, %v2247
        %v2249 = vpop.f32.mrb[0].mxu0
        %v2250 = vpop.f32.mrb[0].mxu0
        %v2251 = vpop.f32.mrb[0].mxu0
        %2252 = vdwg.mxu0
        %v2253 = vlaneseq
        %v2254 = vshrl.u32 %v2253, 7
        %v2255 = vsub.s32 0, %v2254
        %v2256 = vrot.slane %v2248, %v2255
        %s2257 = scalar_lea.vmem %s8, 36
        %v2258 = vld [vmem:[%s2257] sm:$0xf]
        %v2259 = vpack.c.bf16 %v2256, %v2256
        %v2261 = vsel %vm871, %v2259, 0
        %v2264 = vsel %vm935, %v2258, 0
        %2266 = vmatprep.subr.bf16.mxu0 0
        %2267 = vmatpush1.bf16.msra.mxu0 %v2264
        %2268 = vmatprep.subr.bf16.mxu0 0
        %2269 = vmatpush1.bf16.msra.mxu0 0
        %2270 = vmatprep.subr.bf16.mxu0 0
        %2271 = vmatpush1.bf16.msra.mxu0 0
        %2272 = vmatprep.subr.bf16.mxu0 0
        %2273 = vmatpush1.bf16.msra.mxu0 0
        %2274 = vmatprep.subr.bf16.mxu0 0
        %2275 = vmatpush1.bf16.msra.mxu0 0
        %2276 = vmatprep.subr.bf16.mxu0 0
        %2277 = vmatpush1.bf16.msra.mxu0 0
        %2278 = vmatprep.subr.bf16.mxu0 0
        %2279 = vmatpush1.bf16.msra.mxu0 0
        %2280 = vmatprep.subr.bf16.mxu0 0
        %2281 = vmatpush1.bf16.msra.mxu0 0
        %2282 = vmatprep.subr.bf16.mxu0 0
        %2283 = vmatpush1.bf16.msra.mxu0 0
        %2284 = vmatprep.subr.bf16.mxu0 0
        %2285 = vmatpush1.bf16.msra.mxu0 0
        %2286 = vmatprep.subr.bf16.mxu0 0
        %2287 = vmatpush1.bf16.msra.mxu0 0
        %2288 = vmatprep.subr.bf16.mxu0 0
        %2289 = vmatpush1.bf16.msra.mxu0 0
        %2290 = vmatprep.subr.bf16.mxu0 0
        %2291 = vmatpush1.bf16.msra.mxu0 0
        %2292 = vmatprep.subr.bf16.mxu0 0
        %2293 = vmatpush1.bf16.msra.mxu0 0
        %2294 = vmatprep.subr.bf16.mxu0 0
        %2295 = vmatpush1.bf16.msra.mxu0 0
        %2296 = vmatprep.subr.bf16.mxu0 0
        %2297 = vmatpush1.bf16.msra.mxu0 0
        %2298 = vmatprep.mubr.bf16.mxu0 0
        %2299 = vmatmul.mubr.bf16.gmra.mrb[0].mxu0 %v2261
        %v2300 = vpop.f32.mrb[0].mxu0
        %v2301 = vadd.f32 0.0, %v2300
        %v2302 = vpop.f32.mrb[0].mxu0
        %v2303 = vpop.f32.mrb[0].mxu0
        %v2304 = vpop.f32.mrb[0].mxu0
        %2305 = vdwg.mxu0
        %v2307 = vsel %vm871, %v2193, 0
        %v2310 = vsel %vm935, %v2192, 0
        %2312 = vmatprep.subr.bf16.mxu0 0
        %2313 = vmatpush1.bf16.msra.mxu0 %v2310
        %2314 = vmatprep.subr.bf16.mxu0 0
        %2315 = vmatpush1.bf16.msra.mxu0 0
        %2316 = vmatprep.subr.bf16.mxu0 0
        %2317 = vmatpush1.bf16.msra.mxu0 0
        %2318 = vmatprep.subr.bf16.mxu0 0
        %2319 = vmatpush1.bf16.msra.mxu0 0
        %2320 = vmatprep.subr.bf16.mxu0 0
        %2321 = vmatpush1.bf16.msra.mxu0 0
        %2322 = vmatprep.subr.bf16.mxu0 0
        %2323 = vmatpush1.bf16.msra.mxu0 0
        %2324 = vmatprep.subr.bf16.mxu0 0
        %2325 = vmatpush1.bf16.msra.mxu0 0
        %2326 = vmatprep.subr.bf16.mxu0 0
        %2327 = vmatpush1.bf16.msra.mxu0 0
        %2328 = vmatprep.subr.bf16.mxu0 0
        %2329 = vmatpush1.bf16.msra.mxu0 0
        %2330 = vmatprep.subr.bf16.mxu0 0
        %2331 = vmatpush1.bf16.msra.mxu0 0
        %2332 = vmatprep.subr.bf16.mxu0 0
        %2333 = vmatpush1.bf16.msra.mxu0 0
        %2334 = vmatprep.subr.bf16.mxu0 0
        %2335 = vmatpush1.bf16.msra.mxu0 0
        %2336 = vmatprep.subr.bf16.mxu0 0
        %2337 = vmatpush1.bf16.msra.mxu0 0
        %2338 = vmatprep.subr.bf16.mxu0 0
        %2339 = vmatpush1.bf16.msra.mxu0 0
        %2340 = vmatprep.subr.bf16.mxu0 0
        %2341 = vmatpush1.bf16.msra.mxu0 0
        %2342 = vmatprep.subr.bf16.mxu0 0
        %2343 = vmatpush1.bf16.msra.mxu0 0
        %2344 = vmatprep.mubr.bf16.mxu0 0
        %2345 = vmatmul.mubr.bf16.gmra.mrb[0].mxu0 %v2307
        %v2346 = vpop.f32.mrb[0].mxu0
        %v2347 = vadd.f32 %v2301, %v2346
        %v2348 = vpop.f32.mrb[0].mxu0
        %v2349 = vpop.f32.mrb[0].mxu0
        %v2350 = vpop.f32.mrb[0].mxu0
        %2351 = vdwg.mxu0
        %s2352 = scalar_lea.vmem %s6, 160
        %v2353 = vld [vmem:[%s2352] sm:$0xf]
        %v2354 = vld [vmem:[%s2352 + $0x4] sm:$0xf]
        %v2355 = vld [vmem:[%s2352 + $0x8] sm:$0xf]
        %v2356 = vld [vmem:[%s2352 + $0xc] sm:$0xf]
        %s2357 = scalar_lea.vmem [#allocation7], 10
        %v2358 = vld [vmem:[%s2357] sm:$0x1]
        %v2363 = vunpack.c.l.b16 %v2353
        %v2364 = vunpack.c.l.b16 %v2354
        %v2365 = vunpack.c.l.b16 %v2355
        %v2366 = vunpack.c.l.b16 %v2356
        %v2367 = vpack.c.b16 %v2364, %v2363
        %v2368 = vpack.c.b16 %v2366, %v2365
        %2371 = vmatprep.subr.bf16.mxu0 0
        %2372 = vmatpush1.bf16.msra.mxu0 %v2367
        %2373 = vmatprep.subr.bf16.mxu0 0
        %2374 = vmatpush1.bf16.msra.mxu0 %v2368
        %2375 = vmatprep.subr.bf16.mxu0 0
        %2376 = vmatpush1.bf16.msra.mxu0 0
        %2377 = vmatprep.subr.bf16.mxu0 0
        %2378 = vmatpush1.bf16.msra.mxu0 0
        %2379 = vmatprep.subr.bf16.mxu0 0
        %2380 = vmatpush1.bf16.msra.mxu0 0
        %2381 = vmatprep.subr.bf16.mxu0 0
        %2382 = vmatpush1.bf16.msra.mxu0 0
        %2383 = vmatprep.subr.bf16.mxu0 0
        %2384 = vmatpush1.bf16.msra.mxu0 0
        %2385 = vmatprep.subr.bf16.mxu0 0
        %2386 = vmatpush1.bf16.msra.mxu0 0
        %2387 = vmatprep.subr.bf16.mxu0 0
        %2388 = vmatpush1.bf16.msra.mxu0 0
        %2389 = vmatprep.subr.bf16.mxu0 0
        %2390 = vmatpush1.bf16.msra.mxu0 0
        %2391 = vmatprep.subr.bf16.mxu0 0
        %2392 = vmatpush1.bf16.msra.mxu0 0
        %2393 = vmatprep.subr.bf16.mxu0 0
        %2394 = vmatpush1.bf16.msra.mxu0 0
        %2395 = vmatprep.subr.bf16.mxu0 0
        %2396 = vmatpush1.bf16.msra.mxu0 0
        %2397 = vmatprep.subr.bf16.mxu0 0
        %2398 = vmatpush1.bf16.msra.mxu0 0
        %2399 = vmatprep.subr.bf16.mxu0 0
        %2400 = vmatpush1.bf16.msra.mxu0 0
        %2401 = vmatprep.subr.bf16.mxu0 0
        %2402 = vmatpush1.bf16.msra.mxu0 0
        %2403 = vmatprep.mubr.bf16.mxu0 0
        %2404 = vmatmul.mubr.bf16.gmra.mrb[0].mxu0 %v2145
        %v2405 = vpop.f32.mrb[0].mxu0
        %v2406 = vadd.f32 %v2358, %v2405
        %v2407 = vpop.f32.mrb[0].mxu0
        %v2408 = vpop.f32.mrb[0].mxu0
        %v2409 = vpop.f32.mrb[0].mxu0
        %2410 = vdwg.mxu0
        %v2411 = vlaneseq
        %v2412 = vshrl.u32 %v2411, 7
        %v2413 = vsub.s32 0, %v2412
        %v2414 = vrot.slane %v2406, %v2413
        %s2415 = scalar_lea.vmem %s8, 40
        %v2416 = vld [vmem:[%s2415] sm:$0xf]
        %v2417 = vpack.c.bf16 %v2414, %v2414
        %v2419 = vsel %vm871, %v2417, 0
        %v2422 = vsel %vm935, %v2416, 0
        %2424 = vmatprep.subr.bf16.mxu0 0
        %2425 = vmatpush1.bf16.msra.mxu0 %v2422
        %2426 = vmatprep.subr.bf16.mxu0 0
        %2427 = vmatpush1.bf16.msra.mxu0 0
        %2428 = vmatprep.subr.bf16.mxu0 0
        %2429 = vmatpush1.bf16.msra.mxu0 0
        %2430 = vmatprep.subr.bf16.mxu0 0
        %2431 = vmatpush1.bf16.msra.mxu0 0
        %2432 = vmatprep.subr.bf16.mxu0 0
        %2433 = vmatpush1.bf16.msra.mxu0 0
        %2434 = vmatprep.subr.bf16.mxu0 0
        %2435 = vmatpush1.bf16.msra.mxu0 0
        %2436 = vmatprep.subr.bf16.mxu0 0
        %2437 = vmatpush1.bf16.msra.mxu0 0
        %2438 = vmatprep.subr.bf16.mxu0 0
        %2439 = vmatpush1.bf16.msra.mxu0 0
        %2440 = vmatprep.subr.bf16.mxu0 0
        %2441 = vmatpush1.bf16.msra.mxu0 0
        %2442 = vmatprep.subr.bf16.mxu0 0
        %2443 = vmatpush1.bf16.msra.mxu0 0
        %2444 = vmatprep.subr.bf16.mxu0 0
        %2445 = vmatpush1.bf16.msra.mxu0 0
        %2446 = vmatprep.subr.bf16.mxu0 0
        %2447 = vmatpush1.bf16.msra.mxu0 0
        %2448 = vmatprep.subr.bf16.mxu0 0
        %2449 = vmatpush1.bf16.msra.mxu0 0
        %2450 = vmatprep.subr.bf16.mxu0 0
        %2451 = vmatpush1.bf16.msra.mxu0 0
        %2452 = vmatprep.subr.bf16.mxu0 0
        %2453 = vmatpush1.bf16.msra.mxu0 0
        %2454 = vmatprep.subr.bf16.mxu0 0
        %2455 = vmatpush1.bf16.msra.mxu0 0
        %2456 = vmatprep.mubr.bf16.mxu0 0
        %2457 = vmatmul.mubr.bf16.gmra.mrb[0].mxu0 %v2419
        %v2458 = vpop.f32.mrb[0].mxu0
        %v2459 = vadd.f32 0.0, %v2458
        %v2460 = vpop.f32.mrb[0].mxu0
        %v2461 = vpop.f32.mrb[0].mxu0
        %v2462 = vpop.f32.mrb[0].mxu0
        %2463 = vdwg.mxu0
        %v2464 = vadd.f32 %v2347, %v2459
        %s2465 = scalar_lea.vmem %s6, 176
        %v2466 = vld [vmem:[%s2465] sm:$0xf]
        %v2467 = vld [vmem:[%s2465 + $0x4] sm:$0xf]
        %v2468 = vld [vmem:[%s2465 + $0x8] sm:$0xf]
        %v2469 = vld [vmem:[%s2465 + $0xc] sm:$0xf]
        %s2470 = scalar_lea.vmem [#allocation7], 11
        %v2471 = vld [vmem:[%s2470] sm:$0x1]
        %v2476 = vunpack.c.l.b16 %v2466
        %v2477 = vunpack.c.l.b16 %v2467
        %v2478 = vunpack.c.l.b16 %v2468
        %v2479 = vunpack.c.l.b16 %v2469
        %v2480 = vpack.c.b16 %v2477, %v2476
        %v2481 = vpack.c.b16 %v2479, %v2478
        %2484 = vmatprep.subr.bf16.mxu0 0
        %2485 = vmatpush1.bf16.msra.mxu0 %v2480
        %2486 = vmatprep.subr.bf16.mxu0 0
        %2487 = vmatpush1.bf16.msra.mxu0 %v2481
        %2488 = vmatprep.subr.bf16.mxu0 0
        %2489 = vmatpush1.bf16.msra.mxu0 0
        %2490 = vmatprep.subr.bf16.mxu0 0
        %2491 = vmatpush1.bf16.msra.mxu0 0
        %2492 = vmatprep.subr.bf16.mxu0 0
        %2493 = vmatpush1.bf16.msra.mxu0 0
        %2494 = vmatprep.subr.bf16.mxu0 0
        %2495 = vmatpush1.bf16.msra.mxu0 0
        %2496 = vmatprep.subr.bf16.mxu0 0
        %2497 = vmatpush1.bf16.msra.mxu0 0
        %2498 = vmatprep.subr.bf16.mxu0 0
        %2499 = vmatpush1.bf16.msra.mxu0 0
        %2500 = vmatprep.subr.bf16.mxu0 0
        %2501 = vmatpush1.bf16.msra.mxu0 0
        %2502 = vmatprep.subr.bf16.mxu0 0
        %2503 = vmatpush1.bf16.msra.mxu0 0
        %2504 = vmatprep.subr.bf16.mxu0 0
        %2505 = vmatpush1.bf16.msra.mxu0 0
        %2506 = vmatprep.subr.bf16.mxu0 0
        %2507 = vmatpush1.bf16.msra.mxu0 0
        %2508 = vmatprep.subr.bf16.mxu0 0
        %2509 = vmatpush1.bf16.msra.mxu0 0
        %2510 = vmatprep.subr.bf16.mxu0 0
        %2511 = vmatpush1.bf16.msra.mxu0 0
        %2512 = vmatprep.subr.bf16.mxu0 0
        %2513 = vmatpush1.bf16.msra.mxu0 0
        %2514 = vmatprep.subr.bf16.mxu0 0
        %2515 = vmatpush1.bf16.msra.mxu0 0
        %2516 = vmatprep.mubr.bf16.mxu0 0
        %2517 = vmatmul.mubr.bf16.gmra.mrb[0].mxu0 %v2145
        %v2518 = vpop.f32.mrb[0].mxu0
        %v2519 = vadd.f32 %v2471, %v2518
        %v2520 = vpop.f32.mrb[0].mxu0
        %v2521 = vpop.f32.mrb[0].mxu0
        %v2522 = vpop.f32.mrb[0].mxu0
        %2523 = vdwg.mxu0
        %v2524 = vlaneseq
        %v2525 = vshrl.u32 %v2524, 7
        %v2526 = vsub.s32 0, %v2525
        %v2527 = vrot.slane %v2519, %v2526
        %s2528 = scalar_lea.vmem %s8, 44
        %v2529 = vld [vmem:[%s2528] sm:$0xf]
        %v2530 = vpack.c.bf16 %v2527, %v2527
        %v2532 = vsel %vm871, %v2530, 0
        %v2535 = vsel %vm935, %v2529, 0
        %2537 = vmatprep.subr.bf16.mxu0 0
        %2538 = vmatpush1.bf16.msra.mxu0 %v2535
        %2539 = vmatprep.subr.bf16.mxu0 0
        %2540 = vmatpush1.bf16.msra.mxu0 0
        %2541 = vmatprep.subr.bf16.mxu0 0
        %2542 = vmatpush1.bf16.msra.mxu0 0
        %2543 = vmatprep.subr.bf16.mxu0 0
        %2544 = vmatpush1.bf16.msra.mxu0 0
        %2545 = vmatprep.subr.bf16.mxu0 0
        %2546 = vmatpush1.bf16.msra.mxu0 0
        %2547 = vmatprep.subr.bf16.mxu0 0
        %2548 = vmatpush1.bf16.msra.mxu0 0
        %2549 = vmatprep.subr.bf16.mxu0 0
        %2550 = vmatpush1.bf16.msra.mxu0 0
        %2551 = vmatprep.subr.bf16.mxu0 0
        %2552 = vmatpush1.bf16.msra.mxu0 0
        %2553 = vmatprep.subr.bf16.mxu0 0
        %2554 = vmatpush1.bf16.msra.mxu0 0
        %2555 = vmatprep.subr.bf16.mxu0 0
        %2556 = vmatpush1.bf16.msra.mxu0 0
        %2557 = vmatprep.subr.bf16.mxu0 0
        %2558 = vmatpush1.bf16.msra.mxu0 0
        %2559 = vmatprep.subr.bf16.mxu0 0
        %2560 = vmatpush1.bf16.msra.mxu0 0
        %2561 = vmatprep.subr.bf16.mxu0 0
        %2562 = vmatpush1.bf16.msra.mxu0 0
        %2563 = vmatprep.subr.bf16.mxu0 0
        %2564 = vmatpush1.bf16.msra.mxu0 0
        %2565 = vmatprep.subr.bf16.mxu0 0
        %2566 = vmatpush1.bf16.msra.mxu0 0
        %2567 = vmatprep.subr.bf16.mxu0 0
        %2568 = vmatpush1.bf16.msra.mxu0 0
        %2569 = vmatprep.mubr.bf16.mxu0 0
        %2570 = vmatmul.mubr.bf16.gmra.mrb[0].mxu0 %v2532
        %v2571 = vpop.f32.mrb[0].mxu0
        %v2572 = vadd.f32 0.0, %v2571
        %v2573 = vpop.f32.mrb[0].mxu0
        %v2574 = vpop.f32.mrb[0].mxu0
        %v2575 = vpop.f32.mrb[0].mxu0
        %2576 = vdwg.mxu0
        %v2577 = vadd.f32 %v2464, %v2572
        %s2578 = scalar_lea.vmem [#allocation8], 2
        %v2579 = vld [vmem:[%s2578] sm:$0x1]
        %v2581 = vlaneseq
        %v2582 = vshrl.u32 %v2581, 7
        %v2583 = vsub.s32 0, %v2582
        %v2584 = vrot.slane %v2579, %v2583
        %v2586 = vadd.f32 %v2577, %v2584
        %v2587 = vadd.f32 %v2123, %v2586
        %v2588 = vsel %vm699, %v2587, 0.0
        %2589 = vadd.xlane.f32.xlu0 %v2588
        %v2590 = vpop.xlane.xlu0 %2589
        %v2591 = vmul.f32 %v2590, %v2097
        %v2592 = vsub.f32 %v2587, %v2591
        %v2593 = vmul.f32 %v2592, %v2592
        %v2594 = vsel %vm699, %v2593, 0.0
        %2595 = vadd.xlane.f32.xlu0 %v2594
        %v2596 = vpop.xlane.xlu0 %2595
        %v2597 = vmul.f32 %v2596, %v2097
        %v2598 = vadd.f32 %v2597, 1e-05
        %v2599 = vrsqrt.pop %v2598
        %v2600 = vmul.f32 %v2592, %v2599
        %s2601 = scalar_lea.vmem %s14, 1
        %v2602 = vld [vmem:[%s2601] sm:$0x1]
        %v2604 = vlaneseq
        %v2605 = vshrl.u32 %v2604, 7
        %v2606 = vsub.s32 0, %v2605
        %v2607 = vrot.slane %v2602, %v2606
        %v2609 = vmul.f32 %v2600, %v2607
        %s2610 = scalar_lea.vmem %s15, 1
        %v2611 = vld [vmem:[%s2610] sm:$0x1]
        %v2613 = vlaneseq
        %v2614 = vshrl.u32 %v2613, 7
        %v2615 = vsub.s32 0, %v2614
        %v2616 = vrot.slane %v2611, %v2615
        %v2618 = vadd.f32 %v2609, %v2616
        %v2619 = vld [vmem:[%s10] sm:$0xf]
        %v2620 = vld [vmem:[%s10 + $0x4] sm:$0xf]
        %v2621 = vld [vmem:[%s10 + $0x8] sm:$0xf]
        %v2622 = vld [vmem:[%s10 + $0xc] sm:$0xf]
        %v2623 = vpack.c.bf16 %v2618, %v2618
        %v2624 = vld [vmem:[#allocation10] sm:$0x1]
        %v2626 = vlaneseq
        %v2627 = vshrl.u32 %v2626, 7
        %v2628 = vsub.s32 0, %v2627
        %v2629 = vrot.slane %v2624, %v2628
        %v2635 = vunpack.c.l.b16 %v2619
        %v2636 = vunpack.c.l.b16 %v2620
        %v2637 = vunpack.c.l.b16 %v2621
        %v2638 = vunpack.c.l.b16 %v2622
        %v2639 = vpack.c.b16 %v2636, %v2635
        %v2640 = vpack.c.b16 %v2638, %v2637
        %v2644 = vsel %vm699, %v2623, 0
        %2646 = vmatprep.subr.bf16.mxu0 0
        %2647 = vmatpush1.bf16.msra.mxu0 %v2639
        %2648 = vmatprep.subr.bf16.mxu0 0
        %2649 = vmatpush1.bf16.msra.mxu0 %v2640
        %2650 = vmatprep.subr.bf16.mxu0 0
        %2651 = vmatpush1.bf16.msra.mxu0 0
        %2652 = vmatprep.subr.bf16.mxu0 0
        %2653 = vmatpush1.bf16.msra.mxu0 0
        %2654 = vmatprep.subr.bf16.mxu0 0
        %2655 = vmatpush1.bf16.msra.mxu0 0
        %2656 = vmatprep.subr.bf16.mxu0 0
        %2657 = vmatpush1.bf16.msra.mxu0 0
        %2658 = vmatprep.subr.bf16.mxu0 0
        %2659 = vmatpush1.bf16.msra.mxu0 0
        %2660 = vmatprep.subr.bf16.mxu0 0
        %2661 = vmatpush1.bf16.msra.mxu0 0
        %2662 = vmatprep.subr.bf16.mxu0 0
        %2663 = vmatpush1.bf16.msra.mxu0 0
        %2664 = vmatprep.subr.bf16.mxu0 0
        %2665 = vmatpush1.bf16.msra.mxu0 0
        %2666 = vmatprep.subr.bf16.mxu0 0
        %2667 = vmatpush1.bf16.msra.mxu0 0
        %2668 = vmatprep.subr.bf16.mxu0 0
        %2669 = vmatpush1.bf16.msra.mxu0 0
        %2670 = vmatprep.subr.bf16.mxu0 0
        %2671 = vmatpush1.bf16.msra.mxu0 0
        %2672 = vmatprep.subr.bf16.mxu0 0
        %2673 = vmatpush1.bf16.msra.mxu0 0
        %2674 = vmatprep.subr.bf16.mxu0 0
        %2675 = vmatpush1.bf16.msra.mxu0 0
        %2676 = vmatprep.subr.bf16.mxu0 0
        %2677 = vmatpush1.bf16.msra.mxu0 0
        %2678 = vmatprep.mubr.bf16.mxu0 0
        %2679 = vmatmul.mubr.bf16.gmra.mrb[0].mxu0 %v2644
        %v2680 = vpop.f32.mrb[0].mxu0
        %v2681 = vadd.f32 %v2629, %v2680
        %v2682 = vpop.f32.mrb[0].mxu0
        %v2683 = vpop.f32.mrb[0].mxu0
        %v2684 = vpop.f32.mrb[0].mxu0
        %2685 = vdwg.mxu0
        %v2686 = vmax.f32 %v2681, 0.0
        %v2687 = vld [vmem:[%s12] sm:$0xf]
        %v2688 = vld [vmem:[%s12 + $0x4] sm:$0xf]
        %v2689 = vld [vmem:[%s12 + $0x8] sm:$0xf]
        %v2690 = vld [vmem:[%s12 + $0xc] sm:$0xf]
        %v2691 = vld [vmem:[%s12 + $0x10] sm:$0xf]
        %v2692 = vld [vmem:[%s12 + $0x14] sm:$0xf]
        %v2693 = vld [vmem:[%s12 + $0x18] sm:$0xf]
        %v2694 = vld [vmem:[%s12 + $0x1c] sm:$0xf]
        %v2695 = vld [vmem:[%s12 + $0x20] sm:$0xf]
        %v2696 = vld [vmem:[%s12 + $0x24] sm:$0xf]
        %v2697 = vld [vmem:[%s12 + $0x28] sm:$0xf]
        %v2698 = vld [vmem:[%s12 + $0x2c] sm:$0xf]
        %v2699 = vld [vmem:[%s12 + $0x30] sm:$0xf]
        %v2700 = vld [vmem:[%s12 + $0x34] sm:$0xf]
        %v2701 = vld [vmem:[%s12 + $0x38] sm:$0xf]
        %v2702 = vld [vmem:[%s12 + $0x3c] sm:$0xf]
        %v2703 = vpack.c.bf16 %v2686, %v2686
        %v2720 = vunpack.c.l.b16 %v2687
        %v2721 = vunpack.c.l.b16 %v2688
        %v2722 = vunpack.c.l.b16 %v2689
        %v2723 = vunpack.c.l.b16 %v2690
        %v2724 = vunpack.c.l.b16 %v2691
        %v2725 = vunpack.c.l.b16 %v2692
        %v2726 = vunpack.c.l.b16 %v2693
        %v2727 = vunpack.c.l.b16 %v2694
        %v2728 = vunpack.c.l.b16 %v2695
        %v2729 = vunpack.c.l.b16 %v2696
        %v2730 = vunpack.c.l.b16 %v2697
        %v2731 = vunpack.c.l.b16 %v2698
        %v2732 = vunpack.c.l.b16 %v2699
        %v2733 = vunpack.c.l.b16 %v2700
        %v2734 = vunpack.c.l.b16 %v2701
        %v2735 = vunpack.c.l.b16 %v2702
        %v2736 = vpack.c.b16 %v2721, %v2720
        %v2737 = vpack.c.b16 %v2723, %v2722
        %v2738 = vpack.c.b16 %v2725, %v2724
        %v2739 = vpack.c.b16 %v2727, %v2726
        %v2740 = vpack.c.b16 %v2729, %v2728
        %v2741 = vpack.c.b16 %v2731, %v2730
        %v2742 = vpack.c.b16 %v2733, %v2732
        %v2743 = vpack.c.b16 %v2735, %v2734
        %2752 = vmatprep.subr.bf16.mxu0 0
        %2753 = vmatpush1.bf16.msra.mxu0 %v2736
        %2754 = vmatprep.subr.bf16.mxu0 0
        %2755 = vmatpush1.bf16.msra.mxu0 %v2737
        %2756 = vmatprep.subr.bf16.mxu0 0
        %2757 = vmatpush1.bf16.msra.mxu0 %v2738
        %2758 = vmatprep.subr.bf16.mxu0 0
        %2759 = vmatpush1.bf16.msra.mxu0 %v2739
        %2760 = vmatprep.subr.bf16.mxu0 0
        %2761 = vmatpush1.bf16.msra.mxu0 %v2740
        %2762 = vmatprep.subr.bf16.mxu0 0
        %2763 = vmatpush1.bf16.msra.mxu0 %v2741
        %2764 = vmatprep.subr.bf16.mxu0 0
        %2765 = vmatpush1.bf16.msra.mxu0 %v2742
        %2766 = vmatprep.subr.bf16.mxu0 0
        %2767 = vmatpush1.bf16.msra.mxu0 %v2743
        %2768 = vmatprep.subr.bf16.mxu0 0
        %2769 = vmatpush1.bf16.msra.mxu0 0
        %2770 = vmatprep.subr.bf16.mxu0 0
        %2771 = vmatpush1.bf16.msra.mxu0 0
        %2772 = vmatprep.subr.bf16.mxu0 0
        %2773 = vmatpush1.bf16.msra.mxu0 0
        %2774 = vmatprep.subr.bf16.mxu0 0
        %2775 = vmatpush1.bf16.msra.mxu0 0
        %2776 = vmatprep.subr.bf16.mxu0 0
        %2777 = vmatpush1.bf16.msra.mxu0 0
        %2778 = vmatprep.subr.bf16.mxu0 0
        %2779 = vmatpush1.bf16.msra.mxu0 0
        %2780 = vmatprep.subr.bf16.mxu0 0
        %2781 = vmatpush1.bf16.msra.mxu0 0
        %2782 = vmatprep.subr.bf16.mxu0 0
        %2783 = vmatpush1.bf16.msra.mxu0 0
        %2784 = vmatprep.mubr.bf16.mxu0 0
        %2785 = vmatmul.mubr.bf16.gmra.mrb[0].mxu0 %v2703
        %v2786 = vpop.f32.mrb[0].mxu0
        %v2787 = vadd.f32 0.0, %v2786
        %v2788 = vpop.f32.mrb[0].mxu0
        %v2789 = vpop.f32.mrb[0].mxu0
        %v2790 = vpop.f32.mrb[0].mxu0
        %2791 = vdwg.mxu0
        %v2792 = vadd.f32 %v2618, %v2787
        %v2793 = vld [vmem:[#allocation11] sm:$0x1]
        %v2795 = vlaneseq
        %v2796 = vshrl.u32 %v2795, 7
        %v2797 = vsub.s32 0, %v2796
        %v2798 = vrot.slane %v2793, %v2797
        %v2800 = vadd.f32 %v2792, %v2798
        %v2801 = vsel %vm699, %v2800, 0.0
        %2802 = vadd.xlane.f32.xlu0 %v2801
        %v2803 = vpop.xlane.xlu0 %2802
        %v2804 = vmul.f32 %v2803, %v2097
        %v2805 = vsub.f32 %v2800, %v2804
        %v2806 = vmul.f32 %v2805, %v2805
        %v2807 = vsel %vm699, %v2806, 0.0
        %2808 = vadd.xlane.f32.xlu0 %v2807
        %v2809 = vpop.xlane.xlu0 %2808
        %v2810 = vmul.f32 %v2809, %v2097
        %v2811 = vadd.f32 %v2810, 1e-05
        %v2812 = vrsqrt.pop %v2811
        %v2813 = vmul.f32 %v2805, %v2812
        %s2814 = scalar_lea.vmem %s14, 2
        %v2815 = vld [vmem:[%s2814] sm:$0x1]
        %v2817 = vlaneseq
        %v2818 = vshrl.u32 %v2817, 7
        %v2819 = vsub.s32 0, %v2818
        %v2820 = vrot.slane %v2815, %v2819
        %v2822 = vmul.f32 %v2813, %v2820
        %s2823 = scalar_lea.vmem %s15, 2
        %v2824 = vld [vmem:[%s2823] sm:$0x1]
        %v2826 = vlaneseq
        %v2827 = vshrl.u32 %v2826, 7
        %v2828 = vsub.s32 0, %v2827
        %v2829 = vrot.slane %v2824, %v2828
        %v2831 = vadd.f32 %v2822, %v2829
        %s2832 = scalar_lea.vmem %s6, 64
        %v2833 = vld [vmem:[%s2832] sm:$0xf]
        %v2834 = vld [vmem:[%s2832 + $0x4] sm:$0xf]
        %v2835 = vld [vmem:[%s2832 + $0x8] sm:$0xf]
        %v2836 = vld [vmem:[%s2832 + $0xc] sm:$0xf]
        %v2837 = vpack.c.bf16 %v2831, %v2831
        %s2838 = scalar_lea.vmem [#allocation7], 4
        %v2839 = vld [vmem:[%s2838] sm:$0x1]
        %v2841 = vlaneseq
        %v2842 = vshrl.u32 %v2841, 7
        %v2843 = vsub.s32 0, %v2842
        %v2844 = vrot.slane %v2839, %v2843
        %v2850 = vunpack.c.l.b16 %v2833
        %v2851 = vunpack.c.l.b16 %v2834
        %v2852 = vunpack.c.l.b16 %v2835
        %v2853 = vunpack.c.l.b16 %v2836
        %v2854 = vpack.c.b16 %v2851, %v2850
        %v2855 = vpack.c.b16 %v2853, %v2852
        %v2859 = vsel %vm699, %v2837, 0
        %2861 = vmatprep.subr.bf16.mxu0 0
        %2862 = vmatpush1.bf16.msra.mxu0 %v2854
        %2863 = vmatprep.subr.bf16.mxu0 0
        %2864 = vmatpush1.bf16.msra.mxu0 %v2855
        %2865 = vmatprep.subr.bf16.mxu0 0
        %2866 = vmatpush1.bf16.msra.mxu0 0
        %2867 = vmatprep.subr.bf16.mxu0 0
        %2868 = vmatpush1.bf16.msra.mxu0 0
        %2869 = vmatprep.subr.bf16.mxu0 0
        %2870 = vmatpush1.bf16.msra.mxu0 0
        %2871 = vmatprep.subr.bf16.mxu0 0
        %2872 = vmatpush1.bf16.msra.mxu0 0
        %2873 = vmatprep.subr.bf16.mxu0 0
        %2874 = vmatpush1.bf16.msra.mxu0 0
        %2875 = vmatprep.subr.bf16.mxu0 0
        %2876 = vmatpush1.bf16.msra.mxu0 0
        %2877 = vmatprep.subr.bf16.mxu0 0
        %2878 = vmatpush1.bf16.msra.mxu0 0
        %2879 = vmatprep.subr.bf16.mxu0 0
        %2880 = vmatpush1.bf16.msra.mxu0 0
        %2881 = vmatprep.subr.bf16.mxu0 0
        %2882 = vmatpush1.bf16.msra.mxu0 0
        %2883 = vmatprep.subr.bf16.mxu0 0
        %2884 = vmatpush1.bf16.msra.mxu0 0
        %2885 = vmatprep.subr.bf16.mxu0 0
        %2886 = vmatpush1.bf16.msra.mxu0 0
        %2887 = vmatprep.subr.bf16.mxu0 0
        %2888 = vmatpush1.bf16.msra.mxu0 0
        %2889 = vmatprep.subr.bf16.mxu0 0
        %2890 = vmatpush1.bf16.msra.mxu0 0
        %2891 = vmatprep.subr.bf16.mxu0 0
        %2892 = vmatpush1.bf16.msra.mxu0 0
        %2893 = vmatprep.mubr.bf16.mxu0 0
        %2894 = vmatmul.mubr.bf16.gmra.mrb[0].mxu0 %v2859
        %v2895 = vpop.f32.mrb[0].mxu0
        %v2896 = vadd.f32 %v2844, %v2895
        %v2897 = vpop.f32.mrb[0].mxu0
        %v2898 = vpop.f32.mrb[0].mxu0
        %v2899 = vpop.f32.mrb[0].mxu0
        %2900 = vdwg.mxu0
        %s2901 = scalar_lea.vmem %s2, 64
        %v2902 = vld [vmem:[%s2901] sm:$0xf]
        %v2903 = vld [vmem:[%s2901 + $0x4] sm:$0xf]
        %v2904 = vld [vmem:[%s2901 + $0x8] sm:$0xf]
        %v2905 = vld [vmem:[%s2901 + $0xc] sm:$0xf]
        %s2906 = scalar_lea.vmem [#allocation3], 4
        %v2907 = vld [vmem:[%s2906] sm:$0x1]
        %v2909 = vlaneseq
        %v2910 = vshrl.u32 %v2909, 7
        %v2911 = vsub.s32 0, %v2910
        %v2912 = vrot.slane %v2907, %v2911
        %v2918 = vunpack.c.l.b16 %v2902
        %v2919 = vunpack.c.l.b16 %v2903
        %v2920 = vunpack.c.l.b16 %v2904
        %v2921 = vunpack.c.l.b16 %v2905
        %v2922 = vpack.c.b16 %v2919, %v2918
        %v2923 = vpack.c.b16 %v2921, %v2920
        %2926 = vmatprep.subr.bf16.mxu0 0
        %2927 = vmatpush1.bf16.msra.mxu0 %v2922
        %2928 = vmatprep.subr.bf16.mxu0 0
        %2929 = vmatpush1.bf16.msra.mxu0 %v2923
        %2930 = vmatprep.subr.bf16.mxu0 0
        %2931 = vmatpush1.bf16.msra.mxu0 0
        %2932 = vmatprep.subr.bf16.mxu0 0
        %2933 = vmatpush1.bf16.msra.mxu0 0
        %2934 = vmatprep.subr.bf16.mxu0 0
        %2935 = vmatpush1.bf16.msra.mxu0 0
        %2936 = vmatprep.subr.bf16.mxu0 0
        %2937 = vmatpush1.bf16.msra.mxu0 0
        %2938 = vmatprep.subr.bf16.mxu0 0
        %2939 = vmatpush1.bf16.msra.mxu0 0
        %2940 = vmatprep.subr.bf16.mxu0 0
        %2941 = vmatpush1.bf16.msra.mxu0 0
        %2942 = vmatprep.subr.bf16.mxu0 0
        %2943 = vmatpush1.bf16.msra.mxu0 0
        %2944 = vmatprep.subr.bf16.mxu0 0
        %2945 = vmatpush1.bf16.msra.mxu0 0
        %2946 = vmatprep.subr.bf16.mxu0 0
        %2947 = vmatpush1.bf16.msra.mxu0 0
        %2948 = vmatprep.subr.bf16.mxu0 0
        %2949 = vmatpush1.bf16.msra.mxu0 0
        %2950 = vmatprep.subr.bf16.mxu0 0
        %2951 = vmatpush1.bf16.msra.mxu0 0
        %2952 = vmatprep.subr.bf16.mxu0 0
        %2953 = vmatpush1.bf16.msra.mxu0 0
        %2954 = vmatprep.subr.bf16.mxu0 0
        %2955 = vmatpush1.bf16.msra.mxu0 0
        %2956 = vmatprep.subr.bf16.mxu0 0
        %2957 = vmatpush1.bf16.msra.mxu0 0
        %2958 = vmatprep.mubr.bf16.mxu0 0
        %2959 = vmatmul.mubr.bf16.gmra.mrb[0].mxu0 %v2859
        %v2960 = vpop.f32.mrb[0].mxu0
        %v2961 = vadd.f32 %v2912, %v2960
        %v2962 = vpop.f32.mrb[0].mxu0
        %v2963 = vpop.f32.mrb[0].mxu0
        %v2964 = vpop.f32.mrb[0].mxu0
        %2965 = vdwg.mxu0
        %s2966 = scalar_lea.vmem %s4, 64
        %v2967 = vld [vmem:[%s2966] sm:$0xf]
        %v2968 = vld [vmem:[%s2966 + $0x4] sm:$0xf]
        %v2969 = vld [vmem:[%s2966 + $0x8] sm:$0xf]
        %v2970 = vld [vmem:[%s2966 + $0xc] sm:$0xf]
        %s2971 = scalar_lea.vmem [#allocation5], 4
        %v2972 = vld [vmem:[%s2971] sm:$0x1]
        %v2974 = vlaneseq
        %v2975 = vshrl.u32 %v2974, 7
        %v2976 = vsub.s32 0, %v2975
        %v2977 = vrot.slane %v2972, %v2976
        %v2983 = vunpack.c.l.b16 %v2967
        %v2984 = vunpack.c.l.b16 %v2968
        %v2985 = vunpack.c.l.b16 %v2969
        %v2986 = vunpack.c.l.b16 %v2970
        %v2987 = vpack.c.b16 %v2984, %v2983
        %v2988 = vpack.c.b16 %v2986, %v2985
        %2991 = vmatprep.subr.bf16.mxu0 0
        %2992 = vmatpush1.bf16.msra.mxu0 %v2987
        %2993 = vmatprep.subr.bf16.mxu0 0
        %2994 = vmatpush1.bf16.msra.mxu0 %v2988
        %2995 = vmatprep.subr.bf16.mxu0 0
        %2996 = vmatpush1.bf16.msra.mxu0 0
        %2997 = vmatprep.subr.bf16.mxu0 0
        %2998 = vmatpush1.bf16.msra.mxu0 0
        %2999 = vmatprep.subr.bf16.mxu0 0
        %3000 = vmatpush1.bf16.msra.mxu0 0
        %3001 = vmatprep.subr.bf16.mxu0 0
        %3002 = vmatpush1.bf16.msra.mxu0 0
        %3003 = vmatprep.subr.bf16.mxu0 0
        %3004 = vmatpush1.bf16.msra.mxu0 0
        %3005 = vmatprep.subr.bf16.mxu0 0
        %3006 = vmatpush1.bf16.msra.mxu0 0
        %3007 = vmatprep.subr.bf16.mxu0 0
        %3008 = vmatpush1.bf16.msra.mxu0 0
        %3009 = vmatprep.subr.bf16.mxu0 0
        %3010 = vmatpush1.bf16.msra.mxu0 0
        %3011 = vmatprep.subr.bf16.mxu0 0
        %3012 = vmatpush1.bf16.msra.mxu0 0
        %3013 = vmatprep.subr.bf16.mxu0 0
        %3014 = vmatpush1.bf16.msra.mxu0 0
        %3015 = vmatprep.subr.bf16.mxu0 0
        %3016 = vmatpush1.bf16.msra.mxu0 0
        %3017 = vmatprep.subr.bf16.mxu0 0
        %3018 = vmatpush1.bf16.msra.mxu0 0
        %3019 = vmatprep.subr.bf16.mxu0 0
        %3020 = vmatpush1.bf16.msra.mxu0 0
        %3021 = vmatprep.subr.bf16.mxu0 0
        %3022 = vmatpush1.bf16.msra.mxu0 0
        %3023 = vmatprep.mubr.bf16.mxu0 0
        %3024 = vmatmul.mubr.bf16.gmra.mrb[0].mxu0 %v2859
        %v3025 = vpop.f32.mrb[0].mxu0
        %v3026 = vadd.f32 %v2977, %v3025
        %v3027 = vpop.f32.mrb[0].mxu0
        %v3028 = vpop.f32.mrb[0].mxu0
        %v3029 = vpop.f32.mrb[0].mxu0
        %3030 = vdwg.mxu0
        %v3031 = vpack.c.bf16 %v2961, %v2961
        %v3032 = vpack.c.bf16 %v3026, %v3026
        %v3034 = vsel %vm871, %v3031, 0
        %v3037 = vsel %vm871, %v3032, 0
        %3039 = vmatprep.subr.bf16.mxu0 0
        %3040 = vmatpush1.bf16.xpose.msra.mxu0 %v3037
        %3041 = vmatprep.subr.bf16.mxu0 0
        %3042 = vmatpush1.bf16.xpose.msra.mxu0 0
        %3043 = vmatprep.subr.bf16.mxu0 0
        %3044 = vmatpush1.bf16.xpose.msra.mxu0 0
        %3045 = vmatprep.subr.bf16.mxu0 0
        %3046 = vmatpush1.bf16.xpose.msra.mxu0 0
        %3047 = vmatprep.subr.bf16.mxu0 0
        %3048 = vmatpush1.bf16.xpose.msra.mxu0 0
        %3049 = vmatprep.subr.bf16.mxu0 0
        %3050 = vmatpush1.bf16.xpose.msra.mxu0 0
        %3051 = vmatprep.subr.bf16.mxu0 0
        %3052 = vmatpush1.bf16.xpose.msra.mxu0 0
        %3053 = vmatprep.subr.bf16.mxu0 0
        %3054 = vmatpush1.bf16.xpose.msra.mxu0 0
        %3055 = vmatprep.subr.bf16.mxu0 0
        %3056 = vmatpush1.bf16.xpose.msra.mxu0 0
        %3057 = vmatprep.subr.bf16.mxu0 0
        %3058 = vmatpush1.bf16.xpose.msra.mxu0 0
        %3059 = vmatprep.subr.bf16.mxu0 0
        %3060 = vmatpush1.bf16.xpose.msra.mxu0 0
        %3061 = vmatprep.subr.bf16.mxu0 0
        %3062 = vmatpush1.bf16.xpose.msra.mxu0 0
        %3063 = vmatprep.subr.bf16.mxu0 0
        %3064 = vmatpush1.bf16.xpose.msra.mxu0 0
        %3065 = vmatprep.subr.bf16.mxu0 0
        %3066 = vmatpush1.bf16.xpose.msra.mxu0 0
        %3067 = vmatprep.subr.bf16.mxu0 0
        %3068 = vmatpush1.bf16.xpose.msra.mxu0 0
        %3069 = vmatprep.subr.bf16.mxu0 0
        %3070 = vmatpush1.bf16.xpose.msra.mxu0 0
        %3071 = vmatprep.mubr.bf16.mxu0 0
        %3072 = vmatmul.mubr.bf16.gmra.mrb[0].mxu0 %v3034
        %v3073 = vpop.f32.mrb[0].mxu0
        %v3074 = vadd.f32 0.0, %v3073
        %v3075 = vpop.f32.mrb[0].mxu0
        %v3076 = vpop.f32.mrb[0].mxu0
        %v3077 = vpop.f32.mrb[0].mxu0
        %3078 = vdwg.mxu0
        %v3079 = vmul.f32 %v3074, 0.35355338
        %v3080 = vsel %vm871, %v3079, -inf
        %3081 = vmax.xlane.f32.xlu0 %v3080
        %v3082 = vpop.xlane.xlu0 %3081
        %v3083 = vsub.f32 %v3079, %v3082
        %v3084 = vmul.f32 %v3083, 1.442695
        %v3085 = vpow.pop %v3084
        %v3086 = vsel %vm871, %v3085, 0.0
        %3087 = vadd.xlane.f32.xlu0 %v3086
        %v3088 = vpop.xlane.xlu0 %3087
        %v3089 = vrcp.pop %v3088
        %v3090 = vmul.f32 %v3085, %v3089
        %v3091 = vpack.c.bf16 %v3090, %v3090
        %v3092 = vpack.c.bf16 %v2896, %v2896
        %v3094 = vsel %vm871, %v3091, 0
        %v3097 = vsel %vm935, %v3092, 0
        %3099 = vmatprep.subr.bf16.mxu0 0
        %3100 = vmatpush1.bf16.msra.mxu0 %v3097
        %3101 = vmatprep.subr.bf16.mxu0 0
        %3102 = vmatpush1.bf16.msra.mxu0 0
        %3103 = vmatprep.subr.bf16.mxu0 0
        %3104 = vmatpush1.bf16.msra.mxu0 0
        %3105 = vmatprep.subr.bf16.mxu0 0
        %3106 = vmatpush1.bf16.msra.mxu0 0
        %3107 = vmatprep.subr.bf16.mxu0 0
        %3108 = vmatpush1.bf16.msra.mxu0 0
        %3109 = vmatprep.subr.bf16.mxu0 0
        %3110 = vmatpush1.bf16.msra.mxu0 0
        %3111 = vmatprep.subr.bf16.mxu0 0
        %3112 = vmatpush1.bf16.msra.mxu0 0
        %3113 = vmatprep.subr.bf16.mxu0 0
        %3114 = vmatpush1.bf16.msra.mxu0 0
        %3115 = vmatprep.subr.bf16.mxu0 0
        %3116 = vmatpush1.bf16.msra.mxu0 0
        %3117 = vmatprep.subr.bf16.mxu0 0
        %3118 = vmatpush1.bf16.msra.mxu0 0
        %3119 = vmatprep.subr.bf16.mxu0 0
        %3120 = vmatpush1.bf16.msra.mxu0 0
        %3121 = vmatprep.subr.bf16.mxu0 0
        %3122 = vmatpush1.bf16.msra.mxu0 0
        %3123 = vmatprep.subr.bf16.mxu0 0
        %3124 = vmatpush1.bf16.msra.mxu0 0
        %3125 = vmatprep.subr.bf16.mxu0 0
        %3126 = vmatpush1.bf16.msra.mxu0 0
        %3127 = vmatprep.subr.bf16.mxu0 0
        %3128 = vmatpush1.bf16.msra.mxu0 0
        %3129 = vmatprep.subr.bf16.mxu0 0
        %3130 = vmatpush1.bf16.msra.mxu0 0
        %3131 = vmatprep.mubr.bf16.mxu0 0
        %3132 = vmatmul.mubr.bf16.gmra.mrb[0].mxu0 %v3094
        %v3133 = vpop.f32.mrb[0].mxu0
        %v3134 = vadd.f32 0.0, %v3133
        %v3135 = vpop.f32.mrb[0].mxu0
        %v3136 = vpop.f32.mrb[0].mxu0
        %v3137 = vpop.f32.mrb[0].mxu0
        %3138 = vdwg.mxu0
        %s3139 = scalar_lea.vmem %s8, 16
        %v3140 = vld [vmem:[%s3139] sm:$0xf]
        %v3141 = vpack.c.bf16 %v3134, %v3134
        %s3142 = scalar_lea.vmem %s6, 80
        %v3143 = vld [vmem:[%s3142] sm:$0xf]
        %v3144 = vld [vmem:[%s3142 + $0x4] sm:$0xf]
        %v3145 = vld [vmem:[%s3142 + $0x8] sm:$0xf]
        %v3146 = vld [vmem:[%s3142 + $0xc] sm:$0xf]
        %s3147 = scalar_lea.vmem [#allocation7], 5
        %v3148 = vld [vmem:[%s3147] sm:$0x1]
        %v3150 = vlaneseq
        %v3151 = vshrl.u32 %v3150, 7
        %v3152 = vsub.s32 0, %v3151
        %v3153 = vrot.slane %v3148, %v3152
        %v3159 = vunpack.c.l.b16 %v3143
        %v3160 = vunpack.c.l.b16 %v3144
        %v3161 = vunpack.c.l.b16 %v3145
        %v3162 = vunpack.c.l.b16 %v3146
        %v3163 = vpack.c.b16 %v3160, %v3159
        %v3164 = vpack.c.b16 %v3162, %v3161
        %3167 = vmatprep.subr.bf16.mxu0 0
        %3168 = vmatpush1.bf16.msra.mxu0 %v3163
        %3169 = vmatprep.subr.bf16.mxu0 0
        %3170 = vmatpush1.bf16.msra.mxu0 %v3164
        %3171 = vmatprep.subr.bf16.mxu0 0
        %3172 = vmatpush1.bf16.msra.mxu0 0
        %3173 = vmatprep.subr.bf16.mxu0 0
        %3174 = vmatpush1.bf16.msra.mxu0 0
        %3175 = vmatprep.subr.bf16.mxu0 0
        %3176 = vmatpush1.bf16.msra.mxu0 0
        %3177 = vmatprep.subr.bf16.mxu0 0
        %3178 = vmatpush1.bf16.msra.mxu0 0
        %3179 = vmatprep.subr.bf16.mxu0 0
        %3180 = vmatpush1.bf16.msra.mxu0 0
        %3181 = vmatprep.subr.bf16.mxu0 0
        %3182 = vmatpush1.bf16.msra.mxu0 0
        %3183 = vmatprep.subr.bf16.mxu0 0
        %3184 = vmatpush1.bf16.msra.mxu0 0
        %3185 = vmatprep.subr.bf16.mxu0 0
        %3186 = vmatpush1.bf16.msra.mxu0 0
        %3187 = vmatprep.subr.bf16.mxu0 0
        %3188 = vmatpush1.bf16.msra.mxu0 0
        %3189 = vmatprep.subr.bf16.mxu0 0
        %3190 = vmatpush1.bf16.msra.mxu0 0
        %3191 = vmatprep.subr.bf16.mxu0 0
        %3192 = vmatpush1.bf16.msra.mxu0 0
        %3193 = vmatprep.subr.bf16.mxu0 0
        %3194 = vmatpush1.bf16.msra.mxu0 0
        %3195 = vmatprep.subr.bf16.mxu0 0
        %3196 = vmatpush1.bf16.msra.mxu0 0
        %3197 = vmatprep.subr.bf16.mxu0 0
        %3198 = vmatpush1.bf16.msra.mxu0 0
        %3199 = vmatprep.mubr.bf16.mxu0 0
        %3200 = vmatmul.mubr.bf16.gmra.mrb[0].mxu0 %v2859
        %v3201 = vpop.f32.mrb[0].mxu0
        %v3202 = vadd.f32 %v3153, %v3201
        %v3203 = vpop.f32.mrb[0].mxu0
        %v3204 = vpop.f32.mrb[0].mxu0
        %v3205 = vpop.f32.mrb[0].mxu0
        %3206 = vdwg.mxu0
        %s3207 = scalar_lea.vmem %s2, 80
        %v3208 = vld [vmem:[%s3207] sm:$0xf]
        %v3209 = vld [vmem:[%s3207 + $0x4] sm:$0xf]
        %v3210 = vld [vmem:[%s3207 + $0x8] sm:$0xf]
        %v3211 = vld [vmem:[%s3207 + $0xc] sm:$0xf]
        %s3212 = scalar_lea.vmem [#allocation3], 5
        %v3213 = vld [vmem:[%s3212] sm:$0x1]
        %v3215 = vlaneseq
        %v3216 = vshrl.u32 %v3215, 7
        %v3217 = vsub.s32 0, %v3216
        %v3218 = vrot.slane %v3213, %v3217
        %v3224 = vunpack.c.l.b16 %v3208
        %v3225 = vunpack.c.l.b16 %v3209
        %v3226 = vunpack.c.l.b16 %v3210
        %v3227 = vunpack.c.l.b16 %v3211
        %v3228 = vpack.c.b16 %v3225, %v3224
        %v3229 = vpack.c.b16 %v3227, %v3226
        %3232 = vmatprep.subr.bf16.mxu0 0
        %3233 = vmatpush1.bf16.msra.mxu0 %v3228
        %3234 = vmatprep.subr.bf16.mxu0 0
        %3235 = vmatpush1.bf16.msra.mxu0 %v3229
        %3236 = vmatprep.subr.bf16.mxu0 0
        %3237 = vmatpush1.bf16.msra.mxu0 0
        %3238 = vmatprep.subr.bf16.mxu0 0
        %3239 = vmatpush1.bf16.msra.mxu0 0
        %3240 = vmatprep.subr.bf16.mxu0 0
        %3241 = vmatpush1.bf16.msra.mxu0 0
        %3242 = vmatprep.subr.bf16.mxu0 0
        %3243 = vmatpush1.bf16.msra.mxu0 0
        %3244 = vmatprep.subr.bf16.mxu0 0
        %3245 = vmatpush1.bf16.msra.mxu0 0
        %3246 = vmatprep.subr.bf16.mxu0 0
        %3247 = vmatpush1.bf16.msra.mxu0 0
        %3248 = vmatprep.subr.bf16.mxu0 0
        %3249 = vmatpush1.bf16.msra.mxu0 0
        %3250 = vmatprep.subr.bf16.mxu0 0
        %3251 = vmatpush1.bf16.msra.mxu0 0
        %3252 = vmatprep.subr.bf16.mxu0 0
        %3253 = vmatpush1.bf16.msra.mxu0 0
        %3254 = vmatprep.subr.bf16.mxu0 0
        %3255 = vmatpush1.bf16.msra.mxu0 0
        %3256 = vmatprep.subr.bf16.mxu0 0
        %3257 = vmatpush1.bf16.msra.mxu0 0
        %3258 = vmatprep.subr.bf16.mxu0 0
        %3259 = vmatpush1.bf16.msra.mxu0 0
        %3260 = vmatprep.subr.bf16.mxu0 0
        %3261 = vmatpush1.bf16.msra.mxu0 0
        %3262 = vmatprep.subr.bf16.mxu0 0
        %3263 = vmatpush1.bf16.msra.mxu0 0
        %3264 = vmatprep.mubr.bf16.mxu0 0
        %3265 = vmatmul.mubr.bf16.gmra.mrb[0].mxu0 %v2859
        %v3266 = vpop.f32.mrb[0].mxu0
        %v3267 = vadd.f32 %v3218, %v3266
        %v3268 = vpop.f32.mrb[0].mxu0
        %v3269 = vpop.f32.mrb[0].mxu0
        %v3270 = vpop.f32.mrb[0].mxu0
        %3271 = vdwg.mxu0
        %s3272 = scalar_lea.vmem %s4, 80
        %v3273 = vld [vmem:[%s3272] sm:$0xf]
        %v3274 = vld [vmem:[%s3272 + $0x4] sm:$0xf]
        %v3275 = vld [vmem:[%s3272 + $0x8] sm:$0xf]
        %v3276 = vld [vmem:[%s3272 + $0xc] sm:$0xf]
        %s3277 = scalar_lea.vmem [#allocation5], 5
        %v3278 = vld [vmem:[%s3277] sm:$0x1]
        %v3280 = vlaneseq
        %v3281 = vshrl.u32 %v3280, 7
        %v3282 = vsub.s32 0, %v3281
        %v3283 = vrot.slane %v3278, %v3282
        %v3289 = vunpack.c.l.b16 %v3273
        %v3290 = vunpack.c.l.b16 %v3274
        %v3291 = vunpack.c.l.b16 %v3275
        %v3292 = vunpack.c.l.b16 %v3276
        %v3293 = vpack.c.b16 %v3290, %v3289
        %v3294 = vpack.c.b16 %v3292, %v3291
        %3297 = vmatprep.subr.bf16.mxu0 0
        %3298 = vmatpush1.bf16.msra.mxu0 %v3293
        %3299 = vmatprep.subr.bf16.mxu0 0
        %3300 = vmatpush1.bf16.msra.mxu0 %v3294
        %3301 = vmatprep.subr.bf16.mxu0 0
        %3302 = vmatpush1.bf16.msra.mxu0 0
        %3303 = vmatprep.subr.bf16.mxu0 0
        %3304 = vmatpush1.bf16.msra.mxu0 0
        %3305 = vmatprep.subr.bf16.mxu0 0
        %3306 = vmatpush1.bf16.msra.mxu0 0
        %3307 = vmatprep.subr.bf16.mxu0 0
        %3308 = vmatpush1.bf16.msra.mxu0 0
        %3309 = vmatprep.subr.bf16.mxu0 0
        %3310 = vmatpush1.bf16.msra.mxu0 0
        %3311 = vmatprep.subr.bf16.mxu0 0
        %3312 = vmatpush1.bf16.msra.mxu0 0
        %3313 = vmatprep.subr.bf16.mxu0 0
        %3314 = vmatpush1.bf16.msra.mxu0 0
        %3315 = vmatprep.subr.bf16.mxu0 0
        %3316 = vmatpush1.bf16.msra.mxu0 0
        %3317 = vmatprep.subr.bf16.mxu0 0
        %3318 = vmatpush1.bf16.msra.mxu0 0
        %3319 = vmatprep.subr.bf16.mxu0 0
        %3320 = vmatpush1.bf16.msra.mxu0 0
        %3321 = vmatprep.subr.bf16.mxu0 0
        %3322 = vmatpush1.bf16.msra.mxu0 0
        %3323 = vmatprep.subr.bf16.mxu0 0
        %3324 = vmatpush1.bf16.msra.mxu0 0
        %3325 = vmatprep.subr.bf16.mxu0 0
        %3326 = vmatpush1.bf16.msra.mxu0 0
        %3327 = vmatprep.subr.bf16.mxu0 0
        %3328 = vmatpush1.bf16.msra.mxu0 0
        %3329 = vmatprep.mubr.bf16.mxu0 0
        %3330 = vmatmul.mubr.bf16.gmra.mrb[0].mxu0 %v2859
        %v3331 = vpop.f32.mrb[0].mxu0
        %v3332 = vadd.f32 %v3283, %v3331
        %v3333 = vpop.f32.mrb[0].mxu0
        %v3334 = vpop.f32.mrb[0].mxu0
        %v3335 = vpop.f32.mrb[0].mxu0
        %3336 = vdwg.mxu0
        %v3337 = vpack.c.bf16 %v3267, %v3267
        %v3338 = vpack.c.bf16 %v3332, %v3332
        %v3340 = vsel %vm871, %v3337, 0
        %v3343 = vsel %vm871, %v3338, 0
        %3345 = vmatprep.subr.bf16.mxu0 0
        %3346 = vmatpush1.bf16.xpose.msra.mxu0 %v3343
        %3347 = vmatprep.subr.bf16.mxu0 0
        %3348 = vmatpush1.bf16.xpose.msra.mxu0 0
        %3349 = vmatprep.subr.bf16.mxu0 0
        %3350 = vmatpush1.bf16.xpose.msra.mxu0 0
        %3351 = vmatprep.subr.bf16.mxu0 0
        %3352 = vmatpush1.bf16.xpose.msra.mxu0 0
        %3353 = vmatprep.subr.bf16.mxu0 0
        %3354 = vmatpush1.bf16.xpose.msra.mxu0 0
        %3355 = vmatprep.subr.bf16.mxu0 0
        %3356 = vmatpush1.bf16.xpose.msra.mxu0 0
        %3357 = vmatprep.subr.bf16.mxu0 0
        %3358 = vmatpush1.bf16.xpose.msra.mxu0 0
        %3359 = vmatprep.subr.bf16.mxu0 0
        %3360 = vmatpush1.bf16.xpose.msra.mxu0 0
        %3361 = vmatprep.subr.bf16.mxu0 0
        %3362 = vmatpush1.bf16.xpose.msra.mxu0 0
        %3363 = vmatprep.subr.bf16.mxu0 0
        %3364 = vmatpush1.bf16.xpose.msra.mxu0 0
        %3365 = vmatprep.subr.bf16.mxu0 0
        %3366 = vmatpush1.bf16.xpose.msra.mxu0 0
        %3367 = vmatprep.subr.bf16.mxu0 0
        %3368 = vmatpush1.bf16.xpose.msra.mxu0 0
        %3369 = vmatprep.subr.bf16.mxu0 0
        %3370 = vmatpush1.bf16.xpose.msra.mxu0 0
        %3371 = vmatprep.subr.bf16.mxu0 0
        %3372 = vmatpush1.bf16.xpose.msra.mxu0 0
        %3373 = vmatprep.subr.bf16.mxu0 0
        %3374 = vmatpush1.bf16.xpose.msra.mxu0 0
        %3375 = vmatprep.subr.bf16.mxu0 0
        %3376 = vmatpush1.bf16.xpose.msra.mxu0 0
        %3377 = vmatprep.mubr.bf16.mxu0 0
        %3378 = vmatmul.mubr.bf16.gmra.mrb[0].mxu0 %v3340
        %v3379 = vpop.f32.mrb[0].mxu0
        %v3380 = vadd.f32 0.0, %v3379
        %v3381 = vpop.f32.mrb[0].mxu0
        %v3382 = vpop.f32.mrb[0].mxu0
        %v3383 = vpop.f32.mrb[0].mxu0
        %3384 = vdwg.mxu0
        %v3385 = vmul.f32 %v3380, 0.35355338
        %v3386 = vsel %vm871, %v3385, -inf
        %3387 = vmax.xlane.f32.xlu0 %v3386
        %v3388 = vpop.xlane.xlu0 %3387
        %v3389 = vsub.f32 %v3385, %v3388
        %v3390 = vmul.f32 %v3389, 1.442695
        %v3391 = vpow.pop %v3390
        %v3392 = vsel %vm871, %v3391, 0.0
        %3393 = vadd.xlane.f32.xlu0 %v3392
        %v3394 = vpop.xlane.xlu0 %3393
        %v3395 = vrcp.pop %v3394
        %v3396 = vmul.f32 %v3391, %v3395
        %v3397 = vpack.c.bf16 %v3396, %v3396
        %v3398 = vpack.c.bf16 %v3202, %v3202
        %v3400 = vsel %vm871, %v3397, 0
        %v3403 = vsel %vm935, %v3398, 0
        %3405 = vmatprep.subr.bf16.mxu0 0
        %3406 = vmatpush1.bf16.msra.mxu0 %v3403
        %3407 = vmatprep.subr.bf16.mxu0 0
        %3408 = vmatpush1.bf16.msra.mxu0 0
        %3409 = vmatprep.subr.bf16.mxu0 0
        %3410 = vmatpush1.bf16.msra.mxu0 0
        %3411 = vmatprep.subr.bf16.mxu0 0
        %3412 = vmatpush1.bf16.msra.mxu0 0
        %3413 = vmatprep.subr.bf16.mxu0 0
        %3414 = vmatpush1.bf16.msra.mxu0 0
        %3415 = vmatprep.subr.bf16.mxu0 0
        %3416 = vmatpush1.bf16.msra.mxu0 0
        %3417 = vmatprep.subr.bf16.mxu0 0
        %3418 = vmatpush1.bf16.msra.mxu0 0
        %3419 = vmatprep.subr.bf16.mxu0 0
        %3420 = vmatpush1.bf16.msra.mxu0 0
        %3421 = vmatprep.subr.bf16.mxu0 0
        %3422 = vmatpush1.bf16.msra.mxu0 0
        %3423 = vmatprep.subr.bf16.mxu0 0
        %3424 = vmatpush1.bf16.msra.mxu0 0
        %3425 = vmatprep.subr.bf16.mxu0 0
        %3426 = vmatpush1.bf16.msra.mxu0 0
        %3427 = vmatprep.subr.bf16.mxu0 0
        %3428 = vmatpush1.bf16.msra.mxu0 0
        %3429 = vmatprep.subr.bf16.mxu0 0
        %3430 = vmatpush1.bf16.msra.mxu0 0
        %3431 = vmatprep.subr.bf16.mxu0 0
        %3432 = vmatpush1.bf16.msra.mxu0 0
        %3433 = vmatprep.subr.bf16.mxu0 0
        %3434 = vmatpush1.bf16.msra.mxu0 0
        %3435 = vmatprep.subr.bf16.mxu0 0
        %3436 = vmatpush1.bf16.msra.mxu0 0
        %3437 = vmatprep.mubr.bf16.mxu0 0
        %3438 = vmatmul.mubr.bf16.gmra.mrb[0].mxu0 %v3400
        %v3439 = vpop.f32.mrb[0].mxu0
        %v3440 = vadd.f32 0.0, %v3439
        %v3441 = vpop.f32.mrb[0].mxu0
        %v3442 = vpop.f32.mrb[0].mxu0
        %v3443 = vpop.f32.mrb[0].mxu0
        %3444 = vdwg.mxu0
        %s3445 = scalar_lea.vmem %s8, 20
        %v3446 = vld [vmem:[%s3445] sm:$0xf]
        %v3447 = vpack.c.bf16 %v3440, %v3440
        %v3449 = vsel %vm871, %v3447, 0
        %v3452 = vsel %vm935, %v3446, 0
        %3454 = vmatprep.subr.bf16.mxu0 0
        %3455 = vmatpush1.bf16.msra.mxu0 %v3452
        %3456 = vmatprep.subr.bf16.mxu0 0
        %3457 = vmatpush1.bf16.msra.mxu0 0
        %3458 = vmatprep.subr.bf16.mxu0 0
        %3459 = vmatpush1.bf16.msra.mxu0 0
        %3460 = vmatprep.subr.bf16.mxu0 0
        %3461 = vmatpush1.bf16.msra.mxu0 0
        %3462 = vmatprep.subr.bf16.mxu0 0
        %3463 = vmatpush1.bf16.msra.mxu0 0
        %3464 = vmatprep.subr.bf16.mxu0 0
        %3465 = vmatpush1.bf16.msra.mxu0 0
        %3466 = vmatprep.subr.bf16.mxu0 0
        %3467 = vmatpush1.bf16.msra.mxu0 0
        %3468 = vmatprep.subr.bf16.mxu0 0
        %3469 = vmatpush1.bf16.msra.mxu0 0
        %3470 = vmatprep.subr.bf16.mxu0 0
        %3471 = vmatpush1.bf16.msra.mxu0 0
        %3472 = vmatprep.subr.bf16.mxu0 0
        %3473 = vmatpush1.bf16.msra.mxu0 0
        %3474 = vmatprep.subr.bf16.mxu0 0
        %3475 = vmatpush1.bf16.msra.mxu0 0
        %3476 = vmatprep.subr.bf16.mxu0 0
        %3477 = vmatpush1.bf16.msra.mxu0 0
        %3478 = vmatprep.subr.bf16.mxu0 0
        %3479 = vmatpush1.bf16.msra.mxu0 0
        %3480 = vmatprep.subr.bf16.mxu0 0
        %3481 = vmatpush1.bf16.msra.mxu0 0
        %3482 = vmatprep.subr.bf16.mxu0 0
        %3483 = vmatpush1.bf16.msra.mxu0 0
        %3484 = vmatprep.subr.bf16.mxu0 0
        %3485 = vmatpush1.bf16.msra.mxu0 0
        %3486 = vmatprep.mubr.bf16.mxu0 0
        %3487 = vmatmul.mubr.bf16.gmra.mrb[0].mxu0 %v3449
        %v3488 = vpop.f32.mrb[0].mxu0
        %v3489 = vadd.f32 0.0, %v3488
        %v3490 = vpop.f32.mrb[0].mxu0
        %v3491 = vpop.f32.mrb[0].mxu0
        %v3492 = vpop.f32.mrb[0].mxu0
        %3493 = vdwg.mxu0
        %v3495 = vsel %vm871, %v3141, 0
        %v3498 = vsel %vm935, %v3140, 0
        %3500 = vmatprep.subr.bf16.mxu0 0
        %3501 = vmatpush1.bf16.msra.mxu0 %v3498
        %3502 = vmatprep.subr.bf16.mxu0 0
        %3503 = vmatpush1.bf16.msra.mxu0 0
        %3504 = vmatprep.subr.bf16.mxu0 0
        %3505 = vmatpush1.bf16.msra.mxu0 0
        %3506 = vmatprep.subr.bf16.mxu0 0
        %3507 = vmatpush1.bf16.msra.mxu0 0
        %3508 = vmatprep.subr.bf16.mxu0 0
        %3509 = vmatpush1.bf16.msra.mxu0 0
        %3510 = vmatprep.subr.bf16.mxu0 0
        %3511 = vmatpush1.bf16.msra.mxu0 0
        %3512 = vmatprep.subr.bf16.mxu0 0
        %3513 = vmatpush1.bf16.msra.mxu0 0
        %3514 = vmatprep.subr.bf16.mxu0 0
        %3515 = vmatpush1.bf16.msra.mxu0 0
        %3516 = vmatprep.subr.bf16.mxu0 0
        %3517 = vmatpush1.bf16.msra.mxu0 0
        %3518 = vmatprep.subr.bf16.mxu0 0
        %3519 = vmatpush1.bf16.msra.mxu0 0
        %3520 = vmatprep.subr.bf16.mxu0 0
        %3521 = vmatpush1.bf16.msra.mxu0 0
        %3522 = vmatprep.subr.bf16.mxu0 0
        %3523 = vmatpush1.bf16.msra.mxu0 0
        %3524 = vmatprep.subr.bf16.mxu0 0
        %3525 = vmatpush1.bf16.msra.mxu0 0
        %3526 = vmatprep.subr.bf16.mxu0 0
        %3527 = vmatpush1.bf16.msra.mxu0 0
        %3528 = vmatprep.subr.bf16.mxu0 0
        %3529 = vmatpush1.bf16.msra.mxu0 0
        %3530 = vmatprep.subr.bf16.mxu0 0
        %3531 = vmatpush1.bf16.msra.mxu0 0
        %3532 = vmatprep.mubr.bf16.mxu0 0
        %3533 = vmatmul.mubr.bf16.gmra.mrb[0].mxu0 %v3495
        %v3534 = vpop.f32.mrb[0].mxu0
        %v3535 = vadd.f32 %v3489, %v3534
        %v3536 = vpop.f32.mrb[0].mxu0
        %v3537 = vpop.f32.mrb[0].mxu0
        %v3538 = vpop.f32.mrb[0].mxu0
        %3539 = vdwg.mxu0
        %s3540 = scalar_lea.vmem %s6, 96
        %v3541 = vld [vmem:[%s3540] sm:$0xf]
        %v3542 = vld [vmem:[%s3540 + $0x4] sm:$0xf]
        %v3543 = vld [vmem:[%s3540 + $0x8] sm:$0xf]
        %v3544 = vld [vmem:[%s3540 + $0xc] sm:$0xf]
        %s3545 = scalar_lea.vmem [#allocation7], 6
        %v3546 = vld [vmem:[%s3545] sm:$0x1]
        %v3548 = vlaneseq
        %v3549 = vshrl.u32 %v3548, 7
        %v3550 = vsub.s32 0, %v3549
        %v3551 = vrot.slane %v3546, %v3550
        %v3557 = vunpack.c.l.b16 %v3541
        %v3558 = vunpack.c.l.b16 %v3542
        %v3559 = vunpack.c.l.b16 %v3543
        %v3560 = vunpack.c.l.b16 %v3544
        %v3561 = vpack.c.b16 %v3558, %v3557
        %v3562 = vpack.c.b16 %v3560, %v3559
        %3565 = vmatprep.subr.bf16.mxu0 0
        %3566 = vmatpush1.bf16.msra.mxu0 %v3561
        %3567 = vmatprep.subr.bf16.mxu0 0
        %3568 = vmatpush1.bf16.msra.mxu0 %v3562
        %3569 = vmatprep.subr.bf16.mxu0 0
        %3570 = vmatpush1.bf16.msra.mxu0 0
        %3571 = vmatprep.subr.bf16.mxu0 0
        %3572 = vmatpush1.bf16.msra.mxu0 0
        %3573 = vmatprep.subr.bf16.mxu0 0
        %3574 = vmatpush1.bf16.msra.mxu0 0
        %3575 = vmatprep.subr.bf16.mxu0 0
        %3576 = vmatpush1.bf16.msra.mxu0 0
        %3577 = vmatprep.subr.bf16.mxu0 0
        %3578 = vmatpush1.bf16.msra.mxu0 0
        %3579 = vmatprep.subr.bf16.mxu0 0
        %3580 = vmatpush1.bf16.msra.mxu0 0
        %3581 = vmatprep.subr.bf16.mxu0 0
        %3582 = vmatpush1.bf16.msra.mxu0 0
        %3583 = vmatprep.subr.bf16.mxu0 0
        %3584 = vmatpush1.bf16.msra.mxu0 0
        %3585 = vmatprep.subr.bf16.mxu0 0
        %3586 = vmatpush1.bf16.msra.mxu0 0
        %3587 = vmatprep.subr.bf16.mxu0 0
        %3588 = vmatpush1.bf16.msra.mxu0 0
        %3589 = vmatprep.subr.bf16.mxu0 0
        %3590 = vmatpush1.bf16.msra.mxu0 0
        %3591 = vmatprep.subr.bf16.mxu0 0
        %3592 = vmatpush1.bf16.msra.mxu0 0
        %3593 = vmatprep.subr.bf16.mxu0 0
        %3594 = vmatpush1.bf16.msra.mxu0 0
        %3595 = vmatprep.subr.bf16.mxu0 0
        %3596 = vmatpush1.bf16.msra.mxu0 0
        %3597 = vmatprep.mubr.bf16.mxu0 0
        %3598 = vmatmul.mubr.bf16.gmra.mrb[0].mxu0 %v2859
        %v3599 = vpop.f32.mrb[0].mxu0
        %v3600 = vadd.f32 %v3551, %v3599
        %v3601 = vpop.f32.mrb[0].mxu0
        %v3602 = vpop.f32.mrb[0].mxu0
        %v3603 = vpop.f32.mrb[0].mxu0
        %3604 = vdwg.mxu0
        %s3605 = scalar_lea.vmem %s2, 96
        %v3606 = vld [vmem:[%s3605] sm:$0xf]
        %v3607 = vld [vmem:[%s3605 + $0x4] sm:$0xf]
        %v3608 = vld [vmem:[%s3605 + $0x8] sm:$0xf]
        %v3609 = vld [vmem:[%s3605 + $0xc] sm:$0xf]
        %s3610 = scalar_lea.vmem [#allocation3], 6
        %v3611 = vld [vmem:[%s3610] sm:$0x1]
        %v3613 = vlaneseq
        %v3614 = vshrl.u32 %v3613, 7
        %v3615 = vsub.s32 0, %v3614
        %v3616 = vrot.slane %v3611, %v3615
        %v3622 = vunpack.c.l.b16 %v3606
        %v3623 = vunpack.c.l.b16 %v3607
        %v3624 = vunpack.c.l.b16 %v3608
        %v3625 = vunpack.c.l.b16 %v3609
        %v3626 = vpack.c.b16 %v3623, %v3622
        %v3627 = vpack.c.b16 %v3625, %v3624
        %3630 = vmatprep.subr.bf16.mxu0 0
        %3631 = vmatpush1.bf16.msra.mxu0 %v3626
        %3632 = vmatprep.subr.bf16.mxu0 0
        %3633 = vmatpush1.bf16.msra.mxu0 %v3627
        %3634 = vmatprep.subr.bf16.mxu0 0
        %3635 = vmatpush1.bf16.msra.mxu0 0
        %3636 = vmatprep.subr.bf16.mxu0 0
        %3637 = vmatpush1.bf16.msra.mxu0 0
        %3638 = vmatprep.subr.bf16.mxu0 0
        %3639 = vmatpush1.bf16.msra.mxu0 0
        %3640 = vmatprep.subr.bf16.mxu0 0
        %3641 = vmatpush1.bf16.msra.mxu0 0
        %3642 = vmatprep.subr.bf16.mxu0 0
        %3643 = vmatpush1.bf16.msra.mxu0 0
        %3644 = vmatprep.subr.bf16.mxu0 0
        %3645 = vmatpush1.bf16.msra.mxu0 0
        %3646 = vmatprep.subr.bf16.mxu0 0
        %3647 = vmatpush1.bf16.msra.mxu0 0
        %3648 = vmatprep.subr.bf16.mxu0 0
        %3649 = vmatpush1.bf16.msra.mxu0 0
        %3650 = vmatprep.subr.bf16.mxu0 0
        %3651 = vmatpush1.bf16.msra.mxu0 0
        %3652 = vmatprep.subr.bf16.mxu0 0
        %3653 = vmatpush1.bf16.msra.mxu0 0
        %3654 = vmatprep.subr.bf16.mxu0 0
        %3655 = vmatpush1.bf16.msra.mxu0 0
        %3656 = vmatprep.subr.bf16.mxu0 0
        %3657 = vmatpush1.bf16.msra.mxu0 0
        %3658 = vmatprep.subr.bf16.mxu0 0
        %3659 = vmatpush1.bf16.msra.mxu0 0
        %3660 = vmatprep.subr.bf16.mxu0 0
        %3661 = vmatpush1.bf16.msra.mxu0 0
        %3662 = vmatprep.mubr.bf16.mxu0 0
        %3663 = vmatmul.mubr.bf16.gmra.mrb[0].mxu0 %v2859
        %v3664 = vpop.f32.mrb[0].mxu0
        %v3665 = vadd.f32 %v3616, %v3664
        %v3666 = vpop.f32.mrb[0].mxu0
        %v3667 = vpop.f32.mrb[0].mxu0
        %v3668 = vpop.f32.mrb[0].mxu0
        %3669 = vdwg.mxu0
        %s3670 = scalar_lea.vmem %s4, 96
        %v3671 = vld [vmem:[%s3670] sm:$0xf]
        %v3672 = vld [vmem:[%s3670 + $0x4] sm:$0xf]
        %v3673 = vld [vmem:[%s3670 + $0x8] sm:$0xf]
        %v3674 = vld [vmem:[%s3670 + $0xc] sm:$0xf]
        %s3675 = scalar_lea.vmem [#allocation5], 6
        %v3676 = vld [vmem:[%s3675] sm:$0x1]
        %v3678 = vlaneseq
        %v3679 = vshrl.u32 %v3678, 7
        %v3680 = vsub.s32 0, %v3679
        %v3681 = vrot.slane %v3676, %v3680
        %v3687 = vunpack.c.l.b16 %v3671
        %v3688 = vunpack.c.l.b16 %v3672
        %v3689 = vunpack.c.l.b16 %v3673
        %v3690 = vunpack.c.l.b16 %v3674
        %v3691 = vpack.c.b16 %v3688, %v3687
        %v3692 = vpack.c.b16 %v3690, %v3689
        %3695 = vmatprep.subr.bf16.mxu0 0
        %3696 = vmatpush1.bf16.msra.mxu0 %v3691
        %3697 = vmatprep.subr.bf16.mxu0 0
        %3698 = vmatpush1.bf16.msra.mxu0 %v3692
        %3699 = vmatprep.subr.bf16.mxu0 0
        %3700 = vmatpush1.bf16.msra.mxu0 0
        %3701 = vmatprep.subr.bf16.mxu0 0
        %3702 = vmatpush1.bf16.msra.mxu0 0
        %3703 = vmatprep.subr.bf16.mxu0 0
        %3704 = vmatpush1.bf16.msra.mxu0 0
        %3705 = vmatprep.subr.bf16.mxu0 0
        %3706 = vmatpush1.bf16.msra.mxu0 0
        %3707 = vmatprep.subr.bf16.mxu0 0
        %3708 = vmatpush1.bf16.msra.mxu0 0
        %3709 = vmatprep.subr.bf16.mxu0 0
        %3710 = vmatpush1.bf16.msra.mxu0 0
        %3711 = vmatprep.subr.bf16.mxu0 0
        %3712 = vmatpush1.bf16.msra.mxu0 0
        %3713 = vmatprep.subr.bf16.mxu0 0
        %3714 = vmatpush1.bf16.msra.mxu0 0
        %3715 = vmatprep.subr.bf16.mxu0 0
        %3716 = vmatpush1.bf16.msra.mxu0 0
        %3717 = vmatprep.subr.bf16.mxu0 0
        %3718 = vmatpush1.bf16.msra.mxu0 0
        %3719 = vmatprep.subr.bf16.mxu0 0
        %3720 = vmatpush1.bf16.msra.mxu0 0
        %3721 = vmatprep.subr.bf16.mxu0 0
        %3722 = vmatpush1.bf16.msra.mxu0 0
        %3723 = vmatprep.subr.bf16.mxu0 0
        %3724 = vmatpush1.bf16.msra.mxu0 0
        %3725 = vmatprep.subr.bf16.mxu0 0
        %3726 = vmatpush1.bf16.msra.mxu0 0
        %3727 = vmatprep.mubr.bf16.mxu0 0
        %3728 = vmatmul.mubr.bf16.gmra.mrb[0].mxu0 %v2859
        %v3729 = vpop.f32.mrb[0].mxu0
        %v3730 = vadd.f32 %v3681, %v3729
        %v3731 = vpop.f32.mrb[0].mxu0
        %v3732 = vpop.f32.mrb[0].mxu0
        %v3733 = vpop.f32.mrb[0].mxu0
        %3734 = vdwg.mxu0
        %v3735 = vpack.c.bf16 %v3665, %v3665
        %v3736 = vpack.c.bf16 %v3730, %v3730
        %v3738 = vsel %vm871, %v3735, 0
        %v3741 = vsel %vm871, %v3736, 0
        %3743 = vmatprep.subr.bf16.mxu0 0
        %3744 = vmatpush1.bf16.xpose.msra.mxu0 %v3741
        %3745 = vmatprep.subr.bf16.mxu0 0
        %3746 = vmatpush1.bf16.xpose.msra.mxu0 0
        %3747 = vmatprep.subr.bf16.mxu0 0
        %3748 = vmatpush1.bf16.xpose.msra.mxu0 0
        %3749 = vmatprep.subr.bf16.mxu0 0
        %3750 = vmatpush1.bf16.xpose.msra.mxu0 0
        %3751 = vmatprep.subr.bf16.mxu0 0
        %3752 = vmatpush1.bf16.xpose.msra.mxu0 0
        %3753 = vmatprep.subr.bf16.mxu0 0
        %3754 = vmatpush1.bf16.xpose.msra.mxu0 0
        %3755 = vmatprep.subr.bf16.mxu0 0
        %3756 = vmatpush1.bf16.xpose.msra.mxu0 0
        %3757 = vmatprep.subr.bf16.mxu0 0
        %3758 = vmatpush1.bf16.xpose.msra.mxu0 0
        %3759 = vmatprep.subr.bf16.mxu0 0
        %3760 = vmatpush1.bf16.xpose.msra.mxu0 0
        %3761 = vmatprep.subr.bf16.mxu0 0
        %3762 = vmatpush1.bf16.xpose.msra.mxu0 0
        %3763 = vmatprep.subr.bf16.mxu0 0
        %3764 = vmatpush1.bf16.xpose.msra.mxu0 0
        %3765 = vmatprep.subr.bf16.mxu0 0
        %3766 = vmatpush1.bf16.xpose.msra.mxu0 0
        %3767 = vmatprep.subr.bf16.mxu0 0
        %3768 = vmatpush1.bf16.xpose.msra.mxu0 0
        %3769 = vmatprep.subr.bf16.mxu0 0
        %3770 = vmatpush1.bf16.xpose.msra.mxu0 0
        %3771 = vmatprep.subr.bf16.mxu0 0
        %3772 = vmatpush1.bf16.xpose.msra.mxu0 0
        %3773 = vmatprep.subr.bf16.mxu0 0
        %3774 = vmatpush1.bf16.xpose.msra.mxu0 0
        %3775 = vmatprep.mubr.bf16.mxu0 0
        %3776 = vmatmul.mubr.bf16.gmra.mrb[0].mxu0 %v3738
        %v3777 = vpop.f32.mrb[0].mxu0
        %v3778 = vadd.f32 0.0, %v3777
        %v3779 = vpop.f32.mrb[0].mxu0
        %v3780 = vpop.f32.mrb[0].mxu0
        %v3781 = vpop.f32.mrb[0].mxu0
        %3782 = vdwg.mxu0
        %v3783 = vmul.f32 %v3778, 0.35355338
        %v3784 = vsel %vm871, %v3783, -inf
        %3785 = vmax.xlane.f32.xlu0 %v3784
        %v3786 = vpop.xlane.xlu0 %3785
        %v3787 = vsub.f32 %v3783, %v3786
        %v3788 = vmul.f32 %v3787, 1.442695
        %v3789 = vpow.pop %v3788
        %v3790 = vsel %vm871, %v3789, 0.0
        %3791 = vadd.xlane.f32.xlu0 %v3790
        %v3792 = vpop.xlane.xlu0 %3791
        %v3793 = vrcp.pop %v3792
        %v3794 = vmul.f32 %v3789, %v3793
        %v3795 = vpack.c.bf16 %v3794, %v3794
        %v3796 = vpack.c.bf16 %v3600, %v3600
        %v3798 = vsel %vm871, %v3795, 0
        %v3801 = vsel %vm935, %v3796, 0
        %3803 = vmatprep.subr.bf16.mxu0 0
        %3804 = vmatpush1.bf16.msra.mxu0 %v3801
        %3805 = vmatprep.subr.bf16.mxu0 0
        %3806 = vmatpush1.bf16.msra.mxu0 0
        %3807 = vmatprep.subr.bf16.mxu0 0
        %3808 = vmatpush1.bf16.msra.mxu0 0
        %3809 = vmatprep.subr.bf16.mxu0 0
        %3810 = vmatpush1.bf16.msra.mxu0 0
        %3811 = vmatprep.subr.bf16.mxu0 0
        %3812 = vmatpush1.bf16.msra.mxu0 0
        %3813 = vmatprep.subr.bf16.mxu0 0
        %3814 = vmatpush1.bf16.msra.mxu0 0
        %3815 = vmatprep.subr.bf16.mxu0 0
        %3816 = vmatpush1.bf16.msra.mxu0 0
        %3817 = vmatprep.subr.bf16.mxu0 0
        %3818 = vmatpush1.bf16.msra.mxu0 0
        %3819 = vmatprep.subr.bf16.mxu0 0
        %3820 = vmatpush1.bf16.msra.mxu0 0
        %3821 = vmatprep.subr.bf16.mxu0 0
        %3822 = vmatpush1.bf16.msra.mxu0 0
        %3823 = vmatprep.subr.bf16.mxu0 0
        %3824 = vmatpush1.bf16.msra.mxu0 0
        %3825 = vmatprep.subr.bf16.mxu0 0
        %3826 = vmatpush1.bf16.msra.mxu0 0
        %3827 = vmatprep.subr.bf16.mxu0 0
        %3828 = vmatpush1.bf16.msra.mxu0 0
        %3829 = vmatprep.subr.bf16.mxu0 0
        %3830 = vmatpush1.bf16.msra.mxu0 0
        %3831 = vmatprep.subr.bf16.mxu0 0
        %3832 = vmatpush1.bf16.msra.mxu0 0
        %3833 = vmatprep.subr.bf16.mxu0 0
        %3834 = vmatpush1.bf16.msra.mxu0 0
        %3835 = vmatprep.mubr.bf16.mxu0 0
        %3836 = vmatmul.mubr.bf16.gmra.mrb[0].mxu0 %v3798
        %v3837 = vpop.f32.mrb[0].mxu0
        %v3838 = vadd.f32 0.0, %v3837
        %v3839 = vpop.f32.mrb[0].mxu0
        %v3840 = vpop.f32.mrb[0].mxu0
        %v3841 = vpop.f32.mrb[0].mxu0
        %3842 = vdwg.mxu0
        %s3843 = scalar_lea.vmem %s8, 24
        %v3844 = vld [vmem:[%s3843] sm:$0xf]
        %v3845 = vpack.c.bf16 %v3838, %v3838
        %v3847 = vsel %vm871, %v3845, 0
        %v3850 = vsel %vm935, %v3844, 0
        %3852 = vmatprep.subr.bf16.mxu0 0
        %3853 = vmatpush1.bf16.msra.mxu0 %v3850
        %3854 = vmatprep.subr.bf16.mxu0 0
        %3855 = vmatpush1.bf16.msra.mxu0 0
        %3856 = vmatprep.subr.bf16.mxu0 0
        %3857 = vmatpush1.bf16.msra.mxu0 0
        %3858 = vmatprep.subr.bf16.mxu0 0
        %3859 = vmatpush1.bf16.msra.mxu0 0
        %3860 = vmatprep.subr.bf16.mxu0 0
        %3861 = vmatpush1.bf16.msra.mxu0 0
        %3862 = vmatprep.subr.bf16.mxu0 0
        %3863 = vmatpush1.bf16.msra.mxu0 0
        %3864 = vmatprep.subr.bf16.mxu0 0
        %3865 = vmatpush1.bf16.msra.mxu0 0
        %3866 = vmatprep.subr.bf16.mxu0 0
        %3867 = vmatpush1.bf16.msra.mxu0 0
        %3868 = vmatprep.subr.bf16.mxu0 0
        %3869 = vmatpush1.bf16.msra.mxu0 0
        %3870 = vmatprep.subr.bf16.mxu0 0
        %3871 = vmatpush1.bf16.msra.mxu0 0
        %3872 = vmatprep.subr.bf16.mxu0 0
        %3873 = vmatpush1.bf16.msra.mxu0 0
        %3874 = vmatprep.subr.bf16.mxu0 0
        %3875 = vmatpush1.bf16.msra.mxu0 0
        %3876 = vmatprep.subr.bf16.mxu0 0
        %3877 = vmatpush1.bf16.msra.mxu0 0
        %3878 = vmatprep.subr.bf16.mxu0 0
        %3879 = vmatpush1.bf16.msra.mxu0 0
        %3880 = vmatprep.subr.bf16.mxu0 0
        %3881 = vmatpush1.bf16.msra.mxu0 0
        %3882 = vmatprep.subr.bf16.mxu0 0
        %3883 = vmatpush1.bf16.msra.mxu0 0
        %3884 = vmatprep.mubr.bf16.mxu0 0
        %3885 = vmatmul.mubr.bf16.gmra.mrb[0].mxu0 %v3847
        %v3886 = vpop.f32.mrb[0].mxu0
        %v3887 = vadd.f32 0.0, %v3886
        %v3888 = vpop.f32.mrb[0].mxu0
        %v3889 = vpop.f32.mrb[0].mxu0
        %v3890 = vpop.f32.mrb[0].mxu0
        %3891 = vdwg.mxu0
        %v3892 = vadd.f32 %v3535, %v3887
        %s3893 = scalar_lea.vmem %s6, 112
        %v3894 = vld [vmem:[%s3893] sm:$0xf]
        %v3895 = vld [vmem:[%s3893 + $0x4] sm:$0xf]
        %v3896 = vld [vmem:[%s3893 + $0x8] sm:$0xf]
        %v3897 = vld [vmem:[%s3893 + $0xc] sm:$0xf]
        %s3898 = scalar_lea.vmem [#allocation7], 7
        %v3899 = vld [vmem:[%s3898] sm:$0x1]
        %v3901 = vlaneseq
        %v3902 = vshrl.u32 %v3901, 7
        %v3903 = vsub.s32 0, %v3902
        %v3904 = vrot.slane %v3899, %v3903
        %v3910 = vunpack.c.l.b16 %v3894
        %v3911 = vunpack.c.l.b16 %v3895
        %v3912 = vunpack.c.l.b16 %v3896
        %v3913 = vunpack.c.l.b16 %v3897
        %v3914 = vpack.c.b16 %v3911, %v3910
        %v3915 = vpack.c.b16 %v3913, %v3912
        %3918 = vmatprep.subr.bf16.mxu0 0
        %3919 = vmatpush1.bf16.msra.mxu0 %v3914
        %3920 = vmatprep.subr.bf16.mxu0 0
        %3921 = vmatpush1.bf16.msra.mxu0 %v3915
        %3922 = vmatprep.subr.bf16.mxu0 0
        %3923 = vmatpush1.bf16.msra.mxu0 0
        %3924 = vmatprep.subr.bf16.mxu0 0
        %3925 = vmatpush1.bf16.msra.mxu0 0
        %3926 = vmatprep.subr.bf16.mxu0 0
        %3927 = vmatpush1.bf16.msra.mxu0 0
        %3928 = vmatprep.subr.bf16.mxu0 0
        %3929 = vmatpush1.bf16.msra.mxu0 0
        %3930 = vmatprep.subr.bf16.mxu0 0
        %3931 = vmatpush1.bf16.msra.mxu0 0
        %3932 = vmatprep.subr.bf16.mxu0 0
        %3933 = vmatpush1.bf16.msra.mxu0 0
        %3934 = vmatprep.subr.bf16.mxu0 0
        %3935 = vmatpush1.bf16.msra.mxu0 0
        %3936 = vmatprep.subr.bf16.mxu0 0
        %3937 = vmatpush1.bf16.msra.mxu0 0
        %3938 = vmatprep.subr.bf16.mxu0 0
        %3939 = vmatpush1.bf16.msra.mxu0 0
        %3940 = vmatprep.subr.bf16.mxu0 0
        %3941 = vmatpush1.bf16.msra.mxu0 0
        %3942 = vmatprep.subr.bf16.mxu0 0
        %3943 = vmatpush1.bf16.msra.mxu0 0
        %3944 = vmatprep.subr.bf16.mxu0 0
        %3945 = vmatpush1.bf16.msra.mxu0 0
        %3946 = vmatprep.subr.bf16.mxu0 0
        %3947 = vmatpush1.bf16.msra.mxu0 0
        %3948 = vmatprep.subr.bf16.mxu0 0
        %3949 = vmatpush1.bf16.msra.mxu0 0
        %3950 = vmatprep.mubr.bf16.mxu0 0
        %3951 = vmatmul.mubr.bf16.gmra.mrb[0].mxu0 %v2859
        %v3952 = vpop.f32.mrb[0].mxu0
        %v3953 = vadd.f32 %v3904, %v3952
        %v3954 = vpop.f32.mrb[0].mxu0
        %v3955 = vpop.f32.mrb[0].mxu0
        %v3956 = vpop.f32.mrb[0].mxu0
        %3957 = vdwg.mxu0
        %s3958 = scalar_lea.vmem %s2, 112
        %v3959 = vld [vmem:[%s3958] sm:$0xf]
        %v3960 = vld [vmem:[%s3958 + $0x4] sm:$0xf]
        %v3961 = vld [vmem:[%s3958 + $0x8] sm:$0xf]
        %v3962 = vld [vmem:[%s3958 + $0xc] sm:$0xf]
        %s3963 = scalar_lea.vmem [#allocation3], 7
        %v3964 = vld [vmem:[%s3963] sm:$0x1]
        %v3966 = vlaneseq
        %v3967 = vshrl.u32 %v3966, 7
        %v3968 = vsub.s32 0, %v3967
        %v3969 = vrot.slane %v3964, %v3968
        %v3975 = vunpack.c.l.b16 %v3959
        %v3976 = vunpack.c.l.b16 %v3960
        %v3977 = vunpack.c.l.b16 %v3961
        %v3978 = vunpack.c.l.b16 %v3962
        %v3979 = vpack.c.b16 %v3976, %v3975
        %v3980 = vpack.c.b16 %v3978, %v3977
        %3983 = vmatprep.subr.bf16.mxu0 0
        %3984 = vmatpush1.bf16.msra.mxu0 %v3979
        %3985 = vmatprep.subr.bf16.mxu0 0
        %3986 = vmatpush1.bf16.msra.mxu0 %v3980
        %3987 = vmatprep.subr.bf16.mxu0 0
        %3988 = vmatpush1.bf16.msra.mxu0 0
        %3989 = vmatprep.subr.bf16.mxu0 0
        %3990 = vmatpush1.bf16.msra.mxu0 0
        %3991 = vmatprep.subr.bf16.mxu0 0
        %3992 = vmatpush1.bf16.msra.mxu0 0
        %3993 = vmatprep.subr.bf16.mxu0 0
        %3994 = vmatpush1.bf16.msra.mxu0 0
        %3995 = vmatprep.subr.bf16.mxu0 0
        %3996 = vmatpush1.bf16.msra.mxu0 0
        %3997 = vmatprep.subr.bf16.mxu0 0
        %3998 = vmatpush1.bf16.msra.mxu0 0
        %3999 = vmatprep.subr.bf16.mxu0 0
        %4000 = vmatpush1.bf16.msra.mxu0 0
        %4001 = vmatprep.subr.bf16.mxu0 0
        %4002 = vmatpush1.bf16.msra.mxu0 0
        %4003 = vmatprep.subr.bf16.mxu0 0
        %4004 = vmatpush1.bf16.msra.mxu0 0
        %4005 = vmatprep.subr.bf16.mxu0 0
        %4006 = vmatpush1.bf16.msra.mxu0 0
        %4007 = vmatprep.subr.bf16.mxu0 0
        %4008 = vmatpush1.bf16.msra.mxu0 0
        %4009 = vmatprep.subr.bf16.mxu0 0
        %4010 = vmatpush1.bf16.msra.mxu0 0
        %4011 = vmatprep.subr.bf16.mxu0 0
        %4012 = vmatpush1.bf16.msra.mxu0 0
        %4013 = vmatprep.subr.bf16.mxu0 0
        %4014 = vmatpush1.bf16.msra.mxu0 0
        %4015 = vmatprep.mubr.bf16.mxu0 0
        %4016 = vmatmul.mubr.bf16.gmra.mrb[0].mxu0 %v2859
        %v4017 = vpop.f32.mrb[0].mxu0
        %v4018 = vadd.f32 %v3969, %v4017
        %v4019 = vpop.f32.mrb[0].mxu0
        %v4020 = vpop.f32.mrb[0].mxu0
        %v4021 = vpop.f32.mrb[0].mxu0
        %4022 = vdwg.mxu0
        %s4023 = scalar_lea.vmem %s4, 112
        %v4024 = vld [vmem:[%s4023] sm:$0xf]
        %v4025 = vld [vmem:[%s4023 + $0x4] sm:$0xf]
        %v4026 = vld [vmem:[%s4023 + $0x8] sm:$0xf]
        %v4027 = vld [vmem:[%s4023 + $0xc] sm:$0xf]
        %s4028 = scalar_lea.vmem [#allocation5], 7
        %v4029 = vld [vmem:[%s4028] sm:$0x1]
        %v4031 = vlaneseq
        %v4032 = vshrl.u32 %v4031, 7
        %v4033 = vsub.s32 0, %v4032
        %v4034 = vrot.slane %v4029, %v4033
        %v4040 = vunpack.c.l.b16 %v4024
        %v4041 = vunpack.c.l.b16 %v4025
        %v4042 = vunpack.c.l.b16 %v4026
        %v4043 = vunpack.c.l.b16 %v4027
        %v4044 = vpack.c.b16 %v4041, %v4040
        %v4045 = vpack.c.b16 %v4043, %v4042
        %4048 = vmatprep.subr.bf16.mxu0 0
        %4049 = vmatpush1.bf16.msra.mxu0 %v4044
        %4050 = vmatprep.subr.bf16.mxu0 0
        %4051 = vmatpush1.bf16.msra.mxu0 %v4045
        %4052 = vmatprep.subr.bf16.mxu0 0
        %4053 = vmatpush1.bf16.msra.mxu0 0
        %4054 = vmatprep.subr.bf16.mxu0 0
        %4055 = vmatpush1.bf16.msra.mxu0 0
        %4056 = vmatprep.subr.bf16.mxu0 0
        %4057 = vmatpush1.bf16.msra.mxu0 0
        %4058 = vmatprep.subr.bf16.mxu0 0
        %4059 = vmatpush1.bf16.msra.mxu0 0
        %4060 = vmatprep.subr.bf16.mxu0 0
        %4061 = vmatpush1.bf16.msra.mxu0 0
        %4062 = vmatprep.subr.bf16.mxu0 0
        %4063 = vmatpush1.bf16.msra.mxu0 0
        %4064 = vmatprep.subr.bf16.mxu0 0
        %4065 = vmatpush1.bf16.msra.mxu0 0
        %4066 = vmatprep.subr.bf16.mxu0 0
        %4067 = vmatpush1.bf16.msra.mxu0 0
        %4068 = vmatprep.subr.bf16.mxu0 0
        %4069 = vmatpush1.bf16.msra.mxu0 0
        %4070 = vmatprep.subr.bf16.mxu0 0
        %4071 = vmatpush1.bf16.msra.mxu0 0
        %4072 = vmatprep.subr.bf16.mxu0 0
        %4073 = vmatpush1.bf16.msra.mxu0 0
        %4074 = vmatprep.subr.bf16.mxu0 0
        %4075 = vmatpush1.bf16.msra.mxu0 0
        %4076 = vmatprep.subr.bf16.mxu0 0
        %4077 = vmatpush1.bf16.msra.mxu0 0
        %4078 = vmatprep.subr.bf16.mxu0 0
        %4079 = vmatpush1.bf16.msra.mxu0 0
        %4080 = vmatprep.mubr.bf16.mxu0 0
        %4081 = vmatmul.mubr.bf16.gmra.mrb[0].mxu0 %v2859
        %v4082 = vpop.f32.mrb[0].mxu0
        %v4083 = vadd.f32 %v4034, %v4082
        %v4084 = vpop.f32.mrb[0].mxu0
        %v4085 = vpop.f32.mrb[0].mxu0
        %v4086 = vpop.f32.mrb[0].mxu0
        %4087 = vdwg.mxu0
        %v4088 = vpack.c.bf16 %v4018, %v4018
        %v4089 = vpack.c.bf16 %v4083, %v4083
        %v4091 = vsel %vm871, %v4088, 0
        %v4094 = vsel %vm871, %v4089, 0
        %4096 = vmatprep.subr.bf16.mxu0 0
        %4097 = vmatpush1.bf16.xpose.msra.mxu0 %v4094
        %4098 = vmatprep.subr.bf16.mxu0 0
        %4099 = vmatpush1.bf16.xpose.msra.mxu0 0
        %4100 = vmatprep.subr.bf16.mxu0 0
        %4101 = vmatpush1.bf16.xpose.msra.mxu0 0
        %4102 = vmatprep.subr.bf16.mxu0 0
        %4103 = vmatpush1.bf16.xpose.msra.mxu0 0
        %4104 = vmatprep.subr.bf16.mxu0 0
        %4105 = vmatpush1.bf16.xpose.msra.mxu0 0
        %4106 = vmatprep.subr.bf16.mxu0 0
        %4107 = vmatpush1.bf16.xpose.msra.mxu0 0
        %4108 = vmatprep.subr.bf16.mxu0 0
        %4109 = vmatpush1.bf16.xpose.msra.mxu0 0
        %4110 = vmatprep.subr.bf16.mxu0 0
        %4111 = vmatpush1.bf16.xpose.msra.mxu0 0
        %4112 = vmatprep.subr.bf16.mxu0 0
        %4113 = vmatpush1.bf16.xpose.msra.mxu0 0
        %4114 = vmatprep.subr.bf16.mxu0 0
        %4115 = vmatpush1.bf16.xpose.msra.mxu0 0
        %4116 = vmatprep.subr.bf16.mxu0 0
        %4117 = vmatpush1.bf16.xpose.msra.mxu0 0
        %4118 = vmatprep.subr.bf16.mxu0 0
        %4119 = vmatpush1.bf16.xpose.msra.mxu0 0
        %4120 = vmatprep.subr.bf16.mxu0 0
        %4121 = vmatpush1.bf16.xpose.msra.mxu0 0
        %4122 = vmatprep.subr.bf16.mxu0 0
        %4123 = vmatpush1.bf16.xpose.msra.mxu0 0
        %4124 = vmatprep.subr.bf16.mxu0 0
        %4125 = vmatpush1.bf16.xpose.msra.mxu0 0
        %4126 = vmatprep.subr.bf16.mxu0 0
        %4127 = vmatpush1.bf16.xpose.msra.mxu0 0
        %4128 = vmatprep.mubr.bf16.mxu0 0
        %4129 = vmatmul.mubr.bf16.gmra.mrb[0].mxu0 %v4091
        %v4130 = vpop.f32.mrb[0].mxu0
        %v4131 = vadd.f32 0.0, %v4130
        %v4132 = vpop.f32.mrb[0].mxu0
        %v4133 = vpop.f32.mrb[0].mxu0
        %v4134 = vpop.f32.mrb[0].mxu0
        %4135 = vdwg.mxu0
        %v4136 = vmul.f32 %v4131, 0.35355338
        %v4137 = vsel %vm871, %v4136, -inf
        %4138 = vmax.xlane.f32.xlu0 %v4137
        %v4139 = vpop.xlane.xlu0 %4138
        %v4140 = vsub.f32 %v4136, %v4139
        %v4141 = vmul.f32 %v4140, 1.442695
        %v4142 = vpow.pop %v4141
        %v4143 = vsel %vm871, %v4142, 0.0
        %4144 = vadd.xlane.f32.xlu0 %v4143
        %v4145 = vpop.xlane.xlu0 %4144
        %v4146 = vrcp.pop %v4145
        %v4147 = vmul.f32 %v4142, %v4146
        %v4148 = vpack.c.bf16 %v4147, %v4147
        %v4149 = vpack.c.bf16 %v3953, %v3953
        %v4151 = vsel %vm871, %v4148, 0
        %v4154 = vsel %vm935, %v4149, 0
        %4156 = vmatprep.subr.bf16.mxu0 0
        %4157 = vmatpush1.bf16.msra.mxu0 %v4154
        %4158 = vmatprep.subr.bf16.mxu0 0
        %4159 = vmatpush1.bf16.msra.mxu0 0
        %4160 = vmatprep.subr.bf16.mxu0 0
        %4161 = vmatpush1.bf16.msra.mxu0 0
        %4162 = vmatprep.subr.bf16.mxu0 0
        %4163 = vmatpush1.bf16.msra.mxu0 0
        %4164 = vmatprep.subr.bf16.mxu0 0
        %4165 = vmatpush1.bf16.msra.mxu0 0
        %4166 = vmatprep.subr.bf16.mxu0 0
        %4167 = vmatpush1.bf16.msra.mxu0 0
        %4168 = vmatprep.subr.bf16.mxu0 0
        %4169 = vmatpush1.bf16.msra.mxu0 0
        %4170 = vmatprep.subr.bf16.mxu0 0
        %4171 = vmatpush1.bf16.msra.mxu0 0
        %4172 = vmatprep.subr.bf16.mxu0 0
        %4173 = vmatpush1.bf16.msra.mxu0 0
        %4174 = vmatprep.subr.bf16.mxu0 0
        %4175 = vmatpush1.bf16.msra.mxu0 0
        %4176 = vmatprep.subr.bf16.mxu0 0
        %4177 = vmatpush1.bf16.msra.mxu0 0
        %4178 = vmatprep.subr.bf16.mxu0 0
        %4179 = vmatpush1.bf16.msra.mxu0 0
        %4180 = vmatprep.subr.bf16.mxu0 0
        %4181 = vmatpush1.bf16.msra.mxu0 0
        %4182 = vmatprep.subr.bf16.mxu0 0
        %4183 = vmatpush1.bf16.msra.mxu0 0
        %4184 = vmatprep.subr.bf16.mxu0 0
        %4185 = vmatpush1.bf16.msra.mxu0 0
        %4186 = vmatprep.subr.bf16.mxu0 0
        %4187 = vmatpush1.bf16.msra.mxu0 0
        %4188 = vmatprep.mubr.bf16.mxu0 0
        %4189 = vmatmul.mubr.bf16.gmra.mrb[0].mxu0 %v4151
        %v4190 = vpop.f32.mrb[0].mxu0
        %v4191 = vadd.f32 0.0, %v4190
        %v4192 = vpop.f32.mrb[0].mxu0
        %v4193 = vpop.f32.mrb[0].mxu0
        %v4194 = vpop.f32.mrb[0].mxu0
        %4195 = vdwg.mxu0
        %s4196 = scalar_lea.vmem %s8, 28
        %v4197 = vld [vmem:[%s4196] sm:$0xf]
        %v4198 = vpack.c.bf16 %v4191, %v4191
        %v4200 = vsel %vm871, %v4198, 0
        %v4203 = vsel %vm935, %v4197, 0
        %4205 = vmatprep.subr.bf16.mxu0 0
        %4206 = vmatpush1.bf16.msra.mxu0 %v4203
        %4207 = vmatprep.subr.bf16.mxu0 0
        %4208 = vmatpush1.bf16.msra.mxu0 0
        %4209 = vmatprep.subr.bf16.mxu0 0
        %4210 = vmatpush1.bf16.msra.mxu0 0
        %4211 = vmatprep.subr.bf16.mxu0 0
        %4212 = vmatpush1.bf16.msra.mxu0 0
        %4213 = vmatprep.subr.bf16.mxu0 0
        %4214 = vmatpush1.bf16.msra.mxu0 0
        %4215 = vmatprep.subr.bf16.mxu0 0
        %4216 = vmatpush1.bf16.msra.mxu0 0
        %4217 = vmatprep.subr.bf16.mxu0 0
        %4218 = vmatpush1.bf16.msra.mxu0 0
        %4219 = vmatprep.subr.bf16.mxu0 0
        %4220 = vmatpush1.bf16.msra.mxu0 0
        %4221 = vmatprep.subr.bf16.mxu0 0
        %4222 = vmatpush1.bf16.msra.mxu0 0
        %4223 = vmatprep.subr.bf16.mxu0 0
        %4224 = vmatpush1.bf16.msra.mxu0 0
        %4225 = vmatprep.subr.bf16.mxu0 0
        %4226 = vmatpush1.bf16.msra.mxu0 0
        %4227 = vmatprep.subr.bf16.mxu0 0
        %4228 = vmatpush1.bf16.msra.mxu0 0
        %4229 = vmatprep.subr.bf16.mxu0 0
        %4230 = vmatpush1.bf16.msra.mxu0 0
        %4231 = vmatprep.subr.bf16.mxu0 0
        %4232 = vmatpush1.bf16.msra.mxu0 0
        %4233 = vmatprep.subr.bf16.mxu0 0
        %4234 = vmatpush1.bf16.msra.mxu0 0
        %4235 = vmatprep.subr.bf16.mxu0 0
        %4236 = vmatpush1.bf16.msra.mxu0 0
        %4237 = vmatprep.mubr.bf16.mxu0 0
        %4238 = vmatmul.mubr.bf16.gmra.mrb[0].mxu0 %v4200
        %v4239 = vpop.f32.mrb[0].mxu0
        %v4240 = vadd.f32 0.0, %v4239
        %v4241 = vpop.f32.mrb[0].mxu0
        %v4242 = vpop.f32.mrb[0].mxu0
        %v4243 = vpop.f32.mrb[0].mxu0
        %4244 = vdwg.mxu0
        %v4245 = vadd.f32 %v3892, %v4240
        %s4246 = scalar_lea.vmem [#allocation8], 1
        %v4247 = vld [vmem:[%s4246] sm:$0x1]
        %v4249 = vlaneseq
        %v4250 = vshrl.u32 %v4249, 7
        %v4251 = vsub.s32 0, %v4250
        %v4252 = vrot.slane %v4247, %v4251
        %v4254 = vadd.f32 %v4245, %v4252
        %v4255 = vadd.f32 %v2831, %v4254
        %v4256 = vsel %vm699, %v4255, 0.0
        %4257 = vadd.xlane.f32.xlu0 %v4256
        %v4258 = vpop.xlane.xlu0 %4257
        %v4259 = vmul.f32 %v4258, %v2097
        %v4260 = vsub.f32 %v4255, %v4259
        %v4261 = vmul.f32 %v4260, %v4260
        %v4262 = vsel %vm699, %v4261, 0.0
        %4263 = vadd.xlane.f32.xlu0 %v4262
        %v4264 = vpop.xlane.xlu0 %4263
        %v4265 = vmul.f32 %v4264, %v2097
        %v4266 = vadd.f32 %v4265, 1e-05
        %v4267 = vrsqrt.pop %v4266
        %v4268 = vmul.f32 %v4260, %v4267
        %s4269 = scalar_lea.vmem %s14, 3
        %v4270 = vld [vmem:[%s4269] sm:$0x1]
        %v4272 = vlaneseq
        %v4273 = vshrl.u32 %v4272, 7
        %v4274 = vsub.s32 0, %v4273
        %v4275 = vrot.slane %v4270, %v4274
        %v4277 = vmul.f32 %v4268, %v4275
        %s4278 = scalar_lea.vmem %s15, 3
        %v4279 = vld [vmem:[%s4278] sm:$0x1]
        %v4281 = vlaneseq
        %v4282 = vshrl.u32 %v4281, 7
        %v4283 = vsub.s32 0, %v4282
        %v4284 = vrot.slane %v4279, %v4283
        %v4286 = vadd.f32 %v4277, %v4284
        %s4287 = scalar_lea.vmem %s6, 192
        %v4288 = vld [vmem:[%s4287] sm:$0xf]
        %v4289 = vld [vmem:[%s4287 + $0x4] sm:$0xf]
        %v4290 = vld [vmem:[%s4287 + $0x8] sm:$0xf]
        %v4291 = vld [vmem:[%s4287 + $0xc] sm:$0xf]
        %s4292 = scalar_lea.vmem [#allocation7], 12
        %v4293 = vld [vmem:[%s4292] sm:$0x1]
        %v4298 = vunpack.c.l.b16 %v4288
        %v4299 = vunpack.c.l.b16 %v4289
        %v4300 = vunpack.c.l.b16 %v4290
        %v4301 = vunpack.c.l.b16 %v4291
        %v4302 = vpack.c.b16 %v4299, %v4298
        %v4303 = vpack.c.b16 %v4301, %v4300
        %4306 = vmatprep.subr.bf16.mxu0 0
        %4307 = vmatpush1.bf16.msra.mxu0 %v4302
        %4308 = vmatprep.subr.bf16.mxu0 0
        %4309 = vmatpush1.bf16.msra.mxu0 %v4303
        %4310 = vmatprep.subr.bf16.mxu0 0
        %4311 = vmatpush1.bf16.msra.mxu0 0
        %4312 = vmatprep.subr.bf16.mxu0 0
        %4313 = vmatpush1.bf16.msra.mxu0 0
        %4314 = vmatprep.subr.bf16.mxu0 0
        %4315 = vmatpush1.bf16.msra.mxu0 0
        %4316 = vmatprep.subr.bf16.mxu0 0
        %4317 = vmatpush1.bf16.msra.mxu0 0
        %4318 = vmatprep.subr.bf16.mxu0 0
        %4319 = vmatpush1.bf16.msra.mxu0 0
        %4320 = vmatprep.subr.bf16.mxu0 0
        %4321 = vmatpush1.bf16.msra.mxu0 0
        %4322 = vmatprep.subr.bf16.mxu0 0
        %4323 = vmatpush1.bf16.msra.mxu0 0
        %4324 = vmatprep.subr.bf16.mxu0 0
        %4325 = vmatpush1.bf16.msra.mxu0 0
        %4326 = vmatprep.subr.bf16.mxu0 0
        %4327 = vmatpush1.bf16.msra.mxu0 0
        %4328 = vmatprep.subr.bf16.mxu0 0
        %4329 = vmatpush1.bf16.msra.mxu0 0
        %4330 = vmatprep.subr.bf16.mxu0 0
        %4331 = vmatpush1.bf16.msra.mxu0 0
        %4332 = vmatprep.subr.bf16.mxu0 0
        %4333 = vmatpush1.bf16.msra.mxu0 0
        %4334 = vmatprep.subr.bf16.mxu0 0
        %4335 = vmatpush1.bf16.msra.mxu0 0
        %4336 = vmatprep.subr.bf16.mxu0 0
        %4337 = vmatpush1.bf16.msra.mxu0 0
        %4338 = vmatprep.mubr.bf16.mxu0 0
        %4339 = vmatmul.mubr.bf16.gmra.mrb[0].mxu0 %v2145
        %v4340 = vpop.f32.mrb[0].mxu0
        %v4341 = vadd.f32 %v4293, %v4340
        %v4342 = vpop.f32.mrb[0].mxu0
        %v4343 = vpop.f32.mrb[0].mxu0
        %v4344 = vpop.f32.mrb[0].mxu0
        %4345 = vdwg.mxu0
        %v4346 = vlaneseq
        %v4347 = vshrl.u32 %v4346, 7
        %v4348 = vsub.s32 0, %v4347
        %v4349 = vrot.slane %v4341, %v4348
        %s4350 = scalar_lea.vmem %s8, 48
        %v4351 = vld [vmem:[%s4350] sm:$0xf]
        %v4352 = vpack.c.bf16 %v4349, %v4349
        %s4353 = scalar_lea.vmem %s6, 208
        %v4354 = vld [vmem:[%s4353] sm:$0xf]
        %v4355 = vld [vmem:[%s4353 + $0x4] sm:$0xf]
        %v4356 = vld [vmem:[%s4353 + $0x8] sm:$0xf]
        %v4357 = vld [vmem:[%s4353 + $0xc] sm:$0xf]
        %s4358 = scalar_lea.vmem [#allocation7], 13
        %v4359 = vld [vmem:[%s4358] sm:$0x1]
        %v4364 = vunpack.c.l.b16 %v4354
        %v4365 = vunpack.c.l.b16 %v4355
        %v4366 = vunpack.c.l.b16 %v4356
        %v4367 = vunpack.c.l.b16 %v4357
        %v4368 = vpack.c.b16 %v4365, %v4364
        %v4369 = vpack.c.b16 %v4367, %v4366
        %4372 = vmatprep.subr.bf16.mxu0 0
        %4373 = vmatpush1.bf16.msra.mxu0 %v4368
        %4374 = vmatprep.subr.bf16.mxu0 0
        %4375 = vmatpush1.bf16.msra.mxu0 %v4369
        %4376 = vmatprep.subr.bf16.mxu0 0
        %4377 = vmatpush1.bf16.msra.mxu0 0
        %4378 = vmatprep.subr.bf16.mxu0 0
        %4379 = vmatpush1.bf16.msra.mxu0 0
        %4380 = vmatprep.subr.bf16.mxu0 0
        %4381 = vmatpush1.bf16.msra.mxu0 0
        %4382 = vmatprep.subr.bf16.mxu0 0
        %4383 = vmatpush1.bf16.msra.mxu0 0
        %4384 = vmatprep.subr.bf16.mxu0 0
        %4385 = vmatpush1.bf16.msra.mxu0 0
        %4386 = vmatprep.subr.bf16.mxu0 0
        %4387 = vmatpush1.bf16.msra.mxu0 0
        %4388 = vmatprep.subr.bf16.mxu0 0
        %4389 = vmatpush1.bf16.msra.mxu0 0
        %4390 = vmatprep.subr.bf16.mxu0 0
        %4391 = vmatpush1.bf16.msra.mxu0 0
        %4392 = vmatprep.subr.bf16.mxu0 0
        %4393 = vmatpush1.bf16.msra.mxu0 0
        %4394 = vmatprep.subr.bf16.mxu0 0
        %4395 = vmatpush1.bf16.msra.mxu0 0
        %4396 = vmatprep.subr.bf16.mxu0 0
        %4397 = vmatpush1.bf16.msra.mxu0 0
        %4398 = vmatprep.subr.bf16.mxu0 0
        %4399 = vmatpush1.bf16.msra.mxu0 0
        %4400 = vmatprep.subr.bf16.mxu0 0
        %4401 = vmatpush1.bf16.msra.mxu0 0
        %4402 = vmatprep.subr.bf16.mxu0 0
        %4403 = vmatpush1.bf16.msra.mxu0 0
        %4404 = vmatprep.mubr.bf16.mxu0 0
        %4405 = vmatmul.mubr.bf16.gmra.mrb[0].mxu0 %v2145
        %v4406 = vpop.f32.mrb[0].mxu0
        %v4407 = vadd.f32 %v4359, %v4406
        %v4408 = vpop.f32.mrb[0].mxu0
        %v4409 = vpop.f32.mrb[0].mxu0
        %v4410 = vpop.f32.mrb[0].mxu0
        %4411 = vdwg.mxu0
        %v4412 = vlaneseq
        %v4413 = vshrl.u32 %v4412, 7
        %v4414 = vsub.s32 0, %v4413
        %v4415 = vrot.slane %v4407, %v4414
        %s4416 = scalar_lea.vmem %s8, 52
        %v4417 = vld [vmem:[%s4416] sm:$0xf]
        %v4418 = vpack.c.bf16 %v4415, %v4415
        %v4420 = vsel %vm871, %v4418, 0
        %v4423 = vsel %vm935, %v4417, 0
        %4425 = vmatprep.subr.bf16.mxu0 0
        %4426 = vmatpush1.bf16.msra.mxu0 %v4423
        %4427 = vmatprep.subr.bf16.mxu0 0
        %4428 = vmatpush1.bf16.msra.mxu0 0
        %4429 = vmatprep.subr.bf16.mxu0 0
        %4430 = vmatpush1.bf16.msra.mxu0 0
        %4431 = vmatprep.subr.bf16.mxu0 0
        %4432 = vmatpush1.bf16.msra.mxu0 0
        %4433 = vmatprep.subr.bf16.mxu0 0
        %4434 = vmatpush1.bf16.msra.mxu0 0
        %4435 = vmatprep.subr.bf16.mxu0 0
        %4436 = vmatpush1.bf16.msra.mxu0 0
        %4437 = vmatprep.subr.bf16.mxu0 0
        %4438 = vmatpush1.bf16.msra.mxu0 0
        %4439 = vmatprep.subr.bf16.mxu0 0
        %4440 = vmatpush1.bf16.msra.mxu0 0
        %4441 = vmatprep.subr.bf16.mxu0 0
        %4442 = vmatpush1.bf16.msra.mxu0 0
        %4443 = vmatprep.subr.bf16.mxu0 0
        %4444 = vmatpush1.bf16.msra.mxu0 0
        %4445 = vmatprep.subr.bf16.mxu0 0
        %4446 = vmatpush1.bf16.msra.mxu0 0
        %4447 = vmatprep.subr.bf16.mxu0 0
        %4448 = vmatpush1.bf16.msra.mxu0 0
        %4449 = vmatprep.subr.bf16.mxu0 0
        %4450 = vmatpush1.bf16.msra.mxu0 0
        %4451 = vmatprep.subr.bf16.mxu0 0
        %4452 = vmatpush1.bf16.msra.mxu0 0
        %4453 = vmatprep.subr.bf16.mxu0 0
        %4454 = vmatpush1.bf16.msra.mxu0 0
        %4455 = vmatprep.subr.bf16.mxu0 0
        %4456 = vmatpush1.bf16.msra.mxu0 0
        %4457 = vmatprep.mubr.bf16.mxu0 0
        %4458 = vmatmul.mubr.bf16.gmra.mrb[0].mxu0 %v4420
        %v4459 = vpop.f32.mrb[0].mxu0
        %v4460 = vadd.f32 0.0, %v4459
        %v4461 = vpop.f32.mrb[0].mxu0
        %v4462 = vpop.f32.mrb[0].mxu0
        %v4463 = vpop.f32.mrb[0].mxu0
        %4464 = vdwg.mxu0
        %v4466 = vsel %vm871, %v4352, 0
        %v4469 = vsel %vm935, %v4351, 0
        %4471 = vmatprep.subr.bf16.mxu0 0
        %4472 = vmatpush1.bf16.msra.mxu0 %v4469
        %4473 = vmatprep.subr.bf16.mxu0 0
        %4474 = vmatpush1.bf16.msra.mxu0 0
        %4475 = vmatprep.subr.bf16.mxu0 0
        %4476 = vmatpush1.bf16.msra.mxu0 0
        %4477 = vmatprep.subr.bf16.mxu0 0
        %4478 = vmatpush1.bf16.msra.mxu0 0
        %4479 = vmatprep.subr.bf16.mxu0 0
        %4480 = vmatpush1.bf16.msra.mxu0 0
        %4481 = vmatprep.subr.bf16.mxu0 0
        %4482 = vmatpush1.bf16.msra.mxu0 0
        %4483 = vmatprep.subr.bf16.mxu0 0
        %4484 = vmatpush1.bf16.msra.mxu0 0
        %4485 = vmatprep.subr.bf16.mxu0 0
        %4486 = vmatpush1.bf16.msra.mxu0 0
        %4487 = vmatprep.subr.bf16.mxu0 0
        %4488 = vmatpush1.bf16.msra.mxu0 0
        %4489 = vmatprep.subr.bf16.mxu0 0
        %4490 = vmatpush1.bf16.msra.mxu0 0
        %4491 = vmatprep.subr.bf16.mxu0 0
        %4492 = vmatpush1.bf16.msra.mxu0 0
        %4493 = vmatprep.subr.bf16.mxu0 0
        %4494 = vmatpush1.bf16.msra.mxu0 0
        %4495 = vmatprep.subr.bf16.mxu0 0
        %4496 = vmatpush1.bf16.msra.mxu0 0
        %4497 = vmatprep.subr.bf16.mxu0 0
        %4498 = vmatpush1.bf16.msra.mxu0 0
        %4499 = vmatprep.subr.bf16.mxu0 0
        %4500 = vmatpush1.bf16.msra.mxu0 0
        %4501 = vmatprep.subr.bf16.mxu0 0
        %4502 = vmatpush1.bf16.msra.mxu0 0
        %4503 = vmatprep.mubr.bf16.mxu0 0
        %4504 = vmatmul.mubr.bf16.gmra.mrb[0].mxu0 %v4466
        %v4505 = vpop.f32.mrb[0].mxu0
        %v4506 = vadd.f32 %v4460, %v4505
        %v4507 = vpop.f32.mrb[0].mxu0
        %v4508 = vpop.f32.mrb[0].mxu0
        %v4509 = vpop.f32.mrb[0].mxu0
        %4510 = vdwg.mxu0
        %s4511 = scalar_lea.vmem %s6, 224
        %v4512 = vld [vmem:[%s4511] sm:$0xf]
        %v4513 = vld [vmem:[%s4511 + $0x4] sm:$0xf]
        %v4514 = vld [vmem:[%s4511 + $0x8] sm:$0xf]
        %v4515 = vld [vmem:[%s4511 + $0xc] sm:$0xf]
        %s4516 = scalar_lea.vmem [#allocation7], 14
        %v4517 = vld [vmem:[%s4516] sm:$0x1]
        %v4522 = vunpack.c.l.b16 %v4512
        %v4523 = vunpack.c.l.b16 %v4513
        %v4524 = vunpack.c.l.b16 %v4514
        %v4525 = vunpack.c.l.b16 %v4515
        %v4526 = vpack.c.b16 %v4523, %v4522
        %v4527 = vpack.c.b16 %v4525, %v4524
        %4530 = vmatprep.subr.bf16.mxu0 0
        %4531 = vmatpush1.bf16.msra.mxu0 %v4526
        %4532 = vmatprep.subr.bf16.mxu0 0
        %4533 = vmatpush1.bf16.msra.mxu0 %v4527
        %4534 = vmatprep.subr.bf16.mxu0 0
        %4535 = vmatpush1.bf16.msra.mxu0 0
        %4536 = vmatprep.subr.bf16.mxu0 0
        %4537 = vmatpush1.bf16.msra.mxu0 0
        %4538 = vmatprep.subr.bf16.mxu0 0
        %4539 = vmatpush1.bf16.msra.mxu0 0
        %4540 = vmatprep.subr.bf16.mxu0 0
        %4541 = vmatpush1.bf16.msra.mxu0 0
        %4542 = vmatprep.subr.bf16.mxu0 0
        %4543 = vmatpush1.bf16.msra.mxu0 0
        %4544 = vmatprep.subr.bf16.mxu0 0
        %4545 = vmatpush1.bf16.msra.mxu0 0
        %4546 = vmatprep.subr.bf16.mxu0 0
        %4547 = vmatpush1.bf16.msra.mxu0 0
        %4548 = vmatprep.subr.bf16.mxu0 0
        %4549 = vmatpush1.bf16.msra.mxu0 0
        %4550 = vmatprep.subr.bf16.mxu0 0
        %4551 = vmatpush1.bf16.msra.mxu0 0
        %4552 = vmatprep.subr.bf16.mxu0 0
        %4553 = vmatpush1.bf16.msra.mxu0 0
        %4554 = vmatprep.subr.bf16.mxu0 0
        %4555 = vmatpush1.bf16.msra.mxu0 0
        %4556 = vmatprep.subr.bf16.mxu0 0
        %4557 = vmatpush1.bf16.msra.mxu0 0
        %4558 = vmatprep.subr.bf16.mxu0 0
        %4559 = vmatpush1.bf16.msra.mxu0 0
        %4560 = vmatprep.subr.bf16.mxu0 0
        %4561 = vmatpush1.bf16.msra.mxu0 0
        %4562 = vmatprep.mubr.bf16.mxu0 0
        %4563 = vmatmul.mubr.bf16.gmra.mrb[0].mxu0 %v2145
        %v4564 = vpop.f32.mrb[0].mxu0
        %v4565 = vadd.f32 %v4517, %v4564
        %v4566 = vpop.f32.mrb[0].mxu0
        %v4567 = vpop.f32.mrb[0].mxu0
        %v4568 = vpop.f32.mrb[0].mxu0
        %4569 = vdwg.mxu0
        %v4570 = vlaneseq
        %v4571 = vshrl.u32 %v4570, 7
        %v4572 = vsub.s32 0, %v4571
        %v4573 = vrot.slane %v4565, %v4572
        %s4574 = scalar_lea.vmem %s8, 56
        %v4575 = vld [vmem:[%s4574] sm:$0xf]
        %v4576 = vpack.c.bf16 %v4573, %v4573
        %v4578 = vsel %vm871, %v4576, 0
        %v4581 = vsel %vm935, %v4575, 0
        %4583 = vmatprep.subr.bf16.mxu0 0
        %4584 = vmatpush1.bf16.msra.mxu0 %v4581
        %4585 = vmatprep.subr.bf16.mxu0 0
        %4586 = vmatpush1.bf16.msra.mxu0 0
        %4587 = vmatprep.subr.bf16.mxu0 0
        %4588 = vmatpush1.bf16.msra.mxu0 0
        %4589 = vmatprep.subr.bf16.mxu0 0
        %4590 = vmatpush1.bf16.msra.mxu0 0
        %4591 = vmatprep.subr.bf16.mxu0 0
        %4592 = vmatpush1.bf16.msra.mxu0 0
        %4593 = vmatprep.subr.bf16.mxu0 0
        %4594 = vmatpush1.bf16.msra.mxu0 0
        %4595 = vmatprep.subr.bf16.mxu0 0
        %4596 = vmatpush1.bf16.msra.mxu0 0
        %4597 = vmatprep.subr.bf16.mxu0 0
        %4598 = vmatpush1.bf16.msra.mxu0 0
        %4599 = vmatprep.subr.bf16.mxu0 0
        %4600 = vmatpush1.bf16.msra.mxu0 0
        %4601 = vmatprep.subr.bf16.mxu0 0
        %4602 = vmatpush1.bf16.msra.mxu0 0
        %4603 = vmatprep.subr.bf16.mxu0 0
        %4604 = vmatpush1.bf16.msra.mxu0 0
        %4605 = vmatprep.subr.bf16.mxu0 0
        %4606 = vmatpush1.bf16.msra.mxu0 0
        %4607 = vmatprep.subr.bf16.mxu0 0
        %4608 = vmatpush1.bf16.msra.mxu0 0
        %4609 = vmatprep.subr.bf16.mxu0 0
        %4610 = vmatpush1.bf16.msra.mxu0 0
        %4611 = vmatprep.subr.bf16.mxu0 0
        %4612 = vmatpush1.bf16.msra.mxu0 0
        %4613 = vmatprep.subr.bf16.mxu0 0
        %4614 = vmatpush1.bf16.msra.mxu0 0
        %4615 = vmatprep.mubr.bf16.mxu0 0
        %4616 = vmatmul.mubr.bf16.gmra.mrb[0].mxu0 %v4578
        %v4617 = vpop.f32.mrb[0].mxu0
        %v4618 = vadd.f32 0.0, %v4617
        %v4619 = vpop.f32.mrb[0].mxu0
        %v4620 = vpop.f32.mrb[0].mxu0
        %v4621 = vpop.f32.mrb[0].mxu0
        %4622 = vdwg.mxu0
        %v4623 = vadd.f32 %v4506, %v4618
        %s4624 = scalar_lea.vmem %s6, 240
        %v4625 = vld [vmem:[%s4624] sm:$0xf]
        %v4626 = vld [vmem:[%s4624 + $0x4] sm:$0xf]
        %v4627 = vld [vmem:[%s4624 + $0x8] sm:$0xf]
        %v4628 = vld [vmem:[%s4624 + $0xc] sm:$0xf]
        %s4629 = scalar_lea.vmem [#allocation7], 15
        %v4630 = vld [vmem:[%s4629] sm:$0x1]
        %v4635 = vunpack.c.l.b16 %v4625
        %v4636 = vunpack.c.l.b16 %v4626
        %v4637 = vunpack.c.l.b16 %v4627
        %v4638 = vunpack.c.l.b16 %v4628
        %v4639 = vpack.c.b16 %v4636, %v4635
        %v4640 = vpack.c.b16 %v4638, %v4637
        %4643 = vmatprep.subr.bf16.mxu0 0
        %4644 = vmatpush1.bf16.msra.mxu0 %v4639
        %4645 = vmatprep.subr.bf16.mxu0 0
        %4646 = vmatpush1.bf16.msra.mxu0 %v4640
        %4647 = vmatprep.subr.bf16.mxu0 0
        %4648 = vmatpush1.bf16.msra.mxu0 0
        %4649 = vmatprep.subr.bf16.mxu0 0
        %4650 = vmatpush1.bf16.msra.mxu0 0
        %4651 = vmatprep.subr.bf16.mxu0 0
        %4652 = vmatpush1.bf16.msra.mxu0 0
        %4653 = vmatprep.subr.bf16.mxu0 0
        %4654 = vmatpush1.bf16.msra.mxu0 0
        %4655 = vmatprep.subr.bf16.mxu0 0
        %4656 = vmatpush1.bf16.msra.mxu0 0
        %4657 = vmatprep.subr.bf16.mxu0 0
        %4658 = vmatpush1.bf16.msra.mxu0 0
        %4659 = vmatprep.subr.bf16.mxu0 0
        %4660 = vmatpush1.bf16.msra.mxu0 0
        %4661 = vmatprep.subr.bf16.mxu0 0
        %4662 = vmatpush1.bf16.msra.mxu0 0
        %4663 = vmatprep.subr.bf16.mxu0 0
        %4664 = vmatpush1.bf16.msra.mxu0 0
        %4665 = vmatprep.subr.bf16.mxu0 0
        %4666 = vmatpush1.bf16.msra.mxu0 0
        %4667 = vmatprep.subr.bf16.mxu0 0
        %4668 = vmatpush1.bf16.msra.mxu0 0
        %4669 = vmatprep.subr.bf16.mxu0 0
        %4670 = vmatpush1.bf16.msra.mxu0 0
        %4671 = vmatprep.subr.bf16.mxu0 0
        %4672 = vmatpush1.bf16.msra.mxu0 0
        %4673 = vmatprep.subr.bf16.mxu0 0
        %4674 = vmatpush1.bf16.msra.mxu0 0
        %4675 = vmatprep.mubr.bf16.mxu0 0
        %4676 = vmatmul.mubr.bf16.gmra.mrb[0].mxu0 %v2145
        %v4677 = vpop.f32.mrb[0].mxu0
        %v4678 = vadd.f32 %v4630, %v4677
        %v4679 = vpop.f32.mrb[0].mxu0
        %v4680 = vpop.f32.mrb[0].mxu0
        %v4681 = vpop.f32.mrb[0].mxu0
        %4682 = vdwg.mxu0
        %v4683 = vlaneseq
        %v4684 = vshrl.u32 %v4683, 7
        %v4685 = vsub.s32 0, %v4684
        %v4686 = vrot.slane %v4678, %v4685
        %s4687 = scalar_lea.vmem %s8, 60
        %v4688 = vld [vmem:[%s4687] sm:$0xf]
        %v4689 = vpack.c.bf16 %v4686, %v4686
        %v4691 = vsel %vm871, %v4689, 0
        %v4694 = vsel %vm935, %v4688, 0
        %4696 = vmatprep.subr.bf16.mxu0 0
        %4697 = vmatpush1.bf16.msra.mxu0 %v4694
        %4698 = vmatprep.subr.bf16.mxu0 0
        %4699 = vmatpush1.bf16.msra.mxu0 0
        %4700 = vmatprep.subr.bf16.mxu0 0
        %4701 = vmatpush1.bf16.msra.mxu0 0
        %4702 = vmatprep.subr.bf16.mxu0 0
        %4703 = vmatpush1.bf16.msra.mxu0 0
        %4704 = vmatprep.subr.bf16.mxu0 0
        %4705 = vmatpush1.bf16.msra.mxu0 0
        %4706 = vmatprep.subr.bf16.mxu0 0
        %4707 = vmatpush1.bf16.msra.mxu0 0
        %4708 = vmatprep.subr.bf16.mxu0 0
        %4709 = vmatpush1.bf16.msra.mxu0 0
        %4710 = vmatprep.subr.bf16.mxu0 0
        %4711 = vmatpush1.bf16.msra.mxu0 0
        %4712 = vmatprep.subr.bf16.mxu0 0
        %4713 = vmatpush1.bf16.msra.mxu0 0
        %4714 = vmatprep.subr.bf16.mxu0 0
        %4715 = vmatpush1.bf16.msra.mxu0 0
        %4716 = vmatprep.subr.bf16.mxu0 0
        %4717 = vmatpush1.bf16.msra.mxu0 0
        %4718 = vmatprep.subr.bf16.mxu0 0
        %4719 = vmatpush1.bf16.msra.mxu0 0
        %4720 = vmatprep.subr.bf16.mxu0 0
        %4721 = vmatpush1.bf16.msra.mxu0 0
        %4722 = vmatprep.subr.bf16.mxu0 0
        %4723 = vmatpush1.bf16.msra.mxu0 0
        %4724 = vmatprep.subr.bf16.mxu0 0
        %4725 = vmatpush1.bf16.msra.mxu0 0
        %4726 = vmatprep.subr.bf16.mxu0 0
        %4727 = vmatpush1.bf16.msra.mxu0 0
        %4728 = vmatprep.mubr.bf16.mxu0 0
        %4729 = vmatmul.mubr.bf16.gmra.mrb[0].mxu0 %v4691
        %v4730 = vpop.f32.mrb[0].mxu0
        %v4731 = vadd.f32 0.0, %v4730
        %v4732 = vpop.f32.mrb[0].mxu0
        %v4733 = vpop.f32.mrb[0].mxu0
        %v4734 = vpop.f32.mrb[0].mxu0
        %4735 = vdwg.mxu0
        %v4736 = vadd.f32 %v4623, %v4731
        %s4737 = scalar_lea.vmem [#allocation8], 3
        %v4738 = vld [vmem:[%s4737] sm:$0x1]
        %v4740 = vlaneseq
        %v4741 = vshrl.u32 %v4740, 7
        %v4742 = vsub.s32 0, %v4741
        %v4743 = vrot.slane %v4738, %v4742
        %v4745 = vadd.f32 %v4736, %v4743
        %v4746 = vadd.f32 %v4286, %v4745
        %v4747 = vsel %vm699, %v4746, 0.0
        %4748 = vadd.xlane.f32.xlu0 %v4747
        %v4749 = vpop.xlane.xlu0 %4748
        %v4750 = vmul.f32 %v4749, %v2097
        %v4751 = vsub.f32 %v4746, %v4750
        %v4752 = vmul.f32 %v4751, %v4751
        %v4753 = vsel %vm699, %v4752, 0.0
        %4754 = vadd.xlane.f32.xlu0 %v4753
        %v4755 = vpop.xlane.xlu0 %4754
        %v4756 = vmul.f32 %v4755, %v2097
        %v4757 = vadd.f32 %v4756, 1e-05
        %v4758 = vrsqrt.pop %v4757
        %v4759 = vmul.f32 %v4751, %v4758
        %s4760 = scalar_lea.vmem %s14, 4
        %v4761 = vld [vmem:[%s4760] sm:$0x1]
        %v4763 = vlaneseq
        %v4764 = vshrl.u32 %v4763, 7
        %v4765 = vsub.s32 0, %v4764
        %v4766 = vrot.slane %v4761, %v4765
        %v4768 = vmul.f32 %v4759, %v4766
        %s4769 = scalar_lea.vmem %s15, 4
        %v4770 = vld [vmem:[%s4769] sm:$0x1]
        %v4772 = vlaneseq
        %v4773 = vshrl.u32 %v4772, 7
        %v4774 = vsub.s32 0, %v4773
        %v4775 = vrot.slane %v4770, %v4774
        %v4777 = vadd.f32 %v4768, %v4775
        %s4778 = scalar_lea.vmem %s10, 16
        %v4779 = vld [vmem:[%s4778] sm:$0xf]
        %v4780 = vld [vmem:[%s4778 + $0x4] sm:$0xf]
        %v4781 = vld [vmem:[%s4778 + $0x8] sm:$0xf]
        %v4782 = vld [vmem:[%s4778 + $0xc] sm:$0xf]
        %v4783 = vpack.c.bf16 %v4777, %v4777
        %s4784 = scalar_lea.vmem [#allocation10], 1
        %v4785 = vld [vmem:[%s4784] sm:$0x1]
        %v4787 = vlaneseq
        %v4788 = vshrl.u32 %v4787, 7
        %v4789 = vsub.s32 0, %v4788
        %v4790 = vrot.slane %v4785, %v4789
        %v4796 = vunpack.c.l.b16 %v4779
        %v4797 = vunpack.c.l.b16 %v4780
        %v4798 = vunpack.c.l.b16 %v4781
        %v4799 = vunpack.c.l.b16 %v4782
        %v4800 = vpack.c.b16 %v4797, %v4796
        %v4801 = vpack.c.b16 %v4799, %v4798
        %v4805 = vsel %vm699, %v4783, 0
        %4807 = vmatprep.subr.bf16.mxu0 0
        %4808 = vmatpush1.bf16.msra.mxu0 %v4800
        %4809 = vmatprep.subr.bf16.mxu0 0
        %4810 = vmatpush1.bf16.msra.mxu0 %v4801
        %4811 = vmatprep.subr.bf16.mxu0 0
        %4812 = vmatpush1.bf16.msra.mxu0 0
        %4813 = vmatprep.subr.bf16.mxu0 0
        %4814 = vmatpush1.bf16.msra.mxu0 0
        %4815 = vmatprep.subr.bf16.mxu0 0
        %4816 = vmatpush1.bf16.msra.mxu0 0
        %4817 = vmatprep.subr.bf16.mxu0 0
        %4818 = vmatpush1.bf16.msra.mxu0 0
        %4819 = vmatprep.subr.bf16.mxu0 0
        %4820 = vmatpush1.bf16.msra.mxu0 0
        %4821 = vmatprep.subr.bf16.mxu0 0
        %4822 = vmatpush1.bf16.msra.mxu0 0
        %4823 = vmatprep.subr.bf16.mxu0 0
        %4824 = vmatpush1.bf16.msra.mxu0 0
        %4825 = vmatprep.subr.bf16.mxu0 0
        %4826 = vmatpush1.bf16.msra.mxu0 0
        %4827 = vmatprep.subr.bf16.mxu0 0
        %4828 = vmatpush1.bf16.msra.mxu0 0
        %4829 = vmatprep.subr.bf16.mxu0 0
        %4830 = vmatpush1.bf16.msra.mxu0 0
        %4831 = vmatprep.subr.bf16.mxu0 0
        %4832 = vmatpush1.bf16.msra.mxu0 0
        %4833 = vmatprep.subr.bf16.mxu0 0
        %4834 = vmatpush1.bf16.msra.mxu0 0
        %4835 = vmatprep.subr.bf16.mxu0 0
        %4836 = vmatpush1.bf16.msra.mxu0 0
        %4837 = vmatprep.subr.bf16.mxu0 0
        %4838 = vmatpush1.bf16.msra.mxu0 0
        %4839 = vmatprep.mubr.bf16.mxu0 0
        %4840 = vmatmul.mubr.bf16.gmra.mrb[0].mxu0 %v4805
        %v4841 = vpop.f32.mrb[0].mxu0
        %v4842 = vadd.f32 %v4790, %v4841
        %v4843 = vpop.f32.mrb[0].mxu0
        %v4844 = vpop.f32.mrb[0].mxu0
        %v4845 = vpop.f32.mrb[0].mxu0
        %4846 = vdwg.mxu0
        %v4847 = vmax.f32 %v4842, 0.0
        %s4848 = scalar_lea.vmem %s12, 64
        %v4849 = vld [vmem:[%s4848] sm:$0xf]
        %v4850 = vld [vmem:[%s4848 + $0x4] sm:$0xf]
        %v4851 = vld [vmem:[%s4848 + $0x8] sm:$0xf]
        %v4852 = vld [vmem:[%s4848 + $0xc] sm:$0xf]
        %v4853 = vld [vmem:[%s4848 + $0x10] sm:$0xf]
        %v4854 = vld [vmem:[%s4848 + $0x14] sm:$0xf]
        %v4855 = vld [vmem:[%s4848 + $0x18] sm:$0xf]
        %v4856 = vld [vmem:[%s4848 + $0x1c] sm:$0xf]
        %v4857 = vld [vmem:[%s4848 + $0x20] sm:$0xf]
        %v4858 = vld [vmem:[%s4848 + $0x24] sm:$0xf]
        %v4859 = vld [vmem:[%s4848 + $0x28] sm:$0xf]
        %v4860 = vld [vmem:[%s4848 + $0x2c] sm:$0xf]
        %v4861 = vld [vmem:[%s4848 + $0x30] sm:$0xf]
        %v4862 = vld [vmem:[%s4848 + $0x34] sm:$0xf]
        %v4863 = vld [vmem:[%s4848 + $0x38] sm:$0xf]
        %v4864 = vld [vmem:[%s4848 + $0x3c] sm:$0xf]
        %v4865 = vpack.c.bf16 %v4847, %v4847
        %v4882 = vunpack.c.l.b16 %v4849
        %v4883 = vunpack.c.l.b16 %v4850
        %v4884 = vunpack.c.l.b16 %v4851
        %v4885 = vunpack.c.l.b16 %v4852
        %v4886 = vunpack.c.l.b16 %v4853
        %v4887 = vunpack.c.l.b16 %v4854
        %v4888 = vunpack.c.l.b16 %v4855
        %v4889 = vunpack.c.l.b16 %v4856
        %v4890 = vunpack.c.l.b16 %v4857
        %v4891 = vunpack.c.l.b16 %v4858
        %v4892 = vunpack.c.l.b16 %v4859
        %v4893 = vunpack.c.l.b16 %v4860
        %v4894 = vunpack.c.l.b16 %v4861
        %v4895 = vunpack.c.l.b16 %v4862
        %v4896 = vunpack.c.l.b16 %v4863
        %v4897 = vunpack.c.l.b16 %v4864
        %v4898 = vpack.c.b16 %v4883, %v4882
        %v4899 = vpack.c.b16 %v4885, %v4884
        %v4900 = vpack.c.b16 %v4887, %v4886
        %v4901 = vpack.c.b16 %v4889, %v4888
        %v4902 = vpack.c.b16 %v4891, %v4890
        %v4903 = vpack.c.b16 %v4893, %v4892
        %v4904 = vpack.c.b16 %v4895, %v4894
        %v4905 = vpack.c.b16 %v4897, %v4896
        %4914 = vmatprep.subr.bf16.mxu0 0
        %4915 = vmatpush1.bf16.msra.mxu0 %v4898
        %4916 = vmatprep.subr.bf16.mxu0 0
        %4917 = vmatpush1.bf16.msra.mxu0 %v4899
        %4918 = vmatprep.subr.bf16.mxu0 0
        %4919 = vmatpush1.bf16.msra.mxu0 %v4900
        %4920 = vmatprep.subr.bf16.mxu0 0
        %4921 = vmatpush1.bf16.msra.mxu0 %v4901
        %4922 = vmatprep.subr.bf16.mxu0 0
        %4923 = vmatpush1.bf16.msra.mxu0 %v4902
        %4924 = vmatprep.subr.bf16.mxu0 0
        %4925 = vmatpush1.bf16.msra.mxu0 %v4903
        %4926 = vmatprep.subr.bf16.mxu0 0
        %4927 = vmatpush1.bf16.msra.mxu0 %v4904
        %4928 = vmatprep.subr.bf16.mxu0 0
        %4929 = vmatpush1.bf16.msra.mxu0 %v4905
        %4930 = vmatprep.subr.bf16.mxu0 0
        %4931 = vmatpush1.bf16.msra.mxu0 0
        %4932 = vmatprep.subr.bf16.mxu0 0
        %4933 = vmatpush1.bf16.msra.mxu0 0
        %4934 = vmatprep.subr.bf16.mxu0 0
        %4935 = vmatpush1.bf16.msra.mxu0 0
        %4936 = vmatprep.subr.bf16.mxu0 0
        %4937 = vmatpush1.bf16.msra.mxu0 0
        %4938 = vmatprep.subr.bf16.mxu0 0
        %4939 = vmatpush1.bf16.msra.mxu0 0
        %4940 = vmatprep.subr.bf16.mxu0 0
        %4941 = vmatpush1.bf16.msra.mxu0 0
        %4942 = vmatprep.subr.bf16.mxu0 0
        %4943 = vmatpush1.bf16.msra.mxu0 0
        %4944 = vmatprep.subr.bf16.mxu0 0
        %4945 = vmatpush1.bf16.msra.mxu0 0
        %4946 = vmatprep.mubr.bf16.mxu0 0
        %4947 = vmatmul.mubr.bf16.gmra.mrb[0].mxu0 %v4865
        %v4948 = vpop.f32.mrb[0].mxu0
        %v4949 = vadd.f32 0.0, %v4948
        %v4950 = vpop.f32.mrb[0].mxu0
        %v4951 = vpop.f32.mrb[0].mxu0
        %v4952 = vpop.f32.mrb[0].mxu0
        %4953 = vdwg.mxu0
        %v4954 = vadd.f32 %v4777, %v4949
        %s4955 = scalar_lea.vmem [#allocation11], 1
        %v4956 = vld [vmem:[%s4955] sm:$0x1]
        %v4958 = vlaneseq
        %v4959 = vshrl.u32 %v4958, 7
        %v4960 = vsub.s32 0, %v4959
        %v4961 = vrot.slane %v4956, %v4960
        %v4963 = vadd.f32 %v4954, %v4961
        %v4964 = vsel %vm699, %v4963, 0.0
        %4965 = vadd.xlane.f32.xlu0 %v4964
        %v4966 = vpop.xlane.xlu0 %4965
        %v4967 = vmul.f32 %v4966, %v2097
        %v4968 = vsub.f32 %v4963, %v4967
        %v4969 = vmul.f32 %v4968, %v4968
        %v4970 = vsel %vm699, %v4969, 0.0
        %4971 = vadd.xlane.f32.xlu0 %v4970
        %v4972 = vpop.xlane.xlu0 %4971
        %v4973 = vmul.f32 %v4972, %v2097
        %v4974 = vadd.f32 %v4973, 1e-05
        %v4975 = vrsqrt.pop %v4974
        %v4976 = vmul.f32 %v4968, %v4975
        %s4977 = scalar_lea.vmem %s14, 5
        %v4978 = vld [vmem:[%s4977] sm:$0x1]
        %v4980 = vlaneseq
        %v4981 = vshrl.u32 %v4980, 7
        %v4982 = vsub.s32 0, %v4981
        %v4983 = vrot.slane %v4978, %v4982
        %v4985 = vmul.f32 %v4976, %v4983
        %s4986 = scalar_lea.vmem %s15, 5
        %v4987 = vld [vmem:[%s4986] sm:$0x1]
        %v4989 = vlaneseq
        %v4990 = vshrl.u32 %v4989, 7
        %v4991 = vsub.s32 0, %v4990
        %v4992 = vrot.slane %v4987, %v4991
        %v4994 = vadd.f32 %v4985, %v4992
        %v4995 = vld [vmem:[#allocation13] sm:$0xff]
        %v4996 = vld [vmem:[#allocation13 + $0x8] sm:$0xff]
        %v4997 = vld [vmem:[#allocation13 + $0x10] sm:$0xff]
        %v4998 = vld [vmem:[#allocation13 + $0x18] sm:$0xff]
        %v4999 = vld [vmem:[#allocation2] sm:$0x1]
        %v5001 = vlaneseq
        %v5002 = vshrl.u32 %v5001, 7
        %v5003 = vsub.s32 0, %v5002
        %v5004 = vrot.slane %v4999, %v5003
        %v5007 = vsel %vm699, %v4994, 0
        %5009 = vmatprep.subr.mxu0 0.0
        %5010 = vmatpush1.msra.mxu0 %v4995
        %5011 = vmatprep.subr.mxu0 0.0
        %5012 = vmatpush1.msra.mxu0 %v4996
        %5013 = vmatprep.subr.mxu0 0.0
        %5014 = vmatpush1.msra.mxu0 %v4997
        %5015 = vmatprep.subr.mxu0 0.0
        %5016 = vmatpush1.msra.mxu0 %v4998
        %5017 = vmatprep.subr.mxu0 0.0
        %5018 = vmatpush1.msra.mxu0 0.0
        %5019 = vmatprep.subr.mxu0 0.0
        %5020 = vmatpush1.msra.mxu0 0.0
        %5021 = vmatprep.subr.mxu0 0.0
        %5022 = vmatpush1.msra.mxu0 0.0
        %5023 = vmatprep.subr.mxu0 0.0
        %5024 = vmatpush1.msra.mxu0 0.0
        %5025 = vmatprep.subr.mxu0 0.0
        %5026 = vmatpush1.msra.mxu0 0.0
        %5027 = vmatprep.subr.mxu0 0.0
        %5028 = vmatpush1.msra.mxu0 0.0
        %5029 = vmatprep.subr.mxu0 0.0
        %5030 = vmatpush1.msra.mxu0 0.0
        %5031 = vmatprep.subr.mxu0 0.0
        %5032 = vmatpush1.msra.mxu0 0.0
        %5033 = vmatprep.subr.mxu0 0.0
        %5034 = vmatpush1.msra.mxu0 0.0
        %5035 = vmatprep.subr.mxu0 0.0
        %5036 = vmatpush1.msra.mxu0 0.0
        %5037 = vmatprep.subr.mxu0 0.0
        %5038 = vmatpush1.msra.mxu0 0.0
        %5039 = vmatprep.subr.mxu0 0.0
        %5040 = vmatpush1.msra.mxu0 0.0
        %5041 = vmatprep.subr.mxu0 0.0
        %5042 = vmatpush1.msra.mxu0 0.0
        %5043 = vmatprep.subr.mxu0 0.0
        %5044 = vmatpush1.msra.mxu0 0.0
        %5045 = vmatprep.subr.mxu0 0.0
        %5046 = vmatpush1.msra.mxu0 0.0
        %5047 = vmatprep.subr.mxu0 0.0
        %5048 = vmatpush1.msra.mxu0 0.0
        %5049 = vmatprep.subr.mxu0 0.0
        %5050 = vmatpush1.msra.mxu0 0.0
        %5051 = vmatprep.subr.mxu0 0.0
        %5052 = vmatpush1.msra.mxu0 0.0
        %5053 = vmatprep.subr.mxu0 0.0
        %5054 = vmatpush1.msra.mxu0 0.0
        %5055 = vmatprep.subr.mxu0 0.0
        %5056 = vmatpush1.msra.mxu0 0.0
        %5057 = vmatprep.subr.mxu0 0.0
        %5058 = vmatpush1.msra.mxu0 0.0
        %5059 = vmatprep.subr.mxu0 0.0
        %5060 = vmatpush1.msra.mxu0 0.0
        %5061 = vmatprep.subr.mxu0 0.0
        %5062 = vmatpush1.msra.mxu0 0.0
        %5063 = vmatprep.subr.mxu0 0.0
        %5064 = vmatpush1.msra.mxu0 0.0
        %5065 = vmatprep.subr.mxu0 0.0
        %5066 = vmatpush1.msra.mxu0 0.0
        %5067 = vmatprep.subr.mxu0 0.0
        %5068 = vmatpush1.msra.mxu0 0.0
        %5069 = vmatprep.subr.mxu0 0.0
        %5070 = vmatpush1.msra.mxu0 0.0
        %5071 = vmatprep.subr.mxu0 0.0
        %5072 = vmatpush1.msra.mxu0 0.0
        %5073 = vmatprep.mubr.f32.mxu0 0.0
        %5074 = vmatmul.mubr.f32.gmra.mrb[0].mxu0 %v5007
        %v5075 = vpop.f32.mrb[0].mxu0
        %v5076 = vadd.f32 %v5004, %v5075
        %v5077 = vpop.f32.mrb[0].mxu0
        %5078 = vdwg.mxu0
        %vm5079 = vcmask 7168
        %5080 = vst.msk [vmem:[%s671] sm:$0xff] %vm5079, %v5076
        %p5081 = scmp.lt.s32.totalorder %s35, 1
        %s5082 = scalar_select %p5081, %s35, 1
        %s5083 = smul.addr %s5082, 8
        %s5084 = scalar_lea.vmem %s18, %s5083
        // Predicated region
        $region121: #{_lambda_.3} parent=91 // pred_check
          %p5085 = pneg %p436
        $region122: #{_lambda_.3} parent=91 // pred_check_branch
          %5087 = sbr.rel (%p5085) target = $region124
        $region123: #{_lambda_.3} parent=91 // pred_region
          _
        $region124: #{_lambda_.3} parent=91 // pred_fallthru
          _
      $region92: #{_lambda_.3} parent=5 // pred_fallthru
        _
      %p5088 = scmp.le.s32.totalorder 2, %s30
      // Predicated region
      $region125: #{_lambda_.3} parent=5 // pred_check
        %p5089 = pneg %p5088
      $region126: #{_lambda_.3} parent=5 // pred_check_branch
        %5091 = sbr.rel (%p5089) target = $region128
      $region127: #{_lambda_.3} parent=5 // pred_region
        %s5092 = ssub.s32 %s30, 2
        // Predicated region
        $region129: #{_lambda_.3} parent=127 // pred_check
          %p5093 = pneg %p442
        $region130: #{_lambda_.3} parent=127 // pred_check_branch
          %5095 = sbr.rel (%p5093) target = $region132
        $region131: #{_lambda_.3} parent=127 // pred_region
          %p5096 = scmp.lt.s32.totalorder %s36, 1
          %s5097 = scalar_select %p5096, %s36, 1
          %s5098 = smul.addr %s5097, 8
          %s5099 = scalar_lea.vmem %s18, %s5098
        $region132: #{_lambda_.3} parent=127 // pred_fallthru
          _
      $region128: #{_lambda_.3} parent=5 // pred_fallthru
        _
    $region6: #{_lambda_.3} parent=1 // loop_footer
      %s34 = sadd.s32 1, %s30
    $region7: #{_lambda_.3} parent=1 // loop_footer_branch
      %29 = sbr.rel target = $region3
    $region8: #{_lambda_.3} parent=1 // loop_exit
      _
    %5100 = vsyncpa [#allocation4], 1
    %s5101 = scalar_lea.sflag [#allocation4], 1
    %5102 = vsyncpa %s5101, 1
    %5103 = vsyncpa [#allocation6], 1
    %5104 = vsyncpa [#allocation9], 1
    %5105 = vsyncpa [#allocation12], 1

</llo_original>
